<compile_context>
chip_gen: v7x
topology: tpu7x:2x2x1
jax: 0.10.0
libtpu: 0.0.40
codegen_flags: <defaults>
</compile_context>

<pallas_src>
import functools

import jax
import jax.numpy as jnp
from jax import lax
from jax.experimental import pallas as pl
from jax.experimental.pallas import tpu as pltpu

LEAKY_SLOPE = 0.2
BN_EPS = 1e-5


def _round_up(x, m):
    return (x + m - 1) // m * m


# ----------------------------------------------------------------------------
# Kernel 1: fused im2col-free gated conv + per-block BN partial statistics.
#   grid = (batch, output-row block); both axes parallel.
#   Per step: statically unrolled loop over tile_oh output rows; each row does
#   KH*KW accumulated MXU matmuls (2*C_p, C_in_p) @ (C_in_p, OW) in f32,
#   adds bias, applies LeakyReLU(0.2)*sigmoid gating, stores the NCHW-ordered
#   f32 row and accumulates sum / sum-of-squares for batch norm.
# ----------------------------------------------------------------------------
def gated_conv_kernel(x_ref, w_ref, b_ref, y_ref, psum_ref, psumsq_ref, *,
                      c_p, tile_oh, kh, kw, ow, stride):
    t = pl.program_id(1)
    row0 = t * (tile_oh * stride)

    # Input rows needed for this block of output rows (loaded once, reused for
    # every (row, kh) pair).  Dynamic index only on a leading (non-tiled) dim.
    n_rows = (tile_oh - 1) * stride + kh
    rows = [x_ref[0, row0 + r] for r in range(n_rows)]      # (c_in_p, w_pad) bf16

    bias = b_ref[...].astype(jnp.float32)                   # (2*c_p, 1)
    w_span = (ow - 1) * stride + 1

    s_acc = jnp.zeros((c_p, ow), jnp.float32)
    ss_acc = jnp.zeros((c_p, ow), jnp.float32)

    for r in range(tile_oh):
        acc = jnp.zeros((2 * c_p, ow), jnp.float32)
        for ikh in range(kh):
            row = rows[r * stride + ikh]                     # (c_in_p, w_pad)
            for ikw in range(kw):
                lhs = row[:, ikw:ikw + w_span:stride]        # (c_in_p, ow)
                acc = acc + jnp.dot(w_ref[ikh * kw + ikw], lhs,
                                    preferred_element_type=jnp.float32)
        acc = acc + bias                                     # broadcast over ow
        xp = acc[:c_p]                                       # conv half
        mp = acc[c_p:]                                       # mask half
        act = jnp.where(xp > 0, xp, LEAKY_SLOPE * xp)        # LeakyReLU(0.2)
        yrow = act * jax.nn.sigmoid(mp)                      # (c_p, ow) f32

        y_ref[0, :, r, :] = yrow                             # NCHW-ordered store
        s_acc = s_acc + yrow
        ss_acc = ss_acc + yrow * yrow

    psum_ref[0, 0] = s_acc
    psumsq_ref[0, 0] = ss_acc


# ----------------------------------------------------------------------------
# Kernel 2: batch-norm apply.  scale/shift are precomputed outside, so each
#           image is one fused multiply-add; output is already NCHW and
#           already sliced to the real C_out (no post-kernel transpose/slice).
# ----------------------------------------------------------------------------
def bn_apply_kernel(y_ref, scale_ref, shift_ref, out_ref, *, c_out):
    y = y_ref[0, :c_out]                                     # (c_out, OH, OW) f32
    out_ref[0] = y * scale_ref[...] + shift_ref[...]


# ----------------------------------------------------------------------------
# Host-side glue
# ----------------------------------------------------------------------------
def lesion_gate_conv(x, wx, bx, wm, bm, gamma, beta, *, stride=1, padding=0):
    """x: (N, C_in, H, W) NCHW f32, weights: (C_out, C_in, KH, KW) OIHW."""
    n, c_in, h, w = x.shape
    c_out, _, kh, kw = wx.shape
    oh = (h + 2 * padding - kh) // stride + 1
    ow = (w + 2 * padding - kw) // stride + 1
    h_pad, w_pad = h + 2 * padding, w + 2 * padding

    c_in_p = _round_up(c_in, 8)           # sublane-aligned contraction dim
    c_p = _round_up(c_out, 8)             # sublane-aligned channels (NOT 128)

    # Input: pad spatially, reorder to (N, H_pad, C_in_p, W_pad), cast bf16.
    # This is a 1x-sized restructure, not a KH*KW-inflated im2col copy.
    xs = jnp.pad(x, ((0, 0), (0, 0), (padding, padding), (padding, padding)))
    xr = jnp.transpose(xs, (0, 2, 1, 3))
    xr = jnp.pad(xr, ((0, 0), (0, 0), (0, c_in_p - c_in), (0, 0))
                 ).astype(jnp.bfloat16)

    def prep(wgt):                         # OIHW -> (KH*KW, c_p, c_in_p)
        tap = jnp.transpose(wgt, (2, 3, 0, 1)).reshape(kh * kw, c_out, c_in)
        return jnp.pad(tap, ((0, 0), (0, c_p - c_out), (0, c_in_p - c_in)))

    w_cat = jnp.concatenate([prep(wx), prep(wm)], axis=1).astype(jnp.bfloat16)
    b_cat = jnp.concatenate([jnp.pad(bx, (0, c_p - c_out)),
                             jnp.pad(bm, (0, c_p - c_out))]
                            ).reshape(2 * c_p, 1).astype(jnp.float32)

    # Output-row tiling: 8 rows per step when possible (sublane multiple),
    # otherwise a full-extent block (always legal).
    tile_oh = 8 if oh % 8 == 0 else oh
    n_ohb = oh // tile_oh

    kernel1 = functools.partial(gated_conv_kernel, c_p=c_p, tile_oh=tile_oh,
                                kh=kh, kw=kw, ow=ow, stride=stride)

    # --- pass 1: fused gated conv + per-block BN partial statistics ---
    y, psum, psumsq = pl.pallas_call(
        kernel1,
        out_shape=(
            jax.ShapeDtypeStruct((n, c_p, oh, ow), jnp.float32),
            jax.ShapeDtypeStruct((n, n_ohb, c_p, ow), jnp.float32),
            jax.ShapeDtypeStruct((n, n_ohb, c_p, ow), jnp.float32),
        ),
        grid_spec=pltpu.PrefetchScalarGridSpec(
            num_scalar_prefetch=0,
            grid=(n, n_ohb),
            in_specs=[
                pl.BlockSpec((1, h_pad, c_in_p, w_pad), lambda b, t: (b, 0, 0, 0)),
                pl.BlockSpec((kh * kw, 2 * c_p, c_in_p), lambda b, t: (0, 0, 0)),
                pl.BlockSpec((2 * c_p, 1), lambda b, t: (0, 0)),
            ],
            out_specs=[
                pl.BlockSpec((1, c_p, tile_oh, ow), lambda b, t: (b, 0, t, 0)),
                pl.BlockSpec((1, 1, c_p, ow), lambda b, t: (b, t, 0, 0)),
                pl.BlockSpec((1, 1, c_p, ow), lambda b, t: (b, t, 0, 0)),
            ],
        ),
        compiler_params=pltpu.CompilerParams(
            dimension_semantics=("parallel", "parallel")),
    )(xr, w_cat, b_cat)

    # --- tiny cross-block reduction + BN scale/shift precompute (plain JAX) ---
    count = float(n * oh * ow)
    s = jnp.sum(psum, axis=(0, 1, 3))[:c_out]
    ssq = jnp.sum(psumsq, axis=(0, 1, 3))[:c_out]
    mean = s / count
    var = jnp.maximum(ssq / count - mean * mean, 0.0)         # biased variance
    scale = gamma * lax.rsqrt(var + BN_EPS)                   # (c_out,)
    shift = beta - mean * scale
    scale3 = scale.reshape(c_out, 1, 1).astype(jnp.float32)
    shift3 = shift.reshape(c_out, 1, 1).astype(jnp.float32)

    # --- pass 2: BN apply, emits the final NCHW output directly ---
    kernel2 = functools.partial(bn_apply_kernel, c_out=c_out)
    out = pl.pallas_call(
        kernel2,
        out_shape=jax.ShapeDtypeStruct((n, c_out, oh, ow), jnp.float32),
        grid_spec=pltpu.PrefetchScalarGridSpec(
            num_scalar_prefetch=0,
            grid=(n,),
            in_specs=[
                pl.BlockSpec((1, c_p, oh, ow), lambda b: (b, 0, 0, 0)),
                pl.BlockSpec((c_out, 1, 1), lambda b: (0, 0, 0)),
                pl.BlockSpec((c_out, 1, 1), lambda b: (0, 0, 0)),
            ],
            out_specs=pl.BlockSpec((1, c_out, oh, ow), lambda b: (b, 0, 0, 0)),
        ),
        compiler_params=pltpu.CompilerParams(
            dimension_semantics=("parallel",)),
    )(y, scale3, shift3)
    return out


# ----------------------------------------------------------------------------
# Pure-JAX f32 reference (for in-script correctness check)
# ----------------------------------------------------------------------------
def reference(x, wx, bx, wm, bm, gamma, beta, *, stride=1, padding=0):
    conv = functools.partial(
        lax.conv_general_dilated,
        window_strides=(stride, stride),
        padding=[(padding, padding), (padding, padding)],
        dimension_numbers=("NCHW", "OIHW", "NCHW"),
        precision=lax.Precision.HIGHEST)
    xc = conv(x, wx) + bx[None, :, None, None]
    mc = conv(x, wm) + bm[None, :, None, None]
    y = jnp.where(xc > 0, xc, LEAKY_SLOPE * xc) * jax.nn.sigmoid(mc)
    mean = jnp.mean(y, axis=(0, 2, 3), keepdims=True)
    var = jnp.mean((y - mean) ** 2, axis=(0, 2, 3), keepdims=True)
    return ((y - mean) * lax.rsqrt(var + BN_EPS)
            * gamma[None, :, None, None] + beta[None, :, None, None])


if __name__ == "__main__":
    # Small shapes: N=2, C_in=4, H=W=16, C_out=8, 3x3 conv, stride=1, pad=1.
    N, C_IN, H, W = 2, 4, 16, 16
    C_OUT, KH, KW = 8, 3, 3
    STRIDE, PAD = 1, 1

    key = jax.random.PRNGKey(0)
    k = jax.random.split(key, 8)
    fan_in = C_IN * KH * KW
    bound = 1.0 / (fan_in ** 0.5)

    x = jax.random.normal(k[0], (N, C_IN, H, W), jnp.float32)
    wx = jax.random.uniform(k[1], (C_OUT, C_IN, KH, KW), jnp.float32, -bound, bound)
    bx = jax.random.uniform(k[2], (C_OUT,), jnp.float32, -bound, bound)
    wm = jax.random.uniform(k[3], (C_OUT, C_IN, KH, KW), jnp.float32, -bound, bound)
    bm = jax.random.uniform(k[4], (C_OUT,), jnp.float32, -bound, bound)
    gamma = 1.0 + 0.1 * jax.random.normal(k[5], (C_OUT,), jnp.float32)
    beta = 0.1 * jax.random.normal(k[6], (C_OUT,), jnp.float32)

    out = lesion_gate_conv(x, wx, bx, wm, bm, gamma, beta,
                           stride=STRIDE, padding=PAD)
    out = jax.block_until_ready(out)

    ref = reference(x, wx, bx, wm, bm, gamma, beta, stride=STRIDE, padding=PAD)
    assert out.shape == (N, C_OUT, H, W)
    # Tolerance sized for bf16 MXU operands vs f32 HIGHEST reference, amplified
    # by the batch-norm 1/std rescaling (y std ~0.2).
    max_err = float(jnp.max(jnp.abs(out - ref)))
    assert jnp.allclose(out, ref, atol=8e-2, rtol=8e-2), max_err

    print("KERNEL_OK")
</pallas_src>

<mosaic_0001>
module attributes {stable_mosaic.version = 11 : i64} {
  func.func @gated_conv_kernel(%arg0: i32, %arg1: i32, %arg2: memref<1x18x8x18xbf16, #tpu.memory_space<vmem>>, %arg3: memref<9x16x8xbf16, #tpu.memory_space<vmem>>, %arg4: memref<16x1xf32, #tpu.memory_space<vmem>>, %arg5: memref<1x8x8x16xf32, #tpu.memory_space<vmem>>, %arg6: memref<1x1x8x16xf32, #tpu.memory_space<vmem>>, %arg7: memref<1x1x8x16xf32, #tpu.memory_space<vmem>>) attributes {dimension_semantics = [#tpu.dimension_semantics<parallel>, #tpu.dimension_semantics<parallel>], iteration_bounds = array<i64: 2, 2>, scalar_prefetch = 0 : i64, scratch_operands = 0 : i64, tpu.core_type = #tpu.core_type<tc>, window_params = [{transform_indices = @transform_0, window_bounds = array<i64: 1, 18, 8, 18>}, {pipeline_mode = #tpu.pipeline_mode<synchronous>, transform_indices = @transform_1, window_bounds = array<i64: 9, 16, 8>}, {pipeline_mode = #tpu.pipeline_mode<synchronous>, transform_indices = @transform_2, window_bounds = array<i64: 16, 1>}, {transform_indices = @transform_3, window_bounds = array<i64: 1, 8, 8, 16>}, {transform_indices = @transform_4, window_bounds = array<i64: 1, 1, 8, 16>}, {transform_indices = @transform_5, window_bounds = array<i64: 1, 1, 8, 16>}]} {
    %c8_i32 = arith.constant 8 : i32
    %0 = arith.muli %arg1, %c8_i32 : i32
    %c0_i32 = arith.constant 0 : i32
    %1 = arith.addi %0, %c0_i32 : i32
    %c0 = arith.constant 0 : index
    %2 = arith.index_cast %1 : i32 to index
    %c0_0 = arith.constant 0 : index
    %c0_1 = arith.constant 0 : index
    %3 = vector.load %arg2[%c0, %2, %c0_0, %c0_1] : memref<1x18x8x18xbf16, #tpu.memory_space<vmem>>, vector<1x1x8x18xbf16>
    %4 = vector.shape_cast %3 : vector<1x1x8x18xbf16> to vector<8x18xbf16>
    %c1_i32 = arith.constant 1 : i32
    %5 = arith.addi %0, %c1_i32 : i32
    %c0_2 = arith.constant 0 : index
    %6 = arith.index_cast %5 : i32 to index
    %c0_3 = arith.constant 0 : index
    %c0_4 = arith.constant 0 : index
    %7 = vector.load %arg2[%c0_2, %6, %c0_3, %c0_4] : memref<1x18x8x18xbf16, #tpu.memory_space<vmem>>, vector<1x1x8x18xbf16>
    %8 = vector.shape_cast %7 : vector<1x1x8x18xbf16> to vector<8x18xbf16>
    %c2_i32 = arith.constant 2 : i32
    %9 = arith.addi %0, %c2_i32 : i32
    %c0_5 = arith.constant 0 : index
    %10 = arith.index_cast %9 : i32 to index
    %c0_6 = arith.constant 0 : index
    %c0_7 = arith.constant 0 : index
    %11 = vector.load %arg2[%c0_5, %10, %c0_6, %c0_7] : memref<1x18x8x18xbf16, #tpu.memory_space<vmem>>, vector<1x1x8x18xbf16>
    %12 = vector.shape_cast %11 : vector<1x1x8x18xbf16> to vector<8x18xbf16>
    %c3_i32 = arith.constant 3 : i32
    %13 = arith.addi %0, %c3_i32 : i32
    %c0_8 = arith.constant 0 : index
    %14 = arith.index_cast %13 : i32 to index
    %c0_9 = arith.constant 0 : index
    %c0_10 = arith.constant 0 : index
    %15 = vector.load %arg2[%c0_8, %14, %c0_9, %c0_10] : memref<1x18x8x18xbf16, #tpu.memory_space<vmem>>, vector<1x1x8x18xbf16>
    %16 = vector.shape_cast %15 : vector<1x1x8x18xbf16> to vector<8x18xbf16>
    %c4_i32 = arith.constant 4 : i32
    %17 = arith.addi %0, %c4_i32 : i32
    %c0_11 = arith.constant 0 : index
    %18 = arith.index_cast %17 : i32 to index
    %c0_12 = arith.constant 0 : index
    %c0_13 = arith.constant 0 : index
    %19 = vector.load %arg2[%c0_11, %18, %c0_12, %c0_13] : memref<1x18x8x18xbf16, #tpu.memory_space<vmem>>, vector<1x1x8x18xbf16>
    %20 = vector.shape_cast %19 : vector<1x1x8x18xbf16> to vector<8x18xbf16>
    %c5_i32 = arith.constant 5 : i32
    %21 = arith.addi %0, %c5_i32 : i32
    %c0_14 = arith.constant 0 : index
    %22 = arith.index_cast %21 : i32 to index
    %c0_15 = arith.constant 0 : index
    %c0_16 = arith.constant 0 : index
    %23 = vector.load %arg2[%c0_14, %22, %c0_15, %c0_16] : memref<1x18x8x18xbf16, #tpu.memory_space<vmem>>, vector<1x1x8x18xbf16>
    %24 = vector.shape_cast %23 : vector<1x1x8x18xbf16> to vector<8x18xbf16>
    %c6_i32 = arith.constant 6 : i32
    %25 = arith.addi %0, %c6_i32 : i32
    %c0_17 = arith.constant 0 : index
    %26 = arith.index_cast %25 : i32 to index
    %c0_18 = arith.constant 0 : index
    %c0_19 = arith.constant 0 : index
    %27 = vector.load %arg2[%c0_17, %26, %c0_18, %c0_19] : memref<1x18x8x18xbf16, #tpu.memory_space<vmem>>, vector<1x1x8x18xbf16>
    %28 = vector.shape_cast %27 : vector<1x1x8x18xbf16> to vector<8x18xbf16>
    %c7_i32 = arith.constant 7 : i32
    %29 = arith.addi %0, %c7_i32 : i32
    %c0_20 = arith.constant 0 : index
    %30 = arith.index_cast %29 : i32 to index
    %c0_21 = arith.constant 0 : index
    %c0_22 = arith.constant 0 : index
    %31 = vector.load %arg2[%c0_20, %30, %c0_21, %c0_22] : memref<1x18x8x18xbf16, #tpu.memory_space<vmem>>, vector<1x1x8x18xbf16>
    %32 = vector.shape_cast %31 : vector<1x1x8x18xbf16> to vector<8x18xbf16>
    %c8_i32_23 = arith.constant 8 : i32
    %33 = arith.addi %0, %c8_i32_23 : i32
    %c0_24 = arith.constant 0 : index
    %34 = arith.index_cast %33 : i32 to index
    %c0_25 = arith.constant 0 : index
    %c0_26 = arith.constant 0 : index
    %35 = vector.load %arg2[%c0_24, %34, %c0_25, %c0_26] : memref<1x18x8x18xbf16, #tpu.memory_space<vmem>>, vector<1x1x8x18xbf16>
    %36 = vector.shape_cast %35 : vector<1x1x8x18xbf16> to vector<8x18xbf16>
    %c9_i32 = arith.constant 9 : i32
    %37 = arith.addi %0, %c9_i32 : i32
    %c0_27 = arith.constant 0 : index
    %38 = arith.index_cast %37 : i32 to index
    %c0_28 = arith.constant 0 : index
    %c0_29 = arith.constant 0 : index
    %39 = vector.load %arg2[%c0_27, %38, %c0_28, %c0_29] : memref<1x18x8x18xbf16, #tpu.memory_space<vmem>>, vector<1x1x8x18xbf16>
    %40 = vector.shape_cast %39 : vector<1x1x8x18xbf16> to vector<8x18xbf16>
    %c0_30 = arith.constant 0 : index
    %c0_31 = arith.constant 0 : index
    %41 = vector.load %arg4[%c0_30, %c0_31] : memref<16x1xf32, #tpu.memory_space<vmem>>, vector<16x1xf32>
    %cst = arith.constant 0.000000e+00 : f32
    %42 = vector.broadcast %cst : f32 to vector<8x16xf32>
    %cst_32 = arith.constant 0.000000e+00 : f32
    %43 = vector.broadcast %cst_32 : f32 to vector<8x16xf32>
    %cst_33 = arith.constant 0.000000e+00 : f32
    %44 = vector.broadcast %cst_33 : f32 to vector<16x16xf32>
    %45 = vector.extract_strided_slice %4 {offsets = [0, 0], sizes = [8, 16], strides = [1, 1]} : vector<8x18xbf16> to vector<8x16xbf16>
    %c0_34 = arith.constant 0 : index
    %c0_35 = arith.constant 0 : index
    %c0_36 = arith.constant 0 : index
    %46 = vector.load %arg3[%c0_34, %c0_35, %c0_36] : memref<9x16x8xbf16, #tpu.memory_space<vmem>>, vector<1x16x8xbf16>
    %47 = vector.shape_cast %46 : vector<1x16x8xbf16> to vector<16x8xbf16>
    %cst_37 = arith.constant dense<0.000000e+00> : vector<16x16xf32>
    %48 = tpu.matmul %47, %45, %cst_37 {dimension_numbers = #tpu.dot_dimension_numbers<[1], [0], [0], [1], [0, 0, 1, 1], [], []>} : vector<16x8xbf16>, vector<8x16xbf16>, vector<16x16xf32> -> vector<16x16xf32>
    %49 = arith.addf %44, %48 : vector<16x16xf32>
    %50 = vector.extract_strided_slice %4 {offsets = [0, 1], sizes = [8, 16], strides = [1, 1]} : vector<8x18xbf16> to vector<8x16xbf16>
    %c1 = arith.constant 1 : index
    %c0_38 = arith.constant 0 : index
    %c0_39 = arith.constant 0 : index
    %51 = vector.load %arg3[%c1, %c0_38, %c0_39] : memref<9x16x8xbf16, #tpu.memory_space<vmem>>, vector<1x16x8xbf16>
    %52 = vector.shape_cast %51 : vector<1x16x8xbf16> to vector<16x8xbf16>
    %cst_40 = arith.constant dense<0.000000e+00> : vector<16x16xf32>
    %53 = tpu.matmul %52, %50, %cst_40 {dimension_numbers = #tpu.dot_dimension_numbers<[1], [0], [0], [1], [0, 0, 1, 1], [], []>} : vector<16x8xbf16>, vector<8x16xbf16>, vector<16x16xf32> -> vector<16x16xf32>
    %54 = arith.addf %49, %53 : vector<16x16xf32>
    %55 = vector.extract_strided_slice %4 {offsets = [0, 2], sizes = [8, 16], strides = [1, 1]} : vector<8x18xbf16> to vector<8x16xbf16>
    %c2 = arith.constant 2 : index
    %c0_41 = arith.constant 0 : index
    %c0_42 = arith.constant 0 : index
    %56 = vector.load %arg3[%c2, %c0_41, %c0_42] : memref<9x16x8xbf16, #tpu.memory_space<vmem>>, vector<1x16x8xbf16>
    %57 = vector.shape_cast %56 : vector<1x16x8xbf16> to vector<16x8xbf16>
    %cst_43 = arith.constant dense<0.000000e+00> : vector<16x16xf32>
    %58 = tpu.matmul %57, %55, %cst_43 {dimension_numbers = #tpu.dot_dimension_numbers<[1], [0], [0], [1], [0, 0, 1, 1], [], []>} : vector<16x8xbf16>, vector<8x16xbf16>, vector<16x16xf32> -> vector<16x16xf32>
    %59 = arith.addf %54, %58 : vector<16x16xf32>
    %60 = vector.extract_strided_slice %8 {offsets = [0, 0], sizes = [8, 16], strides = [1, 1]} : vector<8x18xbf16> to vector<8x16xbf16>
    %c3 = arith.constant 3 : index
    %c0_44 = arith.constant 0 : index
    %c0_45 = arith.constant 0 : index
    %61 = vector.load %arg3[%c3, %c0_44, %c0_45] : memref<9x16x8xbf16, #tpu.memory_space<vmem>>, vector<1x16x8xbf16>
    %62 = vector.shape_cast %61 : vector<1x16x8xbf16> to vector<16x8xbf16>
    %cst_46 = arith.constant dense<0.000000e+00> : vector<16x16xf32>
    %63 = tpu.matmul %62, %60, %cst_46 {dimension_numbers = #tpu.dot_dimension_numbers<[1], [0], [0], [1], [0, 0, 1, 1], [], []>} : vector<16x8xbf16>, vector<8x16xbf16>, vector<16x16xf32> -> vector<16x16xf32>
    %64 = arith.addf %59, %63 : vector<16x16xf32>
    %65 = vector.extract_strided_slice %8 {offsets = [0, 1], sizes = [8, 16], strides = [1, 1]} : vector<8x18xbf16> to vector<8x16xbf16>
    %c4 = arith.constant 4 : index
    %c0_47 = arith.constant 0 : index
    %c0_48 = arith.constant 0 : index
    %66 = vector.load %arg3[%c4, %c0_47, %c0_48] : memref<9x16x8xbf16, #tpu.memory_space<vmem>>, vector<1x16x8xbf16>
    %67 = vector.shape_cast %66 : vector<1x16x8xbf16> to vector<16x8xbf16>
    %cst_49 = arith.constant dense<0.000000e+00> : vector<16x16xf32>
    %68 = tpu.matmul %67, %65, %cst_49 {dimension_numbers = #tpu.dot_dimension_numbers<[1], [0], [0], [1], [0, 0, 1, 1], [], []>} : vector<16x8xbf16>, vector<8x16xbf16>, vector<16x16xf32> -> vector<16x16xf32>
    %69 = arith.addf %64, %68 : vector<16x16xf32>
    %70 = vector.extract_strided_slice %8 {offsets = [0, 2], sizes = [8, 16], strides = [1, 1]} : vector<8x18xbf16> to vector<8x16xbf16>
    %c5 = arith.constant 5 : index
    %c0_50 = arith.constant 0 : index
    %c0_51 = arith.constant 0 : index
    %71 = vector.load %arg3[%c5, %c0_50, %c0_51] : memref<9x16x8xbf16, #tpu.memory_space<vmem>>, vector<1x16x8xbf16>
    %72 = vector.shape_cast %71 : vector<1x16x8xbf16> to vector<16x8xbf16>
    %cst_52 = arith.constant dense<0.000000e+00> : vector<16x16xf32>
    %73 = tpu.matmul %72, %70, %cst_52 {dimension_numbers = #tpu.dot_dimension_numbers<[1], [0], [0], [1], [0, 0, 1, 1], [], []>} : vector<16x8xbf16>, vector<8x16xbf16>, vector<16x16xf32> -> vector<16x16xf32>
    %74 = arith.addf %69, %73 : vector<16x16xf32>
    %75 = vector.extract_strided_slice %12 {offsets = [0, 0], sizes = [8, 16], strides = [1, 1]} : vector<8x18xbf16> to vector<8x16xbf16>
    %c6 = arith.constant 6 : index
    %c0_53 = arith.constant 0 : index
    %c0_54 = arith.constant 0 : index
    %76 = vector.load %arg3[%c6, %c0_53, %c0_54] : memref<9x16x8xbf16, #tpu.memory_space<vmem>>, vector<1x16x8xbf16>
    %77 = vector.shape_cast %76 : vector<1x16x8xbf16> to vector<16x8xbf16>
    %cst_55 = arith.constant dense<0.000000e+00> : vector<16x16xf32>
    %78 = tpu.matmul %77, %75, %cst_55 {dimension_numbers = #tpu.dot_dimension_numbers<[1], [0], [0], [1], [0, 0, 1, 1], [], []>} : vector<16x8xbf16>, vector<8x16xbf16>, vector<16x16xf32> -> vector<16x16xf32>
    %79 = arith.addf %74, %78 : vector<16x16xf32>
    %80 = vector.extract_strided_slice %12 {offsets = [0, 1], sizes = [8, 16], strides = [1, 1]} : vector<8x18xbf16> to vector<8x16xbf16>
    %c7 = arith.constant 7 : index
    %c0_56 = arith.constant 0 : index
    %c0_57 = arith.constant 0 : index
    %81 = vector.load %arg3[%c7, %c0_56, %c0_57] : memref<9x16x8xbf16, #tpu.memory_space<vmem>>, vector<1x16x8xbf16>
    %82 = vector.shape_cast %81 : vector<1x16x8xbf16> to vector<16x8xbf16>
    %cst_58 = arith.constant dense<0.000000e+00> : vector<16x16xf32>
    %83 = tpu.matmul %82, %80, %cst_58 {dimension_numbers = #tpu.dot_dimension_numbers<[1], [0], [0], [1], [0, 0, 1, 1], [], []>} : vector<16x8xbf16>, vector<8x16xbf16>, vector<16x16xf32> -> vector<16x16xf32>
    %84 = arith.addf %79, %83 : vector<16x16xf32>
    %85 = vector.extract_strided_slice %12 {offsets = [0, 2], sizes = [8, 16], strides = [1, 1]} : vector<8x18xbf16> to vector<8x16xbf16>
    %c8 = arith.constant 8 : index
    %c0_59 = arith.constant 0 : index
    %c0_60 = arith.constant 0 : index
    %86 = vector.load %arg3[%c8, %c0_59, %c0_60] : memref<9x16x8xbf16, #tpu.memory_space<vmem>>, vector<1x16x8xbf16>
    %87 = vector.shape_cast %86 : vector<1x16x8xbf16> to vector<16x8xbf16>
    %cst_61 = arith.constant dense<0.000000e+00> : vector<16x16xf32>
    %88 = tpu.matmul %87, %85, %cst_61 {dimension_numbers = #tpu.dot_dimension_numbers<[1], [0], [0], [1], [0, 0, 1, 1], [], []>} : vector<16x8xbf16>, vector<8x16xbf16>, vector<16x16xf32> -> vector<16x16xf32>
    %89 = arith.addf %84, %88 : vector<16x16xf32>
    %90 = vector.broadcast %41 : vector<16x1xf32> to vector<16x16xf32>
    %91 = arith.addf %89, %90 : vector<16x16xf32>
    %92 = vector.extract_strided_slice %91 {offsets = [0, 0], sizes = [8, 16], strides = [1, 1]} : vector<16x16xf32> to vector<8x16xf32>
    %93 = vector.extract_strided_slice %91 {offsets = [8, 0], sizes = [8, 16], strides = [1, 1]} : vector<16x16xf32> to vector<8x16xf32>
    %cst_62 = arith.constant 0.000000e+00 : f32
    %94 = vector.broadcast %cst_62 : f32 to vector<8x16xf32>
    %95 = arith.cmpf ogt, %92, %94 : vector<8x16xf32>
    %cst_63 = arith.constant 2.000000e-01 : f32
    %96 = vector.broadcast %cst_63 : f32 to vector<8x16xf32>
    %97 = arith.mulf %96, %92 : vector<8x16xf32>
    %98 = arith.select %95, %92, %97 : vector<8x16xi1>, vector<8x16xf32>
    %99 = arith.negf %93 : vector<8x16xf32>
    %100 = math.exp %99 : vector<8x16xf32>
    %cst_64 = arith.constant 1.000000e+00 : f32
    %101 = vector.broadcast %cst_64 : f32 to vector<8x16xf32>
    %102 = arith.addf %101, %100 : vector<8x16xf32>
    %103 = arith.divf %101, %102 : vector<8x16xf32>
    %104 = arith.mulf %98, %103 : vector<8x16xf32>
    %c0_65 = arith.constant 0 : index
    %c0_66 = arith.constant 0 : index
    %c0_67 = arith.constant 0 : index
    %c0_68 = arith.constant 0 : index
    %105 = vector.load %arg5[%c0_65, %c0_66, %c0_67, %c0_68] : memref<1x8x8x16xf32, #tpu.memory_space<vmem>>, vector<1x8x1x16xf32>
    %106 = vector.shape_cast %105 : vector<1x8x1x16xf32> to vector<8x16xf32>
    %107 = vector.shape_cast %104 : vector<8x16xf32> to vector<1x8x1x16xf32>
    tpu.vector_store %arg5[%c0_65, %c0_66, %c0_67, %c0_68], %107 {strides = array<i32>} : memref<1x8x8x16xf32, #tpu.memory_space<vmem>>, vector<1x8x1x16xf32>,
    %108 = arith.addf %42, %104 : vector<8x16xf32>
    %109 = arith.mulf %104, %104 : vector<8x16xf32>
    %110 = arith.addf %43, %109 : vector<8x16xf32>
    %cst_69 = arith.constant 0.000000e+00 : f32
    %111 = vector.broadcast %cst_69 : f32 to vector<16x16xf32>
    %112 = vector.extract_strided_slice %8 {offsets = [0, 0], sizes = [8, 16], strides = [1, 1]} : vector<8x18xbf16> to vector<8x16xbf16>
    %c0_70 = arith.constant 0 : index
    %c0_71 = arith.constant 0 : index
    %c0_72 = arith.constant 0 : index
    %113 = vector.load %arg3[%c0_70, %c0_71, %c0_72] : memref<9x16x8xbf16, #tpu.memory_space<vmem>>, vector<1x16x8xbf16>
    %114 = vector.shape_cast %113 : vector<1x16x8xbf16> to vector<16x8xbf16>
    %cst_73 = arith.constant dense<0.000000e+00> : vector<16x16xf32>
    %115 = tpu.matmul %114, %112, %cst_73 {dimension_numbers = #tpu.dot_dimension_numbers<[1], [0], [0], [1], [0, 0, 1, 1], [], []>} : vector<16x8xbf16>, vector<8x16xbf16>, vector<16x16xf32> -> vector<16x16xf32>
    %116 = arith.addf %111, %115 : vector<16x16xf32>
    %117 = vector.extract_strided_slice %8 {offsets = [0, 1], sizes = [8, 16], strides = [1, 1]} : vector<8x18xbf16> to vector<8x16xbf16>
    %c1_74 = arith.constant 1 : index
    %c0_75 = arith.constant 0 : index
    %c0_76 = arith.constant 0 : index
    %118 = vector.load %arg3[%c1_74, %c0_75, %c0_76] : memref<9x16x8xbf16, #tpu.memory_space<vmem>>, vector<1x16x8xbf16>
    %119 = vector.shape_cast %118 : vector<1x16x8xbf16> to vector<16x8xbf16>
    %cst_77 = arith.constant dense<0.000000e+00> : vector<16x16xf32>
    %120 = tpu.matmul %119, %117, %cst_77 {dimension_numbers = #tpu.dot_dimension_numbers<[1], [0], [0], [1], [0, 0, 1, 1], [], []>} : vector<16x8xbf16>, vector<8x16xbf16>, vector<16x16xf32> -> vector<16x16xf32>
    %121 = arith.addf %116, %120 : vector<16x16xf32>
    %122 = vector.extract_strided_slice %8 {offsets = [0, 2], sizes = [8, 16], strides = [1, 1]} : vector<8x18xbf16> to vector<8x16xbf16>
    %c2_78 = arith.constant 2 : index
    %c0_79 = arith.constant 0 : index
    %c0_80 = arith.constant 0 : index
    %123 = vector.load %arg3[%c2_78, %c0_79, %c0_80] : memref<9x16x8xbf16, #tpu.memory_space<vmem>>, vector<1x16x8xbf16>
    %124 = vector.shape_cast %123 : vector<1x16x8xbf16> to vector<16x8xbf16>
    %cst_81 = arith.constant dense<0.000000e+00> : vector<16x16xf32>
    %125 = tpu.matmul %124, %122, %cst_81 {dimension_numbers = #tpu.dot_dimension_numbers<[1], [0], [0], [1], [0, 0, 1, 1], [], []>} : vector<16x8xbf16>, vector<8x16xbf16>, vector<16x16xf32> -> vector<16x16xf32>
    %126 = arith.addf %121, %125 : vector<16x16xf32>
    %127 = vector.extract_strided_slice %12 {offsets = [0, 0], sizes = [8, 16], strides = [1, 1]} : vector<8x18xbf16> to vector<8x16xbf16>
    %c3_82 = arith.constant 3 : index
    %c0_83 = arith.constant 0 : index
    %c0_84 = arith.constant 0 : index
    %128 = vector.load %arg3[%c3_82, %c0_83, %c0_84] : memref<9x16x8xbf16, #tpu.memory_space<vmem>>, vector<1x16x8xbf16>
    %129 = vector.shape_cast %128 : vector<1x16x8xbf16> to vector<16x8xbf16>
    %cst_85 = arith.constant dense<0.000000e+00> : vector<16x16xf32>
    %130 = tpu.matmul %129, %127, %cst_85 {dimension_numbers = #tpu.dot_dimension_numbers<[1], [0], [0], [1], [0, 0, 1, 1], [], []>} : vector<16x8xbf16>, vector<8x16xbf16>, vector<16x16xf32> -> vector<16x16xf32>
    %131 = arith.addf %126, %130 : vector<16x16xf32>
    %132 = vector.extract_strided_slice %12 {offsets = [0, 1], sizes = [8, 16], strides = [1, 1]} : vector<8x18xbf16> to vector<8x16xbf16>
    %c4_86 = arith.constant 4 : index
    %c0_87 = arith.constant 0 : index
    %c0_88 = arith.constant 0 : index
    %133 = vector.load %arg3[%c4_86, %c0_87, %c0_88] : memref<9x16x8xbf16, #tpu.memory_space<vmem>>, vector<1x16x8xbf16>
    %134 = vector.shape_cast %133 : vector<1x16x8xbf16> to vector<16x8xbf16>
    %cst_89 = arith.constant dense<0.000000e+00> : vector<16x16xf32>
    %135 = tpu.matmul %134, %132, %cst_89 {dimension_numbers = #tpu.dot_dimension_numbers<[1], [0], [0], [1], [0, 0, 1, 1], [], []>} : vector<16x8xbf16>, vector<8x16xbf16>, vector<16x16xf32> -> vector<16x16xf32>
    %136 = arith.addf %131, %135 : vector<16x16xf32>
    %137 = vector.extract_strided_slice %12 {offsets = [0, 2], sizes = [8, 16], strides = [1, 1]} : vector<8x18xbf16> to vector<8x16xbf16>
    %c5_90 = arith.constant 5 : index
    %c0_91 = arith.constant 0 : index
    %c0_92 = arith.constant 0 : index
    %138 = vector.load %arg3[%c5_90, %c0_91, %c0_92] : memref<9x16x8xbf16, #tpu.memory_space<vmem>>, vector<1x16x8xbf16>
    %139 = vector.shape_cast %138 : vector<1x16x8xbf16> to vector<16x8xbf16>
    %cst_93 = arith.constant dense<0.000000e+00> : vector<16x16xf32>
    %140 = tpu.matmul %139, %137, %cst_93 {dimension_numbers = #tpu.dot_dimension_numbers<[1], [0], [0], [1], [0, 0, 1, 1], [], []>} : vector<16x8xbf16>, vector<8x16xbf16>, vector<16x16xf32> -> vector<16x16xf32>
    %141 = arith.addf %136, %140 : vector<16x16xf32>
    %142 = vector.extract_strided_slice %16 {offsets = [0, 0], sizes = [8, 16], strides = [1, 1]} : vector<8x18xbf16> to vector<8x16xbf16>
    %c6_94 = arith.constant 6 : index
    %c0_95 = arith.constant 0 : index
    %c0_96 = arith.constant 0 : index
    %143 = vector.load %arg3[%c6_94, %c0_95, %c0_96] : memref<9x16x8xbf16, #tpu.memory_space<vmem>>, vector<1x16x8xbf16>
    %144 = vector.shape_cast %143 : vector<1x16x8xbf16> to vector<16x8xbf16>
    %cst_97 = arith.constant dense<0.000000e+00> : vector<16x16xf32>
    %145 = tpu.matmul %144, %142, %cst_97 {dimension_numbers = #tpu.dot_dimension_numbers<[1], [0], [0], [1], [0, 0, 1, 1], [], []>} : vector<16x8xbf16>, vector<8x16xbf16>, vector<16x16xf32> -> vector<16x16xf32>
    %146 = arith.addf %141, %145 : vector<16x16xf32>
    %147 = vector.extract_strided_slice %16 {offsets = [0, 1], sizes = [8, 16], strides = [1, 1]} : vector<8x18xbf16> to vector<8x16xbf16>
    %c7_98 = arith.constant 7 : index
    %c0_99 = arith.constant 0 : index
    %c0_100 = arith.constant 0 : index
    %148 = vector.load %arg3[%c7_98, %c0_99, %c0_100] : memref<9x16x8xbf16, #tpu.memory_space<vmem>>, vector<1x16x8xbf16>
    %149 = vector.shape_cast %148 : vector<1x16x8xbf16> to vector<16x8xbf16>
    %cst_101 = arith.constant dense<0.000000e+00> : vector<16x16xf32>
    %150 = tpu.matmul %149, %147, %cst_101 {dimension_numbers = #tpu.dot_dimension_numbers<[1], [0], [0], [1], [0, 0, 1, 1], [], []>} : vector<16x8xbf16>, vector<8x16xbf16>, vector<16x16xf32> -> vector<16x16xf32>
    %151 = arith.addf %146, %150 : vector<16x16xf32>
    %152 = vector.extract_strided_slice %16 {offsets = [0, 2], sizes = [8, 16], strides = [1, 1]} : vector<8x18xbf16> to vector<8x16xbf16>
    %c8_102 = arith.constant 8 : index
    %c0_103 = arith.constant 0 : index
    %c0_104 = arith.constant 0 : index
    %153 = vector.load %arg3[%c8_102, %c0_103, %c0_104] : memref<9x16x8xbf16, #tpu.memory_space<vmem>>, vector<1x16x8xbf16>
    %154 = vector.shape_cast %153 : vector<1x16x8xbf16> to vector<16x8xbf16>
    %cst_105 = arith.constant dense<0.000000e+00> : vector<16x16xf32>
    %155 = tpu.matmul %154, %152, %cst_105 {dimension_numbers = #tpu.dot_dimension_numbers<[1], [0], [0], [1], [0, 0, 1, 1], [], []>} : vector<16x8xbf16>, vector<8x16xbf16>, vector<16x16xf32> -> vector<16x16xf32>
    %156 = arith.addf %151, %155 : vector<16x16xf32>
    %157 = vector.broadcast %41 : vector<16x1xf32> to vector<16x16xf32>
    %158 = arith.addf %156, %157 : vector<16x16xf32>
    %159 = vector.extract_strided_slice %158 {offsets = [0, 0], sizes = [8, 16], strides = [1, 1]} : vector<16x16xf32> to vector<8x16xf32>
    %160 = vector.extract_strided_slice %158 {offsets = [8, 0], sizes = [8, 16], strides = [1, 1]} : vector<16x16xf32> to vector<8x16xf32>
    %cst_106 = arith.constant 0.000000e+00 : f32
    %161 = vector.broadcast %cst_106 : f32 to vector<8x16xf32>
    %162 = arith.cmpf ogt, %159, %161 : vector<8x16xf32>
    %cst_107 = arith.constant 2.000000e-01 : f32
    %163 = vector.broadcast %cst_107 : f32 to vector<8x16xf32>
    %164 = arith.mulf %163, %159 : vector<8x16xf32>
    %165 = arith.select %162, %159, %164 : vector<8x16xi1>, vector<8x16xf32>
    %166 = arith.negf %160 : vector<8x16xf32>
    %167 = math.exp %166 : vector<8x16xf32>
    %cst_108 = arith.constant 1.000000e+00 : f32
    %168 = vector.broadcast %cst_108 : f32 to vector<8x16xf32>
    %169 = arith.addf %168, %167 : vector<8x16xf32>
    %170 = arith.divf %168, %169 : vector<8x16xf32>
    %171 = arith.mulf %165, %170 : vector<8x16xf32>
    %c0_109 = arith.constant 0 : index
    %c0_110 = arith.constant 0 : index
    %c1_111 = arith.constant 1 : index
    %c0_112 = arith.constant 0 : index
    %172 = vector.load %arg5[%c0_109, %c0_110, %c1_111, %c0_112] : memref<1x8x8x16xf32, #tpu.memory_space<vmem>>, vector<1x8x1x16xf32>
    %173 = vector.shape_cast %172 : vector<1x8x1x16xf32> to vector<8x16xf32>
    %174 = vector.shape_cast %171 : vector<8x16xf32> to vector<1x8x1x16xf32>
    tpu.vector_store %arg5[%c0_109, %c0_110, %c1_111, %c0_112], %174 {strides = array<i32>} : memref<1x8x8x16xf32, #tpu.memory_space<vmem>>, vector<1x8x1x16xf32>,
    %175 = arith.addf %108, %171 : vector<8x16xf32>
    %176 = arith.mulf %171, %171 : vector<8x16xf32>
    %177 = arith.addf %110, %176 : vector<8x16xf32>
    %cst_113 = arith.constant 0.000000e+00 : f32
    %178 = vector.broadcast %cst_113 : f32 to vector<16x16xf32>
    %179 = vector.extract_strided_slice %12 {offsets = [0, 0], sizes = [8, 16], strides = [1, 1]} : vector<8x18xbf16> to vector<8x16xbf16>
    %c0_114 = arith.constant 0 : index
    %c0_115 = arith.constant 0 : index
    %c0_116 = arith.constant 0 : index
    %180 = vector.load %arg3[%c0_114, %c0_115, %c0_116] : memref<9x16x8xbf16, #tpu.memory_space<vmem>>, vector<1x16x8xbf16>
    %181 = vector.shape_cast %180 : vector<1x16x8xbf16> to vector<16x8xbf16>
    %cst_117 = arith.constant dense<0.000000e+00> : vector<16x16xf32>
    %182 = tpu.matmul %181, %179, %cst_117 {dimension_numbers = #tpu.dot_dimension_numbers<[1], [0], [0], [1], [0, 0, 1, 1], [], []>} : vector<16x8xbf16>, vector<8x16xbf16>, vector<16x16xf32> -> vector<16x16xf32>
    %183 = arith.addf %178, %182 : vector<16x16xf32>
    %184 = vector.extract_strided_slice %12 {offsets = [0, 1], sizes = [8, 16], strides = [1, 1]} : vector<8x18xbf16> to vector<8x16xbf16>
    %c1_118 = arith.constant 1 : index
    %c0_119 = arith.constant 0 : index
    %c0_120 = arith.constant 0 : index
    %185 = vector.load %arg3[%c1_118, %c0_119, %c0_120] : memref<9x16x8xbf16, #tpu.memory_space<vmem>>, vector<1x16x8xbf16>
    %186 = vector.shape_cast %185 : vector<1x16x8xbf16> to vector<16x8xbf16>
    %cst_121 = arith.constant dense<0.000000e+00> : vector<16x16xf32>
    %187 = tpu.matmul %186, %184, %cst_121 {dimension_numbers = #tpu.dot_dimension_numbers<[1], [0], [0], [1], [0, 0, 1, 1], [], []>} : vector<16x8xbf16>, vector<8x16xbf16>, vector<16x16xf32> -> vector<16x16xf32>
    %188 = arith.addf %183, %187 : vector<16x16xf32>
    %189 = vector.extract_strided_slice %12 {offsets = [0, 2], sizes = [8, 16], strides = [1, 1]} : vector<8x18xbf16> to vector<8x16xbf16>
    %c2_122 = arith.constant 2 : index
    %c0_123 = arith.constant 0 : index
    %c0_124 = arith.constant 0 : index
    %190 = vector.load %arg3[%c2_122, %c0_123, %c0_124] : memref<9x16x8xbf16, #tpu.memory_space<vmem>>, vector<1x16x8xbf16>
    %191 = vector.shape_cast %190 : vector<1x16x8xbf16> to vector<16x8xbf16>
    %cst_125 = arith.constant dense<0.000000e+00> : vector<16x16xf32>
    %192 = tpu.matmul %191, %189, %cst_125 {dimension_numbers = #tpu.dot_dimension_numbers<[1], [0], [0], [1], [0, 0, 1, 1], [], []>} : vector<16x8xbf16>, vector<8x16xbf16>, vector<16x16xf32> -> vector<16x16xf32>
    %193 = arith.addf %188, %192 : vector<16x16xf32>
    %194 = vector.extract_strided_slice %16 {offsets = [0, 0], sizes = [8, 16], strides = [1, 1]} : vector<8x18xbf16> to vector<8x16xbf16>
    %c3_126 = arith.constant 3 : index
    %c0_127 = arith.constant 0 : index
    %c0_128 = arith.constant 0 : index
    %195 = vector.load %arg3[%c3_126, %c0_127, %c0_128] : memref<9x16x8xbf16, #tpu.memory_space<vmem>>, vector<1x16x8xbf16>
    %196 = vector.shape_cast %195 : vector<1x16x8xbf16> to vector<16x8xbf16>
    %cst_129 = arith.constant dense<0.000000e+00> : vector<16x16xf32>
    %197 = tpu.matmul %196, %194, %cst_129 {dimension_numbers = #tpu.dot_dimension_numbers<[1], [0], [0], [1], [0, 0, 1, 1], [], []>} : vector<16x8xbf16>, vector<8x16xbf16>, vector<16x16xf32> -> vector<16x16xf32>
    %198 = arith.addf %193, %197 : vector<16x16xf32>
    %199 = vector.extract_strided_slice %16 {offsets = [0, 1], sizes = [8, 16], strides = [1, 1]} : vector<8x18xbf16> to vector<8x16xbf16>
    %c4_130 = arith.constant 4 : index
    %c0_131 = arith.constant 0 : index
    %c0_132 = arith.constant 0 : index
    %200 = vector.load %arg3[%c4_130, %c0_131, %c0_132] : memref<9x16x8xbf16, #tpu.memory_space<vmem>>, vector<1x16x8xbf16>
    %201 = vector.shape_cast %200 : vector<1x16x8xbf16> to vector<16x8xbf16>
    %cst_133 = arith.constant dense<0.000000e+00> : vector<16x16xf32>
    %202 = tpu.matmul %201, %199, %cst_133 {dimension_numbers = #tpu.dot_dimension_numbers<[1], [0], [0], [1], [0, 0, 1, 1], [], []>} : vector<16x8xbf16>, vector<8x16xbf16>, vector<16x16xf32> -> vector<16x16xf32>
    %203 = arith.addf %198, %202 : vector<16x16xf32>
    %204 = vector.extract_strided_slice %16 {offsets = [0, 2], sizes = [8, 16], strides = [1, 1]} : vector<8x18xbf16> to vector<8x16xbf16>
    %c5_134 = arith.constant 5 : index
    %c0_135 = arith.constant 0 : index
    %c0_136 = arith.constant 0 : index
    %205 = vector.load %arg3[%c5_134, %c0_135, %c0_136] : memref<9x16x8xbf16, #tpu.memory_space<vmem>>, vector<1x16x8xbf16>
    %206 = vector.shape_cast %205 : vector<1x16x8xbf16> to vector<16x8xbf16>
    %cst_137 = arith.constant dense<0.000000e+00> : vector<16x16xf32>
    %207 = tpu.matmul %206, %204, %cst_137 {dimension_numbers = #tpu.dot_dimension_numbers<[1], [0], [0], [1], [0, 0, 1, 1], [], []>} : vector<16x8xbf16>, vector<8x16xbf16>, vector<16x16xf32> -> vector<16x16xf32>
    %208 = arith.addf %203, %207 : vector<16x16xf32>
    %209 = vector.extract_strided_slice %20 {offsets = [0, 0], sizes = [8, 16], strides = [1, 1]} : vector<8x18xbf16> to vector<8x16xbf16>
    %c6_138 = arith.constant 6 : index
    %c0_139 = arith.constant 0 : index
    %c0_140 = arith.constant 0 : index
    %210 = vector.load %arg3[%c6_138, %c0_139, %c0_140] : memref<9x16x8xbf16, #tpu.memory_space<vmem>>, vector<1x16x8xbf16>
    %211 = vector.shape_cast %210 : vector<1x16x8xbf16> to vector<16x8xbf16>
    %cst_141 = arith.constant dense<0.000000e+00> : vector<16x16xf32>
    %212 = tpu.matmul %211, %209, %cst_141 {dimension_numbers = #tpu.dot_dimension_numbers<[1], [0], [0], [1], [0, 0, 1, 1], [], []>} : vector<16x8xbf16>, vector<8x16xbf16>, vector<16x16xf32> -> vector<16x16xf32>
    %213 = arith.addf %208, %212 : vector<16x16xf32>
    %214 = vector.extract_strided_slice %20 {offsets = [0, 1], sizes = [8, 16], strides = [1, 1]} : vector<8x18xbf16> to vector<8x16xbf16>
    %c7_142 = arith.constant 7 : index
    %c0_143 = arith.constant 0 : index
    %c0_144 = arith.constant 0 : index
    %215 = vector.load %arg3[%c7_142, %c0_143, %c0_144] : memref<9x16x8xbf16, #tpu.memory_space<vmem>>, vector<1x16x8xbf16>
    %216 = vector.shape_cast %215 : vector<1x16x8xbf16> to vector<16x8xbf16>
    %cst_145 = arith.constant dense<0.000000e+00> : vector<16x16xf32>
    %217 = tpu.matmul %216, %214, %cst_145 {dimension_numbers = #tpu.dot_dimension_numbers<[1], [0], [0], [1], [0, 0, 1, 1], [], []>} : vector<16x8xbf16>, vector<8x16xbf16>, vector<16x16xf32> -> vector<16x16xf32>
    %218 = arith.addf %213, %217 : vector<16x16xf32>
    %219 = vector.extract_strided_slice %20 {offsets = [0, 2], sizes = [8, 16], strides = [1, 1]} : vector<8x18xbf16> to vector<8x16xbf16>
    %c8_146 = arith.constant 8 : index
    %c0_147 = arith.constant 0 : index
    %c0_148 = arith.constant 0 : index
    %220 = vector.load %arg3[%c8_146, %c0_147, %c0_148] : memref<9x16x8xbf16, #tpu.memory_space<vmem>>, vector<1x16x8xbf16>
    %221 = vector.shape_cast %220 : vector<1x16x8xbf16> to vector<16x8xbf16>
    %cst_149 = arith.constant dense<0.000000e+00> : vector<16x16xf32>
    %222 = tpu.matmul %221, %219, %cst_149 {dimension_numbers = #tpu.dot_dimension_numbers<[1], [0], [0], [1], [0, 0, 1, 1], [], []>} : vector<16x8xbf16>, vector<8x16xbf16>, vector<16x16xf32> -> vector<16x16xf32>
    %223 = arith.addf %218, %222 : vector<16x16xf32>
    %224 = vector.broadcast %41 : vector<16x1xf32> to vector<16x16xf32>
    %225 = arith.addf %223, %224 : vector<16x16xf32>
    %226 = vector.extract_strided_slice %225 {offsets = [0, 0], sizes = [8, 16], strides = [1, 1]} : vector<16x16xf32> to vector<8x16xf32>
    %227 = vector.extract_strided_slice %225 {offsets = [8, 0], sizes = [8, 16], strides = [1, 1]} : vector<16x16xf32> to vector<8x16xf32>
    %cst_150 = arith.constant 0.000000e+00 : f32
    %228 = vector.broadcast %cst_150 : f32 to vector<8x16xf32>
    %229 = arith.cmpf ogt, %226, %228 : vector<8x16xf32>
    %cst_151 = arith.constant 2.000000e-01 : f32
    %230 = vector.broadcast %cst_151 : f32 to vector<8x16xf32>
    %231 = arith.mulf %230, %226 : vector<8x16xf32>
    %232 = arith.select %229, %226, %231 : vector<8x16xi1>, vector<8x16xf32>
    %233 = arith.negf %227 : vector<8x16xf32>
    %234 = math.exp %233 : vector<8x16xf32>
    %cst_152 = arith.constant 1.000000e+00 : f32
    %235 = vector.broadcast %cst_152 : f32 to vector<8x16xf32>
    %236 = arith.addf %235, %234 : vector<8x16xf32>
    %237 = arith.divf %235, %236 : vector<8x16xf32>
    %238 = arith.mulf %232, %237 : vector<8x16xf32>
    %c0_153 = arith.constant 0 : index
    %c0_154 = arith.constant 0 : index
    %c2_155 = arith.constant 2 : index
    %c0_156 = arith.constant 0 : index
    %239 = vector.load %arg5[%c0_153, %c0_154, %c2_155, %c0_156] : memref<1x8x8x16xf32, #tpu.memory_space<vmem>>, vector<1x8x1x16xf32>
    %240 = vector.shape_cast %239 : vector<1x8x1x16xf32> to vector<8x16xf32>
    %241 = vector.shape_cast %238 : vector<8x16xf32> to vector<1x8x1x16xf32>
    tpu.vector_store %arg5[%c0_153, %c0_154, %c2_155, %c0_156], %241 {strides = array<i32>} : memref<1x8x8x16xf32, #tpu.memory_space<vmem>>, vector<1x8x1x16xf32>,
    %242 = arith.addf %175, %238 : vector<8x16xf32>
    %243 = arith.mulf %238, %238 : vector<8x16xf32>
    %244 = arith.addf %177, %243 : vector<8x16xf32>
    %cst_157 = arith.constant 0.000000e+00 : f32
    %245 = vector.broadcast %cst_157 : f32 to vector<16x16xf32>
    %246 = vector.extract_strided_slice %16 {offsets = [0, 0], sizes = [8, 16], strides = [1, 1]} : vector<8x18xbf16> to vector<8x16xbf16>
    %c0_158 = arith.constant 0 : index
    %c0_159 = arith.constant 0 : index
    %c0_160 = arith.constant 0 : index
    %247 = vector.load %arg3[%c0_158, %c0_159, %c0_160] : memref<9x16x8xbf16, #tpu.memory_space<vmem>>, vector<1x16x8xbf16>
    %248 = vector.shape_cast %247 : vector<1x16x8xbf16> to vector<16x8xbf16>
    %cst_161 = arith.constant dense<0.000000e+00> : vector<16x16xf32>
    %249 = tpu.matmul %248, %246, %cst_161 {dimension_numbers = #tpu.dot_dimension_numbers<[1], [0], [0], [1], [0, 0, 1, 1], [], []>} : vector<16x8xbf16>, vector<8x16xbf16>, vector<16x16xf32> -> vector<16x16xf32>
    %250 = arith.addf %245, %249 : vector<16x16xf32>
    %251 = vector.extract_strided_slice %16 {offsets = [0, 1], sizes = [8, 16], strides = [1, 1]} : vector<8x18xbf16> to vector<8x16xbf16>
    %c1_162 = arith.constant 1 : index
    %c0_163 = arith.constant 0 : index
    %c0_164 = arith.constant 0 : index
    %252 = vector.load %arg3[%c1_162, %c0_163, %c0_164] : memref<9x16x8xbf16, #tpu.memory_space<vmem>>, vector<1x16x8xbf16>
    %253 = vector.shape_cast %252 : vector<1x16x8xbf16> to vector<16x8xbf16>
    %cst_165 = arith.constant dense<0.000000e+00> : vector<16x16xf32>
    %254 = tpu.matmul %253, %251, %cst_165 {dimension_numbers = #tpu.dot_dimension_numbers<[1], [0], [0], [1], [0, 0, 1, 1], [], []>} : vector<16x8xbf16>, vector<8x16xbf16>, vector<16x16xf32> -> vector<16x16xf32>
    %255 = arith.addf %250, %254 : vector<16x16xf32>
    %256 = vector.extract_strided_slice %16 {offsets = [0, 2], sizes = [8, 16], strides = [1, 1]} : vector<8x18xbf16> to vector<8x16xbf16>
    %c2_166 = arith.constant 2 : index
    %c0_167 = arith.constant 0 : index
    %c0_168 = arith.constant 0 : index
    %257 = vector.load %arg3[%c2_166, %c0_167, %c0_168] : memref<9x16x8xbf16, #tpu.memory_space<vmem>>, vector<1x16x8xbf16>
    %258 = vector.shape_cast %257 : vector<1x16x8xbf16> to vector<16x8xbf16>
    %cst_169 = arith.constant dense<0.000000e+00> : vector<16x16xf32>
    %259 = tpu.matmul %258, %256, %cst_169 {dimension_numbers = #tpu.dot_dimension_numbers<[1], [0], [0], [1], [0, 0, 1, 1], [], []>} : vector<16x8xbf16>, vector<8x16xbf16>, vector<16x16xf32> -> vector<16x16xf32>
    %260 = arith.addf %255, %259 : vector<16x16xf32>
    %261 = vector.extract_strided_slice %20 {offsets = [0, 0], sizes = [8, 16], strides = [1, 1]} : vector<8x18xbf16> to vector<8x16xbf16>
    %c3_170 = arith.constant 3 : index
    %c0_171 = arith.constant 0 : index
    %c0_172 = arith.constant 0 : index
    %262 = vector.load %arg3[%c3_170, %c0_171, %c0_172] : memref<9x16x8xbf16, #tpu.memory_space<vmem>>, vector<1x16x8xbf16>
    %263 = vector.shape_cast %262 : vector<1x16x8xbf16> to vector<16x8xbf16>
    %cst_173 = arith.constant dense<0.000000e+00> : vector<16x16xf32>
    %264 = tpu.matmul %263, %261, %cst_173 {dimension_numbers = #tpu.dot_dimension_numbers<[1], [0], [0], [1], [0, 0, 1, 1], [], []>} : vector<16x8xbf16>, vector<8x16xbf16>, vector<16x16xf32> -> vector<16x16xf32>
    %265 = arith.addf %260, %264 : vector<16x16xf32>
    %266 = vector.extract_strided_slice %20 {offsets = [0, 1], sizes = [8, 16], strides = [1, 1]} : vector<8x18xbf16> to vector<8x16xbf16>
    %c4_174 = arith.constant 4 : index
    %c0_175 = arith.constant 0 : index
    %c0_176 = arith.constant 0 : index
    %267 = vector.load %arg3[%c4_174, %c0_175, %c0_176] : memref<9x16x8xbf16, #tpu.memory_space<vmem>>, vector<1x16x8xbf16>
    %268 = vector.shape_cast %267 : vector<1x16x8xbf16> to vector<16x8xbf16>
    %cst_177 = arith.constant dense<0.000000e+00> : vector<16x16xf32>
    %269 = tpu.matmul %268, %266, %cst_177 {dimension_numbers = #tpu.dot_dimension_numbers<[1], [0], [0], [1], [0, 0, 1, 1], [], []>} : vector<16x8xbf16>, vector<8x16xbf16>, vector<16x16xf32> -> vector<16x16xf32>
    %270 = arith.addf %265, %269 : vector<16x16xf32>
    %271 = vector.extract_strided_slice %20 {offsets = [0, 2], sizes = [8, 16], strides = [1, 1]} : vector<8x18xbf16> to vector<8x16xbf16>
    %c5_178 = arith.constant 5 : index
    %c0_179 = arith.constant 0 : index
    %c0_180 = arith.constant 0 : index
    %272 = vector.load %arg3[%c5_178, %c0_179, %c0_180] : memref<9x16x8xbf16, #tpu.memory_space<vmem>>, vector<1x16x8xbf16>
    %273 = vector.shape_cast %272 : vector<1x16x8xbf16> to vector<16x8xbf16>
    %cst_181 = arith.constant dense<0.000000e+00> : vector<16x16xf32>
    %274 = tpu.matmul %273, %271, %cst_181 {dimension_numbers = #tpu.dot_dimension_numbers<[1], [0], [0], [1], [0, 0, 1, 1], [], []>} : vector<16x8xbf16>, vector<8x16xbf16>, vector<16x16xf32> -> vector<16x16xf32>
    %275 = arith.addf %270, %274 : vector<16x16xf32>
    %276 = vector.extract_strided_slice %24 {offsets = [0, 0], sizes = [8, 16], strides = [1, 1]} : vector<8x18xbf16> to vector<8x16xbf16>
    %c6_182 = arith.constant 6 : index
    %c0_183 = arith.constant 0 : index
    %c0_184 = arith.constant 0 : index
    %277 = vector.load %arg3[%c6_182, %c0_183, %c0_184] : memref<9x16x8xbf16, #tpu.memory_space<vmem>>, vector<1x16x8xbf16>
    %278 = vector.shape_cast %277 : vector<1x16x8xbf16> to vector<16x8xbf16>
    %cst_185 = arith.constant dense<0.000000e+00> : vector<16x16xf32>
    %279 = tpu.matmul %278, %276, %cst_185 {dimension_numbers = #tpu.dot_dimension_numbers<[1], [0], [0], [1], [0, 0, 1, 1], [], []>} : vector<16x8xbf16>, vector<8x16xbf16>, vector<16x16xf32> -> vector<16x16xf32>
    %280 = arith.addf %275, %279 : vector<16x16xf32>
    %281 = vector.extract_strided_slice %24 {offsets = [0, 1], sizes = [8, 16], strides = [1, 1]} : vector<8x18xbf16> to vector<8x16xbf16>
    %c7_186 = arith.constant 7 : index
    %c0_187 = arith.constant 0 : index
    %c0_188 = arith.constant 0 : index
    %282 = vector.load %arg3[%c7_186, %c0_187, %c0_188] : memref<9x16x8xbf16, #tpu.memory_space<vmem>>, vector<1x16x8xbf16>
    %283 = vector.shape_cast %282 : vector<1x16x8xbf16> to vector<16x8xbf16>
    %cst_189 = arith.constant dense<0.000000e+00> : vector<16x16xf32>
    %284 = tpu.matmul %283, %281, %cst_189 {dimension_numbers = #tpu.dot_dimension_numbers<[1], [0], [0], [1], [0, 0, 1, 1], [], []>} : vector<16x8xbf16>, vector<8x16xbf16>, vector<16x16xf32> -> vector<16x16xf32>
    %285 = arith.addf %280, %284 : vector<16x16xf32>
    %286 = vector.extract_strided_slice %24 {offsets = [0, 2], sizes = [8, 16], strides = [1, 1]} : vector<8x18xbf16> to vector<8x16xbf16>
    %c8_190 = arith.constant 8 : index
    %c0_191 = arith.constant 0 : index
    %c0_192 = arith.constant 0 : index
    %287 = vector.load %arg3[%c8_190, %c0_191, %c0_192] : memref<9x16x8xbf16, #tpu.memory_space<vmem>>, vector<1x16x8xbf16>
    %288 = vector.shape_cast %287 : vector<1x16x8xbf16> to vector<16x8xbf16>
    %cst_193 = arith.constant dense<0.000000e+00> : vector<16x16xf32>
    %289 = tpu.matmul %288, %286, %cst_193 {dimension_numbers = #tpu.dot_dimension_numbers<[1], [0], [0], [1], [0, 0, 1, 1], [], []>} : vector<16x8xbf16>, vector<8x16xbf16>, vector<16x16xf32> -> vector<16x16xf32>
    %290 = arith.addf %285, %289 : vector<16x16xf32>
    %291 = vector.broadcast %41 : vector<16x1xf32> to vector<16x16xf32>
    %292 = arith.addf %290, %291 : vector<16x16xf32>
    %293 = vector.extract_strided_slice %292 {offsets = [0, 0], sizes = [8, 16], strides = [1, 1]} : vector<16x16xf32> to vector<8x16xf32>
    %294 = vector.extract_strided_slice %292 {offsets = [8, 0], sizes = [8, 16], strides = [1, 1]} : vector<16x16xf32> to vector<8x16xf32>
    %cst_194 = arith.constant 0.000000e+00 : f32
    %295 = vector.broadcast %cst_194 : f32 to vector<8x16xf32>
    %296 = arith.cmpf ogt, %293, %295 : vector<8x16xf32>
    %cst_195 = arith.constant 2.000000e-01 : f32
    %297 = vector.broadcast %cst_195 : f32 to vector<8x16xf32>
    %298 = arith.mulf %297, %293 : vector<8x16xf32>
    %299 = arith.select %296, %293, %298 : vector<8x16xi1>, vector<8x16xf32>
    %300 = arith.negf %294 : vector<8x16xf32>
    %301 = math.exp %300 : vector<8x16xf32>
    %cst_196 = arith.constant 1.000000e+00 : f32
    %302 = vector.broadcast %cst_196 : f32 to vector<8x16xf32>
    %303 = arith.addf %302, %301 : vector<8x16xf32>
    %304 = arith.divf %302, %303 : vector<8x16xf32>
    %305 = arith.mulf %299, %304 : vector<8x16xf32>
    %c0_197 = arith.constant 0 : index
    %c0_198 = arith.constant 0 : index
    %c3_199 = arith.constant 3 : index
    %c0_200 = arith.constant 0 : index
    %306 = vector.load %arg5[%c0_197, %c0_198, %c3_199, %c0_200] : memref<1x8x8x16xf32, #tpu.memory_space<vmem>>, vector<1x8x1x16xf32>
    %307 = vector.shape_cast %306 : vector<1x8x1x16xf32> to vector<8x16xf32>
    %308 = vector.shape_cast %305 : vector<8x16xf32> to vector<1x8x1x16xf32>
    tpu.vector_store %arg5[%c0_197, %c0_198, %c3_199, %c0_200], %308 {strides = array<i32>} : memref<1x8x8x16xf32, #tpu.memory_space<vmem>>, vector<1x8x1x16xf32>,
    %309 = arith.addf %242, %305 : vector<8x16xf32>
    %310 = arith.mulf %305, %305 : vector<8x16xf32>
    %311 = arith.addf %244, %310 : vector<8x16xf32>
    %cst_201 = arith.constant 0.000000e+00 : f32
    %312 = vector.broadcast %cst_201 : f32 to vector<16x16xf32>
    %313 = vector.extract_strided_slice %20 {offsets = [0, 0], sizes = [8, 16], strides = [1, 1]} : vector<8x18xbf16> to vector<8x16xbf16>
    %c0_202 = arith.constant 0 : index
    %c0_203 = arith.constant 0 : index
    %c0_204 = arith.constant 0 : index
    %314 = vector.load %arg3[%c0_202, %c0_203, %c0_204] : memref<9x16x8xbf16, #tpu.memory_space<vmem>>, vector<1x16x8xbf16>
    %315 = vector.shape_cast %314 : vector<1x16x8xbf16> to vector<16x8xbf16>
    %cst_205 = arith.constant dense<0.000000e+00> : vector<16x16xf32>
    %316 = tpu.matmul %315, %313, %cst_205 {dimension_numbers = #tpu.dot_dimension_numbers<[1], [0], [0], [1], [0, 0, 1, 1], [], []>} : vector<16x8xbf16>, vector<8x16xbf16>, vector<16x16xf32> -> vector<16x16xf32>
    %317 = arith.addf %312, %316 : vector<16x16xf32>
    %318 = vector.extract_strided_slice %20 {offsets = [0, 1], sizes = [8, 16], strides = [1, 1]} : vector<8x18xbf16> to vector<8x16xbf16>
    %c1_206 = arith.constant 1 : index
    %c0_207 = arith.constant 0 : index
    %c0_208 = arith.constant 0 : index
    %319 = vector.load %arg3[%c1_206, %c0_207, %c0_208] : memref<9x16x8xbf16, #tpu.memory_space<vmem>>, vector<1x16x8xbf16>
    %320 = vector.shape_cast %319 : vector<1x16x8xbf16> to vector<16x8xbf16>
    %cst_209 = arith.constant dense<0.000000e+00> : vector<16x16xf32>
    %321 = tpu.matmul %320, %318, %cst_209 {dimension_numbers = #tpu.dot_dimension_numbers<[1], [0], [0], [1], [0, 0, 1, 1], [], []>} : vector<16x8xbf16>, vector<8x16xbf16>, vector<16x16xf32> -> vector<16x16xf32>
    %322 = arith.addf %317, %321 : vector<16x16xf32>
    %323 = vector.extract_strided_slice %20 {offsets = [0, 2], sizes = [8, 16], strides = [1, 1]} : vector<8x18xbf16> to vector<8x16xbf16>
    %c2_210 = arith.constant 2 : index
    %c0_211 = arith.constant 0 : index
    %c0_212 = arith.constant 0 : index
    %324 = vector.load %arg3[%c2_210, %c0_211, %c0_212] : memref<9x16x8xbf16, #tpu.memory_space<vmem>>, vector<1x16x8xbf16>
    %325 = vector.shape_cast %324 : vector<1x16x8xbf16> to vector<16x8xbf16>
    %cst_213 = arith.constant dense<0.000000e+00> : vector<16x16xf32>
    %326 = tpu.matmul %325, %323, %cst_213 {dimension_numbers = #tpu.dot_dimension_numbers<[1], [0], [0], [1], [0, 0, 1, 1], [], []>} : vector<16x8xbf16>, vector<8x16xbf16>, vector<16x16xf32> -> vector<16x16xf32>
    %327 = arith.addf %322, %326 : vector<16x16xf32>
    %328 = vector.extract_strided_slice %24 {offsets = [0, 0], sizes = [8, 16], strides = [1, 1]} : vector<8x18xbf16> to vector<8x16xbf16>
    %c3_214 = arith.constant 3 : index
    %c0_215 = arith.constant 0 : index
    %c0_216 = arith.constant 0 : index
    %329 = vector.load %arg3[%c3_214, %c0_215, %c0_216] : memref<9x16x8xbf16, #tpu.memory_space<vmem>>, vector<1x16x8xbf16>
    %330 = vector.shape_cast %329 : vector<1x16x8xbf16> to vector<16x8xbf16>
    %cst_217 = arith.constant dense<0.000000e+00> : vector<16x16xf32>
    %331 = tpu.matmul %330, %328, %cst_217 {dimension_numbers = #tpu.dot_dimension_numbers<[1], [0], [0], [1], [0, 0, 1, 1], [], []>} : vector<16x8xbf16>, vector<8x16xbf16>, vector<16x16xf32> -> vector<16x16xf32>
    %332 = arith.addf %327, %331 : vector<16x16xf32>
    %333 = vector.extract_strided_slice %24 {offsets = [0, 1], sizes = [8, 16], strides = [1, 1]} : vector<8x18xbf16> to vector<8x16xbf16>
    %c4_218 = arith.constant 4 : index
    %c0_219 = arith.constant 0 : index
    %c0_220 = arith.constant 0 : index
    %334 = vector.load %arg3[%c4_218, %c0_219, %c0_220] : memref<9x16x8xbf16, #tpu.memory_space<vmem>>, vector<1x16x8xbf16>
    %335 = vector.shape_cast %334 : vector<1x16x8xbf16> to vector<16x8xbf16>
    %cst_221 = arith.constant dense<0.000000e+00> : vector<16x16xf32>
    %336 = tpu.matmul %335, %333, %cst_221 {dimension_numbers = #tpu.dot_dimension_numbers<[1], [0], [0], [1], [0, 0, 1, 1], [], []>} : vector<16x8xbf16>, vector<8x16xbf16>, vector<16x16xf32> -> vector<16x16xf32>
    %337 = arith.addf %332, %336 : vector<16x16xf32>
    %338 = vector.extract_strided_slice %24 {offsets = [0, 2], sizes = [8, 16], strides = [1, 1]} : vector<8x18xbf16> to vector<8x16xbf16>
    %c5_222 = arith.constant 5 : index
    %c0_223 = arith.constant 0 : index
    %c0_224 = arith.constant 0 : index
    %339 = vector.load %arg3[%c5_222, %c0_223, %c0_224] : memref<9x16x8xbf16, #tpu.memory_space<vmem>>, vector<1x16x8xbf16>
    %340 = vector.shape_cast %339 : vector<1x16x8xbf16> to vector<16x8xbf16>
    %cst_225 = arith.constant dense<0.000000e+00> : vector<16x16xf32>
    %341 = tpu.matmul %340, %338, %cst_225 {dimension_numbers = #tpu.dot_dimension_numbers<[1], [0], [0], [1], [0, 0, 1, 1], [], []>} : vector<16x8xbf16>, vector<8x16xbf16>, vector<16x16xf32> -> vector<16x16xf32>
    %342 = arith.addf %337, %341 : vector<16x16xf32>
    %343 = vector.extract_strided_slice %28 {offsets = [0, 0], sizes = [8, 16], strides = [1, 1]} : vector<8x18xbf16> to vector<8x16xbf16>
    %c6_226 = arith.constant 6 : index
    %c0_227 = arith.constant 0 : index
    %c0_228 = arith.constant 0 : index
    %344 = vector.load %arg3[%c6_226, %c0_227, %c0_228] : memref<9x16x8xbf16, #tpu.memory_space<vmem>>, vector<1x16x8xbf16>
    %345 = vector.shape_cast %344 : vector<1x16x8xbf16> to vector<16x8xbf16>
    %cst_229 = arith.constant dense<0.000000e+00> : vector<16x16xf32>
    %346 = tpu.matmul %345, %343, %cst_229 {dimension_numbers = #tpu.dot_dimension_numbers<[1], [0], [0], [1], [0, 0, 1, 1], [], []>} : vector<16x8xbf16>, vector<8x16xbf16>, vector<16x16xf32> -> vector<16x16xf32>
    %347 = arith.addf %342, %346 : vector<16x16xf32>
    %348 = vector.extract_strided_slice %28 {offsets = [0, 1], sizes = [8, 16], strides = [1, 1]} : vector<8x18xbf16> to vector<8x16xbf16>
    %c7_230 = arith.constant 7 : index
    %c0_231 = arith.constant 0 : index
    %c0_232 = arith.constant 0 : index
    %349 = vector.load %arg3[%c7_230, %c0_231, %c0_232] : memref<9x16x8xbf16, #tpu.memory_space<vmem>>, vector<1x16x8xbf16>
    %350 = vector.shape_cast %349 : vector<1x16x8xbf16> to vector<16x8xbf16>
    %cst_233 = arith.constant dense<0.000000e+00> : vector<16x16xf32>
    %351 = tpu.matmul %350, %348, %cst_233 {dimension_numbers = #tpu.dot_dimension_numbers<[1], [0], [0], [1], [0, 0, 1, 1], [], []>} : vector<16x8xbf16>, vector<8x16xbf16>, vector<16x16xf32> -> vector<16x16xf32>
    %352 = arith.addf %347, %351 : vector<16x16xf32>
    %353 = vector.extract_strided_slice %28 {offsets = [0, 2], sizes = [8, 16], strides = [1, 1]} : vector<8x18xbf16> to vector<8x16xbf16>
    %c8_234 = arith.constant 8 : index
    %c0_235 = arith.constant 0 : index
    %c0_236 = arith.constant 0 : index
    %354 = vector.load %arg3[%c8_234, %c0_235, %c0_236] : memref<9x16x8xbf16, #tpu.memory_space<vmem>>, vector<1x16x8xbf16>
    %355 = vector.shape_cast %354 : vector<1x16x8xbf16> to vector<16x8xbf16>
    %cst_237 = arith.constant dense<0.000000e+00> : vector<16x16xf32>
    %356 = tpu.matmul %355, %353, %cst_237 {dimension_numbers = #tpu.dot_dimension_numbers<[1], [0], [0], [1], [0, 0, 1, 1], [], []>} : vector<16x8xbf16>, vector<8x16xbf16>, vector<16x16xf32> -> vector<16x16xf32>
    %357 = arith.addf %352, %356 : vector<16x16xf32>
    %358 = vector.broadcast %41 : vector<16x1xf32> to vector<16x16xf32>
    %359 = arith.addf %357, %358 : vector<16x16xf32>
    %360 = vector.extract_strided_slice %359 {offsets = [0, 0], sizes = [8, 16], strides = [1, 1]} : vector<16x16xf32> to vector<8x16xf32>
    %361 = vector.extract_strided_slice %359 {offsets = [8, 0], sizes = [8, 16], strides = [1, 1]} : vector<16x16xf32> to vector<8x16xf32>
    %cst_238 = arith.constant 0.000000e+00 : f32
    %362 = vector.broadcast %cst_238 : f32 to vector<8x16xf32>
    %363 = arith.cmpf ogt, %360, %362 : vector<8x16xf32>
    %cst_239 = arith.constant 2.000000e-01 : f32
    %364 = vector.broadcast %cst_239 : f32 to vector<8x16xf32>
    %365 = arith.mulf %364, %360 : vector<8x16xf32>
    %366 = arith.select %363, %360, %365 : vector<8x16xi1>, vector<8x16xf32>
    %367 = arith.negf %361 : vector<8x16xf32>
    %368 = math.exp %367 : vector<8x16xf32>
    %cst_240 = arith.constant 1.000000e+00 : f32
    %369 = vector.broadcast %cst_240 : f32 to vector<8x16xf32>
    %370 = arith.addf %369, %368 : vector<8x16xf32>
    %371 = arith.divf %369, %370 : vector<8x16xf32>
    %372 = arith.mulf %366, %371 : vector<8x16xf32>
    %c0_241 = arith.constant 0 : index
    %c0_242 = arith.constant 0 : index
    %c4_243 = arith.constant 4 : index
    %c0_244 = arith.constant 0 : index
    %373 = vector.load %arg5[%c0_241, %c0_242, %c4_243, %c0_244] : memref<1x8x8x16xf32, #tpu.memory_space<vmem>>, vector<1x8x1x16xf32>
    %374 = vector.shape_cast %373 : vector<1x8x1x16xf32> to vector<8x16xf32>
    %375 = vector.shape_cast %372 : vector<8x16xf32> to vector<1x8x1x16xf32>
    tpu.vector_store %arg5[%c0_241, %c0_242, %c4_243, %c0_244], %375 {strides = array<i32>} : memref<1x8x8x16xf32, #tpu.memory_space<vmem>>, vector<1x8x1x16xf32>,
    %376 = arith.addf %309, %372 : vector<8x16xf32>
    %377 = arith.mulf %372, %372 : vector<8x16xf32>
    %378 = arith.addf %311, %377 : vector<8x16xf32>
    %cst_245 = arith.constant 0.000000e+00 : f32
    %379 = vector.broadcast %cst_245 : f32 to vector<16x16xf32>
    %380 = vector.extract_strided_slice %24 {offsets = [0, 0], sizes = [8, 16], strides = [1, 1]} : vector<8x18xbf16> to vector<8x16xbf16>
    %c0_246 = arith.constant 0 : index
    %c0_247 = arith.constant 0 : index
    %c0_248 = arith.constant 0 : index
    %381 = vector.load %arg3[%c0_246, %c0_247, %c0_248] : memref<9x16x8xbf16, #tpu.memory_space<vmem>>, vector<1x16x8xbf16>
    %382 = vector.shape_cast %381 : vector<1x16x8xbf16> to vector<16x8xbf16>
    %cst_249 = arith.constant dense<0.000000e+00> : vector<16x16xf32>
    %383 = tpu.matmul %382, %380, %cst_249 {dimension_numbers = #tpu.dot_dimension_numbers<[1], [0], [0], [1], [0, 0, 1, 1], [], []>} : vector<16x8xbf16>, vector<8x16xbf16>, vector<16x16xf32> -> vector<16x16xf32>
    %384 = arith.addf %379, %383 : vector<16x16xf32>
    %385 = vector.extract_strided_slice %24 {offsets = [0, 1], sizes = [8, 16], strides = [1, 1]} : vector<8x18xbf16> to vector<8x16xbf16>
    %c1_250 = arith.constant 1 : index
    %c0_251 = arith.constant 0 : index
    %c0_252 = arith.constant 0 : index
    %386 = vector.load %arg3[%c1_250, %c0_251, %c0_252] : memref<9x16x8xbf16, #tpu.memory_space<vmem>>, vector<1x16x8xbf16>
    %387 = vector.shape_cast %386 : vector<1x16x8xbf16> to vector<16x8xbf16>
    %cst_253 = arith.constant dense<0.000000e+00> : vector<16x16xf32>
    %388 = tpu.matmul %387, %385, %cst_253 {dimension_numbers = #tpu.dot_dimension_numbers<[1], [0], [0], [1], [0, 0, 1, 1], [], []>} : vector<16x8xbf16>, vector<8x16xbf16>, vector<16x16xf32> -> vector<16x16xf32>
    %389 = arith.addf %384, %388 : vector<16x16xf32>
    %390 = vector.extract_strided_slice %24 {offsets = [0, 2], sizes = [8, 16], strides = [1, 1]} : vector<8x18xbf16> to vector<8x16xbf16>
    %c2_254 = arith.constant 2 : index
    %c0_255 = arith.constant 0 : index
    %c0_256 = arith.constant 0 : index
    %391 = vector.load %arg3[%c2_254, %c0_255, %c0_256] : memref<9x16x8xbf16, #tpu.memory_space<vmem>>, vector<1x16x8xbf16>
    %392 = vector.shape_cast %391 : vector<1x16x8xbf16> to vector<16x8xbf16>
    %cst_257 = arith.constant dense<0.000000e+00> : vector<16x16xf32>
    %393 = tpu.matmul %392, %390, %cst_257 {dimension_numbers = #tpu.dot_dimension_numbers<[1], [0], [0], [1], [0, 0, 1, 1], [], []>} : vector<16x8xbf16>, vector<8x16xbf16>, vector<16x16xf32> -> vector<16x16xf32>
    %394 = arith.addf %389, %393 : vector<16x16xf32>
    %395 = vector.extract_strided_slice %28 {offsets = [0, 0], sizes = [8, 16], strides = [1, 1]} : vector<8x18xbf16> to vector<8x16xbf16>
    %c3_258 = arith.constant 3 : index
    %c0_259 = arith.constant 0 : index
    %c0_260 = arith.constant 0 : index
    %396 = vector.load %arg3[%c3_258, %c0_259, %c0_260] : memref<9x16x8xbf16, #tpu.memory_space<vmem>>, vector<1x16x8xbf16>
    %397 = vector.shape_cast %396 : vector<1x16x8xbf16> to vector<16x8xbf16>
    %cst_261 = arith.constant dense<0.000000e+00> : vector<16x16xf32>
    %398 = tpu.matmul %397, %395, %cst_261 {dimension_numbers = #tpu.dot_dimension_numbers<[1], [0], [0], [1], [0, 0, 1, 1], [], []>} : vector<16x8xbf16>, vector<8x16xbf16>, vector<16x16xf32> -> vector<16x16xf32>
    %399 = arith.addf %394, %398 : vector<16x16xf32>
    %400 = vector.extract_strided_slice %28 {offsets = [0, 1], sizes = [8, 16], strides = [1, 1]} : vector<8x18xbf16> to vector<8x16xbf16>
    %c4_262 = arith.constant 4 : index
    %c0_263 = arith.constant 0 : index
    %c0_264 = arith.constant 0 : index
    %401 = vector.load %arg3[%c4_262, %c0_263, %c0_264] : memref<9x16x8xbf16, #tpu.memory_space<vmem>>, vector<1x16x8xbf16>
    %402 = vector.shape_cast %401 : vector<1x16x8xbf16> to vector<16x8xbf16>
    %cst_265 = arith.constant dense<0.000000e+00> : vector<16x16xf32>
    %403 = tpu.matmul %402, %400, %cst_265 {dimension_numbers = #tpu.dot_dimension_numbers<[1], [0], [0], [1], [0, 0, 1, 1], [], []>} : vector<16x8xbf16>, vector<8x16xbf16>, vector<16x16xf32> -> vector<16x16xf32>
    %404 = arith.addf %399, %403 : vector<16x16xf32>
    %405 = vector.extract_strided_slice %28 {offsets = [0, 2], sizes = [8, 16], strides = [1, 1]} : vector<8x18xbf16> to vector<8x16xbf16>
    %c5_266 = arith.constant 5 : index
    %c0_267 = arith.constant 0 : index
    %c0_268 = arith.constant 0 : index
    %406 = vector.load %arg3[%c5_266, %c0_267, %c0_268] : memref<9x16x8xbf16, #tpu.memory_space<vmem>>, vector<1x16x8xbf16>
    %407 = vector.shape_cast %406 : vector<1x16x8xbf16> to vector<16x8xbf16>
    %cst_269 = arith.constant dense<0.000000e+00> : vector<16x16xf32>
    %408 = tpu.matmul %407, %405, %cst_269 {dimension_numbers = #tpu.dot_dimension_numbers<[1], [0], [0], [1], [0, 0, 1, 1], [], []>} : vector<16x8xbf16>, vector<8x16xbf16>, vector<16x16xf32> -> vector<16x16xf32>
    %409 = arith.addf %404, %408 : vector<16x16xf32>
    %410 = vector.extract_strided_slice %32 {offsets = [0, 0], sizes = [8, 16], strides = [1, 1]} : vector<8x18xbf16> to vector<8x16xbf16>
    %c6_270 = arith.constant 6 : index
    %c0_271 = arith.constant 0 : index
    %c0_272 = arith.constant 0 : index
    %411 = vector.load %arg3[%c6_270, %c0_271, %c0_272] : memref<9x16x8xbf16, #tpu.memory_space<vmem>>, vector<1x16x8xbf16>
    %412 = vector.shape_cast %411 : vector<1x16x8xbf16> to vector<16x8xbf16>
    %cst_273 = arith.constant dense<0.000000e+00> : vector<16x16xf32>
    %413 = tpu.matmul %412, %410, %cst_273 {dimension_numbers = #tpu.dot_dimension_numbers<[1], [0], [0], [1], [0, 0, 1, 1], [], []>} : vector<16x8xbf16>, vector<8x16xbf16>, vector<16x16xf32> -> vector<16x16xf32>
    %414 = arith.addf %409, %413 : vector<16x16xf32>
    %415 = vector.extract_strided_slice %32 {offsets = [0, 1], sizes = [8, 16], strides = [1, 1]} : vector<8x18xbf16> to vector<8x16xbf16>
    %c7_274 = arith.constant 7 : index
    %c0_275 = arith.constant 0 : index
    %c0_276 = arith.constant 0 : index
    %416 = vector.load %arg3[%c7_274, %c0_275, %c0_276] : memref<9x16x8xbf16, #tpu.memory_space<vmem>>, vector<1x16x8xbf16>
    %417 = vector.shape_cast %416 : vector<1x16x8xbf16> to vector<16x8xbf16>
    %cst_277 = arith.constant dense<0.000000e+00> : vector<16x16xf32>
    %418 = tpu.matmul %417, %415, %cst_277 {dimension_numbers = #tpu.dot_dimension_numbers<[1], [0], [0], [1], [0, 0, 1, 1], [], []>} : vector<16x8xbf16>, vector<8x16xbf16>, vector<16x16xf32> -> vector<16x16xf32>
    %419 = arith.addf %414, %418 : vector<16x16xf32>
    %420 = vector.extract_strided_slice %32 {offsets = [0, 2], sizes = [8, 16], strides = [1, 1]} : vector<8x18xbf16> to vector<8x16xbf16>
    %c8_278 = arith.constant 8 : index
    %c0_279 = arith.constant 0 : index
    %c0_280 = arith.constant 0 : index
    %421 = vector.load %arg3[%c8_278, %c0_279, %c0_280] : memref<9x16x8xbf16, #tpu.memory_space<vmem>>, vector<1x16x8xbf16>
    %422 = vector.shape_cast %421 : vector<1x16x8xbf16> to vector<16x8xbf16>
    %cst_281 = arith.constant dense<0.000000e+00> : vector<16x16xf32>
    %423 = tpu.matmul %422, %420, %cst_281 {dimension_numbers = #tpu.dot_dimension_numbers<[1], [0], [0], [1], [0, 0, 1, 1], [], []>} : vector<16x8xbf16>, vector<8x16xbf16>, vector<16x16xf32> -> vector<16x16xf32>
    %424 = arith.addf %419, %423 : vector<16x16xf32>
    %425 = vector.broadcast %41 : vector<16x1xf32> to vector<16x16xf32>
    %426 = arith.addf %424, %425 : vector<16x16xf32>
    %427 = vector.extract_strided_slice %426 {offsets = [0, 0], sizes = [8, 16], strides = [1, 1]} : vector<16x16xf32> to vector<8x16xf32>
    %428 = vector.extract_strided_slice %426 {offsets = [8, 0], sizes = [8, 16], strides = [1, 1]} : vector<16x16xf32> to vector<8x16xf32>
    %cst_282 = arith.constant 0.000000e+00 : f32
    %429 = vector.broadcast %cst_282 : f32 to vector<8x16xf32>
    %430 = arith.cmpf ogt, %427, %429 : vector<8x16xf32>
    %cst_283 = arith.constant 2.000000e-01 : f32
    %431 = vector.broadcast %cst_283 : f32 to vector<8x16xf32>
    %432 = arith.mulf %431, %427 : vector<8x16xf32>
    %433 = arith.select %430, %427, %432 : vector<8x16xi1>, vector<8x16xf32>
    %434 = arith.negf %428 : vector<8x16xf32>
    %435 = math.exp %434 : vector<8x16xf32>
    %cst_284 = arith.constant 1.000000e+00 : f32
    %436 = vector.broadcast %cst_284 : f32 to vector<8x16xf32>
    %437 = arith.addf %436, %435 : vector<8x16xf32>
    %438 = arith.divf %436, %437 : vector<8x16xf32>
    %439 = arith.mulf %433, %438 : vector<8x16xf32>
    %c0_285 = arith.constant 0 : index
    %c0_286 = arith.constant 0 : index
    %c5_287 = arith.constant 5 : index
    %c0_288 = arith.constant 0 : index
    %440 = vector.load %arg5[%c0_285, %c0_286, %c5_287, %c0_288] : memref<1x8x8x16xf32, #tpu.memory_space<vmem>>, vector<1x8x1x16xf32>
    %441 = vector.shape_cast %440 : vector<1x8x1x16xf32> to vector<8x16xf32>
    %442 = vector.shape_cast %439 : vector<8x16xf32> to vector<1x8x1x16xf32>
    tpu.vector_store %arg5[%c0_285, %c0_286, %c5_287, %c0_288], %442 {strides = array<i32>} : memref<1x8x8x16xf32, #tpu.memory_space<vmem>>, vector<1x8x1x16xf32>,
    %443 = arith.addf %376, %439 : vector<8x16xf32>
    %444 = arith.mulf %439, %439 : vector<8x16xf32>
    %445 = arith.addf %378, %444 : vector<8x16xf32>
    %cst_289 = arith.constant 0.000000e+00 : f32
    %446 = vector.broadcast %cst_289 : f32 to vector<16x16xf32>
    %447 = vector.extract_strided_slice %28 {offsets = [0, 0], sizes = [8, 16], strides = [1, 1]} : vector<8x18xbf16> to vector<8x16xbf16>
    %c0_290 = arith.constant 0 : index
    %c0_291 = arith.constant 0 : index
    %c0_292 = arith.constant 0 : index
    %448 = vector.load %arg3[%c0_290, %c0_291, %c0_292] : memref<9x16x8xbf16, #tpu.memory_space<vmem>>, vector<1x16x8xbf16>
    %449 = vector.shape_cast %448 : vector<1x16x8xbf16> to vector<16x8xbf16>
    %cst_293 = arith.constant dense<0.000000e+00> : vector<16x16xf32>
    %450 = tpu.matmul %449, %447, %cst_293 {dimension_numbers = #tpu.dot_dimension_numbers<[1], [0], [0], [1], [0, 0, 1, 1], [], []>} : vector<16x8xbf16>, vector<8x16xbf16>, vector<16x16xf32> -> vector<16x16xf32>
    %451 = arith.addf %446, %450 : vector<16x16xf32>
    %452 = vector.extract_strided_slice %28 {offsets = [0, 1], sizes = [8, 16], strides = [1, 1]} : vector<8x18xbf16> to vector<8x16xbf16>
    %c1_294 = arith.constant 1 : index
    %c0_295 = arith.constant 0 : index
    %c0_296 = arith.constant 0 : index
    %453 = vector.load %arg3[%c1_294, %c0_295, %c0_296] : memref<9x16x8xbf16, #tpu.memory_space<vmem>>, vector<1x16x8xbf16>
    %454 = vector.shape_cast %453 : vector<1x16x8xbf16> to vector<16x8xbf16>
    %cst_297 = arith.constant dense<0.000000e+00> : vector<16x16xf32>
    %455 = tpu.matmul %454, %452, %cst_297 {dimension_numbers = #tpu.dot_dimension_numbers<[1], [0], [0], [1], [0, 0, 1, 1], [], []>} : vector<16x8xbf16>, vector<8x16xbf16>, vector<16x16xf32> -> vector<16x16xf32>
    %456 = arith.addf %451, %455 : vector<16x16xf32>
    %457 = vector.extract_strided_slice %28 {offsets = [0, 2], sizes = [8, 16], strides = [1, 1]} : vector<8x18xbf16> to vector<8x16xbf16>
    %c2_298 = arith.constant 2 : index
    %c0_299 = arith.constant 0 : index
    %c0_300 = arith.constant 0 : index
    %458 = vector.load %arg3[%c2_298, %c0_299, %c0_300] : memref<9x16x8xbf16, #tpu.memory_space<vmem>>, vector<1x16x8xbf16>
    %459 = vector.shape_cast %458 : vector<1x16x8xbf16> to vector<16x8xbf16>
    %cst_301 = arith.constant dense<0.000000e+00> : vector<16x16xf32>
    %460 = tpu.matmul %459, %457, %cst_301 {dimension_numbers = #tpu.dot_dimension_numbers<[1], [0], [0], [1], [0, 0, 1, 1], [], []>} : vector<16x8xbf16>, vector<8x16xbf16>, vector<16x16xf32> -> vector<16x16xf32>
    %461 = arith.addf %456, %460 : vector<16x16xf32>
    %462 = vector.extract_strided_slice %32 {offsets = [0, 0], sizes = [8, 16], strides = [1, 1]} : vector<8x18xbf16> to vector<8x16xbf16>
    %c3_302 = arith.constant 3 : index
    %c0_303 = arith.constant 0 : index
    %c0_304 = arith.constant 0 : index
    %463 = vector.load %arg3[%c3_302, %c0_303, %c0_304] : memref<9x16x8xbf16, #tpu.memory_space<vmem>>, vector<1x16x8xbf16>
    %464 = vector.shape_cast %463 : vector<1x16x8xbf16> to vector<16x8xbf16>
    %cst_305 = arith.constant dense<0.000000e+00> : vector<16x16xf32>
    %465 = tpu.matmul %464, %462, %cst_305 {dimension_numbers = #tpu.dot_dimension_numbers<[1], [0], [0], [1], [0, 0, 1, 1], [], []>} : vector<16x8xbf16>, vector<8x16xbf16>, vector<16x16xf32> -> vector<16x16xf32>
    %466 = arith.addf %461, %465 : vector<16x16xf32>
    %467 = vector.extract_strided_slice %32 {offsets = [0, 1], sizes = [8, 16], strides = [1, 1]} : vector<8x18xbf16> to vector<8x16xbf16>
    %c4_306 = arith.constant 4 : index
    %c0_307 = arith.constant 0 : index
    %c0_308 = arith.constant 0 : index
    %468 = vector.load %arg3[%c4_306, %c0_307, %c0_308] : memref<9x16x8xbf16, #tpu.memory_space<vmem>>, vector<1x16x8xbf16>
    %469 = vector.shape_cast %468 : vector<1x16x8xbf16> to vector<16x8xbf16>
    %cst_309 = arith.constant dense<0.000000e+00> : vector<16x16xf32>
    %470 = tpu.matmul %469, %467, %cst_309 {dimension_numbers = #tpu.dot_dimension_numbers<[1], [0], [0], [1], [0, 0, 1, 1], [], []>} : vector<16x8xbf16>, vector<8x16xbf16>, vector<16x16xf32> -> vector<16x16xf32>
    %471 = arith.addf %466, %470 : vector<16x16xf32>
    %472 = vector.extract_strided_slice %32 {offsets = [0, 2], sizes = [8, 16], strides = [1, 1]} : vector<8x18xbf16> to vector<8x16xbf16>
    %c5_310 = arith.constant 5 : index
    %c0_311 = arith.constant 0 : index
    %c0_312 = arith.constant 0 : index
    %473 = vector.load %arg3[%c5_310, %c0_311, %c0_312] : memref<9x16x8xbf16, #tpu.memory_space<vmem>>, vector<1x16x8xbf16>
    %474 = vector.shape_cast %473 : vector<1x16x8xbf16> to vector<16x8xbf16>
    %cst_313 = arith.constant dense<0.000000e+00> : vector<16x16xf32>
    %475 = tpu.matmul %474, %472, %cst_313 {dimension_numbers = #tpu.dot_dimension_numbers<[1], [0], [0], [1], [0, 0, 1, 1], [], []>} : vector<16x8xbf16>, vector<8x16xbf16>, vector<16x16xf32> -> vector<16x16xf32>
    %476 = arith.addf %471, %475 : vector<16x16xf32>
    %477 = vector.extract_strided_slice %36 {offsets = [0, 0], sizes = [8, 16], strides = [1, 1]} : vector<8x18xbf16> to vector<8x16xbf16>
    %c6_314 = arith.constant 6 : index
    %c0_315 = arith.constant 0 : index
    %c0_316 = arith.constant 0 : index
    %478 = vector.load %arg3[%c6_314, %c0_315, %c0_316] : memref<9x16x8xbf16, #tpu.memory_space<vmem>>, vector<1x16x8xbf16>
    %479 = vector.shape_cast %478 : vector<1x16x8xbf16> to vector<16x8xbf16>
    %cst_317 = arith.constant dense<0.000000e+00> : vector<16x16xf32>
    %480 = tpu.matmul %479, %477, %cst_317 {dimension_numbers = #tpu.dot_dimension_numbers<[1], [0], [0], [1], [0, 0, 1, 1], [], []>} : vector<16x8xbf16>, vector<8x16xbf16>, vector<16x16xf32> -> vector<16x16xf32>
    %481 = arith.addf %476, %480 : vector<16x16xf32>
    %482 = vector.extract_strided_slice %36 {offsets = [0, 1], sizes = [8, 16], strides = [1, 1]} : vector<8x18xbf16> to vector<8x16xbf16>
    %c7_318 = arith.constant 7 : index
    %c0_319 = arith.constant 0 : index
    %c0_320 = arith.constant 0 : index
    %483 = vector.load %arg3[%c7_318, %c0_319, %c0_320] : memref<9x16x8xbf16, #tpu.memory_space<vmem>>, vector<1x16x8xbf16>
    %484 = vector.shape_cast %483 : vector<1x16x8xbf16> to vector<16x8xbf16>
    %cst_321 = arith.constant dense<0.000000e+00> : vector<16x16xf32>
    %485 = tpu.matmul %484, %482, %cst_321 {dimension_numbers = #tpu.dot_dimension_numbers<[1], [0], [0], [1], [0, 0, 1, 1], [], []>} : vector<16x8xbf16>, vector<8x16xbf16>, vector<16x16xf32> -> vector<16x16xf32>
    %486 = arith.addf %481, %485 : vector<16x16xf32>
    %487 = vector.extract_strided_slice %36 {offsets = [0, 2], sizes = [8, 16], strides = [1, 1]} : vector<8x18xbf16> to vector<8x16xbf16>
    %c8_322 = arith.constant 8 : index
    %c0_323 = arith.constant 0 : index
    %c0_324 = arith.constant 0 : index
    %488 = vector.load %arg3[%c8_322, %c0_323, %c0_324] : memref<9x16x8xbf16, #tpu.memory_space<vmem>>, vector<1x16x8xbf16>
    %489 = vector.shape_cast %488 : vector<1x16x8xbf16> to vector<16x8xbf16>
    %cst_325 = arith.constant dense<0.000000e+00> : vector<16x16xf32>
    %490 = tpu.matmul %489, %487, %cst_325 {dimension_numbers = #tpu.dot_dimension_numbers<[1], [0], [0], [1], [0, 0, 1, 1], [], []>} : vector<16x8xbf16>, vector<8x16xbf16>, vector<16x16xf32> -> vector<16x16xf32>
    %491 = arith.addf %486, %490 : vector<16x16xf32>
    %492 = vector.broadcast %41 : vector<16x1xf32> to vector<16x16xf32>
    %493 = arith.addf %491, %492 : vector<16x16xf32>
    %494 = vector.extract_strided_slice %493 {offsets = [0, 0], sizes = [8, 16], strides = [1, 1]} : vector<16x16xf32> to vector<8x16xf32>
    %495 = vector.extract_strided_slice %493 {offsets = [8, 0], sizes = [8, 16], strides = [1, 1]} : vector<16x16xf32> to vector<8x16xf32>
    %cst_326 = arith.constant 0.000000e+00 : f32
    %496 = vector.broadcast %cst_326 : f32 to vector<8x16xf32>
    %497 = arith.cmpf ogt, %494, %496 : vector<8x16xf32>
    %cst_327 = arith.constant 2.000000e-01 : f32
    %498 = vector.broadcast %cst_327 : f32 to vector<8x16xf32>
    %499 = arith.mulf %498, %494 : vector<8x16xf32>
    %500 = arith.select %497, %494, %499 : vector<8x16xi1>, vector<8x16xf32>
    %501 = arith.negf %495 : vector<8x16xf32>
    %502 = math.exp %501 : vector<8x16xf32>
    %cst_328 = arith.constant 1.000000e+00 : f32
    %503 = vector.broadcast %cst_328 : f32 to vector<8x16xf32>
    %504 = arith.addf %503, %502 : vector<8x16xf32>
    %505 = arith.divf %503, %504 : vector<8x16xf32>
    %506 = arith.mulf %500, %505 : vector<8x16xf32>
    %c0_329 = arith.constant 0 : index
    %c0_330 = arith.constant 0 : index
    %c6_331 = arith.constant 6 : index
    %c0_332 = arith.constant 0 : index
    %507 = vector.load %arg5[%c0_329, %c0_330, %c6_331, %c0_332] : memref<1x8x8x16xf32, #tpu.memory_space<vmem>>, vector<1x8x1x16xf32>
    %508 = vector.shape_cast %507 : vector<1x8x1x16xf32> to vector<8x16xf32>
    %509 = vector.shape_cast %506 : vector<8x16xf32> to vector<1x8x1x16xf32>
    tpu.vector_store %arg5[%c0_329, %c0_330, %c6_331, %c0_332], %509 {strides = array<i32>} : memref<1x8x8x16xf32, #tpu.memory_space<vmem>>, vector<1x8x1x16xf32>,
    %510 = arith.addf %443, %506 : vector<8x16xf32>
    %511 = arith.mulf %506, %506 : vector<8x16xf32>
    %512 = arith.addf %445, %511 : vector<8x16xf32>
    %cst_333 = arith.constant 0.000000e+00 : f32
    %513 = vector.broadcast %cst_333 : f32 to vector<16x16xf32>
    %514 = vector.extract_strided_slice %32 {offsets = [0, 0], sizes = [8, 16], strides = [1, 1]} : vector<8x18xbf16> to vector<8x16xbf16>
    %c0_334 = arith.constant 0 : index
    %c0_335 = arith.constant 0 : index
    %c0_336 = arith.constant 0 : index
    %515 = vector.load %arg3[%c0_334, %c0_335, %c0_336] : memref<9x16x8xbf16, #tpu.memory_space<vmem>>, vector<1x16x8xbf16>
    %516 = vector.shape_cast %515 : vector<1x16x8xbf16> to vector<16x8xbf16>
    %cst_337 = arith.constant dense<0.000000e+00> : vector<16x16xf32>
    %517 = tpu.matmul %516, %514, %cst_337 {dimension_numbers = #tpu.dot_dimension_numbers<[1], [0], [0], [1], [0, 0, 1, 1], [], []>} : vector<16x8xbf16>, vector<8x16xbf16>, vector<16x16xf32> -> vector<16x16xf32>
    %518 = arith.addf %513, %517 : vector<16x16xf32>
    %519 = vector.extract_strided_slice %32 {offsets = [0, 1], sizes = [8, 16], strides = [1, 1]} : vector<8x18xbf16> to vector<8x16xbf16>
    %c1_338 = arith.constant 1 : index
    %c0_339 = arith.constant 0 : index
    %c0_340 = arith.constant 0 : index
    %520 = vector.load %arg3[%c1_338, %c0_339, %c0_340] : memref<9x16x8xbf16, #tpu.memory_space<vmem>>, vector<1x16x8xbf16>
    %521 = vector.shape_cast %520 : vector<1x16x8xbf16> to vector<16x8xbf16>
    %cst_341 = arith.constant dense<0.000000e+00> : vector<16x16xf32>
    %522 = tpu.matmul %521, %519, %cst_341 {dimension_numbers = #tpu.dot_dimension_numbers<[1], [0], [0], [1], [0, 0, 1, 1], [], []>} : vector<16x8xbf16>, vector<8x16xbf16>, vector<16x16xf32> -> vector<16x16xf32>
    %523 = arith.addf %518, %522 : vector<16x16xf32>
    %524 = vector.extract_strided_slice %32 {offsets = [0, 2], sizes = [8, 16], strides = [1, 1]} : vector<8x18xbf16> to vector<8x16xbf16>
    %c2_342 = arith.constant 2 : index
    %c0_343 = arith.constant 0 : index
    %c0_344 = arith.constant 0 : index
    %525 = vector.load %arg3[%c2_342, %c0_343, %c0_344] : memref<9x16x8xbf16, #tpu.memory_space<vmem>>, vector<1x16x8xbf16>
    %526 = vector.shape_cast %525 : vector<1x16x8xbf16> to vector<16x8xbf16>
    %cst_345 = arith.constant dense<0.000000e+00> : vector<16x16xf32>
    %527 = tpu.matmul %526, %524, %cst_345 {dimension_numbers = #tpu.dot_dimension_numbers<[1], [0], [0], [1], [0, 0, 1, 1], [], []>} : vector<16x8xbf16>, vector<8x16xbf16>, vector<16x16xf32> -> vector<16x16xf32>
    %528 = arith.addf %523, %527 : vector<16x16xf32>
    %529 = vector.extract_strided_slice %36 {offsets = [0, 0], sizes = [8, 16], strides = [1, 1]} : vector<8x18xbf16> to vector<8x16xbf16>
    %c3_346 = arith.constant 3 : index
    %c0_347 = arith.constant 0 : index
    %c0_348 = arith.constant 0 : index
    %530 = vector.load %arg3[%c3_346, %c0_347, %c0_348] : memref<9x16x8xbf16, #tpu.memory_space<vmem>>, vector<1x16x8xbf16>
    %531 = vector.shape_cast %530 : vector<1x16x8xbf16> to vector<16x8xbf16>
    %cst_349 = arith.constant dense<0.000000e+00> : vector<16x16xf32>
    %532 = tpu.matmul %531, %529, %cst_349 {dimension_numbers = #tpu.dot_dimension_numbers<[1], [0], [0], [1], [0, 0, 1, 1], [], []>} : vector<16x8xbf16>, vector<8x16xbf16>, vector<16x16xf32> -> vector<16x16xf32>
    %533 = arith.addf %528, %532 : vector<16x16xf32>
    %534 = vector.extract_strided_slice %36 {offsets = [0, 1], sizes = [8, 16], strides = [1, 1]} : vector<8x18xbf16> to vector<8x16xbf16>
    %c4_350 = arith.constant 4 : index
    %c0_351 = arith.constant 0 : index
    %c0_352 = arith.constant 0 : index
    %535 = vector.load %arg3[%c4_350, %c0_351, %c0_352] : memref<9x16x8xbf16, #tpu.memory_space<vmem>>, vector<1x16x8xbf16>
    %536 = vector.shape_cast %535 : vector<1x16x8xbf16> to vector<16x8xbf16>
    %cst_353 = arith.constant dense<0.000000e+00> : vector<16x16xf32>
    %537 = tpu.matmul %536, %534, %cst_353 {dimension_numbers = #tpu.dot_dimension_numbers<[1], [0], [0], [1], [0, 0, 1, 1], [], []>} : vector<16x8xbf16>, vector<8x16xbf16>, vector<16x16xf32> -> vector<16x16xf32>
    %538 = arith.addf %533, %537 : vector<16x16xf32>
    %539 = vector.extract_strided_slice %36 {offsets = [0, 2], sizes = [8, 16], strides = [1, 1]} : vector<8x18xbf16> to vector<8x16xbf16>
    %c5_354 = arith.constant 5 : index
    %c0_355 = arith.constant 0 : index
    %c0_356 = arith.constant 0 : index
    %540 = vector.load %arg3[%c5_354, %c0_355, %c0_356] : memref<9x16x8xbf16, #tpu.memory_space<vmem>>, vector<1x16x8xbf16>
    %541 = vector.shape_cast %540 : vector<1x16x8xbf16> to vector<16x8xbf16>
    %cst_357 = arith.constant dense<0.000000e+00> : vector<16x16xf32>
    %542 = tpu.matmul %541, %539, %cst_357 {dimension_numbers = #tpu.dot_dimension_numbers<[1], [0], [0], [1], [0, 0, 1, 1], [], []>} : vector<16x8xbf16>, vector<8x16xbf16>, vector<16x16xf32> -> vector<16x16xf32>
    %543 = arith.addf %538, %542 : vector<16x16xf32>
    %544 = vector.extract_strided_slice %40 {offsets = [0, 0], sizes = [8, 16], strides = [1, 1]} : vector<8x18xbf16> to vector<8x16xbf16>
    %c6_358 = arith.constant 6 : index
    %c0_359 = arith.constant 0 : index
    %c0_360 = arith.constant 0 : index
    %545 = vector.load %arg3[%c6_358, %c0_359, %c0_360] : memref<9x16x8xbf16, #tpu.memory_space<vmem>>, vector<1x16x8xbf16>
    %546 = vector.shape_cast %545 : vector<1x16x8xbf16> to vector<16x8xbf16>
    %cst_361 = arith.constant dense<0.000000e+00> : vector<16x16xf32>
    %547 = tpu.matmul %546, %544, %cst_361 {dimension_numbers = #tpu.dot_dimension_numbers<[1], [0], [0], [1], [0, 0, 1, 1], [], []>} : vector<16x8xbf16>, vector<8x16xbf16>, vector<16x16xf32> -> vector<16x16xf32>
    %548 = arith.addf %543, %547 : vector<16x16xf32>
    %549 = vector.extract_strided_slice %40 {offsets = [0, 1], sizes = [8, 16], strides = [1, 1]} : vector<8x18xbf16> to vector<8x16xbf16>
    %c7_362 = arith.constant 7 : index
    %c0_363 = arith.constant 0 : index
    %c0_364 = arith.constant 0 : index
    %550 = vector.load %arg3[%c7_362, %c0_363, %c0_364] : memref<9x16x8xbf16, #tpu.memory_space<vmem>>, vector<1x16x8xbf16>
    %551 = vector.shape_cast %550 : vector<1x16x8xbf16> to vector<16x8xbf16>
    %cst_365 = arith.constant dense<0.000000e+00> : vector<16x16xf32>
    %552 = tpu.matmul %551, %549, %cst_365 {dimension_numbers = #tpu.dot_dimension_numbers<[1], [0], [0], [1], [0, 0, 1, 1], [], []>} : vector<16x8xbf16>, vector<8x16xbf16>, vector<16x16xf32> -> vector<16x16xf32>
    %553 = arith.addf %548, %552 : vector<16x16xf32>
    %554 = vector.extract_strided_slice %40 {offsets = [0, 2], sizes = [8, 16], strides = [1, 1]} : vector<8x18xbf16> to vector<8x16xbf16>
    %c8_366 = arith.constant 8 : index
    %c0_367 = arith.constant 0 : index
    %c0_368 = arith.constant 0 : index
    %555 = vector.load %arg3[%c8_366, %c0_367, %c0_368] : memref<9x16x8xbf16, #tpu.memory_space<vmem>>, vector<1x16x8xbf16>
    %556 = vector.shape_cast %555 : vector<1x16x8xbf16> to vector<16x8xbf16>
    %cst_369 = arith.constant dense<0.000000e+00> : vector<16x16xf32>
    %557 = tpu.matmul %556, %554, %cst_369 {dimension_numbers = #tpu.dot_dimension_numbers<[1], [0], [0], [1], [0, 0, 1, 1], [], []>} : vector<16x8xbf16>, vector<8x16xbf16>, vector<16x16xf32> -> vector<16x16xf32>
    %558 = arith.addf %553, %557 : vector<16x16xf32>
    %559 = vector.broadcast %41 : vector<16x1xf32> to vector<16x16xf32>
    %560 = arith.addf %558, %559 : vector<16x16xf32>
    %561 = vector.extract_strided_slice %560 {offsets = [0, 0], sizes = [8, 16], strides = [1, 1]} : vector<16x16xf32> to vector<8x16xf32>
    %562 = vector.extract_strided_slice %560 {offsets = [8, 0], sizes = [8, 16], strides = [1, 1]} : vector<16x16xf32> to vector<8x16xf32>
    %cst_370 = arith.constant 0.000000e+00 : f32
    %563 = vector.broadcast %cst_370 : f32 to vector<8x16xf32>
    %564 = arith.cmpf ogt, %561, %563 : vector<8x16xf32>
    %cst_371 = arith.constant 2.000000e-01 : f32
    %565 = vector.broadcast %cst_371 : f32 to vector<8x16xf32>
    %566 = arith.mulf %565, %561 : vector<8x16xf32>
    %567 = arith.select %564, %561, %566 : vector<8x16xi1>, vector<8x16xf32>
    %568 = arith.negf %562 : vector<8x16xf32>
    %569 = math.exp %568 : vector<8x16xf32>
    %cst_372 = arith.constant 1.000000e+00 : f32
    %570 = vector.broadcast %cst_372 : f32 to vector<8x16xf32>
    %571 = arith.addf %570, %569 : vector<8x16xf32>
    %572 = arith.divf %570, %571 : vector<8x16xf32>
    %573 = arith.mulf %567, %572 : vector<8x16xf32>
    %c0_373 = arith.constant 0 : index
    %c0_374 = arith.constant 0 : index
    %c7_375 = arith.constant 7 : index
    %c0_376 = arith.constant 0 : index
    %574 = vector.load %arg5[%c0_373, %c0_374, %c7_375, %c0_376] : memref<1x8x8x16xf32, #tpu.memory_space<vmem>>, vector<1x8x1x16xf32>
    %575 = vector.shape_cast %574 : vector<1x8x1x16xf32> to vector<8x16xf32>
    %576 = vector.shape_cast %573 : vector<8x16xf32> to vector<1x8x1x16xf32>
    tpu.vector_store %arg5[%c0_373, %c0_374, %c7_375, %c0_376], %576 {strides = array<i32>} : memref<1x8x8x16xf32, #tpu.memory_space<vmem>>, vector<1x8x1x16xf32>,
    %577 = arith.addf %510, %573 : vector<8x16xf32>
    %578 = arith.mulf %573, %573 : vector<8x16xf32>
    %579 = arith.addf %512, %578 : vector<8x16xf32>
    %c0_377 = arith.constant 0 : index
    %c0_378 = arith.constant 0 : index
    %c0_379 = arith.constant 0 : index
    %c0_380 = arith.constant 0 : index
    %580 = vector.load %arg6[%c0_377, %c0_378, %c0_379, %c0_380] : memref<1x1x8x16xf32, #tpu.memory_space<vmem>>, vector<1x1x8x16xf32>
    %581 = vector.shape_cast %580 : vector<1x1x8x16xf32> to vector<8x16xf32>
    %582 = vector.shape_cast %577 : vector<8x16xf32> to vector<1x1x8x16xf32>
    tpu.vector_store %arg6[%c0_377, %c0_378, %c0_379, %c0_380], %582 {strides = array<i32>} : memref<1x1x8x16xf32, #tpu.memory_space<vmem>>, vector<1x1x8x16xf32>,
    %c0_381 = arith.constant 0 : index
    %c0_382 = arith.constant 0 : index
    %c0_383 = arith.constant 0 : index
    %c0_384 = arith.constant 0 : index
    %583 = vector.load %arg7[%c0_381, %c0_382, %c0_383, %c0_384] : memref<1x1x8x16xf32, #tpu.memory_space<vmem>>, vector<1x1x8x16xf32>
    %584 = vector.shape_cast %583 : vector<1x1x8x16xf32> to vector<8x16xf32>
    %585 = vector.shape_cast %579 : vector<8x16xf32> to vector<1x1x8x16xf32>
    tpu.vector_store %arg7[%c0_381, %c0_382, %c0_383, %c0_384], %585 {strides = array<i32>} : memref<1x1x8x16xf32, #tpu.memory_space<vmem>>, vector<1x1x8x16xf32>,
    return
  }
  func.func @transform_0(%arg0: i32, %arg1: i32) -> (i32, i32, i32, i32) {
    %c0_i32 = arith.constant 0 : i32
    %c0_i32_0 = arith.constant 0 : i32
    %c0_i32_1 = arith.constant 0 : i32
    %c0_i32_2 = arith.constant 0 : i32
    return %arg0, %c0_i32, %c0_i32_0, %c0_i32_1 : i32, i32, i32, i32
  }
  func.func @transform_1(%arg0: i32, %arg1: i32) -> (i32, i32, i32) {
    %c0_i32 = arith.constant 0 : i32
    %c0_i32_0 = arith.constant 0 : i32
    %c0_i32_1 = arith.constant 0 : i32
    %c0_i32_2 = arith.constant 0 : i32
    return %c0_i32, %c0_i32_0, %c0_i32_1 : i32, i32, i32
  }
  func.func @transform_2(%arg0: i32, %arg1: i32) -> (i32, i32) {
    %c0_i32 = arith.constant 0 : i32
    %c0_i32_0 = arith.constant 0 : i32
    %c0_i32_1 = arith.constant 0 : i32
    return %c0_i32, %c0_i32_0 : i32, i32
  }
  func.func @transform_3(%arg0: i32, %arg1: i32) -> (i32, i32, i32, i32) {
    %c0_i32 = arith.constant 0 : i32
    %c0_i32_0 = arith.constant 0 : i32
    %c0_i32_1 = arith.constant 0 : i32
    return %arg0, %c0_i32, %arg1, %c0_i32_0 : i32, i32, i32, i32
  }
  func.func @transform_4(%arg0: i32, %arg1: i32) -> (i32, i32, i32, i32) {
    %c0_i32 = arith.constant 0 : i32
    %c0_i32_0 = arith.constant 0 : i32
    %c0_i32_1 = arith.constant 0 : i32
    return %arg0, %arg1, %c0_i32, %c0_i32_0 : i32, i32, i32, i32
  }
  func.func @transform_5(%arg0: i32, %arg1: i32) -> (i32, i32, i32, i32) {
    %c0_i32 = arith.constant 0 : i32
    %c0_i32_0 = arith.constant 0 : i32
    %c0_i32_1 = arith.constant 0 : i32
    return %arg0, %arg1, %c0_i32, %c0_i32_0 : i32, i32, i32, i32
  }
}

</mosaic_0001>

<llo_original>
// kernel: tpu_custom_call.1
$region0: #{tpu_custom_call.1}
  #allocation0 [shape = 'u32[]', space=smem, size = 0x4, offset = 0x4, fixed_abs, tag = 'smem constant byte address 0x4 - core index']
  #allocation1 [shape = 'u32[144,128]{1,0:T(1,128)}', space=vmem, size = 0x12000, scoped, tag = 'internal scratch']
  %s0 = inlined_call_operand.hbm [shape: bf16[2,18,8,18], index: 0, kind: input, shape index: {}]
  %s1 = inlined_call_operand.vmem [shape: bf16[9,16,8], index: 1, kind: input, shape index: {}]
  %s2 = inlined_call_operand.vmem [shape: f32[16,1], index: 2, kind: input, shape index: {}]
  %s3 = inlined_call_operand.hbm [shape: f32[2,8,16,16], index: 3, kind: output, shape index: {0}]
  %s4 = inlined_call_operand.hbm [shape: f32[2,2,8,16], index: 4, kind: output, shape index: {1}]
  %s5 = inlined_call_operand.hbm [shape: f32[2,2,8,16], index: 5, kind: output, shape index: {2}]
  %6 = xla_tuple %s3, %s4, %s5
  %s7 = sld [smem:[#allocation0]]
  $region65: #{tpu_custom_call.1} parent=0
    _
  %s9 = ssub.s32 1, %s7
  %s10 = scalar_select 0, %s9, %s7
  $region1: #{tpu_custom_call.1} parent=0
    #allocation2 [shape = 'u8[73728]{0}', space=vmem, size = 0x12000, scoped, tag = 'input window, operand 0']
    #allocation3 [shape = 's32[2]{0}', space=sflag, size = 0x8, scoped, tag = 'scoped memory for tpu_custom_call.1']
    #allocation4 [shape = 's32[2]{0}', space=sflag, size = 0x8, scoped, tag = 'scoped memory for tpu_custom_call.1']
    #allocation5 [shape = 'u8[65536]{0}', space=vmem, size = 0x10000, scoped, tag = 'output window, operand 0']
    #allocation6 [shape = 'u8[8192]{0}', space=vmem, size = 0x2000, scoped, tag = 'output window, operand 1']
    #allocation7 [shape = 's32[2]{0}', space=sflag, size = 0x8, scoped, tag = 'scoped memory for tpu_custom_call.1']
    #allocation8 [shape = 'u8[8192]{0}', space=vmem, size = 0x2000, scoped, tag = 'output window, operand 2']
    %11 = vsyncpa [#allocation3], 0
    %s12 = scalar_lea.sflag [#allocation3], 1
    %13 = vsyncpa %s12, 0
    %14 = vsyncpa [#allocation4], 0
    %s15 = scalar_lea.sflag [#allocation4], 1
    %16 = vsyncpa %s15, 0
    %17 = vsyncpa [#allocation7], 0
    %s18 = scalar_lea.sflag [#allocation7], 1
    %19 = vsyncpa %s18, 0
    loop: start=0, step=1, limit=6
    $region2: #{tpu_custom_call.1} parent=1 // loop_pre_header
      _
    $region3: #{tpu_custom_call.1} parent=1 // loop_header
      %s21 = sphi 0, %s25
      %p22 = scmp.ge.s32.totalorder %s21, 6
      %s28 = sphi 0, %s40
      %s29 = sphi 0, %s36
      %s30 = sphi 0, %s28
      %s31 = sphi 0, %s29
      %s32 = sphi 0, %s30
      %s33 = sphi 0, %s31
      %s43 = sphi 0, %s45
      %s46 = sphi 0, %s43
      %s47 = sphi 0, %s46
      %s63 = sphi 0, %s47
      %s67 = sphi 0, %s67
      %s69 = sphi 0, %s67
      %s70 = sphi 0, %s69
      %s84 = sphi 0, %s70
      %s88 = sphi 0, %s88
      %s90 = sphi 0, %s88
      %s91 = sphi 0, %s90
      %s105 = sphi 0, %s91
      %s113 = sphi 0, %s115
      %s116 = sphi 0, %s113
      %s117 = sphi 0, %s116
      %s133 = sphi 0, %s117
      %s141 = sphi 0, %s143
      %s144 = sphi 0, %s141
      %s145 = sphi 0, %s144
      %s161 = sphi 0, %s145
      %s169 = sphi 0, %s171
      %s172 = sphi 0, %s169
      %s173 = sphi 0, %s172
      %s189 = sphi 0, %s173
    $region4: #{tpu_custom_call.1} parent=1 // loop_header_branch
      %24 = sbr.rel (%p22) target = $region8
    $region5: #{tpu_custom_call.1} parent=1 // loop_body
      %s26 = ssub.s32 %s21, 1
      %s27 = ssub.s32 %s21, 2
      %s34 = sadd.s32 1, %s29
      %p35 = scmp.ge.s32.totalorder %s34, 2
      %s36 = scalar_select %p35, 0, %s34
      %s37 = sadd.s32 1, %s28
      %s38 = scalar_select %p35, %s37, %s28
      %p39 = scmp.ge.s32.totalorder %s38, 2
      %s40 = scalar_select %p39, 0, %s38
      %s41 = ssub.s32 %s28, %s40
      %p42 = scmp.eq.s32.totalorder %s41, 0
      %s44 = sadd.s32 %s43, 1
      %s45 = scalar_select %p42, %s43, %s44
      %p48 = pneg %p42
      %p49 = scmp.eq.s32.totalorder %s21, 3
      %p50 = por %p48, %p49
      %p51 = scmp.ne.s32.totalorder %s43, %s46
      %p52 = scmp.eq.s32.totalorder %s21, 0
      %p53 = por %p51, %p52
      %p54 = scmp.ne.s32.totalorder %s43, %s46
      %p55 = scmp.eq.s32.totalorder %s26, 3
      %p56 = por %p54, %p55
      %p57 = scmp.ne.s32.totalorder %s46, %s47
      %p58 = scmp.eq.s32.totalorder %s26, 0
      %p59 = por %p57, %p58
      %p60 = scmp.ne.s32.totalorder %s46, %s47
      %p61 = scmp.eq.s32.totalorder %s27, 3
      %p62 = por %p60, %p61
      %p64 = scmp.ne.s32.totalorder %s47, %s63
      %p65 = scmp.eq.s32.totalorder %s27, 0
      %p66 = por %p64, %p65
      %s68 = sadd.s32 %s67, 1
      %p71 = scmp.eq.s32.totalorder %s21, 3
      %p72 = scmp.ne.s32.totalorder %s67, %s69
      %p73 = scmp.eq.s32.totalorder %s21, 0
      %p74 = por %p72, %p73
      %p75 = scmp.ne.s32.totalorder %s67, %s69
      %p76 = scmp.eq.s32.totalorder %s26, 3
      %p77 = por %p75, %p76
      %p78 = scmp.ne.s32.totalorder %s69, %s70
      %p79 = scmp.eq.s32.totalorder %s26, 0
      %p80 = por %p78, %p79
      %p81 = scmp.ne.s32.totalorder %s69, %s70
      %p82 = scmp.eq.s32.totalorder %s27, 3
      %p83 = por %p81, %p82
      %p85 = scmp.ne.s32.totalorder %s70, %s84
      %p86 = scmp.eq.s32.totalorder %s27, 0
      %p87 = por %p85, %p86
      %s89 = sadd.s32 %s88, 1
      %p92 = scmp.eq.s32.totalorder %s21, 3
      %p93 = scmp.ne.s32.totalorder %s88, %s90
      %p94 = scmp.eq.s32.totalorder %s21, 0
      %p95 = por %p93, %p94
      %p96 = scmp.ne.s32.totalorder %s88, %s90
      %p97 = scmp.eq.s32.totalorder %s26, 3
      %p98 = por %p96, %p97
      %p99 = scmp.ne.s32.totalorder %s90, %s91
      %p100 = scmp.eq.s32.totalorder %s26, 0
      %p101 = por %p99, %p100
      %p102 = scmp.ne.s32.totalorder %s90, %s91
      %p103 = scmp.eq.s32.totalorder %s27, 3
      %p104 = por %p102, %p103
      %p106 = scmp.ne.s32.totalorder %s91, %s105
      %p107 = scmp.eq.s32.totalorder %s27, 0
      %p108 = por %p106, %p107
      %s109 = ssub.s32 %s28, %s40
      %s110 = ssub.s32 %s29, %s36
      %s111 = sor.u32 %s109, %s110
      %p112 = scmp.eq.s32.totalorder %s111, 0
      %s114 = sadd.s32 %s113, 1
      %s115 = scalar_select %p112, %s113, %s114
      %p118 = pneg %p112
      %p119 = scmp.eq.s32.totalorder %s21, 3
      %p120 = por %p118, %p119
      %p121 = scmp.ne.s32.totalorder %s113, %s116
      %p122 = scmp.eq.s32.totalorder %s21, 0
      %p123 = por %p121, %p122
      %p124 = scmp.ne.s32.totalorder %s113, %s116
      %p125 = scmp.eq.s32.totalorder %s26, 3
      %p126 = por %p124, %p125
      %p127 = scmp.ne.s32.totalorder %s116, %s117
      %p128 = scmp.eq.s32.totalorder %s26, 0
      %p129 = por %p127, %p128
      %p130 = scmp.ne.s32.totalorder %s116, %s117
      %p131 = scmp.eq.s32.totalorder %s27, 3
      %p132 = por %p130, %p131
      %p134 = scmp.ne.s32.totalorder %s117, %s133
      %p135 = scmp.eq.s32.totalorder %s27, 0
      %p136 = por %p134, %p135
      %s137 = ssub.s32 %s28, %s40
      %s138 = ssub.s32 %s29, %s36
      %s139 = sor.u32 %s137, %s138
      %p140 = scmp.eq.s32.totalorder %s139, 0
      %s142 = sadd.s32 %s141, 1
      %s143 = scalar_select %p140, %s141, %s142
      %p146 = pneg %p140
      %p147 = scmp.eq.s32.totalorder %s21, 3
      %p148 = por %p146, %p147
      %p149 = scmp.ne.s32.totalorder %s141, %s144
      %p150 = scmp.eq.s32.totalorder %s21, 0
      %p151 = por %p149, %p150
      %p152 = scmp.ne.s32.totalorder %s141, %s144
      %p153 = scmp.eq.s32.totalorder %s26, 3
      %p154 = por %p152, %p153
      %p155 = scmp.ne.s32.totalorder %s144, %s145
      %p156 = scmp.eq.s32.totalorder %s26, 0
      %p157 = por %p155, %p156
      %p158 = scmp.ne.s32.totalorder %s144, %s145
      %p159 = scmp.eq.s32.totalorder %s27, 3
      %p160 = por %p158, %p159
      %p162 = scmp.ne.s32.totalorder %s145, %s161
      %p163 = scmp.eq.s32.totalorder %s27, 0
      %p164 = por %p162, %p163
      %s165 = ssub.s32 %s28, %s40
      %s166 = ssub.s32 %s29, %s36
      %s167 = sor.u32 %s165, %s166
      %p168 = scmp.eq.s32.totalorder %s167, 0
      %s170 = sadd.s32 %s169, 1
      %s171 = scalar_select %p168, %s169, %s170
      %p174 = pneg %p168
      %p175 = scmp.eq.s32.totalorder %s21, 3
      %p176 = por %p174, %p175
      %p177 = scmp.ne.s32.totalorder %s169, %s172
      %p178 = scmp.eq.s32.totalorder %s21, 0
      %p179 = por %p177, %p178
      %p180 = scmp.ne.s32.totalorder %s169, %s172
      %p181 = scmp.eq.s32.totalorder %s26, 3
      %p182 = por %p180, %p181
      %p183 = scmp.ne.s32.totalorder %s172, %s173
      %p184 = scmp.eq.s32.totalorder %s26, 0
      %p185 = por %p183, %p184
      %p186 = scmp.ne.s32.totalorder %s172, %s173
      %p187 = scmp.eq.s32.totalorder %s27, 3
      %p188 = por %p186, %p187
      %p190 = scmp.ne.s32.totalorder %s173, %s189
      %p191 = scmp.eq.s32.totalorder %s27, 0
      %p192 = por %p190, %p191
      %p193 = scmp.le.s32.totalorder 1, %s21
      %p194 = scmp.lt.s32.totalorder %s21, 5
      %p195 = pnand %p193, %p194
      %p196 = pneg %p195
      // Predicated region
      $region9: #{tpu_custom_call.1} parent=5 // pred_check
        _
      $region10: #{tpu_custom_call.1} parent=5 // pred_check_branch
        %198 = sbr.rel (%p195) target = $region12
      $region11: #{tpu_custom_call.1} parent=5 // pred_region
        %s199 = ssub.s32 %s21, 1
        // Predicated region
        $region13: #{tpu_custom_call.1} parent=11 // pred_check
          %p200 = pneg %p80
        $region14: #{tpu_custom_call.1} parent=11 // pred_check_branch
          %202 = sbr.rel (%p200) target = $region16
        $region15: #{tpu_custom_call.1} parent=11 // pred_region
          _
        $region16: #{tpu_custom_call.1} parent=11 // pred_fallthru
          _
        // Predicated region
        $region17: #{tpu_custom_call.1} parent=11 // pred_check
          %p203 = pneg %p101
        $region18: #{tpu_custom_call.1} parent=11 // pred_check_branch
          %205 = sbr.rel (%p203) target = $region20
        $region19: #{tpu_custom_call.1} parent=11 // pred_region
          _
        $region20: #{tpu_custom_call.1} parent=11 // pred_fallthru
          _
      $region12: #{tpu_custom_call.1} parent=5 // pred_fallthru
        _
      %p206 = scmp.lt.s32.totalorder %s21, 4
      // Predicated region
      $region21: #{tpu_custom_call.1} parent=5 // pred_check
        %p207 = pneg %p206
      $region22: #{tpu_custom_call.1} parent=5 // pred_check_branch
        %209 = sbr.rel (%p207) target = $region24
      $region23: #{tpu_custom_call.1} parent=5 // pred_region
        // Predicated region
        $region25: #{tpu_custom_call.1} parent=23 // pred_check
          %p210 = pneg %p53
        $region26: #{tpu_custom_call.1} parent=23 // pred_check_branch
          %212 = sbr.rel (%p210) target = $region28
        $region27: #{tpu_custom_call.1} parent=23 // pred_region
          %s213 = sand.u32 %s43, 1
          %s214 = scalar_lea.sflag [#allocation3], %s213
          %s215 = sand.u32 %s43, 1
          %s216 = smul.addr %s215, 72
          %s217 = scalar_lea.vmem [#allocation2], %s216
          %s219 = ssub.s32 1152, 1152
          %220 = vsyncadd %s214, %s219
          %s221 = smul.addr %s28, 18
          %s222 = smul.addr %s221, 64
          %s223 = scalar_lea.hbm %s0, %s222
          %s224 = sshll.u32 %s217, 4
          %s225 = int_to_ptr.vmem [resolvable:$true] %s224
          %230 = dma.hbm_to_vmem [thread:$0]  %s223, 1152, %s225, %s214, 64, 64, 4
        $region28: #{tpu_custom_call.1} parent=23 // pred_fallthru
          _
      $region24: #{tpu_custom_call.1} parent=5 // pred_fallthru
        _
      %p231 = scmp.le.s32.totalorder 1, %s21
      %p232 = scmp.lt.s32.totalorder %s21, 5
      %p233 = pnand %p231, %p232
      %p234 = pneg %p233
      // Predicated region
      $region29: #{tpu_custom_call.1} parent=5 // pred_check
        _
      $region30: #{tpu_custom_call.1} parent=5 // pred_check_branch
        %236 = sbr.rel (%p233) target = $region32
      $region31: #{tpu_custom_call.1} parent=5 // pred_region
        %s237 = ssub.s32 %s21, 1
        %s238 = sand.u32 %s46, 1
        %s239 = scalar_lea.sflag [#allocation3], %s238
        %s240 = sand.u32 %s46, 1
        %s241 = smul.addr %s240, 72
        %s242 = scalar_lea.vmem [#allocation2], %s241
        // Predicated region
        $region33: #{tpu_custom_call.1} parent=31 // pred_check
          %p243 = pneg %p59
        $region34: #{tpu_custom_call.1} parent=31 // pred_check_branch
          %245 = sbr.rel (%p243) target = $region36
        $region35: #{tpu_custom_call.1} parent=31 // pred_region
          %246 = dma.done %s239, 1152
        $region36: #{tpu_custom_call.1} parent=31 // pred_fallthru
          _
        %s247 = sand.u32 %s46, 1
        %s248 = scalar_lea.sflag [#allocation3], %s247
        %s249 = sand.u32 %s46, 1
        %s250 = smul.addr %s249, 72
        %s251 = scalar_lea.vmem [#allocation2], %s250
        %p252 = pneg %p59
        %p253 = pneg %p56
        %p254 = pneg %p80
        %p255 = pneg %p77
        %p256 = pneg %p101
        %p257 = pneg %p98
        %p258 = pneg %p129
        %p259 = pneg %p126
        %s260 = sand.u32 %s116, 1
        %s261 = scalar_lea.sflag [#allocation4], %s260
        %s262 = sand.u32 %s116, 1
        %s263 = smul.addr %s262, 64
        %s264 = scalar_lea.vmem [#allocation5], %s263
        %p265 = pneg %p157
        %p266 = pneg %p154
        %s267 = sand.u32 %s26, 1
        %s268 = scalar_lea.sflag [#allocation7], %s267
        %s269 = sand.u32 %s144, 1
        %s270 = smul.addr %s269, 8
        %s271 = scalar_lea.vmem [#allocation6], %s270
        %p272 = pneg %p185
        %p273 = pneg %p182
        %s274 = sand.u32 %s26, 1
        %s275 = scalar_lea.sflag [#allocation7], %s274
        %s276 = sand.u32 %s172, 1
        %s277 = smul.addr %s276, 8
        %s278 = scalar_lea.vmem [#allocation8], %s277
        %s280 = smul.u32 %s31, 8
        %s281 = smul.addr %s280, 4
        %s282 = scalar_lea.vmem %s242, %s281 [#allocation2]
        %v283 = vld [vmem:[%s282] sm:$0xf]
        %s284 = sadd.s32 %s280, 1
        %s285 = smul.addr %s284, 4
        %s286 = scalar_lea.vmem %s242, %s285 [#allocation2]
        %v287 = vld [vmem:[%s286] sm:$0xf]
        %s288 = sadd.s32 %s280, 2
        %s289 = smul.addr %s288, 4
        %s290 = scalar_lea.vmem %s242, %s289 [#allocation2]
        %v291 = vld [vmem:[%s290] sm:$0xf]
        %s292 = sadd.s32 %s280, 3
        %s293 = smul.addr %s292, 4
        %s294 = scalar_lea.vmem %s242, %s293 [#allocation2]
        %v295 = vld [vmem:[%s294] sm:$0xf]
        %s296 = sadd.s32 %s280, 4
        %s297 = smul.addr %s296, 4
        %s298 = scalar_lea.vmem %s242, %s297 [#allocation2]
        %v299 = vld [vmem:[%s298] sm:$0xf]
        %s300 = sadd.s32 %s280, 5
        %s301 = smul.addr %s300, 4
        %s302 = scalar_lea.vmem %s242, %s301 [#allocation2]
        %v303 = vld [vmem:[%s302] sm:$0xf]
        %s304 = sadd.s32 %s280, 6
        %s305 = smul.addr %s304, 4
        %s306 = scalar_lea.vmem %s242, %s305 [#allocation2]
        %v307 = vld [vmem:[%s306] sm:$0xf]
        %s308 = sadd.s32 %s280, 7
        %s309 = smul.addr %s308, 4
        %s310 = scalar_lea.vmem %s242, %s309 [#allocation2]
        %v311 = vld [vmem:[%s310] sm:$0xf]
        %s312 = sadd.s32 %s280, 8
        %s313 = smul.addr %s312, 4
        %s314 = scalar_lea.vmem %s242, %s313 [#allocation2]
        %v315 = vld [vmem:[%s314] sm:$0xf]
        %s316 = sadd.s32 %s280, 9
        %s317 = smul.addr %s316, 4
        %s318 = scalar_lea.vmem %s242, %s317 [#allocation2]
        %v319 = vld [vmem:[%s318] sm:$0xf]
        %v320 = vld [vmem:[%s2] sm:$0xff]
        %v321 = vld [vmem:[%s2 + $0x8] sm:$0xff]
        %v322 = vld [vmem:[%s1] sm:$0xf]
        %v323 = vld [vmem:[%s1 + $0x4] sm:$0xf]
        %s324 = scalar_lea.vmem %s1, 8
        %v325 = vld [vmem:[%s324] sm:$0xf]
        %v326 = vld [vmem:[%s324 + $0x4] sm:$0xf]
        %v329 = vunpack.c.l.b16 %v325
        %v330 = vunpack.c.l.b16 %v326
        %v331 = vpack.c.b16 %v330, %v329
        %v333 = vunpack.c.l.b16 %v283
        %v334 = vpack.c.b16 %v333, %v333
        %335 = vrot.lane.b32.xlu0 %v334, 127
        %v336 = vpop.permute.xlu0 %335
        %vm337 = vcmask 64512
        %v339 = vsel %vm337, %v331, 0
        %vm341 = vcmask 1043456
        %v343 = vsel %vm341, %v336, 0
        %345 = vmatprep.subr.bf16.mxu0 0
        %346 = vmatpush1.bf16.msra.mxu0 %v343
        %347 = vmatprep.subr.bf16.mxu0 0
        %348 = vmatpush1.bf16.msra.mxu0 0
        %349 = vmatprep.subr.bf16.mxu0 0
        %350 = vmatpush1.bf16.msra.mxu0 0
        %351 = vmatprep.subr.bf16.mxu0 0
        %352 = vmatpush1.bf16.msra.mxu0 0
        %353 = vmatprep.subr.bf16.mxu0 0
        %354 = vmatpush1.bf16.msra.mxu0 0
        %355 = vmatprep.subr.bf16.mxu0 0
        %356 = vmatpush1.bf16.msra.mxu0 0
        %357 = vmatprep.subr.bf16.mxu0 0
        %358 = vmatpush1.bf16.msra.mxu0 0
        %359 = vmatprep.subr.bf16.mxu0 0
        %360 = vmatpush1.bf16.msra.mxu0 0
        %361 = vmatprep.subr.bf16.mxu0 0
        %362 = vmatpush1.bf16.msra.mxu0 0
        %363 = vmatprep.subr.bf16.mxu0 0
        %364 = vmatpush1.bf16.msra.mxu0 0
        %365 = vmatprep.subr.bf16.mxu0 0
        %366 = vmatpush1.bf16.msra.mxu0 0
        %367 = vmatprep.subr.bf16.mxu0 0
        %368 = vmatpush1.bf16.msra.mxu0 0
        %369 = vmatprep.subr.bf16.mxu0 0
        %370 = vmatpush1.bf16.msra.mxu0 0
        %371 = vmatprep.subr.bf16.mxu0 0
        %372 = vmatpush1.bf16.msra.mxu0 0
        %373 = vmatprep.subr.bf16.mxu0 0
        %374 = vmatpush1.bf16.msra.mxu0 0
        %375 = vmatprep.subr.bf16.mxu0 0
        %376 = vmatpush1.bf16.msra.mxu0 0
        %377 = vmatprep.mubr.bf16.mxu0 0
        %378 = vmatmul.mubr.bf16.gmra.mrb[0].mxu0 %v339
        %v379 = vpop.f32.mrb[0].mxu0
        %v380 = vadd.f32 0.0, %v379
        %v381 = vpop.f32.mrb[0].mxu0
        %v382 = vpop.f32.mrb[0].mxu0
        %v383 = vadd.f32 0.0, %v382
        %v384 = vpop.f32.mrb[0].mxu0
        %385 = vdwg.mxu0
        %v388 = vunpack.c.l.b16 %v322
        %v389 = vunpack.c.l.b16 %v323
        %v390 = vpack.c.b16 %v389, %v388
        %v392 = vsel %vm337, %v390, 0
        %v395 = vsel %vm341, %v283, 0
        %397 = vmatprep.subr.bf16.mxu0 0
        %398 = vmatpush1.bf16.msra.mxu0 %v395
        %399 = vmatprep.subr.bf16.mxu0 0
        %400 = vmatpush1.bf16.msra.mxu0 0
        %401 = vmatprep.subr.bf16.mxu0 0
        %402 = vmatpush1.bf16.msra.mxu0 0
        %403 = vmatprep.subr.bf16.mxu0 0
        %404 = vmatpush1.bf16.msra.mxu0 0
        %405 = vmatprep.subr.bf16.mxu0 0
        %406 = vmatpush1.bf16.msra.mxu0 0
        %407 = vmatprep.subr.bf16.mxu0 0
        %408 = vmatpush1.bf16.msra.mxu0 0
        %409 = vmatprep.subr.bf16.mxu0 0
        %410 = vmatpush1.bf16.msra.mxu0 0
        %411 = vmatprep.subr.bf16.mxu0 0
        %412 = vmatpush1.bf16.msra.mxu0 0
        %413 = vmatprep.subr.bf16.mxu0 0
        %414 = vmatpush1.bf16.msra.mxu0 0
        %415 = vmatprep.subr.bf16.mxu0 0
        %416 = vmatpush1.bf16.msra.mxu0 0
        %417 = vmatprep.subr.bf16.mxu0 0
        %418 = vmatpush1.bf16.msra.mxu0 0
        %419 = vmatprep.subr.bf16.mxu0 0
        %420 = vmatpush1.bf16.msra.mxu0 0
        %421 = vmatprep.subr.bf16.mxu0 0
        %422 = vmatpush1.bf16.msra.mxu0 0
        %423 = vmatprep.subr.bf16.mxu0 0
        %424 = vmatpush1.bf16.msra.mxu0 0
        %425 = vmatprep.subr.bf16.mxu0 0
        %426 = vmatpush1.bf16.msra.mxu0 0
        %427 = vmatprep.subr.bf16.mxu0 0
        %428 = vmatpush1.bf16.msra.mxu0 0
        %429 = vmatprep.mubr.bf16.mxu0 0
        %430 = vmatmul.mubr.bf16.gmra.mrb[0].mxu0 %v392
        %v431 = vpop.f32.mrb[0].mxu0
        %v432 = vadd.f32 %v380, %v431
        %v433 = vpop.f32.mrb[0].mxu0
        %v434 = vpop.f32.mrb[0].mxu0
        %v435 = vadd.f32 %v383, %v434
        %v436 = vpop.f32.mrb[0].mxu0
        %437 = vdwg.mxu0
        %s438 = scalar_lea.vmem %s1, 16
        %v439 = vld [vmem:[%s438] sm:$0xf]
        %v440 = vld [vmem:[%s438 + $0x4] sm:$0xf]
        %v443 = vunpack.c.l.b16 %v439
        %v444 = vunpack.c.l.b16 %v440
        %v445 = vpack.c.b16 %v444, %v443
        %446 = vrot.lane.b32.xlu0 %v334, 126
        %v447 = vpop.permute.xlu0 %446
        %v449 = vsel %vm337, %v445, 0
        %v452 = vsel %vm341, %v447, 0
        %454 = vmatprep.subr.bf16.mxu0 0
        %455 = vmatpush1.bf16.msra.mxu0 %v452
        %456 = vmatprep.subr.bf16.mxu0 0
        %457 = vmatpush1.bf16.msra.mxu0 0
        %458 = vmatprep.subr.bf16.mxu0 0
        %459 = vmatpush1.bf16.msra.mxu0 0
        %460 = vmatprep.subr.bf16.mxu0 0
        %461 = vmatpush1.bf16.msra.mxu0 0
        %462 = vmatprep.subr.bf16.mxu0 0
        %463 = vmatpush1.bf16.msra.mxu0 0
        %464 = vmatprep.subr.bf16.mxu0 0
        %465 = vmatpush1.bf16.msra.mxu0 0
        %466 = vmatprep.subr.bf16.mxu0 0
        %467 = vmatpush1.bf16.msra.mxu0 0
        %468 = vmatprep.subr.bf16.mxu0 0
        %469 = vmatpush1.bf16.msra.mxu0 0
        %470 = vmatprep.subr.bf16.mxu0 0
        %471 = vmatpush1.bf16.msra.mxu0 0
        %472 = vmatprep.subr.bf16.mxu0 0
        %473 = vmatpush1.bf16.msra.mxu0 0
        %474 = vmatprep.subr.bf16.mxu0 0
        %475 = vmatpush1.bf16.msra.mxu0 0
        %476 = vmatprep.subr.bf16.mxu0 0
        %477 = vmatpush1.bf16.msra.mxu0 0
        %478 = vmatprep.subr.bf16.mxu0 0
        %479 = vmatpush1.bf16.msra.mxu0 0
        %480 = vmatprep.subr.bf16.mxu0 0
        %481 = vmatpush1.bf16.msra.mxu0 0
        %482 = vmatprep.subr.bf16.mxu0 0
        %483 = vmatpush1.bf16.msra.mxu0 0
        %484 = vmatprep.subr.bf16.mxu0 0
        %485 = vmatpush1.bf16.msra.mxu0 0
        %486 = vmatprep.mubr.bf16.mxu0 0
        %487 = vmatmul.mubr.bf16.gmra.mrb[0].mxu0 %v449
        %v488 = vpop.f32.mrb[0].mxu0
        %v489 = vadd.f32 0.0, %v488
        %v490 = vpop.f32.mrb[0].mxu0
        %v491 = vpop.f32.mrb[0].mxu0
        %v492 = vadd.f32 0.0, %v491
        %v493 = vpop.f32.mrb[0].mxu0
        %494 = vdwg.mxu0
        %v495 = vadd.f32 %v432, %v489
        %v496 = vadd.f32 %v435, %v492
        %s497 = scalar_lea.vmem %s1, 24
        %v498 = vld [vmem:[%s497] sm:$0xf]
        %v499 = vld [vmem:[%s497 + $0x4] sm:$0xf]
        %v502 = vunpack.c.l.b16 %v498
        %v503 = vunpack.c.l.b16 %v499
        %v504 = vpack.c.b16 %v503, %v502
        %v506 = vsel %vm337, %v504, 0
        %v509 = vsel %vm341, %v287, 0
        %511 = vmatprep.subr.bf16.mxu0 0
        %512 = vmatpush1.bf16.msra.mxu0 %v509
        %513 = vmatprep.subr.bf16.mxu0 0
        %514 = vmatpush1.bf16.msra.mxu0 0
        %515 = vmatprep.subr.bf16.mxu0 0
        %516 = vmatpush1.bf16.msra.mxu0 0
        %517 = vmatprep.subr.bf16.mxu0 0
        %518 = vmatpush1.bf16.msra.mxu0 0
        %519 = vmatprep.subr.bf16.mxu0 0
        %520 = vmatpush1.bf16.msra.mxu0 0
        %521 = vmatprep.subr.bf16.mxu0 0
        %522 = vmatpush1.bf16.msra.mxu0 0
        %523 = vmatprep.subr.bf16.mxu0 0
        %524 = vmatpush1.bf16.msra.mxu0 0
        %525 = vmatprep.subr.bf16.mxu0 0
        %526 = vmatpush1.bf16.msra.mxu0 0
        %527 = vmatprep.subr.bf16.mxu0 0
        %528 = vmatpush1.bf16.msra.mxu0 0
        %529 = vmatprep.subr.bf16.mxu0 0
        %530 = vmatpush1.bf16.msra.mxu0 0
        %531 = vmatprep.subr.bf16.mxu0 0
        %532 = vmatpush1.bf16.msra.mxu0 0
        %533 = vmatprep.subr.bf16.mxu0 0
        %534 = vmatpush1.bf16.msra.mxu0 0
        %535 = vmatprep.subr.bf16.mxu0 0
        %536 = vmatpush1.bf16.msra.mxu0 0
        %537 = vmatprep.subr.bf16.mxu0 0
        %538 = vmatpush1.bf16.msra.mxu0 0
        %539 = vmatprep.subr.bf16.mxu0 0
        %540 = vmatpush1.bf16.msra.mxu0 0
        %541 = vmatprep.subr.bf16.mxu0 0
        %542 = vmatpush1.bf16.msra.mxu0 0
        %543 = vmatprep.mubr.bf16.mxu0 0
        %544 = vmatmul.mubr.bf16.gmra.mrb[0].mxu0 %v506
        %v545 = vpop.f32.mrb[0].mxu0
        %v546 = vadd.f32 0.0, %v545
        %v547 = vpop.f32.mrb[0].mxu0
        %v548 = vpop.f32.mrb[0].mxu0
        %v549 = vadd.f32 0.0, %v548
        %v550 = vpop.f32.mrb[0].mxu0
        %551 = vdwg.mxu0
        %v552 = vadd.f32 %v495, %v546
        %v553 = vadd.f32 %v496, %v549
        %s554 = scalar_lea.vmem %s1, 32
        %v555 = vld [vmem:[%s554] sm:$0xf]
        %v556 = vld [vmem:[%s554 + $0x4] sm:$0xf]
        %v559 = vunpack.c.l.b16 %v555
        %v560 = vunpack.c.l.b16 %v556
        %v561 = vpack.c.b16 %v560, %v559
        %v563 = vunpack.c.l.b16 %v287
        %v564 = vpack.c.b16 %v563, %v563
        %565 = vrot.lane.b32.xlu0 %v564, 127
        %v566 = vpop.permute.xlu0 %565
        %v568 = vsel %vm337, %v561, 0
        %v571 = vsel %vm341, %v566, 0
        %573 = vmatprep.subr.bf16.mxu0 0
        %574 = vmatpush1.bf16.msra.mxu0 %v571
        %575 = vmatprep.subr.bf16.mxu0 0
        %576 = vmatpush1.bf16.msra.mxu0 0
        %577 = vmatprep.subr.bf16.mxu0 0
        %578 = vmatpush1.bf16.msra.mxu0 0
        %579 = vmatprep.subr.bf16.mxu0 0
        %580 = vmatpush1.bf16.msra.mxu0 0
        %581 = vmatprep.subr.bf16.mxu0 0
        %582 = vmatpush1.bf16.msra.mxu0 0
        %583 = vmatprep.subr.bf16.mxu0 0
        %584 = vmatpush1.bf16.msra.mxu0 0
        %585 = vmatprep.subr.bf16.mxu0 0
        %586 = vmatpush1.bf16.msra.mxu0 0
        %587 = vmatprep.subr.bf16.mxu0 0
        %588 = vmatpush1.bf16.msra.mxu0 0
        %589 = vmatprep.subr.bf16.mxu0 0
        %590 = vmatpush1.bf16.msra.mxu0 0
        %591 = vmatprep.subr.bf16.mxu0 0
        %592 = vmatpush1.bf16.msra.mxu0 0
        %593 = vmatprep.subr.bf16.mxu0 0
        %594 = vmatpush1.bf16.msra.mxu0 0
        %595 = vmatprep.subr.bf16.mxu0 0
        %596 = vmatpush1.bf16.msra.mxu0 0
        %597 = vmatprep.subr.bf16.mxu0 0
        %598 = vmatpush1.bf16.msra.mxu0 0
        %599 = vmatprep.subr.bf16.mxu0 0
        %600 = vmatpush1.bf16.msra.mxu0 0
        %601 = vmatprep.subr.bf16.mxu0 0
        %602 = vmatpush1.bf16.msra.mxu0 0
        %603 = vmatprep.subr.bf16.mxu0 0
        %604 = vmatpush1.bf16.msra.mxu0 0
        %605 = vmatprep.mubr.bf16.mxu0 0
        %606 = vmatmul.mubr.bf16.gmra.mrb[0].mxu0 %v568
        %v607 = vpop.f32.mrb[0].mxu0
        %v608 = vadd.f32 0.0, %v607
        %v609 = vpop.f32.mrb[0].mxu0
        %v610 = vpop.f32.mrb[0].mxu0
        %v611 = vadd.f32 0.0, %v610
        %v612 = vpop.f32.mrb[0].mxu0
        %613 = vdwg.mxu0
        %v614 = vadd.f32 %v552, %v608
        %v615 = vadd.f32 %v553, %v611
        %s616 = scalar_lea.vmem %s1, 40
        %v617 = vld [vmem:[%s616] sm:$0xf]
        %v618 = vld [vmem:[%s616 + $0x4] sm:$0xf]
        %v621 = vunpack.c.l.b16 %v617
        %v622 = vunpack.c.l.b16 %v618
        %v623 = vpack.c.b16 %v622, %v621
        %624 = vrot.lane.b32.xlu0 %v564, 126
        %v625 = vpop.permute.xlu0 %624
        %v627 = vsel %vm337, %v623, 0
        %v630 = vsel %vm341, %v625, 0
        %632 = vmatprep.subr.bf16.mxu0 0
        %633 = vmatpush1.bf16.msra.mxu0 %v630
        %634 = vmatprep.subr.bf16.mxu0 0
        %635 = vmatpush1.bf16.msra.mxu0 0
        %636 = vmatprep.subr.bf16.mxu0 0
        %637 = vmatpush1.bf16.msra.mxu0 0
        %638 = vmatprep.subr.bf16.mxu0 0
        %639 = vmatpush1.bf16.msra.mxu0 0
        %640 = vmatprep.subr.bf16.mxu0 0
        %641 = vmatpush1.bf16.msra.mxu0 0
        %642 = vmatprep.subr.bf16.mxu0 0
        %643 = vmatpush1.bf16.msra.mxu0 0
        %644 = vmatprep.subr.bf16.mxu0 0
        %645 = vmatpush1.bf16.msra.mxu0 0
        %646 = vmatprep.subr.bf16.mxu0 0
        %647 = vmatpush1.bf16.msra.mxu0 0
        %648 = vmatprep.subr.bf16.mxu0 0
        %649 = vmatpush1.bf16.msra.mxu0 0
        %650 = vmatprep.subr.bf16.mxu0 0
        %651 = vmatpush1.bf16.msra.mxu0 0
        %652 = vmatprep.subr.bf16.mxu0 0
        %653 = vmatpush1.bf16.msra.mxu0 0
        %654 = vmatprep.subr.bf16.mxu0 0
        %655 = vmatpush1.bf16.msra.mxu0 0
        %656 = vmatprep.subr.bf16.mxu0 0
        %657 = vmatpush1.bf16.msra.mxu0 0
        %658 = vmatprep.subr.bf16.mxu0 0
        %659 = vmatpush1.bf16.msra.mxu0 0
        %660 = vmatprep.subr.bf16.mxu0 0
        %661 = vmatpush1.bf16.msra.mxu0 0
        %662 = vmatprep.subr.bf16.mxu0 0
        %663 = vmatpush1.bf16.msra.mxu0 0
        %664 = vmatprep.mubr.bf16.mxu0 0
        %665 = vmatmul.mubr.bf16.gmra.mrb[0].mxu0 %v627
        %v666 = vpop.f32.mrb[0].mxu0
        %v667 = vadd.f32 0.0, %v666
        %v668 = vpop.f32.mrb[0].mxu0
        %v669 = vpop.f32.mrb[0].mxu0
        %v670 = vadd.f32 0.0, %v669
        %v671 = vpop.f32.mrb[0].mxu0
        %672 = vdwg.mxu0
        %v673 = vadd.f32 %v614, %v667
        %v674 = vadd.f32 %v615, %v670
        %s675 = scalar_lea.vmem %s1, 48
        %v676 = vld [vmem:[%s675] sm:$0xf]
        %v677 = vld [vmem:[%s675 + $0x4] sm:$0xf]
        %v680 = vunpack.c.l.b16 %v676
        %v681 = vunpack.c.l.b16 %v677
        %v682 = vpack.c.b16 %v681, %v680
        %v684 = vsel %vm337, %v682, 0
        %v687 = vsel %vm341, %v291, 0
        %689 = vmatprep.subr.bf16.mxu0 0
        %690 = vmatpush1.bf16.msra.mxu0 %v687
        %691 = vmatprep.subr.bf16.mxu0 0
        %692 = vmatpush1.bf16.msra.mxu0 0
        %693 = vmatprep.subr.bf16.mxu0 0
        %694 = vmatpush1.bf16.msra.mxu0 0
        %695 = vmatprep.subr.bf16.mxu0 0
        %696 = vmatpush1.bf16.msra.mxu0 0
        %697 = vmatprep.subr.bf16.mxu0 0
        %698 = vmatpush1.bf16.msra.mxu0 0
        %699 = vmatprep.subr.bf16.mxu0 0
        %700 = vmatpush1.bf16.msra.mxu0 0
        %701 = vmatprep.subr.bf16.mxu0 0
        %702 = vmatpush1.bf16.msra.mxu0 0
        %703 = vmatprep.subr.bf16.mxu0 0
        %704 = vmatpush1.bf16.msra.mxu0 0
        %705 = vmatprep.subr.bf16.mxu0 0
        %706 = vmatpush1.bf16.msra.mxu0 0
        %707 = vmatprep.subr.bf16.mxu0 0
        %708 = vmatpush1.bf16.msra.mxu0 0
        %709 = vmatprep.subr.bf16.mxu0 0
        %710 = vmatpush1.bf16.msra.mxu0 0
        %711 = vmatprep.subr.bf16.mxu0 0
        %712 = vmatpush1.bf16.msra.mxu0 0
        %713 = vmatprep.subr.bf16.mxu0 0
        %714 = vmatpush1.bf16.msra.mxu0 0
        %715 = vmatprep.subr.bf16.mxu0 0
        %716 = vmatpush1.bf16.msra.mxu0 0
        %717 = vmatprep.subr.bf16.mxu0 0
        %718 = vmatpush1.bf16.msra.mxu0 0
        %719 = vmatprep.subr.bf16.mxu0 0
        %720 = vmatpush1.bf16.msra.mxu0 0
        %721 = vmatprep.mubr.bf16.mxu0 0
        %722 = vmatmul.mubr.bf16.gmra.mrb[0].mxu0 %v684
        %v723 = vpop.f32.mrb[0].mxu0
        %v724 = vadd.f32 0.0, %v723
        %v725 = vpop.f32.mrb[0].mxu0
        %v726 = vpop.f32.mrb[0].mxu0
        %v727 = vadd.f32 0.0, %v726
        %v728 = vpop.f32.mrb[0].mxu0
        %729 = vdwg.mxu0
        %v730 = vadd.f32 %v673, %v724
        %v731 = vadd.f32 %v674, %v727
        %s732 = scalar_lea.vmem %s1, 56
        %v733 = vld [vmem:[%s732] sm:$0xf]
        %v734 = vld [vmem:[%s732 + $0x4] sm:$0xf]
        %v737 = vunpack.c.l.b16 %v733
        %v738 = vunpack.c.l.b16 %v734
        %v739 = vpack.c.b16 %v738, %v737
        %v741 = vunpack.c.l.b16 %v291
        %v742 = vpack.c.b16 %v741, %v741
        %743 = vrot.lane.b32.xlu0 %v742, 127
        %v744 = vpop.permute.xlu0 %743
        %v746 = vsel %vm337, %v739, 0
        %v749 = vsel %vm341, %v744, 0
        %751 = vmatprep.subr.bf16.mxu0 0
        %752 = vmatpush1.bf16.msra.mxu0 %v749
        %753 = vmatprep.subr.bf16.mxu0 0
        %754 = vmatpush1.bf16.msra.mxu0 0
        %755 = vmatprep.subr.bf16.mxu0 0
        %756 = vmatpush1.bf16.msra.mxu0 0
        %757 = vmatprep.subr.bf16.mxu0 0
        %758 = vmatpush1.bf16.msra.mxu0 0
        %759 = vmatprep.subr.bf16.mxu0 0
        %760 = vmatpush1.bf16.msra.mxu0 0
        %761 = vmatprep.subr.bf16.mxu0 0
        %762 = vmatpush1.bf16.msra.mxu0 0
        %763 = vmatprep.subr.bf16.mxu0 0
        %764 = vmatpush1.bf16.msra.mxu0 0
        %765 = vmatprep.subr.bf16.mxu0 0
        %766 = vmatpush1.bf16.msra.mxu0 0
        %767 = vmatprep.subr.bf16.mxu0 0
        %768 = vmatpush1.bf16.msra.mxu0 0
        %769 = vmatprep.subr.bf16.mxu0 0
        %770 = vmatpush1.bf16.msra.mxu0 0
        %771 = vmatprep.subr.bf16.mxu0 0
        %772 = vmatpush1.bf16.msra.mxu0 0
        %773 = vmatprep.subr.bf16.mxu0 0
        %774 = vmatpush1.bf16.msra.mxu0 0
        %775 = vmatprep.subr.bf16.mxu0 0
        %776 = vmatpush1.bf16.msra.mxu0 0
        %777 = vmatprep.subr.bf16.mxu0 0
        %778 = vmatpush1.bf16.msra.mxu0 0
        %779 = vmatprep.subr.bf16.mxu0 0
        %780 = vmatpush1.bf16.msra.mxu0 0
        %781 = vmatprep.subr.bf16.mxu0 0
        %782 = vmatpush1.bf16.msra.mxu0 0
        %783 = vmatprep.mubr.bf16.mxu0 0
        %784 = vmatmul.mubr.bf16.gmra.mrb[0].mxu0 %v746
        %v785 = vpop.f32.mrb[0].mxu0
        %v786 = vadd.f32 0.0, %v785
        %v787 = vpop.f32.mrb[0].mxu0
        %v788 = vpop.f32.mrb[0].mxu0
        %v789 = vadd.f32 0.0, %v788
        %v790 = vpop.f32.mrb[0].mxu0
        %791 = vdwg.mxu0
        %v792 = vadd.f32 %v730, %v786
        %v793 = vadd.f32 %v731, %v789
        %s794 = scalar_lea.vmem %s1, 64
        %v795 = vld [vmem:[%s794] sm:$0xf]
        %v796 = vld [vmem:[%s794 + $0x4] sm:$0xf]
        %v799 = vunpack.c.l.b16 %v795
        %v800 = vunpack.c.l.b16 %v796
        %v801 = vpack.c.b16 %v800, %v799
        %802 = vrot.lane.b32.xlu0 %v742, 126
        %v803 = vpop.permute.xlu0 %802
        %v805 = vsel %vm337, %v801, 0
        %v808 = vsel %vm341, %v803, 0
        %810 = vmatprep.subr.bf16.mxu0 0
        %811 = vmatpush1.bf16.msra.mxu0 %v808
        %812 = vmatprep.subr.bf16.mxu0 0
        %813 = vmatpush1.bf16.msra.mxu0 0
        %814 = vmatprep.subr.bf16.mxu0 0
        %815 = vmatpush1.bf16.msra.mxu0 0
        %816 = vmatprep.subr.bf16.mxu0 0
        %817 = vmatpush1.bf16.msra.mxu0 0
        %818 = vmatprep.subr.bf16.mxu0 0
        %819 = vmatpush1.bf16.msra.mxu0 0
        %820 = vmatprep.subr.bf16.mxu0 0
        %821 = vmatpush1.bf16.msra.mxu0 0
        %822 = vmatprep.subr.bf16.mxu0 0
        %823 = vmatpush1.bf16.msra.mxu0 0
        %824 = vmatprep.subr.bf16.mxu0 0
        %825 = vmatpush1.bf16.msra.mxu0 0
        %826 = vmatprep.subr.bf16.mxu0 0
        %827 = vmatpush1.bf16.msra.mxu0 0
        %828 = vmatprep.subr.bf16.mxu0 0
        %829 = vmatpush1.bf16.msra.mxu0 0
        %830 = vmatprep.subr.bf16.mxu0 0
        %831 = vmatpush1.bf16.msra.mxu0 0
        %832 = vmatprep.subr.bf16.mxu0 0
        %833 = vmatpush1.bf16.msra.mxu0 0
        %834 = vmatprep.subr.bf16.mxu0 0
        %835 = vmatpush1.bf16.msra.mxu0 0
        %836 = vmatprep.subr.bf16.mxu0 0
        %837 = vmatpush1.bf16.msra.mxu0 0
        %838 = vmatprep.subr.bf16.mxu0 0
        %839 = vmatpush1.bf16.msra.mxu0 0
        %840 = vmatprep.subr.bf16.mxu0 0
        %841 = vmatpush1.bf16.msra.mxu0 0
        %842 = vmatprep.mubr.bf16.mxu0 0
        %843 = vmatmul.mubr.bf16.gmra.mrb[0].mxu0 %v805
        %v844 = vpop.f32.mrb[0].mxu0
        %v845 = vadd.f32 0.0, %v844
        %v846 = vpop.f32.mrb[0].mxu0
        %v847 = vpop.f32.mrb[0].mxu0
        %v848 = vadd.f32 0.0, %v847
        %v849 = vpop.f32.mrb[0].mxu0
        %850 = vdwg.mxu0
        %v851 = vadd.f32 %v792, %v845
        %v852 = vadd.f32 %v793, %v848
        %854 = vset.pattern.permute.xlu0 0
        %855 = vperm.xlu0 %854, %v320
        %v856 = vpop.permute.xlu0 %855
        %859 = vset.pattern.permute.xlu0 0
        %860 = vperm.xlu0 %859, %v321
        %v861 = vpop.permute.xlu0 %860
        %v863 = vadd.f32 %v851, %v856
        %v864 = vadd.f32 %v852, %v861
        %vm865 = vcmp.gt.f32.partialorder %v863, 0.0
        %v866 = vmul.f32 %v863, 0.2
        %v867 = vsel %vm865, %v863, %v866
        %v868 = vxor.u32 %v864, 2147483648
        %v869 = vmul.f32 %v868, 1.442695
        %v870 = vpow.pop %v869
        %v871 = vadd.f32 %v870, 1.0
        %v872 = vrcp.pop %v871
        %v873 = vmul.f32 1.0, %v872
        %v874 = vmul.f32 %v867, %v873
        %v876 = vcombine.high %v874, %v874
        %v878 = vunpack.c.l.s4 1966171168
        %v879 = vunpack.c.0.s8 %v878
        %v880 = vlaneseq
        %v881 = vshrl.u32 %v880, 7
        %v882 = vsub.s32 %v879, %v881
        %v883 = vrot.slane %v874, %v882
        %v885 = vunpack.c.l.s4 1966171168
        %v886 = vunpack.c.0.s8 %v885
        %v887 = vlaneseq
        %v888 = vshrl.u32 %v887, 7
        %v889 = vsub.s32 %v886, %v888
        %v890 = vrot.slane %v876, %v889
        %v891 = vcombine.high %v883, %v883
        %v892 = vcombine.high %v890, %v890
        %v894 = vunpack.c.l.s4 1966171168
        %v895 = vunpack.c.0.s8 %v894
        %v896 = vlaneseq
        %v897 = vshrl.u32 %v896, 7
        %v898 = vsub.s32 %v895, %v897
        %v899 = vrot.slane %v883, %v898
        %v901 = vunpack.c.l.s4 1966171168
        %v902 = vunpack.c.0.s8 %v901
        %v903 = vlaneseq
        %v904 = vshrl.u32 %v903, 7
        %v905 = vsub.s32 %v902, %v904
        %v906 = vrot.slane %v890, %v905
        %v908 = vunpack.c.l.s4 1966171168
        %v909 = vunpack.c.0.s8 %v908
        %v910 = vlaneseq
        %v911 = vshrl.u32 %v910, 7
        %v912 = vsub.s32 %v909, %v911
        %v913 = vrot.slane %v891, %v912
        %v915 = vunpack.c.l.s4 1966171168
        %v916 = vunpack.c.0.s8 %v915
        %v917 = vlaneseq
        %v918 = vshrl.u32 %v917, 7
        %v919 = vsub.s32 %v916, %v918
        %v920 = vrot.slane %v892, %v919
        %v921 = vcombine.high %v899, %v899
        %v922 = vcombine.high %v906, %v906
        %v923 = vcombine.high %v913, %v913
        %v924 = vcombine.high %v920, %v920
        %vm933 = vcmask 122880
        %934 = vst.msk [vmem:[%s264] sm:$0x1] %vm933, %v899
        %935 = vst.msk [vmem:[%s264 + $0x8] sm:$0x1] %vm933, %v913
        %936 = vst.msk [vmem:[%s264 + $0x10] sm:$0x1] %vm933, %v921
        %937 = vst.msk [vmem:[%s264 + $0x18] sm:$0x1] %vm933, %v923
        %938 = vst.msk [vmem:[%s264 + $0x20] sm:$0x1] %vm933, %v906
        %939 = vst.msk [vmem:[%s264 + $0x28] sm:$0x1] %vm933, %v920
        %940 = vst.msk [vmem:[%s264 + $0x30] sm:$0x1] %vm933, %v922
        %941 = vst.msk [vmem:[%s264 + $0x38] sm:$0x1] %vm933, %v924
        %v942 = vadd.f32 %v874, 0.0
        %v943 = vmul.f32 %v874, %v874
        %v944 = vadd.f32 %v943, 0.0
        %v945 = vld [vmem:[%s1] sm:$0xf]
        %v946 = vld [vmem:[%s1 + $0x4] sm:$0xf]
        %v947 = vld [vmem:[%s324] sm:$0xf]
        %v948 = vld [vmem:[%s324 + $0x4] sm:$0xf]
        %v951 = vunpack.c.l.b16 %v947
        %v952 = vunpack.c.l.b16 %v948
        %v953 = vpack.c.b16 %v952, %v951
        %v955 = vsel %vm337, %v953, 0
        %957 = vmatprep.subr.bf16.mxu0 0
        %958 = vmatpush1.bf16.msra.mxu0 %v571
        %959 = vmatprep.subr.bf16.mxu0 0
        %960 = vmatpush1.bf16.msra.mxu0 0
        %961 = vmatprep.subr.bf16.mxu0 0
        %962 = vmatpush1.bf16.msra.mxu0 0
        %963 = vmatprep.subr.bf16.mxu0 0
        %964 = vmatpush1.bf16.msra.mxu0 0
        %965 = vmatprep.subr.bf16.mxu0 0
        %966 = vmatpush1.bf16.msra.mxu0 0
        %967 = vmatprep.subr.bf16.mxu0 0
        %968 = vmatpush1.bf16.msra.mxu0 0
        %969 = vmatprep.subr.bf16.mxu0 0
        %970 = vmatpush1.bf16.msra.mxu0 0
        %971 = vmatprep.subr.bf16.mxu0 0
        %972 = vmatpush1.bf16.msra.mxu0 0
        %973 = vmatprep.subr.bf16.mxu0 0
        %974 = vmatpush1.bf16.msra.mxu0 0
        %975 = vmatprep.subr.bf16.mxu0 0
        %976 = vmatpush1.bf16.msra.mxu0 0
        %977 = vmatprep.subr.bf16.mxu0 0
        %978 = vmatpush1.bf16.msra.mxu0 0
        %979 = vmatprep.subr.bf16.mxu0 0
        %980 = vmatpush1.bf16.msra.mxu0 0
        %981 = vmatprep.subr.bf16.mxu0 0
        %982 = vmatpush1.bf16.msra.mxu0 0
        %983 = vmatprep.subr.bf16.mxu0 0
        %984 = vmatpush1.bf16.msra.mxu0 0
        %985 = vmatprep.subr.bf16.mxu0 0
        %986 = vmatpush1.bf16.msra.mxu0 0
        %987 = vmatprep.subr.bf16.mxu0 0
        %988 = vmatpush1.bf16.msra.mxu0 0
        %989 = vmatprep.mubr.bf16.mxu0 0
        %990 = vmatmul.mubr.bf16.gmra.mrb[0].mxu0 %v955
        %v991 = vpop.f32.mrb[0].mxu0
        %v992 = vadd.f32 0.0, %v991
        %v993 = vpop.f32.mrb[0].mxu0
        %v994 = vpop.f32.mrb[0].mxu0
        %v995 = vadd.f32 0.0, %v994
        %v996 = vpop.f32.mrb[0].mxu0
        %997 = vdwg.mxu0
        %v1000 = vunpack.c.l.b16 %v945
        %v1001 = vunpack.c.l.b16 %v946
        %v1002 = vpack.c.b16 %v1001, %v1000
        %v1004 = vsel %vm337, %v1002, 0
        %1006 = vmatprep.subr.bf16.mxu0 0
        %1007 = vmatpush1.bf16.msra.mxu0 %v509
        %1008 = vmatprep.subr.bf16.mxu0 0
        %1009 = vmatpush1.bf16.msra.mxu0 0
        %1010 = vmatprep.subr.bf16.mxu0 0
        %1011 = vmatpush1.bf16.msra.mxu0 0
        %1012 = vmatprep.subr.bf16.mxu0 0
        %1013 = vmatpush1.bf16.msra.mxu0 0
        %1014 = vmatprep.subr.bf16.mxu0 0
        %1015 = vmatpush1.bf16.msra.mxu0 0
        %1016 = vmatprep.subr.bf16.mxu0 0
        %1017 = vmatpush1.bf16.msra.mxu0 0
        %1018 = vmatprep.subr.bf16.mxu0 0
        %1019 = vmatpush1.bf16.msra.mxu0 0
        %1020 = vmatprep.subr.bf16.mxu0 0
        %1021 = vmatpush1.bf16.msra.mxu0 0
        %1022 = vmatprep.subr.bf16.mxu0 0
        %1023 = vmatpush1.bf16.msra.mxu0 0
        %1024 = vmatprep.subr.bf16.mxu0 0
        %1025 = vmatpush1.bf16.msra.mxu0 0
        %1026 = vmatprep.subr.bf16.mxu0 0
        %1027 = vmatpush1.bf16.msra.mxu0 0
        %1028 = vmatprep.subr.bf16.mxu0 0
        %1029 = vmatpush1.bf16.msra.mxu0 0
        %1030 = vmatprep.subr.bf16.mxu0 0
        %1031 = vmatpush1.bf16.msra.mxu0 0
        %1032 = vmatprep.subr.bf16.mxu0 0
        %1033 = vmatpush1.bf16.msra.mxu0 0
        %1034 = vmatprep.subr.bf16.mxu0 0
        %1035 = vmatpush1.bf16.msra.mxu0 0
        %1036 = vmatprep.subr.bf16.mxu0 0
        %1037 = vmatpush1.bf16.msra.mxu0 0
        %1038 = vmatprep.mubr.bf16.mxu0 0
        %1039 = vmatmul.mubr.bf16.gmra.mrb[0].mxu0 %v1004
        %v1040 = vpop.f32.mrb[0].mxu0
        %v1041 = vadd.f32 %v992, %v1040
        %v1042 = vpop.f32.mrb[0].mxu0
        %v1043 = vpop.f32.mrb[0].mxu0
        %v1044 = vadd.f32 %v995, %v1043
        %v1045 = vpop.f32.mrb[0].mxu0
        %1046 = vdwg.mxu0
        %v1047 = vld [vmem:[%s438] sm:$0xf]
        %v1048 = vld [vmem:[%s438 + $0x4] sm:$0xf]
        %v1051 = vunpack.c.l.b16 %v1047
        %v1052 = vunpack.c.l.b16 %v1048
        %v1053 = vpack.c.b16 %v1052, %v1051
        %v1055 = vsel %vm337, %v1053, 0
        %1057 = vmatprep.subr.bf16.mxu0 0
        %1058 = vmatpush1.bf16.msra.mxu0 %v630
        %1059 = vmatprep.subr.bf16.mxu0 0
        %1060 = vmatpush1.bf16.msra.mxu0 0
        %1061 = vmatprep.subr.bf16.mxu0 0
        %1062 = vmatpush1.bf16.msra.mxu0 0
        %1063 = vmatprep.subr.bf16.mxu0 0
        %1064 = vmatpush1.bf16.msra.mxu0 0
        %1065 = vmatprep.subr.bf16.mxu0 0
        %1066 = vmatpush1.bf16.msra.mxu0 0
        %1067 = vmatprep.subr.bf16.mxu0 0
        %1068 = vmatpush1.bf16.msra.mxu0 0
        %1069 = vmatprep.subr.bf16.mxu0 0
        %1070 = vmatpush1.bf16.msra.mxu0 0
        %1071 = vmatprep.subr.bf16.mxu0 0
        %1072 = vmatpush1.bf16.msra.mxu0 0
        %1073 = vmatprep.subr.bf16.mxu0 0
        %1074 = vmatpush1.bf16.msra.mxu0 0
        %1075 = vmatprep.subr.bf16.mxu0 0
        %1076 = vmatpush1.bf16.msra.mxu0 0
        %1077 = vmatprep.subr.bf16.mxu0 0
        %1078 = vmatpush1.bf16.msra.mxu0 0
        %1079 = vmatprep.subr.bf16.mxu0 0
        %1080 = vmatpush1.bf16.msra.mxu0 0
        %1081 = vmatprep.subr.bf16.mxu0 0
        %1082 = vmatpush1.bf16.msra.mxu0 0
        %1083 = vmatprep.subr.bf16.mxu0 0
        %1084 = vmatpush1.bf16.msra.mxu0 0
        %1085 = vmatprep.subr.bf16.mxu0 0
        %1086 = vmatpush1.bf16.msra.mxu0 0
        %1087 = vmatprep.subr.bf16.mxu0 0
        %1088 = vmatpush1.bf16.msra.mxu0 0
        %1089 = vmatprep.mubr.bf16.mxu0 0
        %1090 = vmatmul.mubr.bf16.gmra.mrb[0].mxu0 %v1055
        %v1091 = vpop.f32.mrb[0].mxu0
        %v1092 = vadd.f32 0.0, %v1091
        %v1093 = vpop.f32.mrb[0].mxu0
        %v1094 = vpop.f32.mrb[0].mxu0
        %v1095 = vadd.f32 0.0, %v1094
        %v1096 = vpop.f32.mrb[0].mxu0
        %1097 = vdwg.mxu0
        %v1098 = vadd.f32 %v1041, %v1092
        %v1099 = vadd.f32 %v1044, %v1095
        %v1100 = vld [vmem:[%s497] sm:$0xf]
        %v1101 = vld [vmem:[%s497 + $0x4] sm:$0xf]
        %v1104 = vunpack.c.l.b16 %v1100
        %v1105 = vunpack.c.l.b16 %v1101
        %v1106 = vpack.c.b16 %v1105, %v1104
        %v1108 = vsel %vm337, %v1106, 0
        %1110 = vmatprep.subr.bf16.mxu0 0
        %1111 = vmatpush1.bf16.msra.mxu0 %v687
        %1112 = vmatprep.subr.bf16.mxu0 0
        %1113 = vmatpush1.bf16.msra.mxu0 0
        %1114 = vmatprep.subr.bf16.mxu0 0
        %1115 = vmatpush1.bf16.msra.mxu0 0
        %1116 = vmatprep.subr.bf16.mxu0 0
        %1117 = vmatpush1.bf16.msra.mxu0 0
        %1118 = vmatprep.subr.bf16.mxu0 0
        %1119 = vmatpush1.bf16.msra.mxu0 0
        %1120 = vmatprep.subr.bf16.mxu0 0
        %1121 = vmatpush1.bf16.msra.mxu0 0
        %1122 = vmatprep.subr.bf16.mxu0 0
        %1123 = vmatpush1.bf16.msra.mxu0 0
        %1124 = vmatprep.subr.bf16.mxu0 0
        %1125 = vmatpush1.bf16.msra.mxu0 0
        %1126 = vmatprep.subr.bf16.mxu0 0
        %1127 = vmatpush1.bf16.msra.mxu0 0
        %1128 = vmatprep.subr.bf16.mxu0 0
        %1129 = vmatpush1.bf16.msra.mxu0 0
        %1130 = vmatprep.subr.bf16.mxu0 0
        %1131 = vmatpush1.bf16.msra.mxu0 0
        %1132 = vmatprep.subr.bf16.mxu0 0
        %1133 = vmatpush1.bf16.msra.mxu0 0
        %1134 = vmatprep.subr.bf16.mxu0 0
        %1135 = vmatpush1.bf16.msra.mxu0 0
        %1136 = vmatprep.subr.bf16.mxu0 0
        %1137 = vmatpush1.bf16.msra.mxu0 0
        %1138 = vmatprep.subr.bf16.mxu0 0
        %1139 = vmatpush1.bf16.msra.mxu0 0
        %1140 = vmatprep.subr.bf16.mxu0 0
        %1141 = vmatpush1.bf16.msra.mxu0 0
        %1142 = vmatprep.mubr.bf16.mxu0 0
        %1143 = vmatmul.mubr.bf16.gmra.mrb[0].mxu0 %v1108
        %v1144 = vpop.f32.mrb[0].mxu0
        %v1145 = vadd.f32 0.0, %v1144
        %v1146 = vpop.f32.mrb[0].mxu0
        %v1147 = vpop.f32.mrb[0].mxu0
        %v1148 = vadd.f32 0.0, %v1147
        %v1149 = vpop.f32.mrb[0].mxu0
        %1150 = vdwg.mxu0
        %v1151 = vadd.f32 %v1098, %v1145
        %v1152 = vadd.f32 %v1099, %v1148
        %v1153 = vld [vmem:[%s554] sm:$0xf]
        %v1154 = vld [vmem:[%s554 + $0x4] sm:$0xf]
        %v1157 = vunpack.c.l.b16 %v1153
        %v1158 = vunpack.c.l.b16 %v1154
        %v1159 = vpack.c.b16 %v1158, %v1157
        %v1161 = vsel %vm337, %v1159, 0
        %1163 = vmatprep.subr.bf16.mxu0 0
        %1164 = vmatpush1.bf16.msra.mxu0 %v749
        %1165 = vmatprep.subr.bf16.mxu0 0
        %1166 = vmatpush1.bf16.msra.mxu0 0
        %1167 = vmatprep.subr.bf16.mxu0 0
        %1168 = vmatpush1.bf16.msra.mxu0 0
        %1169 = vmatprep.subr.bf16.mxu0 0
        %1170 = vmatpush1.bf16.msra.mxu0 0
        %1171 = vmatprep.subr.bf16.mxu0 0
        %1172 = vmatpush1.bf16.msra.mxu0 0
        %1173 = vmatprep.subr.bf16.mxu0 0
        %1174 = vmatpush1.bf16.msra.mxu0 0
        %1175 = vmatprep.subr.bf16.mxu0 0
        %1176 = vmatpush1.bf16.msra.mxu0 0
        %1177 = vmatprep.subr.bf16.mxu0 0
        %1178 = vmatpush1.bf16.msra.mxu0 0
        %1179 = vmatprep.subr.bf16.mxu0 0
        %1180 = vmatpush1.bf16.msra.mxu0 0
        %1181 = vmatprep.subr.bf16.mxu0 0
        %1182 = vmatpush1.bf16.msra.mxu0 0
        %1183 = vmatprep.subr.bf16.mxu0 0
        %1184 = vmatpush1.bf16.msra.mxu0 0
        %1185 = vmatprep.subr.bf16.mxu0 0
        %1186 = vmatpush1.bf16.msra.mxu0 0
        %1187 = vmatprep.subr.bf16.mxu0 0
        %1188 = vmatpush1.bf16.msra.mxu0 0
        %1189 = vmatprep.subr.bf16.mxu0 0
        %1190 = vmatpush1.bf16.msra.mxu0 0
        %1191 = vmatprep.subr.bf16.mxu0 0
        %1192 = vmatpush1.bf16.msra.mxu0 0
        %1193 = vmatprep.subr.bf16.mxu0 0
        %1194 = vmatpush1.bf16.msra.mxu0 0
        %1195 = vmatprep.mubr.bf16.mxu0 0
        %1196 = vmatmul.mubr.bf16.gmra.mrb[0].mxu0 %v1161
        %v1197 = vpop.f32.mrb[0].mxu0
        %v1198 = vadd.f32 0.0, %v1197
        %v1199 = vpop.f32.mrb[0].mxu0
        %v1200 = vpop.f32.mrb[0].mxu0
        %v1201 = vadd.f32 0.0, %v1200
        %v1202 = vpop.f32.mrb[0].mxu0
        %1203 = vdwg.mxu0
        %v1204 = vadd.f32 %v1151, %v1198
        %v1205 = vadd.f32 %v1152, %v1201
        %v1206 = vld [vmem:[%s616] sm:$0xf]
        %v1207 = vld [vmem:[%s616 + $0x4] sm:$0xf]
        %v1210 = vunpack.c.l.b16 %v1206
        %v1211 = vunpack.c.l.b16 %v1207
        %v1212 = vpack.c.b16 %v1211, %v1210
        %v1214 = vsel %vm337, %v1212, 0
        %1216 = vmatprep.subr.bf16.mxu0 0
        %1217 = vmatpush1.bf16.msra.mxu0 %v808
        %1218 = vmatprep.subr.bf16.mxu0 0
        %1219 = vmatpush1.bf16.msra.mxu0 0
        %1220 = vmatprep.subr.bf16.mxu0 0
        %1221 = vmatpush1.bf16.msra.mxu0 0
        %1222 = vmatprep.subr.bf16.mxu0 0
        %1223 = vmatpush1.bf16.msra.mxu0 0
        %1224 = vmatprep.subr.bf16.mxu0 0
        %1225 = vmatpush1.bf16.msra.mxu0 0
        %1226 = vmatprep.subr.bf16.mxu0 0
        %1227 = vmatpush1.bf16.msra.mxu0 0
        %1228 = vmatprep.subr.bf16.mxu0 0
        %1229 = vmatpush1.bf16.msra.mxu0 0
        %1230 = vmatprep.subr.bf16.mxu0 0
        %1231 = vmatpush1.bf16.msra.mxu0 0
        %1232 = vmatprep.subr.bf16.mxu0 0
        %1233 = vmatpush1.bf16.msra.mxu0 0
        %1234 = vmatprep.subr.bf16.mxu0 0
        %1235 = vmatpush1.bf16.msra.mxu0 0
        %1236 = vmatprep.subr.bf16.mxu0 0
        %1237 = vmatpush1.bf16.msra.mxu0 0
        %1238 = vmatprep.subr.bf16.mxu0 0
        %1239 = vmatpush1.bf16.msra.mxu0 0
        %1240 = vmatprep.subr.bf16.mxu0 0
        %1241 = vmatpush1.bf16.msra.mxu0 0
        %1242 = vmatprep.subr.bf16.mxu0 0
        %1243 = vmatpush1.bf16.msra.mxu0 0
        %1244 = vmatprep.subr.bf16.mxu0 0
        %1245 = vmatpush1.bf16.msra.mxu0 0
        %1246 = vmatprep.subr.bf16.mxu0 0
        %1247 = vmatpush1.bf16.msra.mxu0 0
        %1248 = vmatprep.mubr.bf16.mxu0 0
        %1249 = vmatmul.mubr.bf16.gmra.mrb[0].mxu0 %v1214
        %v1250 = vpop.f32.mrb[0].mxu0
        %v1251 = vadd.f32 0.0, %v1250
        %v1252 = vpop.f32.mrb[0].mxu0
        %v1253 = vpop.f32.mrb[0].mxu0
        %v1254 = vadd.f32 0.0, %v1253
        %v1255 = vpop.f32.mrb[0].mxu0
        %1256 = vdwg.mxu0
        %v1257 = vadd.f32 %v1204, %v1251
        %v1258 = vadd.f32 %v1205, %v1254
        %v1259 = vld [vmem:[%s675] sm:$0xf]
        %v1260 = vld [vmem:[%s675 + $0x4] sm:$0xf]
        %v1263 = vunpack.c.l.b16 %v1259
        %v1264 = vunpack.c.l.b16 %v1260
        %v1265 = vpack.c.b16 %v1264, %v1263
        %v1267 = vsel %vm337, %v1265, 0
        %v1270 = vsel %vm341, %v295, 0
        %1272 = vmatprep.subr.bf16.mxu0 0
        %1273 = vmatpush1.bf16.msra.mxu0 %v1270
        %1274 = vmatprep.subr.bf16.mxu0 0
        %1275 = vmatpush1.bf16.msra.mxu0 0
        %1276 = vmatprep.subr.bf16.mxu0 0
        %1277 = vmatpush1.bf16.msra.mxu0 0
        %1278 = vmatprep.subr.bf16.mxu0 0
        %1279 = vmatpush1.bf16.msra.mxu0 0
        %1280 = vmatprep.subr.bf16.mxu0 0
        %1281 = vmatpush1.bf16.msra.mxu0 0
        %1282 = vmatprep.subr.bf16.mxu0 0
        %1283 = vmatpush1.bf16.msra.mxu0 0
        %1284 = vmatprep.subr.bf16.mxu0 0
        %1285 = vmatpush1.bf16.msra.mxu0 0
        %1286 = vmatprep.subr.bf16.mxu0 0
        %1287 = vmatpush1.bf16.msra.mxu0 0
        %1288 = vmatprep.subr.bf16.mxu0 0
        %1289 = vmatpush1.bf16.msra.mxu0 0
        %1290 = vmatprep.subr.bf16.mxu0 0
        %1291 = vmatpush1.bf16.msra.mxu0 0
        %1292 = vmatprep.subr.bf16.mxu0 0
        %1293 = vmatpush1.bf16.msra.mxu0 0
        %1294 = vmatprep.subr.bf16.mxu0 0
        %1295 = vmatpush1.bf16.msra.mxu0 0
        %1296 = vmatprep.subr.bf16.mxu0 0
        %1297 = vmatpush1.bf16.msra.mxu0 0
        %1298 = vmatprep.subr.bf16.mxu0 0
        %1299 = vmatpush1.bf16.msra.mxu0 0
        %1300 = vmatprep.subr.bf16.mxu0 0
        %1301 = vmatpush1.bf16.msra.mxu0 0
        %1302 = vmatprep.subr.bf16.mxu0 0
        %1303 = vmatpush1.bf16.msra.mxu0 0
        %1304 = vmatprep.mubr.bf16.mxu0 0
        %1305 = vmatmul.mubr.bf16.gmra.mrb[0].mxu0 %v1267
        %v1306 = vpop.f32.mrb[0].mxu0
        %v1307 = vadd.f32 0.0, %v1306
        %v1308 = vpop.f32.mrb[0].mxu0
        %v1309 = vpop.f32.mrb[0].mxu0
        %v1310 = vadd.f32 0.0, %v1309
        %v1311 = vpop.f32.mrb[0].mxu0
        %1312 = vdwg.mxu0
        %v1313 = vadd.f32 %v1257, %v1307
        %v1314 = vadd.f32 %v1258, %v1310
        %v1315 = vld [vmem:[%s732] sm:$0xf]
        %v1316 = vld [vmem:[%s732 + $0x4] sm:$0xf]
        %v1319 = vunpack.c.l.b16 %v1315
        %v1320 = vunpack.c.l.b16 %v1316
        %v1321 = vpack.c.b16 %v1320, %v1319
        %v1323 = vunpack.c.l.b16 %v295
        %v1324 = vpack.c.b16 %v1323, %v1323
        %1325 = vrot.lane.b32.xlu0 %v1324, 127
        %v1326 = vpop.permute.xlu0 %1325
        %v1328 = vsel %vm337, %v1321, 0
        %v1331 = vsel %vm341, %v1326, 0
        %1333 = vmatprep.subr.bf16.mxu0 0
        %1334 = vmatpush1.bf16.msra.mxu0 %v1331
        %1335 = vmatprep.subr.bf16.mxu0 0
        %1336 = vmatpush1.bf16.msra.mxu0 0
        %1337 = vmatprep.subr.bf16.mxu0 0
        %1338 = vmatpush1.bf16.msra.mxu0 0
        %1339 = vmatprep.subr.bf16.mxu0 0
        %1340 = vmatpush1.bf16.msra.mxu0 0
        %1341 = vmatprep.subr.bf16.mxu0 0
        %1342 = vmatpush1.bf16.msra.mxu0 0
        %1343 = vmatprep.subr.bf16.mxu0 0
        %1344 = vmatpush1.bf16.msra.mxu0 0
        %1345 = vmatprep.subr.bf16.mxu0 0
        %1346 = vmatpush1.bf16.msra.mxu0 0
        %1347 = vmatprep.subr.bf16.mxu0 0
        %1348 = vmatpush1.bf16.msra.mxu0 0
        %1349 = vmatprep.subr.bf16.mxu0 0
        %1350 = vmatpush1.bf16.msra.mxu0 0
        %1351 = vmatprep.subr.bf16.mxu0 0
        %1352 = vmatpush1.bf16.msra.mxu0 0
        %1353 = vmatprep.subr.bf16.mxu0 0
        %1354 = vmatpush1.bf16.msra.mxu0 0
        %1355 = vmatprep.subr.bf16.mxu0 0
        %1356 = vmatpush1.bf16.msra.mxu0 0
        %1357 = vmatprep.subr.bf16.mxu0 0
        %1358 = vmatpush1.bf16.msra.mxu0 0
        %1359 = vmatprep.subr.bf16.mxu0 0
        %1360 = vmatpush1.bf16.msra.mxu0 0
        %1361 = vmatprep.subr.bf16.mxu0 0
        %1362 = vmatpush1.bf16.msra.mxu0 0
        %1363 = vmatprep.subr.bf16.mxu0 0
        %1364 = vmatpush1.bf16.msra.mxu0 0
        %1365 = vmatprep.mubr.bf16.mxu0 0
        %1366 = vmatmul.mubr.bf16.gmra.mrb[0].mxu0 %v1328
        %v1367 = vpop.f32.mrb[0].mxu0
        %v1368 = vadd.f32 0.0, %v1367
        %v1369 = vpop.f32.mrb[0].mxu0
        %v1370 = vpop.f32.mrb[0].mxu0
        %v1371 = vadd.f32 0.0, %v1370
        %v1372 = vpop.f32.mrb[0].mxu0
        %1373 = vdwg.mxu0
        %v1374 = vadd.f32 %v1313, %v1368
        %v1375 = vadd.f32 %v1314, %v1371
        %v1376 = vld [vmem:[%s794] sm:$0xf]
        %v1377 = vld [vmem:[%s794 + $0x4] sm:$0xf]
        %v1380 = vunpack.c.l.b16 %v1376
        %v1381 = vunpack.c.l.b16 %v1377
        %v1382 = vpack.c.b16 %v1381, %v1380
        %1383 = vrot.lane.b32.xlu0 %v1324, 126
        %v1384 = vpop.permute.xlu0 %1383
        %v1386 = vsel %vm337, %v1382, 0
        %v1389 = vsel %vm341, %v1384, 0
        %1391 = vmatprep.subr.bf16.mxu0 0
        %1392 = vmatpush1.bf16.msra.mxu0 %v1389
        %1393 = vmatprep.subr.bf16.mxu0 0
        %1394 = vmatpush1.bf16.msra.mxu0 0
        %1395 = vmatprep.subr.bf16.mxu0 0
        %1396 = vmatpush1.bf16.msra.mxu0 0
        %1397 = vmatprep.subr.bf16.mxu0 0
        %1398 = vmatpush1.bf16.msra.mxu0 0
        %1399 = vmatprep.subr.bf16.mxu0 0
        %1400 = vmatpush1.bf16.msra.mxu0 0
        %1401 = vmatprep.subr.bf16.mxu0 0
        %1402 = vmatpush1.bf16.msra.mxu0 0
        %1403 = vmatprep.subr.bf16.mxu0 0
        %1404 = vmatpush1.bf16.msra.mxu0 0
        %1405 = vmatprep.subr.bf16.mxu0 0
        %1406 = vmatpush1.bf16.msra.mxu0 0
        %1407 = vmatprep.subr.bf16.mxu0 0
        %1408 = vmatpush1.bf16.msra.mxu0 0
        %1409 = vmatprep.subr.bf16.mxu0 0
        %1410 = vmatpush1.bf16.msra.mxu0 0
        %1411 = vmatprep.subr.bf16.mxu0 0
        %1412 = vmatpush1.bf16.msra.mxu0 0
        %1413 = vmatprep.subr.bf16.mxu0 0
        %1414 = vmatpush1.bf16.msra.mxu0 0
        %1415 = vmatprep.subr.bf16.mxu0 0
        %1416 = vmatpush1.bf16.msra.mxu0 0
        %1417 = vmatprep.subr.bf16.mxu0 0
        %1418 = vmatpush1.bf16.msra.mxu0 0
        %1419 = vmatprep.subr.bf16.mxu0 0
        %1420 = vmatpush1.bf16.msra.mxu0 0
        %1421 = vmatprep.subr.bf16.mxu0 0
        %1422 = vmatpush1.bf16.msra.mxu0 0
        %1423 = vmatprep.mubr.bf16.mxu0 0
        %1424 = vmatmul.mubr.bf16.gmra.mrb[0].mxu0 %v1386
        %v1425 = vpop.f32.mrb[0].mxu0
        %v1426 = vadd.f32 0.0, %v1425
        %v1427 = vpop.f32.mrb[0].mxu0
        %v1428 = vpop.f32.mrb[0].mxu0
        %v1429 = vadd.f32 0.0, %v1428
        %v1430 = vpop.f32.mrb[0].mxu0
        %1431 = vdwg.mxu0
        %v1432 = vadd.f32 %v1374, %v1426
        %v1433 = vadd.f32 %v1375, %v1429
        %v1434 = vadd.f32 %v1432, %v856
        %v1435 = vadd.f32 %v1433, %v861
        %vm1436 = vcmp.gt.f32.partialorder %v1434, 0.0
        %v1437 = vmul.f32 %v1434, 0.2
        %v1438 = vsel %vm1436, %v1434, %v1437
        %v1439 = vxor.u32 %v1435, 2147483648
        %v1440 = vmul.f32 %v1439, 1.442695
        %v1441 = vpow.pop %v1440
        %v1442 = vadd.f32 %v1441, 1.0
        %v1443 = vrcp.pop %v1442
        %v1444 = vmul.f32 1.0, %v1443
        %v1445 = vmul.f32 %v1438, %v1444
        %v1447 = vcombine.high %v1445, %v1445
        %v1449 = vunpack.c.l.s4 1966171168
        %v1450 = vunpack.c.0.s8 %v1449
        %v1451 = vlaneseq
        %v1452 = vshrl.u32 %v1451, 7
        %v1453 = vsub.s32 %v1450, %v1452
        %v1454 = vrot.slane %v1445, %v1453
        %v1456 = vunpack.c.l.s4 1966171168
        %v1457 = vunpack.c.0.s8 %v1456
        %v1458 = vlaneseq
        %v1459 = vshrl.u32 %v1458, 7
        %v1460 = vsub.s32 %v1457, %v1459
        %v1461 = vrot.slane %v1447, %v1460
        %v1462 = vcombine.high %v1454, %v1454
        %v1463 = vcombine.high %v1461, %v1461
        %v1465 = vunpack.c.l.s4 1966171168
        %v1466 = vunpack.c.0.s8 %v1465
        %v1467 = vlaneseq
        %v1468 = vshrl.u32 %v1467, 7
        %v1469 = vsub.s32 %v1466, %v1468
        %v1470 = vrot.slane %v1454, %v1469
        %v1472 = vunpack.c.l.s4 1966171168
        %v1473 = vunpack.c.0.s8 %v1472
        %v1474 = vlaneseq
        %v1475 = vshrl.u32 %v1474, 7
        %v1476 = vsub.s32 %v1473, %v1475
        %v1477 = vrot.slane %v1461, %v1476
        %v1479 = vunpack.c.l.s4 1966171168
        %v1480 = vunpack.c.0.s8 %v1479
        %v1481 = vlaneseq
        %v1482 = vshrl.u32 %v1481, 7
        %v1483 = vsub.s32 %v1480, %v1482
        %v1484 = vrot.slane %v1462, %v1483
        %v1486 = vunpack.c.l.s4 1966171168
        %v1487 = vunpack.c.0.s8 %v1486
        %v1488 = vlaneseq
        %v1489 = vshrl.u32 %v1488, 7
        %v1490 = vsub.s32 %v1487, %v1489
        %v1491 = vrot.slane %v1463, %v1490
        %v1492 = vcombine.high %v1470, %v1470
        %v1493 = vcombine.high %v1477, %v1477
        %v1494 = vcombine.high %v1484, %v1484
        %v1495 = vcombine.high %v1491, %v1491
        %1504 = vst.msk [vmem:[%s264 + $0x1] sm:$0x1] %vm933, %v1470
        %1505 = vst.msk [vmem:[%s264 + $0x9] sm:$0x1] %vm933, %v1484
        %1506 = vst.msk [vmem:[%s264 + $0x11] sm:$0x1] %vm933, %v1492
        %1507 = vst.msk [vmem:[%s264 + $0x19] sm:$0x1] %vm933, %v1494
        %1508 = vst.msk [vmem:[%s264 + $0x21] sm:$0x1] %vm933, %v1477
        %1509 = vst.msk [vmem:[%s264 + $0x29] sm:$0x1] %vm933, %v1491
        %1510 = vst.msk [vmem:[%s264 + $0x31] sm:$0x1] %vm933, %v1493
        %1511 = vst.msk [vmem:[%s264 + $0x39] sm:$0x1] %vm933, %v1495
        %v1512 = vadd.f32 %v942, %v1445
        %v1513 = vmul.f32 %v1445, %v1445
        %v1514 = vadd.f32 %v944, %v1513
        %v1515 = vld [vmem:[%s1] sm:$0xf]
        %v1516 = vld [vmem:[%s1 + $0x4] sm:$0xf]
        %v1517 = vld [vmem:[%s324] sm:$0xf]
        %v1518 = vld [vmem:[%s324 + $0x4] sm:$0xf]
        %v1521 = vunpack.c.l.b16 %v1517
        %v1522 = vunpack.c.l.b16 %v1518
        %v1523 = vpack.c.b16 %v1522, %v1521
        %v1525 = vsel %vm337, %v1523, 0
        %1527 = vmatprep.subr.bf16.mxu0 0
        %1528 = vmatpush1.bf16.msra.mxu0 %v749
        %1529 = vmatprep.subr.bf16.mxu0 0
        %1530 = vmatpush1.bf16.msra.mxu0 0
        %1531 = vmatprep.subr.bf16.mxu0 0
        %1532 = vmatpush1.bf16.msra.mxu0 0
        %1533 = vmatprep.subr.bf16.mxu0 0
        %1534 = vmatpush1.bf16.msra.mxu0 0
        %1535 = vmatprep.subr.bf16.mxu0 0
        %1536 = vmatpush1.bf16.msra.mxu0 0
        %1537 = vmatprep.subr.bf16.mxu0 0
        %1538 = vmatpush1.bf16.msra.mxu0 0
        %1539 = vmatprep.subr.bf16.mxu0 0
        %1540 = vmatpush1.bf16.msra.mxu0 0
        %1541 = vmatprep.subr.bf16.mxu0 0
        %1542 = vmatpush1.bf16.msra.mxu0 0
        %1543 = vmatprep.subr.bf16.mxu0 0
        %1544 = vmatpush1.bf16.msra.mxu0 0
        %1545 = vmatprep.subr.bf16.mxu0 0
        %1546 = vmatpush1.bf16.msra.mxu0 0
        %1547 = vmatprep.subr.bf16.mxu0 0
        %1548 = vmatpush1.bf16.msra.mxu0 0
        %1549 = vmatprep.subr.bf16.mxu0 0
        %1550 = vmatpush1.bf16.msra.mxu0 0
        %1551 = vmatprep.subr.bf16.mxu0 0
        %1552 = vmatpush1.bf16.msra.mxu0 0
        %1553 = vmatprep.subr.bf16.mxu0 0
        %1554 = vmatpush1.bf16.msra.mxu0 0
        %1555 = vmatprep.subr.bf16.mxu0 0
        %1556 = vmatpush1.bf16.msra.mxu0 0
        %1557 = vmatprep.subr.bf16.mxu0 0
        %1558 = vmatpush1.bf16.msra.mxu0 0
        %1559 = vmatprep.mubr.bf16.mxu0 0
        %1560 = vmatmul.mubr.bf16.gmra.mrb[0].mxu0 %v1525
        %v1561 = vpop.f32.mrb[0].mxu0
        %v1562 = vadd.f32 0.0, %v1561
        %v1563 = vpop.f32.mrb[0].mxu0
        %v1564 = vpop.f32.mrb[0].mxu0
        %v1565 = vadd.f32 0.0, %v1564
        %v1566 = vpop.f32.mrb[0].mxu0
        %1567 = vdwg.mxu0
        %v1570 = vunpack.c.l.b16 %v1515
        %v1571 = vunpack.c.l.b16 %v1516
        %v1572 = vpack.c.b16 %v1571, %v1570
        %v1574 = vsel %vm337, %v1572, 0
        %1576 = vmatprep.subr.bf16.mxu0 0
        %1577 = vmatpush1.bf16.msra.mxu0 %v687
        %1578 = vmatprep.subr.bf16.mxu0 0
        %1579 = vmatpush1.bf16.msra.mxu0 0
        %1580 = vmatprep.subr.bf16.mxu0 0
        %1581 = vmatpush1.bf16.msra.mxu0 0
        %1582 = vmatprep.subr.bf16.mxu0 0
        %1583 = vmatpush1.bf16.msra.mxu0 0
        %1584 = vmatprep.subr.bf16.mxu0 0
        %1585 = vmatpush1.bf16.msra.mxu0 0
        %1586 = vmatprep.subr.bf16.mxu0 0
        %1587 = vmatpush1.bf16.msra.mxu0 0
        %1588 = vmatprep.subr.bf16.mxu0 0
        %1589 = vmatpush1.bf16.msra.mxu0 0
        %1590 = vmatprep.subr.bf16.mxu0 0
        %1591 = vmatpush1.bf16.msra.mxu0 0
        %1592 = vmatprep.subr.bf16.mxu0 0
        %1593 = vmatpush1.bf16.msra.mxu0 0
        %1594 = vmatprep.subr.bf16.mxu0 0
        %1595 = vmatpush1.bf16.msra.mxu0 0
        %1596 = vmatprep.subr.bf16.mxu0 0
        %1597 = vmatpush1.bf16.msra.mxu0 0
        %1598 = vmatprep.subr.bf16.mxu0 0
        %1599 = vmatpush1.bf16.msra.mxu0 0
        %1600 = vmatprep.subr.bf16.mxu0 0
        %1601 = vmatpush1.bf16.msra.mxu0 0
        %1602 = vmatprep.subr.bf16.mxu0 0
        %1603 = vmatpush1.bf16.msra.mxu0 0
        %1604 = vmatprep.subr.bf16.mxu0 0
        %1605 = vmatpush1.bf16.msra.mxu0 0
        %1606 = vmatprep.subr.bf16.mxu0 0
        %1607 = vmatpush1.bf16.msra.mxu0 0
        %1608 = vmatprep.mubr.bf16.mxu0 0
        %1609 = vmatmul.mubr.bf16.gmra.mrb[0].mxu0 %v1574
        %v1610 = vpop.f32.mrb[0].mxu0
        %v1611 = vadd.f32 %v1562, %v1610
        %v1612 = vpop.f32.mrb[0].mxu0
        %v1613 = vpop.f32.mrb[0].mxu0
        %v1614 = vadd.f32 %v1565, %v1613
        %v1615 = vpop.f32.mrb[0].mxu0
        %1616 = vdwg.mxu0
        %v1617 = vld [vmem:[%s438] sm:$0xf]
        %v1618 = vld [vmem:[%s438 + $0x4] sm:$0xf]
        %v1621 = vunpack.c.l.b16 %v1617
        %v1622 = vunpack.c.l.b16 %v1618
        %v1623 = vpack.c.b16 %v1622, %v1621
        %v1625 = vsel %vm337, %v1623, 0
        %1627 = vmatprep.subr.bf16.mxu0 0
        %1628 = vmatpush1.bf16.msra.mxu0 %v808
        %1629 = vmatprep.subr.bf16.mxu0 0
        %1630 = vmatpush1.bf16.msra.mxu0 0
        %1631 = vmatprep.subr.bf16.mxu0 0
        %1632 = vmatpush1.bf16.msra.mxu0 0
        %1633 = vmatprep.subr.bf16.mxu0 0
        %1634 = vmatpush1.bf16.msra.mxu0 0
        %1635 = vmatprep.subr.bf16.mxu0 0
        %1636 = vmatpush1.bf16.msra.mxu0 0
        %1637 = vmatprep.subr.bf16.mxu0 0
        %1638 = vmatpush1.bf16.msra.mxu0 0
        %1639 = vmatprep.subr.bf16.mxu0 0
        %1640 = vmatpush1.bf16.msra.mxu0 0
        %1641 = vmatprep.subr.bf16.mxu0 0
        %1642 = vmatpush1.bf16.msra.mxu0 0
        %1643 = vmatprep.subr.bf16.mxu0 0
        %1644 = vmatpush1.bf16.msra.mxu0 0
        %1645 = vmatprep.subr.bf16.mxu0 0
        %1646 = vmatpush1.bf16.msra.mxu0 0
        %1647 = vmatprep.subr.bf16.mxu0 0
        %1648 = vmatpush1.bf16.msra.mxu0 0
        %1649 = vmatprep.subr.bf16.mxu0 0
        %1650 = vmatpush1.bf16.msra.mxu0 0
        %1651 = vmatprep.subr.bf16.mxu0 0
        %1652 = vmatpush1.bf16.msra.mxu0 0
        %1653 = vmatprep.subr.bf16.mxu0 0
        %1654 = vmatpush1.bf16.msra.mxu0 0
        %1655 = vmatprep.subr.bf16.mxu0 0
        %1656 = vmatpush1.bf16.msra.mxu0 0
        %1657 = vmatprep.subr.bf16.mxu0 0
        %1658 = vmatpush1.bf16.msra.mxu0 0
        %1659 = vmatprep.mubr.bf16.mxu0 0
        %1660 = vmatmul.mubr.bf16.gmra.mrb[0].mxu0 %v1625
        %v1661 = vpop.f32.mrb[0].mxu0
        %v1662 = vadd.f32 0.0, %v1661
        %v1663 = vpop.f32.mrb[0].mxu0
        %v1664 = vpop.f32.mrb[0].mxu0
        %v1665 = vadd.f32 0.0, %v1664
        %v1666 = vpop.f32.mrb[0].mxu0
        %1667 = vdwg.mxu0
        %v1668 = vadd.f32 %v1611, %v1662
        %v1669 = vadd.f32 %v1614, %v1665
        %v1670 = vld [vmem:[%s497] sm:$0xf]
        %v1671 = vld [vmem:[%s497 + $0x4] sm:$0xf]
        %v1674 = vunpack.c.l.b16 %v1670
        %v1675 = vunpack.c.l.b16 %v1671
        %v1676 = vpack.c.b16 %v1675, %v1674
        %v1678 = vsel %vm337, %v1676, 0
        %1680 = vmatprep.subr.bf16.mxu0 0
        %1681 = vmatpush1.bf16.msra.mxu0 %v1270
        %1682 = vmatprep.subr.bf16.mxu0 0
        %1683 = vmatpush1.bf16.msra.mxu0 0
        %1684 = vmatprep.subr.bf16.mxu0 0
        %1685 = vmatpush1.bf16.msra.mxu0 0
        %1686 = vmatprep.subr.bf16.mxu0 0
        %1687 = vmatpush1.bf16.msra.mxu0 0
        %1688 = vmatprep.subr.bf16.mxu0 0
        %1689 = vmatpush1.bf16.msra.mxu0 0
        %1690 = vmatprep.subr.bf16.mxu0 0
        %1691 = vmatpush1.bf16.msra.mxu0 0
        %1692 = vmatprep.subr.bf16.mxu0 0
        %1693 = vmatpush1.bf16.msra.mxu0 0
        %1694 = vmatprep.subr.bf16.mxu0 0
        %1695 = vmatpush1.bf16.msra.mxu0 0
        %1696 = vmatprep.subr.bf16.mxu0 0
        %1697 = vmatpush1.bf16.msra.mxu0 0
        %1698 = vmatprep.subr.bf16.mxu0 0
        %1699 = vmatpush1.bf16.msra.mxu0 0
        %1700 = vmatprep.subr.bf16.mxu0 0
        %1701 = vmatpush1.bf16.msra.mxu0 0
        %1702 = vmatprep.subr.bf16.mxu0 0
        %1703 = vmatpush1.bf16.msra.mxu0 0
        %1704 = vmatprep.subr.bf16.mxu0 0
        %1705 = vmatpush1.bf16.msra.mxu0 0
        %1706 = vmatprep.subr.bf16.mxu0 0
        %1707 = vmatpush1.bf16.msra.mxu0 0
        %1708 = vmatprep.subr.bf16.mxu0 0
        %1709 = vmatpush1.bf16.msra.mxu0 0
        %1710 = vmatprep.subr.bf16.mxu0 0
        %1711 = vmatpush1.bf16.msra.mxu0 0
        %1712 = vmatprep.mubr.bf16.mxu0 0
        %1713 = vmatmul.mubr.bf16.gmra.mrb[0].mxu0 %v1678
        %v1714 = vpop.f32.mrb[0].mxu0
        %v1715 = vadd.f32 0.0, %v1714
        %v1716 = vpop.f32.mrb[0].mxu0
        %v1717 = vpop.f32.mrb[0].mxu0
        %v1718 = vadd.f32 0.0, %v1717
        %v1719 = vpop.f32.mrb[0].mxu0
        %1720 = vdwg.mxu0
        %v1721 = vadd.f32 %v1668, %v1715
        %v1722 = vadd.f32 %v1669, %v1718
        %v1723 = vld [vmem:[%s554] sm:$0xf]
        %v1724 = vld [vmem:[%s554 + $0x4] sm:$0xf]
        %v1727 = vunpack.c.l.b16 %v1723
        %v1728 = vunpack.c.l.b16 %v1724
        %v1729 = vpack.c.b16 %v1728, %v1727
        %v1731 = vsel %vm337, %v1729, 0
        %1733 = vmatprep.subr.bf16.mxu0 0
        %1734 = vmatpush1.bf16.msra.mxu0 %v1331
        %1735 = vmatprep.subr.bf16.mxu0 0
        %1736 = vmatpush1.bf16.msra.mxu0 0
        %1737 = vmatprep.subr.bf16.mxu0 0
        %1738 = vmatpush1.bf16.msra.mxu0 0
        %1739 = vmatprep.subr.bf16.mxu0 0
        %1740 = vmatpush1.bf16.msra.mxu0 0
        %1741 = vmatprep.subr.bf16.mxu0 0
        %1742 = vmatpush1.bf16.msra.mxu0 0
        %1743 = vmatprep.subr.bf16.mxu0 0
        %1744 = vmatpush1.bf16.msra.mxu0 0
        %1745 = vmatprep.subr.bf16.mxu0 0
        %1746 = vmatpush1.bf16.msra.mxu0 0
        %1747 = vmatprep.subr.bf16.mxu0 0
        %1748 = vmatpush1.bf16.msra.mxu0 0
        %1749 = vmatprep.subr.bf16.mxu0 0
        %1750 = vmatpush1.bf16.msra.mxu0 0
        %1751 = vmatprep.subr.bf16.mxu0 0
        %1752 = vmatpush1.bf16.msra.mxu0 0
        %1753 = vmatprep.subr.bf16.mxu0 0
        %1754 = vmatpush1.bf16.msra.mxu0 0
        %1755 = vmatprep.subr.bf16.mxu0 0
        %1756 = vmatpush1.bf16.msra.mxu0 0
        %1757 = vmatprep.subr.bf16.mxu0 0
        %1758 = vmatpush1.bf16.msra.mxu0 0
        %1759 = vmatprep.subr.bf16.mxu0 0
        %1760 = vmatpush1.bf16.msra.mxu0 0
        %1761 = vmatprep.subr.bf16.mxu0 0
        %1762 = vmatpush1.bf16.msra.mxu0 0
        %1763 = vmatprep.subr.bf16.mxu0 0
        %1764 = vmatpush1.bf16.msra.mxu0 0
        %1765 = vmatprep.mubr.bf16.mxu0 0
        %1766 = vmatmul.mubr.bf16.gmra.mrb[0].mxu0 %v1731
        %v1767 = vpop.f32.mrb[0].mxu0
        %v1768 = vadd.f32 0.0, %v1767
        %v1769 = vpop.f32.mrb[0].mxu0
        %v1770 = vpop.f32.mrb[0].mxu0
        %v1771 = vadd.f32 0.0, %v1770
        %v1772 = vpop.f32.mrb[0].mxu0
        %1773 = vdwg.mxu0
        %v1774 = vadd.f32 %v1721, %v1768
        %v1775 = vadd.f32 %v1722, %v1771
        %v1776 = vld [vmem:[%s616] sm:$0xf]
        %v1777 = vld [vmem:[%s616 + $0x4] sm:$0xf]
        %v1780 = vunpack.c.l.b16 %v1776
        %v1781 = vunpack.c.l.b16 %v1777
        %v1782 = vpack.c.b16 %v1781, %v1780
        %v1784 = vsel %vm337, %v1782, 0
        %1786 = vmatprep.subr.bf16.mxu0 0
        %1787 = vmatpush1.bf16.msra.mxu0 %v1389
        %1788 = vmatprep.subr.bf16.mxu0 0
        %1789 = vmatpush1.bf16.msra.mxu0 0
        %1790 = vmatprep.subr.bf16.mxu0 0
        %1791 = vmatpush1.bf16.msra.mxu0 0
        %1792 = vmatprep.subr.bf16.mxu0 0
        %1793 = vmatpush1.bf16.msra.mxu0 0
        %1794 = vmatprep.subr.bf16.mxu0 0
        %1795 = vmatpush1.bf16.msra.mxu0 0
        %1796 = vmatprep.subr.bf16.mxu0 0
        %1797 = vmatpush1.bf16.msra.mxu0 0
        %1798 = vmatprep.subr.bf16.mxu0 0
        %1799 = vmatpush1.bf16.msra.mxu0 0
        %1800 = vmatprep.subr.bf16.mxu0 0
        %1801 = vmatpush1.bf16.msra.mxu0 0
        %1802 = vmatprep.subr.bf16.mxu0 0
        %1803 = vmatpush1.bf16.msra.mxu0 0
        %1804 = vmatprep.subr.bf16.mxu0 0
        %1805 = vmatpush1.bf16.msra.mxu0 0
        %1806 = vmatprep.subr.bf16.mxu0 0
        %1807 = vmatpush1.bf16.msra.mxu0 0
        %1808 = vmatprep.subr.bf16.mxu0 0
        %1809 = vmatpush1.bf16.msra.mxu0 0
        %1810 = vmatprep.subr.bf16.mxu0 0
        %1811 = vmatpush1.bf16.msra.mxu0 0
        %1812 = vmatprep.subr.bf16.mxu0 0
        %1813 = vmatpush1.bf16.msra.mxu0 0
        %1814 = vmatprep.subr.bf16.mxu0 0
        %1815 = vmatpush1.bf16.msra.mxu0 0
        %1816 = vmatprep.subr.bf16.mxu0 0
        %1817 = vmatpush1.bf16.msra.mxu0 0
        %1818 = vmatprep.mubr.bf16.mxu0 0
        %1819 = vmatmul.mubr.bf16.gmra.mrb[0].mxu0 %v1784
        %v1820 = vpop.f32.mrb[0].mxu0
        %v1821 = vadd.f32 0.0, %v1820
        %v1822 = vpop.f32.mrb[0].mxu0
        %v1823 = vpop.f32.mrb[0].mxu0
        %v1824 = vadd.f32 0.0, %v1823
        %v1825 = vpop.f32.mrb[0].mxu0
        %1826 = vdwg.mxu0
        %v1827 = vadd.f32 %v1774, %v1821
        %v1828 = vadd.f32 %v1775, %v1824
        %v1829 = vld [vmem:[%s675] sm:$0xf]
        %v1830 = vld [vmem:[%s675 + $0x4] sm:$0xf]
        %v1833 = vunpack.c.l.b16 %v1829
        %v1834 = vunpack.c.l.b16 %v1830
        %v1835 = vpack.c.b16 %v1834, %v1833
        %v1837 = vsel %vm337, %v1835, 0
        %v1840 = vsel %vm341, %v299, 0
        %1842 = vmatprep.subr.bf16.mxu0 0
        %1843 = vmatpush1.bf16.msra.mxu0 %v1840
        %1844 = vmatprep.subr.bf16.mxu0 0
        %1845 = vmatpush1.bf16.msra.mxu0 0
        %1846 = vmatprep.subr.bf16.mxu0 0
        %1847 = vmatpush1.bf16.msra.mxu0 0
        %1848 = vmatprep.subr.bf16.mxu0 0
        %1849 = vmatpush1.bf16.msra.mxu0 0
        %1850 = vmatprep.subr.bf16.mxu0 0
        %1851 = vmatpush1.bf16.msra.mxu0 0
        %1852 = vmatprep.subr.bf16.mxu0 0
        %1853 = vmatpush1.bf16.msra.mxu0 0
        %1854 = vmatprep.subr.bf16.mxu0 0
        %1855 = vmatpush1.bf16.msra.mxu0 0
        %1856 = vmatprep.subr.bf16.mxu0 0
        %1857 = vmatpush1.bf16.msra.mxu0 0
        %1858 = vmatprep.subr.bf16.mxu0 0
        %1859 = vmatpush1.bf16.msra.mxu0 0
        %1860 = vmatprep.subr.bf16.mxu0 0
        %1861 = vmatpush1.bf16.msra.mxu0 0
        %1862 = vmatprep.subr.bf16.mxu0 0
        %1863 = vmatpush1.bf16.msra.mxu0 0
        %1864 = vmatprep.subr.bf16.mxu0 0
        %1865 = vmatpush1.bf16.msra.mxu0 0
        %1866 = vmatprep.subr.bf16.mxu0 0
        %1867 = vmatpush1.bf16.msra.mxu0 0
        %1868 = vmatprep.subr.bf16.mxu0 0
        %1869 = vmatpush1.bf16.msra.mxu0 0
        %1870 = vmatprep.subr.bf16.mxu0 0
        %1871 = vmatpush1.bf16.msra.mxu0 0
        %1872 = vmatprep.subr.bf16.mxu0 0
        %1873 = vmatpush1.bf16.msra.mxu0 0
        %1874 = vmatprep.mubr.bf16.mxu0 0
        %1875 = vmatmul.mubr.bf16.gmra.mrb[0].mxu0 %v1837
        %v1876 = vpop.f32.mrb[0].mxu0
        %v1877 = vadd.f32 0.0, %v1876
        %v1878 = vpop.f32.mrb[0].mxu0
        %v1879 = vpop.f32.mrb[0].mxu0
        %v1880 = vadd.f32 0.0, %v1879
        %v1881 = vpop.f32.mrb[0].mxu0
        %1882 = vdwg.mxu0
        %v1883 = vadd.f32 %v1827, %v1877
        %v1884 = vadd.f32 %v1828, %v1880
        %v1885 = vld [vmem:[%s732] sm:$0xf]
        %v1886 = vld [vmem:[%s732 + $0x4] sm:$0xf]
        %v1889 = vunpack.c.l.b16 %v1885
        %v1890 = vunpack.c.l.b16 %v1886
        %v1891 = vpack.c.b16 %v1890, %v1889
        %v1893 = vunpack.c.l.b16 %v299
        %v1894 = vpack.c.b16 %v1893, %v1893
        %1895 = vrot.lane.b32.xlu0 %v1894, 127
        %v1896 = vpop.permute.xlu0 %1895
        %v1898 = vsel %vm337, %v1891, 0
        %v1901 = vsel %vm341, %v1896, 0
        %1903 = vmatprep.subr.bf16.mxu0 0
        %1904 = vmatpush1.bf16.msra.mxu0 %v1901
        %1905 = vmatprep.subr.bf16.mxu0 0
        %1906 = vmatpush1.bf16.msra.mxu0 0
        %1907 = vmatprep.subr.bf16.mxu0 0
        %1908 = vmatpush1.bf16.msra.mxu0 0
        %1909 = vmatprep.subr.bf16.mxu0 0
        %1910 = vmatpush1.bf16.msra.mxu0 0
        %1911 = vmatprep.subr.bf16.mxu0 0
        %1912 = vmatpush1.bf16.msra.mxu0 0
        %1913 = vmatprep.subr.bf16.mxu0 0
        %1914 = vmatpush1.bf16.msra.mxu0 0
        %1915 = vmatprep.subr.bf16.mxu0 0
        %1916 = vmatpush1.bf16.msra.mxu0 0
        %1917 = vmatprep.subr.bf16.mxu0 0
        %1918 = vmatpush1.bf16.msra.mxu0 0
        %1919 = vmatprep.subr.bf16.mxu0 0
        %1920 = vmatpush1.bf16.msra.mxu0 0
        %1921 = vmatprep.subr.bf16.mxu0 0
        %1922 = vmatpush1.bf16.msra.mxu0 0
        %1923 = vmatprep.subr.bf16.mxu0 0
        %1924 = vmatpush1.bf16.msra.mxu0 0
        %1925 = vmatprep.subr.bf16.mxu0 0
        %1926 = vmatpush1.bf16.msra.mxu0 0
        %1927 = vmatprep.subr.bf16.mxu0 0
        %1928 = vmatpush1.bf16.msra.mxu0 0
        %1929 = vmatprep.subr.bf16.mxu0 0
        %1930 = vmatpush1.bf16.msra.mxu0 0
        %1931 = vmatprep.subr.bf16.mxu0 0
        %1932 = vmatpush1.bf16.msra.mxu0 0
        %1933 = vmatprep.subr.bf16.mxu0 0
        %1934 = vmatpush1.bf16.msra.mxu0 0
        %1935 = vmatprep.mubr.bf16.mxu0 0
        %1936 = vmatmul.mubr.bf16.gmra.mrb[0].mxu0 %v1898
        %v1937 = vpop.f32.mrb[0].mxu0
        %v1938 = vadd.f32 0.0, %v1937
        %v1939 = vpop.f32.mrb[0].mxu0
        %v1940 = vpop.f32.mrb[0].mxu0
        %v1941 = vadd.f32 0.0, %v1940
        %v1942 = vpop.f32.mrb[0].mxu0
        %1943 = vdwg.mxu0
        %v1944 = vadd.f32 %v1883, %v1938
        %v1945 = vadd.f32 %v1884, %v1941
        %v1946 = vld [vmem:[%s794] sm:$0xf]
        %v1947 = vld [vmem:[%s794 + $0x4] sm:$0xf]
        %v1950 = vunpack.c.l.b16 %v1946
        %v1951 = vunpack.c.l.b16 %v1947
        %v1952 = vpack.c.b16 %v1951, %v1950
        %1953 = vrot.lane.b32.xlu0 %v1894, 126
        %v1954 = vpop.permute.xlu0 %1953
        %v1956 = vsel %vm337, %v1952, 0
        %v1959 = vsel %vm341, %v1954, 0
        %1961 = vmatprep.subr.bf16.mxu0 0
        %1962 = vmatpush1.bf16.msra.mxu0 %v1959
        %1963 = vmatprep.subr.bf16.mxu0 0
        %1964 = vmatpush1.bf16.msra.mxu0 0
        %1965 = vmatprep.subr.bf16.mxu0 0
        %1966 = vmatpush1.bf16.msra.mxu0 0
        %1967 = vmatprep.subr.bf16.mxu0 0
        %1968 = vmatpush1.bf16.msra.mxu0 0
        %1969 = vmatprep.subr.bf16.mxu0 0
        %1970 = vmatpush1.bf16.msra.mxu0 0
        %1971 = vmatprep.subr.bf16.mxu0 0
        %1972 = vmatpush1.bf16.msra.mxu0 0
        %1973 = vmatprep.subr.bf16.mxu0 0
        %1974 = vmatpush1.bf16.msra.mxu0 0
        %1975 = vmatprep.subr.bf16.mxu0 0
        %1976 = vmatpush1.bf16.msra.mxu0 0
        %1977 = vmatprep.subr.bf16.mxu0 0
        %1978 = vmatpush1.bf16.msra.mxu0 0
        %1979 = vmatprep.subr.bf16.mxu0 0
        %1980 = vmatpush1.bf16.msra.mxu0 0
        %1981 = vmatprep.subr.bf16.mxu0 0
        %1982 = vmatpush1.bf16.msra.mxu0 0
        %1983 = vmatprep.subr.bf16.mxu0 0
        %1984 = vmatpush1.bf16.msra.mxu0 0
        %1985 = vmatprep.subr.bf16.mxu0 0
        %1986 = vmatpush1.bf16.msra.mxu0 0
        %1987 = vmatprep.subr.bf16.mxu0 0
        %1988 = vmatpush1.bf16.msra.mxu0 0
        %1989 = vmatprep.subr.bf16.mxu0 0
        %1990 = vmatpush1.bf16.msra.mxu0 0
        %1991 = vmatprep.subr.bf16.mxu0 0
        %1992 = vmatpush1.bf16.msra.mxu0 0
        %1993 = vmatprep.mubr.bf16.mxu0 0
        %1994 = vmatmul.mubr.bf16.gmra.mrb[0].mxu0 %v1956
        %v1995 = vpop.f32.mrb[0].mxu0
        %v1996 = vadd.f32 0.0, %v1995
        %v1997 = vpop.f32.mrb[0].mxu0
        %v1998 = vpop.f32.mrb[0].mxu0
        %v1999 = vadd.f32 0.0, %v1998
        %v2000 = vpop.f32.mrb[0].mxu0
        %2001 = vdwg.mxu0
        %v2002 = vadd.f32 %v1944, %v1996
        %v2003 = vadd.f32 %v1945, %v1999
        %v2004 = vadd.f32 %v2002, %v856
        %v2005 = vadd.f32 %v2003, %v861
        %vm2006 = vcmp.gt.f32.partialorder %v2004, 0.0
        %v2007 = vmul.f32 %v2004, 0.2
        %v2008 = vsel %vm2006, %v2004, %v2007
        %v2009 = vxor.u32 %v2005, 2147483648
        %v2010 = vmul.f32 %v2009, 1.442695
        %v2011 = vpow.pop %v2010
        %v2012 = vadd.f32 %v2011, 1.0
        %v2013 = vrcp.pop %v2012
        %v2014 = vmul.f32 1.0, %v2013
        %v2015 = vmul.f32 %v2008, %v2014
        %v2017 = vcombine.high %v2015, %v2015
        %v2019 = vunpack.c.l.s4 1966171168
        %v2020 = vunpack.c.0.s8 %v2019
        %v2021 = vlaneseq
        %v2022 = vshrl.u32 %v2021, 7
        %v2023 = vsub.s32 %v2020, %v2022
        %v2024 = vrot.slane %v2015, %v2023
        %v2026 = vunpack.c.l.s4 1966171168
        %v2027 = vunpack.c.0.s8 %v2026
        %v2028 = vlaneseq
        %v2029 = vshrl.u32 %v2028, 7
        %v2030 = vsub.s32 %v2027, %v2029
        %v2031 = vrot.slane %v2017, %v2030
        %v2032 = vcombine.high %v2024, %v2024
        %v2033 = vcombine.high %v2031, %v2031
        %v2035 = vunpack.c.l.s4 1966171168
        %v2036 = vunpack.c.0.s8 %v2035
        %v2037 = vlaneseq
        %v2038 = vshrl.u32 %v2037, 7
        %v2039 = vsub.s32 %v2036, %v2038
        %v2040 = vrot.slane %v2024, %v2039
        %v2042 = vunpack.c.l.s4 1966171168
        %v2043 = vunpack.c.0.s8 %v2042
        %v2044 = vlaneseq
        %v2045 = vshrl.u32 %v2044, 7
        %v2046 = vsub.s32 %v2043, %v2045
        %v2047 = vrot.slane %v2031, %v2046
        %v2049 = vunpack.c.l.s4 1966171168
        %v2050 = vunpack.c.0.s8 %v2049
        %v2051 = vlaneseq
        %v2052 = vshrl.u32 %v2051, 7
        %v2053 = vsub.s32 %v2050, %v2052
        %v2054 = vrot.slane %v2032, %v2053
        %v2056 = vunpack.c.l.s4 1966171168
        %v2057 = vunpack.c.0.s8 %v2056
        %v2058 = vlaneseq
        %v2059 = vshrl.u32 %v2058, 7
        %v2060 = vsub.s32 %v2057, %v2059
        %v2061 = vrot.slane %v2033, %v2060
        %v2062 = vcombine.high %v2040, %v2040
        %v2063 = vcombine.high %v2047, %v2047
        %v2064 = vcombine.high %v2054, %v2054
        %v2065 = vcombine.high %v2061, %v2061
        %2074 = vst.msk [vmem:[%s264 + $0x2] sm:$0x1] %vm933, %v2040
        %2075 = vst.msk [vmem:[%s264 + $0xa] sm:$0x1] %vm933, %v2054
        %2076 = vst.msk [vmem:[%s264 + $0x12] sm:$0x1] %vm933, %v2062
        %2077 = vst.msk [vmem:[%s264 + $0x1a] sm:$0x1] %vm933, %v2064
        %2078 = vst.msk [vmem:[%s264 + $0x22] sm:$0x1] %vm933, %v2047
        %2079 = vst.msk [vmem:[%s264 + $0x2a] sm:$0x1] %vm933, %v2061
        %2080 = vst.msk [vmem:[%s264 + $0x32] sm:$0x1] %vm933, %v2063
        %2081 = vst.msk [vmem:[%s264 + $0x3a] sm:$0x1] %vm933, %v2065
        %v2082 = vadd.f32 %v1512, %v2015
        %v2083 = vmul.f32 %v2015, %v2015
        %v2084 = vadd.f32 %v1514, %v2083
        %v2085 = vld [vmem:[%s1] sm:$0xf]
        %v2086 = vld [vmem:[%s1 + $0x4] sm:$0xf]
        %v2087 = vld [vmem:[%s324] sm:$0xf]
        %v2088 = vld [vmem:[%s324 + $0x4] sm:$0xf]
        %v2091 = vunpack.c.l.b16 %v2087
        %v2092 = vunpack.c.l.b16 %v2088
        %v2093 = vpack.c.b16 %v2092, %v2091
        %v2095 = vsel %vm337, %v2093, 0
        %2097 = vmatprep.subr.bf16.mxu0 0
        %2098 = vmatpush1.bf16.msra.mxu0 %v1331
        %2099 = vmatprep.subr.bf16.mxu0 0
        %2100 = vmatpush1.bf16.msra.mxu0 0
        %2101 = vmatprep.subr.bf16.mxu0 0
        %2102 = vmatpush1.bf16.msra.mxu0 0
        %2103 = vmatprep.subr.bf16.mxu0 0
        %2104 = vmatpush1.bf16.msra.mxu0 0
        %2105 = vmatprep.subr.bf16.mxu0 0
        %2106 = vmatpush1.bf16.msra.mxu0 0
        %2107 = vmatprep.subr.bf16.mxu0 0
        %2108 = vmatpush1.bf16.msra.mxu0 0
        %2109 = vmatprep.subr.bf16.mxu0 0
        %2110 = vmatpush1.bf16.msra.mxu0 0
        %2111 = vmatprep.subr.bf16.mxu0 0
        %2112 = vmatpush1.bf16.msra.mxu0 0
        %2113 = vmatprep.subr.bf16.mxu0 0
        %2114 = vmatpush1.bf16.msra.mxu0 0
        %2115 = vmatprep.subr.bf16.mxu0 0
        %2116 = vmatpush1.bf16.msra.mxu0 0
        %2117 = vmatprep.subr.bf16.mxu0 0
        %2118 = vmatpush1.bf16.msra.mxu0 0
        %2119 = vmatprep.subr.bf16.mxu0 0
        %2120 = vmatpush1.bf16.msra.mxu0 0
        %2121 = vmatprep.subr.bf16.mxu0 0
        %2122 = vmatpush1.bf16.msra.mxu0 0
        %2123 = vmatprep.subr.bf16.mxu0 0
        %2124 = vmatpush1.bf16.msra.mxu0 0
        %2125 = vmatprep.subr.bf16.mxu0 0
        %2126 = vmatpush1.bf16.msra.mxu0 0
        %2127 = vmatprep.subr.bf16.mxu0 0
        %2128 = vmatpush1.bf16.msra.mxu0 0
        %2129 = vmatprep.mubr.bf16.mxu0 0
        %2130 = vmatmul.mubr.bf16.gmra.mrb[0].mxu0 %v2095
        %v2131 = vpop.f32.mrb[0].mxu0
        %v2132 = vadd.f32 0.0, %v2131
        %v2133 = vpop.f32.mrb[0].mxu0
        %v2134 = vpop.f32.mrb[0].mxu0
        %v2135 = vadd.f32 0.0, %v2134
        %v2136 = vpop.f32.mrb[0].mxu0
        %2137 = vdwg.mxu0
        %v2140 = vunpack.c.l.b16 %v2085
        %v2141 = vunpack.c.l.b16 %v2086
        %v2142 = vpack.c.b16 %v2141, %v2140
        %v2144 = vsel %vm337, %v2142, 0
        %2146 = vmatprep.subr.bf16.mxu0 0
        %2147 = vmatpush1.bf16.msra.mxu0 %v1270
        %2148 = vmatprep.subr.bf16.mxu0 0
        %2149 = vmatpush1.bf16.msra.mxu0 0
        %2150 = vmatprep.subr.bf16.mxu0 0
        %2151 = vmatpush1.bf16.msra.mxu0 0
        %2152 = vmatprep.subr.bf16.mxu0 0
        %2153 = vmatpush1.bf16.msra.mxu0 0
        %2154 = vmatprep.subr.bf16.mxu0 0
        %2155 = vmatpush1.bf16.msra.mxu0 0
        %2156 = vmatprep.subr.bf16.mxu0 0
        %2157 = vmatpush1.bf16.msra.mxu0 0
        %2158 = vmatprep.subr.bf16.mxu0 0
        %2159 = vmatpush1.bf16.msra.mxu0 0
        %2160 = vmatprep.subr.bf16.mxu0 0
        %2161 = vmatpush1.bf16.msra.mxu0 0
        %2162 = vmatprep.subr.bf16.mxu0 0
        %2163 = vmatpush1.bf16.msra.mxu0 0
        %2164 = vmatprep.subr.bf16.mxu0 0
        %2165 = vmatpush1.bf16.msra.mxu0 0
        %2166 = vmatprep.subr.bf16.mxu0 0
        %2167 = vmatpush1.bf16.msra.mxu0 0
        %2168 = vmatprep.subr.bf16.mxu0 0
        %2169 = vmatpush1.bf16.msra.mxu0 0
        %2170 = vmatprep.subr.bf16.mxu0 0
        %2171 = vmatpush1.bf16.msra.mxu0 0
        %2172 = vmatprep.subr.bf16.mxu0 0
        %2173 = vmatpush1.bf16.msra.mxu0 0
        %2174 = vmatprep.subr.bf16.mxu0 0
        %2175 = vmatpush1.bf16.msra.mxu0 0
        %2176 = vmatprep.subr.bf16.mxu0 0
        %2177 = vmatpush1.bf16.msra.mxu0 0
        %2178 = vmatprep.mubr.bf16.mxu0 0
        %2179 = vmatmul.mubr.bf16.gmra.mrb[0].mxu0 %v2144
        %v2180 = vpop.f32.mrb[0].mxu0
        %v2181 = vadd.f32 %v2132, %v2180
        %v2182 = vpop.f32.mrb[0].mxu0
        %v2183 = vpop.f32.mrb[0].mxu0
        %v2184 = vadd.f32 %v2135, %v2183
        %v2185 = vpop.f32.mrb[0].mxu0
        %2186 = vdwg.mxu0
        %v2187 = vld [vmem:[%s438] sm:$0xf]
        %v2188 = vld [vmem:[%s438 + $0x4] sm:$0xf]
        %v2191 = vunpack.c.l.b16 %v2187
        %v2192 = vunpack.c.l.b16 %v2188
        %v2193 = vpack.c.b16 %v2192, %v2191
        %v2195 = vsel %vm337, %v2193, 0
        %2197 = vmatprep.subr.bf16.mxu0 0
        %2198 = vmatpush1.bf16.msra.mxu0 %v1389
        %2199 = vmatprep.subr.bf16.mxu0 0
        %2200 = vmatpush1.bf16.msra.mxu0 0
        %2201 = vmatprep.subr.bf16.mxu0 0
        %2202 = vmatpush1.bf16.msra.mxu0 0
        %2203 = vmatprep.subr.bf16.mxu0 0
        %2204 = vmatpush1.bf16.msra.mxu0 0
        %2205 = vmatprep.subr.bf16.mxu0 0
        %2206 = vmatpush1.bf16.msra.mxu0 0
        %2207 = vmatprep.subr.bf16.mxu0 0
        %2208 = vmatpush1.bf16.msra.mxu0 0
        %2209 = vmatprep.subr.bf16.mxu0 0
        %2210 = vmatpush1.bf16.msra.mxu0 0
        %2211 = vmatprep.subr.bf16.mxu0 0
        %2212 = vmatpush1.bf16.msra.mxu0 0
        %2213 = vmatprep.subr.bf16.mxu0 0
        %2214 = vmatpush1.bf16.msra.mxu0 0
        %2215 = vmatprep.subr.bf16.mxu0 0
        %2216 = vmatpush1.bf16.msra.mxu0 0
        %2217 = vmatprep.subr.bf16.mxu0 0
        %2218 = vmatpush1.bf16.msra.mxu0 0
        %2219 = vmatprep.subr.bf16.mxu0 0
        %2220 = vmatpush1.bf16.msra.mxu0 0
        %2221 = vmatprep.subr.bf16.mxu0 0
        %2222 = vmatpush1.bf16.msra.mxu0 0
        %2223 = vmatprep.subr.bf16.mxu0 0
        %2224 = vmatpush1.bf16.msra.mxu0 0
        %2225 = vmatprep.subr.bf16.mxu0 0
        %2226 = vmatpush1.bf16.msra.mxu0 0
        %2227 = vmatprep.subr.bf16.mxu0 0
        %2228 = vmatpush1.bf16.msra.mxu0 0
        %2229 = vmatprep.mubr.bf16.mxu0 0
        %2230 = vmatmul.mubr.bf16.gmra.mrb[0].mxu0 %v2195
        %v2231 = vpop.f32.mrb[0].mxu0
        %v2232 = vadd.f32 0.0, %v2231
        %v2233 = vpop.f32.mrb[0].mxu0
        %v2234 = vpop.f32.mrb[0].mxu0
        %v2235 = vadd.f32 0.0, %v2234
        %v2236 = vpop.f32.mrb[0].mxu0
        %2237 = vdwg.mxu0
        %v2238 = vadd.f32 %v2181, %v2232
        %v2239 = vadd.f32 %v2184, %v2235
        %v2240 = vld [vmem:[%s497] sm:$0xf]
        %v2241 = vld [vmem:[%s497 + $0x4] sm:$0xf]
        %v2244 = vunpack.c.l.b16 %v2240
        %v2245 = vunpack.c.l.b16 %v2241
        %v2246 = vpack.c.b16 %v2245, %v2244
        %v2248 = vsel %vm337, %v2246, 0
        %2250 = vmatprep.subr.bf16.mxu0 0
        %2251 = vmatpush1.bf16.msra.mxu0 %v1840
        %2252 = vmatprep.subr.bf16.mxu0 0
        %2253 = vmatpush1.bf16.msra.mxu0 0
        %2254 = vmatprep.subr.bf16.mxu0 0
        %2255 = vmatpush1.bf16.msra.mxu0 0
        %2256 = vmatprep.subr.bf16.mxu0 0
        %2257 = vmatpush1.bf16.msra.mxu0 0
        %2258 = vmatprep.subr.bf16.mxu0 0
        %2259 = vmatpush1.bf16.msra.mxu0 0
        %2260 = vmatprep.subr.bf16.mxu0 0
        %2261 = vmatpush1.bf16.msra.mxu0 0
        %2262 = vmatprep.subr.bf16.mxu0 0
        %2263 = vmatpush1.bf16.msra.mxu0 0
        %2264 = vmatprep.subr.bf16.mxu0 0
        %2265 = vmatpush1.bf16.msra.mxu0 0
        %2266 = vmatprep.subr.bf16.mxu0 0
        %2267 = vmatpush1.bf16.msra.mxu0 0
        %2268 = vmatprep.subr.bf16.mxu0 0
        %2269 = vmatpush1.bf16.msra.mxu0 0
        %2270 = vmatprep.subr.bf16.mxu0 0
        %2271 = vmatpush1.bf16.msra.mxu0 0
        %2272 = vmatprep.subr.bf16.mxu0 0
        %2273 = vmatpush1.bf16.msra.mxu0 0
        %2274 = vmatprep.subr.bf16.mxu0 0
        %2275 = vmatpush1.bf16.msra.mxu0 0
        %2276 = vmatprep.subr.bf16.mxu0 0
        %2277 = vmatpush1.bf16.msra.mxu0 0
        %2278 = vmatprep.subr.bf16.mxu0 0
        %2279 = vmatpush1.bf16.msra.mxu0 0
        %2280 = vmatprep.subr.bf16.mxu0 0
        %2281 = vmatpush1.bf16.msra.mxu0 0
        %2282 = vmatprep.mubr.bf16.mxu0 0
        %2283 = vmatmul.mubr.bf16.gmra.mrb[0].mxu0 %v2248
        %v2284 = vpop.f32.mrb[0].mxu0
        %v2285 = vadd.f32 0.0, %v2284
        %v2286 = vpop.f32.mrb[0].mxu0
        %v2287 = vpop.f32.mrb[0].mxu0
        %v2288 = vadd.f32 0.0, %v2287
        %v2289 = vpop.f32.mrb[0].mxu0
        %2290 = vdwg.mxu0
        %v2291 = vadd.f32 %v2238, %v2285
        %v2292 = vadd.f32 %v2239, %v2288
        %v2293 = vld [vmem:[%s554] sm:$0xf]
        %v2294 = vld [vmem:[%s554 + $0x4] sm:$0xf]
        %v2297 = vunpack.c.l.b16 %v2293
        %v2298 = vunpack.c.l.b16 %v2294
        %v2299 = vpack.c.b16 %v2298, %v2297
        %v2301 = vsel %vm337, %v2299, 0
        %2303 = vmatprep.subr.bf16.mxu0 0
        %2304 = vmatpush1.bf16.msra.mxu0 %v1901
        %2305 = vmatprep.subr.bf16.mxu0 0
        %2306 = vmatpush1.bf16.msra.mxu0 0
        %2307 = vmatprep.subr.bf16.mxu0 0
        %2308 = vmatpush1.bf16.msra.mxu0 0
        %2309 = vmatprep.subr.bf16.mxu0 0
        %2310 = vmatpush1.bf16.msra.mxu0 0
        %2311 = vmatprep.subr.bf16.mxu0 0
        %2312 = vmatpush1.bf16.msra.mxu0 0
        %2313 = vmatprep.subr.bf16.mxu0 0
        %2314 = vmatpush1.bf16.msra.mxu0 0
        %2315 = vmatprep.subr.bf16.mxu0 0
        %2316 = vmatpush1.bf16.msra.mxu0 0
        %2317 = vmatprep.subr.bf16.mxu0 0
        %2318 = vmatpush1.bf16.msra.mxu0 0
        %2319 = vmatprep.subr.bf16.mxu0 0
        %2320 = vmatpush1.bf16.msra.mxu0 0
        %2321 = vmatprep.subr.bf16.mxu0 0
        %2322 = vmatpush1.bf16.msra.mxu0 0
        %2323 = vmatprep.subr.bf16.mxu0 0
        %2324 = vmatpush1.bf16.msra.mxu0 0
        %2325 = vmatprep.subr.bf16.mxu0 0
        %2326 = vmatpush1.bf16.msra.mxu0 0
        %2327 = vmatprep.subr.bf16.mxu0 0
        %2328 = vmatpush1.bf16.msra.mxu0 0
        %2329 = vmatprep.subr.bf16.mxu0 0
        %2330 = vmatpush1.bf16.msra.mxu0 0
        %2331 = vmatprep.subr.bf16.mxu0 0
        %2332 = vmatpush1.bf16.msra.mxu0 0
        %2333 = vmatprep.subr.bf16.mxu0 0
        %2334 = vmatpush1.bf16.msra.mxu0 0
        %2335 = vmatprep.mubr.bf16.mxu0 0
        %2336 = vmatmul.mubr.bf16.gmra.mrb[0].mxu0 %v2301
        %v2337 = vpop.f32.mrb[0].mxu0
        %v2338 = vadd.f32 0.0, %v2337
        %v2339 = vpop.f32.mrb[0].mxu0
        %v2340 = vpop.f32.mrb[0].mxu0
        %v2341 = vadd.f32 0.0, %v2340
        %v2342 = vpop.f32.mrb[0].mxu0
        %2343 = vdwg.mxu0
        %v2344 = vadd.f32 %v2291, %v2338
        %v2345 = vadd.f32 %v2292, %v2341
        %v2346 = vld [vmem:[%s616] sm:$0xf]
        %v2347 = vld [vmem:[%s616 + $0x4] sm:$0xf]
        %v2350 = vunpack.c.l.b16 %v2346
        %v2351 = vunpack.c.l.b16 %v2347
        %v2352 = vpack.c.b16 %v2351, %v2350
        %v2354 = vsel %vm337, %v2352, 0
        %2356 = vmatprep.subr.bf16.mxu0 0
        %2357 = vmatpush1.bf16.msra.mxu0 %v1959
        %2358 = vmatprep.subr.bf16.mxu0 0
        %2359 = vmatpush1.bf16.msra.mxu0 0
        %2360 = vmatprep.subr.bf16.mxu0 0
        %2361 = vmatpush1.bf16.msra.mxu0 0
        %2362 = vmatprep.subr.bf16.mxu0 0
        %2363 = vmatpush1.bf16.msra.mxu0 0
        %2364 = vmatprep.subr.bf16.mxu0 0
        %2365 = vmatpush1.bf16.msra.mxu0 0
        %2366 = vmatprep.subr.bf16.mxu0 0
        %2367 = vmatpush1.bf16.msra.mxu0 0
        %2368 = vmatprep.subr.bf16.mxu0 0
        %2369 = vmatpush1.bf16.msra.mxu0 0
        %2370 = vmatprep.subr.bf16.mxu0 0
        %2371 = vmatpush1.bf16.msra.mxu0 0
        %2372 = vmatprep.subr.bf16.mxu0 0
        %2373 = vmatpush1.bf16.msra.mxu0 0
        %2374 = vmatprep.subr.bf16.mxu0 0
        %2375 = vmatpush1.bf16.msra.mxu0 0
        %2376 = vmatprep.subr.bf16.mxu0 0
        %2377 = vmatpush1.bf16.msra.mxu0 0
        %2378 = vmatprep.subr.bf16.mxu0 0
        %2379 = vmatpush1.bf16.msra.mxu0 0
        %2380 = vmatprep.subr.bf16.mxu0 0
        %2381 = vmatpush1.bf16.msra.mxu0 0
        %2382 = vmatprep.subr.bf16.mxu0 0
        %2383 = vmatpush1.bf16.msra.mxu0 0
        %2384 = vmatprep.subr.bf16.mxu0 0
        %2385 = vmatpush1.bf16.msra.mxu0 0
        %2386 = vmatprep.subr.bf16.mxu0 0
        %2387 = vmatpush1.bf16.msra.mxu0 0
        %2388 = vmatprep.mubr.bf16.mxu0 0
        %2389 = vmatmul.mubr.bf16.gmra.mrb[0].mxu0 %v2354
        %v2390 = vpop.f32.mrb[0].mxu0
        %v2391 = vadd.f32 0.0, %v2390
        %v2392 = vpop.f32.mrb[0].mxu0
        %v2393 = vpop.f32.mrb[0].mxu0
        %v2394 = vadd.f32 0.0, %v2393
        %v2395 = vpop.f32.mrb[0].mxu0
        %2396 = vdwg.mxu0
        %v2397 = vadd.f32 %v2344, %v2391
        %v2398 = vadd.f32 %v2345, %v2394
        %v2399 = vld [vmem:[%s675] sm:$0xf]
        %v2400 = vld [vmem:[%s675 + $0x4] sm:$0xf]
        %v2403 = vunpack.c.l.b16 %v2399
        %v2404 = vunpack.c.l.b16 %v2400
        %v2405 = vpack.c.b16 %v2404, %v2403
        %v2407 = vsel %vm337, %v2405, 0
        %v2410 = vsel %vm341, %v303, 0
        %2412 = vmatprep.subr.bf16.mxu0 0
        %2413 = vmatpush1.bf16.msra.mxu0 %v2410
        %2414 = vmatprep.subr.bf16.mxu0 0
        %2415 = vmatpush1.bf16.msra.mxu0 0
        %2416 = vmatprep.subr.bf16.mxu0 0
        %2417 = vmatpush1.bf16.msra.mxu0 0
        %2418 = vmatprep.subr.bf16.mxu0 0
        %2419 = vmatpush1.bf16.msra.mxu0 0
        %2420 = vmatprep.subr.bf16.mxu0 0
        %2421 = vmatpush1.bf16.msra.mxu0 0
        %2422 = vmatprep.subr.bf16.mxu0 0
        %2423 = vmatpush1.bf16.msra.mxu0 0
        %2424 = vmatprep.subr.bf16.mxu0 0
        %2425 = vmatpush1.bf16.msra.mxu0 0
        %2426 = vmatprep.subr.bf16.mxu0 0
        %2427 = vmatpush1.bf16.msra.mxu0 0
        %2428 = vmatprep.subr.bf16.mxu0 0
        %2429 = vmatpush1.bf16.msra.mxu0 0
        %2430 = vmatprep.subr.bf16.mxu0 0
        %2431 = vmatpush1.bf16.msra.mxu0 0
        %2432 = vmatprep.subr.bf16.mxu0 0
        %2433 = vmatpush1.bf16.msra.mxu0 0
        %2434 = vmatprep.subr.bf16.mxu0 0
        %2435 = vmatpush1.bf16.msra.mxu0 0
        %2436 = vmatprep.subr.bf16.mxu0 0
        %2437 = vmatpush1.bf16.msra.mxu0 0
        %2438 = vmatprep.subr.bf16.mxu0 0
        %2439 = vmatpush1.bf16.msra.mxu0 0
        %2440 = vmatprep.subr.bf16.mxu0 0
        %2441 = vmatpush1.bf16.msra.mxu0 0
        %2442 = vmatprep.subr.bf16.mxu0 0
        %2443 = vmatpush1.bf16.msra.mxu0 0
        %2444 = vmatprep.mubr.bf16.mxu0 0
        %2445 = vmatmul.mubr.bf16.gmra.mrb[0].mxu0 %v2407
        %v2446 = vpop.f32.mrb[0].mxu0
        %v2447 = vadd.f32 0.0, %v2446
        %v2448 = vpop.f32.mrb[0].mxu0
        %v2449 = vpop.f32.mrb[0].mxu0
        %v2450 = vadd.f32 0.0, %v2449
        %v2451 = vpop.f32.mrb[0].mxu0
        %2452 = vdwg.mxu0
        %v2453 = vadd.f32 %v2397, %v2447
        %v2454 = vadd.f32 %v2398, %v2450
        %v2455 = vld [vmem:[%s732] sm:$0xf]
        %v2456 = vld [vmem:[%s732 + $0x4] sm:$0xf]
        %v2459 = vunpack.c.l.b16 %v2455
        %v2460 = vunpack.c.l.b16 %v2456
        %v2461 = vpack.c.b16 %v2460, %v2459
        %v2463 = vunpack.c.l.b16 %v303
        %v2464 = vpack.c.b16 %v2463, %v2463
        %2465 = vrot.lane.b32.xlu0 %v2464, 127
        %v2466 = vpop.permute.xlu0 %2465
        %v2468 = vsel %vm337, %v2461, 0
        %v2471 = vsel %vm341, %v2466, 0
        %2473 = vmatprep.subr.bf16.mxu0 0
        %2474 = vmatpush1.bf16.msra.mxu0 %v2471
        %2475 = vmatprep.subr.bf16.mxu0 0
        %2476 = vmatpush1.bf16.msra.mxu0 0
        %2477 = vmatprep.subr.bf16.mxu0 0
        %2478 = vmatpush1.bf16.msra.mxu0 0
        %2479 = vmatprep.subr.bf16.mxu0 0
        %2480 = vmatpush1.bf16.msra.mxu0 0
        %2481 = vmatprep.subr.bf16.mxu0 0
        %2482 = vmatpush1.bf16.msra.mxu0 0
        %2483 = vmatprep.subr.bf16.mxu0 0
        %2484 = vmatpush1.bf16.msra.mxu0 0
        %2485 = vmatprep.subr.bf16.mxu0 0
        %2486 = vmatpush1.bf16.msra.mxu0 0
        %2487 = vmatprep.subr.bf16.mxu0 0
        %2488 = vmatpush1.bf16.msra.mxu0 0
        %2489 = vmatprep.subr.bf16.mxu0 0
        %2490 = vmatpush1.bf16.msra.mxu0 0
        %2491 = vmatprep.subr.bf16.mxu0 0
        %2492 = vmatpush1.bf16.msra.mxu0 0
        %2493 = vmatprep.subr.bf16.mxu0 0
        %2494 = vmatpush1.bf16.msra.mxu0 0
        %2495 = vmatprep.subr.bf16.mxu0 0
        %2496 = vmatpush1.bf16.msra.mxu0 0
        %2497 = vmatprep.subr.bf16.mxu0 0
        %2498 = vmatpush1.bf16.msra.mxu0 0
        %2499 = vmatprep.subr.bf16.mxu0 0
        %2500 = vmatpush1.bf16.msra.mxu0 0
        %2501 = vmatprep.subr.bf16.mxu0 0
        %2502 = vmatpush1.bf16.msra.mxu0 0
        %2503 = vmatprep.subr.bf16.mxu0 0
        %2504 = vmatpush1.bf16.msra.mxu0 0
        %2505 = vmatprep.mubr.bf16.mxu0 0
        %2506 = vmatmul.mubr.bf16.gmra.mrb[0].mxu0 %v2468
        %v2507 = vpop.f32.mrb[0].mxu0
        %v2508 = vadd.f32 0.0, %v2507
        %v2509 = vpop.f32.mrb[0].mxu0
        %v2510 = vpop.f32.mrb[0].mxu0
        %v2511 = vadd.f32 0.0, %v2510
        %v2512 = vpop.f32.mrb[0].mxu0
        %2513 = vdwg.mxu0
        %v2514 = vadd.f32 %v2453, %v2508
        %v2515 = vadd.f32 %v2454, %v2511
        %v2516 = vld [vmem:[%s794] sm:$0xf]
        %v2517 = vld [vmem:[%s794 + $0x4] sm:$0xf]
        %v2520 = vunpack.c.l.b16 %v2516
        %v2521 = vunpack.c.l.b16 %v2517
        %v2522 = vpack.c.b16 %v2521, %v2520
        %2523 = vrot.lane.b32.xlu0 %v2464, 126
        %v2524 = vpop.permute.xlu0 %2523
        %v2526 = vsel %vm337, %v2522, 0
        %v2529 = vsel %vm341, %v2524, 0
        %2531 = vmatprep.subr.bf16.mxu0 0
        %2532 = vmatpush1.bf16.msra.mxu0 %v2529
        %2533 = vmatprep.subr.bf16.mxu0 0
        %2534 = vmatpush1.bf16.msra.mxu0 0
        %2535 = vmatprep.subr.bf16.mxu0 0
        %2536 = vmatpush1.bf16.msra.mxu0 0
        %2537 = vmatprep.subr.bf16.mxu0 0
        %2538 = vmatpush1.bf16.msra.mxu0 0
        %2539 = vmatprep.subr.bf16.mxu0 0
        %2540 = vmatpush1.bf16.msra.mxu0 0
        %2541 = vmatprep.subr.bf16.mxu0 0
        %2542 = vmatpush1.bf16.msra.mxu0 0
        %2543 = vmatprep.subr.bf16.mxu0 0
        %2544 = vmatpush1.bf16.msra.mxu0 0
        %2545 = vmatprep.subr.bf16.mxu0 0
        %2546 = vmatpush1.bf16.msra.mxu0 0
        %2547 = vmatprep.subr.bf16.mxu0 0
        %2548 = vmatpush1.bf16.msra.mxu0 0
        %2549 = vmatprep.subr.bf16.mxu0 0
        %2550 = vmatpush1.bf16.msra.mxu0 0
        %2551 = vmatprep.subr.bf16.mxu0 0
        %2552 = vmatpush1.bf16.msra.mxu0 0
        %2553 = vmatprep.subr.bf16.mxu0 0
        %2554 = vmatpush1.bf16.msra.mxu0 0
        %2555 = vmatprep.subr.bf16.mxu0 0
        %2556 = vmatpush1.bf16.msra.mxu0 0
        %2557 = vmatprep.subr.bf16.mxu0 0
        %2558 = vmatpush1.bf16.msra.mxu0 0
        %2559 = vmatprep.subr.bf16.mxu0 0
        %2560 = vmatpush1.bf16.msra.mxu0 0
        %2561 = vmatprep.subr.bf16.mxu0 0
        %2562 = vmatpush1.bf16.msra.mxu0 0
        %2563 = vmatprep.mubr.bf16.mxu0 0
        %2564 = vmatmul.mubr.bf16.gmra.mrb[0].mxu0 %v2526
        %v2565 = vpop.f32.mrb[0].mxu0
        %v2566 = vadd.f32 0.0, %v2565
        %v2567 = vpop.f32.mrb[0].mxu0
        %v2568 = vpop.f32.mrb[0].mxu0
        %v2569 = vadd.f32 0.0, %v2568
        %v2570 = vpop.f32.mrb[0].mxu0
        %2571 = vdwg.mxu0
        %v2572 = vadd.f32 %v2514, %v2566
        %v2573 = vadd.f32 %v2515, %v2569
        %v2574 = vadd.f32 %v2572, %v856
        %v2575 = vadd.f32 %v2573, %v861
        %vm2576 = vcmp.gt.f32.partialorder %v2574, 0.0
        %v2577 = vmul.f32 %v2574, 0.2
        %v2578 = vsel %vm2576, %v2574, %v2577
        %v2579 = vxor.u32 %v2575, 2147483648
        %v2580 = vmul.f32 %v2579, 1.442695
        %v2581 = vpow.pop %v2580
        %v2582 = vadd.f32 %v2581, 1.0
        %v2583 = vrcp.pop %v2582
        %v2584 = vmul.f32 1.0, %v2583
        %v2585 = vmul.f32 %v2578, %v2584
        %v2587 = vcombine.high %v2585, %v2585
        %v2589 = vunpack.c.l.s4 1966171168
        %v2590 = vunpack.c.0.s8 %v2589
        %v2591 = vlaneseq
        %v2592 = vshrl.u32 %v2591, 7
        %v2593 = vsub.s32 %v2590, %v2592
        %v2594 = vrot.slane %v2585, %v2593
        %v2596 = vunpack.c.l.s4 1966171168
        %v2597 = vunpack.c.0.s8 %v2596
        %v2598 = vlaneseq
        %v2599 = vshrl.u32 %v2598, 7
        %v2600 = vsub.s32 %v2597, %v2599
        %v2601 = vrot.slane %v2587, %v2600
        %v2602 = vcombine.high %v2594, %v2594
        %v2603 = vcombine.high %v2601, %v2601
        %v2605 = vunpack.c.l.s4 1966171168
        %v2606 = vunpack.c.0.s8 %v2605
        %v2607 = vlaneseq
        %v2608 = vshrl.u32 %v2607, 7
        %v2609 = vsub.s32 %v2606, %v2608
        %v2610 = vrot.slane %v2594, %v2609
        %v2612 = vunpack.c.l.s4 1966171168
        %v2613 = vunpack.c.0.s8 %v2612
        %v2614 = vlaneseq
        %v2615 = vshrl.u32 %v2614, 7
        %v2616 = vsub.s32 %v2613, %v2615
        %v2617 = vrot.slane %v2601, %v2616
        %v2619 = vunpack.c.l.s4 1966171168
        %v2620 = vunpack.c.0.s8 %v2619
        %v2621 = vlaneseq
        %v2622 = vshrl.u32 %v2621, 7
        %v2623 = vsub.s32 %v2620, %v2622
        %v2624 = vrot.slane %v2602, %v2623
        %v2626 = vunpack.c.l.s4 1966171168
        %v2627 = vunpack.c.0.s8 %v2626
        %v2628 = vlaneseq
        %v2629 = vshrl.u32 %v2628, 7
        %v2630 = vsub.s32 %v2627, %v2629
        %v2631 = vrot.slane %v2603, %v2630
        %v2632 = vcombine.high %v2610, %v2610
        %v2633 = vcombine.high %v2617, %v2617
        %v2634 = vcombine.high %v2624, %v2624
        %v2635 = vcombine.high %v2631, %v2631
        %2644 = vst.msk [vmem:[%s264 + $0x3] sm:$0x1] %vm933, %v2610
        %2645 = vst.msk [vmem:[%s264 + $0xb] sm:$0x1] %vm933, %v2624
        %2646 = vst.msk [vmem:[%s264 + $0x13] sm:$0x1] %vm933, %v2632
        %2647 = vst.msk [vmem:[%s264 + $0x1b] sm:$0x1] %vm933, %v2634
        %2648 = vst.msk [vmem:[%s264 + $0x23] sm:$0x1] %vm933, %v2617
        %2649 = vst.msk [vmem:[%s264 + $0x2b] sm:$0x1] %vm933, %v2631
        %2650 = vst.msk [vmem:[%s264 + $0x33] sm:$0x1] %vm933, %v2633
        %2651 = vst.msk [vmem:[%s264 + $0x3b] sm:$0x1] %vm933, %v2635
        %v2652 = vadd.f32 %v2082, %v2585
        %v2653 = vmul.f32 %v2585, %v2585
        %v2654 = vadd.f32 %v2084, %v2653
        %v2655 = vld [vmem:[%s1] sm:$0xf]
        %v2656 = vld [vmem:[%s1 + $0x4] sm:$0xf]
        %v2657 = vld [vmem:[%s324] sm:$0xf]
        %v2658 = vld [vmem:[%s324 + $0x4] sm:$0xf]
        %v2661 = vunpack.c.l.b16 %v2657
        %v2662 = vunpack.c.l.b16 %v2658
        %v2663 = vpack.c.b16 %v2662, %v2661
        %v2665 = vsel %vm337, %v2663, 0
        %2667 = vmatprep.subr.bf16.mxu0 0
        %2668 = vmatpush1.bf16.msra.mxu0 %v1901
        %2669 = vmatprep.subr.bf16.mxu0 0
        %2670 = vmatpush1.bf16.msra.mxu0 0
        %2671 = vmatprep.subr.bf16.mxu0 0
        %2672 = vmatpush1.bf16.msra.mxu0 0
        %2673 = vmatprep.subr.bf16.mxu0 0
        %2674 = vmatpush1.bf16.msra.mxu0 0
        %2675 = vmatprep.subr.bf16.mxu0 0
        %2676 = vmatpush1.bf16.msra.mxu0 0
        %2677 = vmatprep.subr.bf16.mxu0 0
        %2678 = vmatpush1.bf16.msra.mxu0 0
        %2679 = vmatprep.subr.bf16.mxu0 0
        %2680 = vmatpush1.bf16.msra.mxu0 0
        %2681 = vmatprep.subr.bf16.mxu0 0
        %2682 = vmatpush1.bf16.msra.mxu0 0
        %2683 = vmatprep.subr.bf16.mxu0 0
        %2684 = vmatpush1.bf16.msra.mxu0 0
        %2685 = vmatprep.subr.bf16.mxu0 0
        %2686 = vmatpush1.bf16.msra.mxu0 0
        %2687 = vmatprep.subr.bf16.mxu0 0
        %2688 = vmatpush1.bf16.msra.mxu0 0
        %2689 = vmatprep.subr.bf16.mxu0 0
        %2690 = vmatpush1.bf16.msra.mxu0 0
        %2691 = vmatprep.subr.bf16.mxu0 0
        %2692 = vmatpush1.bf16.msra.mxu0 0
        %2693 = vmatprep.subr.bf16.mxu0 0
        %2694 = vmatpush1.bf16.msra.mxu0 0
        %2695 = vmatprep.subr.bf16.mxu0 0
        %2696 = vmatpush1.bf16.msra.mxu0 0
        %2697 = vmatprep.subr.bf16.mxu0 0
        %2698 = vmatpush1.bf16.msra.mxu0 0
        %2699 = vmatprep.mubr.bf16.mxu0 0
        %2700 = vmatmul.mubr.bf16.gmra.mrb[0].mxu0 %v2665
        %v2701 = vpop.f32.mrb[0].mxu0
        %v2702 = vadd.f32 0.0, %v2701
        %v2703 = vpop.f32.mrb[0].mxu0
        %v2704 = vpop.f32.mrb[0].mxu0
        %v2705 = vadd.f32 0.0, %v2704
        %v2706 = vpop.f32.mrb[0].mxu0
        %2707 = vdwg.mxu0
        %v2710 = vunpack.c.l.b16 %v2655
        %v2711 = vunpack.c.l.b16 %v2656
        %v2712 = vpack.c.b16 %v2711, %v2710
        %v2714 = vsel %vm337, %v2712, 0
        %2716 = vmatprep.subr.bf16.mxu0 0
        %2717 = vmatpush1.bf16.msra.mxu0 %v1840
        %2718 = vmatprep.subr.bf16.mxu0 0
        %2719 = vmatpush1.bf16.msra.mxu0 0
        %2720 = vmatprep.subr.bf16.mxu0 0
        %2721 = vmatpush1.bf16.msra.mxu0 0
        %2722 = vmatprep.subr.bf16.mxu0 0
        %2723 = vmatpush1.bf16.msra.mxu0 0
        %2724 = vmatprep.subr.bf16.mxu0 0
        %2725 = vmatpush1.bf16.msra.mxu0 0
        %2726 = vmatprep.subr.bf16.mxu0 0
        %2727 = vmatpush1.bf16.msra.mxu0 0
        %2728 = vmatprep.subr.bf16.mxu0 0
        %2729 = vmatpush1.bf16.msra.mxu0 0
        %2730 = vmatprep.subr.bf16.mxu0 0
        %2731 = vmatpush1.bf16.msra.mxu0 0
        %2732 = vmatprep.subr.bf16.mxu0 0
        %2733 = vmatpush1.bf16.msra.mxu0 0
        %2734 = vmatprep.subr.bf16.mxu0 0
        %2735 = vmatpush1.bf16.msra.mxu0 0
        %2736 = vmatprep.subr.bf16.mxu0 0
        %2737 = vmatpush1.bf16.msra.mxu0 0
        %2738 = vmatprep.subr.bf16.mxu0 0
        %2739 = vmatpush1.bf16.msra.mxu0 0
        %2740 = vmatprep.subr.bf16.mxu0 0
        %2741 = vmatpush1.bf16.msra.mxu0 0
        %2742 = vmatprep.subr.bf16.mxu0 0
        %2743 = vmatpush1.bf16.msra.mxu0 0
        %2744 = vmatprep.subr.bf16.mxu0 0
        %2745 = vmatpush1.bf16.msra.mxu0 0
        %2746 = vmatprep.subr.bf16.mxu0 0
        %2747 = vmatpush1.bf16.msra.mxu0 0
        %2748 = vmatprep.mubr.bf16.mxu0 0
        %2749 = vmatmul.mubr.bf16.gmra.mrb[0].mxu0 %v2714
        %v2750 = vpop.f32.mrb[0].mxu0
        %v2751 = vadd.f32 %v2702, %v2750
        %v2752 = vpop.f32.mrb[0].mxu0
        %v2753 = vpop.f32.mrb[0].mxu0
        %v2754 = vadd.f32 %v2705, %v2753
        %v2755 = vpop.f32.mrb[0].mxu0
        %2756 = vdwg.mxu0
        %v2757 = vld [vmem:[%s438] sm:$0xf]
        %v2758 = vld [vmem:[%s438 + $0x4] sm:$0xf]
        %v2761 = vunpack.c.l.b16 %v2757
        %v2762 = vunpack.c.l.b16 %v2758
        %v2763 = vpack.c.b16 %v2762, %v2761
        %v2765 = vsel %vm337, %v2763, 0
        %2767 = vmatprep.subr.bf16.mxu0 0
        %2768 = vmatpush1.bf16.msra.mxu0 %v1959
        %2769 = vmatprep.subr.bf16.mxu0 0
        %2770 = vmatpush1.bf16.msra.mxu0 0
        %2771 = vmatprep.subr.bf16.mxu0 0
        %2772 = vmatpush1.bf16.msra.mxu0 0
        %2773 = vmatprep.subr.bf16.mxu0 0
        %2774 = vmatpush1.bf16.msra.mxu0 0
        %2775 = vmatprep.subr.bf16.mxu0 0
        %2776 = vmatpush1.bf16.msra.mxu0 0
        %2777 = vmatprep.subr.bf16.mxu0 0
        %2778 = vmatpush1.bf16.msra.mxu0 0
        %2779 = vmatprep.subr.bf16.mxu0 0
        %2780 = vmatpush1.bf16.msra.mxu0 0
        %2781 = vmatprep.subr.bf16.mxu0 0
        %2782 = vmatpush1.bf16.msra.mxu0 0
        %2783 = vmatprep.subr.bf16.mxu0 0
        %2784 = vmatpush1.bf16.msra.mxu0 0
        %2785 = vmatprep.subr.bf16.mxu0 0
        %2786 = vmatpush1.bf16.msra.mxu0 0
        %2787 = vmatprep.subr.bf16.mxu0 0
        %2788 = vmatpush1.bf16.msra.mxu0 0
        %2789 = vmatprep.subr.bf16.mxu0 0
        %2790 = vmatpush1.bf16.msra.mxu0 0
        %2791 = vmatprep.subr.bf16.mxu0 0
        %2792 = vmatpush1.bf16.msra.mxu0 0
        %2793 = vmatprep.subr.bf16.mxu0 0
        %2794 = vmatpush1.bf16.msra.mxu0 0
        %2795 = vmatprep.subr.bf16.mxu0 0
        %2796 = vmatpush1.bf16.msra.mxu0 0
        %2797 = vmatprep.subr.bf16.mxu0 0
        %2798 = vmatpush1.bf16.msra.mxu0 0
        %2799 = vmatprep.mubr.bf16.mxu0 0
        %2800 = vmatmul.mubr.bf16.gmra.mrb[0].mxu0 %v2765
        %v2801 = vpop.f32.mrb[0].mxu0
        %v2802 = vadd.f32 0.0, %v2801
        %v2803 = vpop.f32.mrb[0].mxu0
        %v2804 = vpop.f32.mrb[0].mxu0
        %v2805 = vadd.f32 0.0, %v2804
        %v2806 = vpop.f32.mrb[0].mxu0
        %2807 = vdwg.mxu0
        %v2808 = vadd.f32 %v2751, %v2802
        %v2809 = vadd.f32 %v2754, %v2805
        %v2810 = vld [vmem:[%s497] sm:$0xf]
        %v2811 = vld [vmem:[%s497 + $0x4] sm:$0xf]
        %v2814 = vunpack.c.l.b16 %v2810
        %v2815 = vunpack.c.l.b16 %v2811
        %v2816 = vpack.c.b16 %v2815, %v2814
        %v2818 = vsel %vm337, %v2816, 0
        %2820 = vmatprep.subr.bf16.mxu0 0
        %2821 = vmatpush1.bf16.msra.mxu0 %v2410
        %2822 = vmatprep.subr.bf16.mxu0 0
        %2823 = vmatpush1.bf16.msra.mxu0 0
        %2824 = vmatprep.subr.bf16.mxu0 0
        %2825 = vmatpush1.bf16.msra.mxu0 0
        %2826 = vmatprep.subr.bf16.mxu0 0
        %2827 = vmatpush1.bf16.msra.mxu0 0
        %2828 = vmatprep.subr.bf16.mxu0 0
        %2829 = vmatpush1.bf16.msra.mxu0 0
        %2830 = vmatprep.subr.bf16.mxu0 0
        %2831 = vmatpush1.bf16.msra.mxu0 0
        %2832 = vmatprep.subr.bf16.mxu0 0
        %2833 = vmatpush1.bf16.msra.mxu0 0
        %2834 = vmatprep.subr.bf16.mxu0 0
        %2835 = vmatpush1.bf16.msra.mxu0 0
        %2836 = vmatprep.subr.bf16.mxu0 0
        %2837 = vmatpush1.bf16.msra.mxu0 0
        %2838 = vmatprep.subr.bf16.mxu0 0
        %2839 = vmatpush1.bf16.msra.mxu0 0
        %2840 = vmatprep.subr.bf16.mxu0 0
        %2841 = vmatpush1.bf16.msra.mxu0 0
        %2842 = vmatprep.subr.bf16.mxu0 0
        %2843 = vmatpush1.bf16.msra.mxu0 0
        %2844 = vmatprep.subr.bf16.mxu0 0
        %2845 = vmatpush1.bf16.msra.mxu0 0
        %2846 = vmatprep.subr.bf16.mxu0 0
        %2847 = vmatpush1.bf16.msra.mxu0 0
        %2848 = vmatprep.subr.bf16.mxu0 0
        %2849 = vmatpush1.bf16.msra.mxu0 0
        %2850 = vmatprep.subr.bf16.mxu0 0
        %2851 = vmatpush1.bf16.msra.mxu0 0
        %2852 = vmatprep.mubr.bf16.mxu0 0
        %2853 = vmatmul.mubr.bf16.gmra.mrb[0].mxu0 %v2818
        %v2854 = vpop.f32.mrb[0].mxu0
        %v2855 = vadd.f32 0.0, %v2854
        %v2856 = vpop.f32.mrb[0].mxu0
        %v2857 = vpop.f32.mrb[0].mxu0
        %v2858 = vadd.f32 0.0, %v2857
        %v2859 = vpop.f32.mrb[0].mxu0
        %2860 = vdwg.mxu0
        %v2861 = vadd.f32 %v2808, %v2855
        %v2862 = vadd.f32 %v2809, %v2858
        %v2863 = vld [vmem:[%s554] sm:$0xf]
        %v2864 = vld [vmem:[%s554 + $0x4] sm:$0xf]
        %v2867 = vunpack.c.l.b16 %v2863
        %v2868 = vunpack.c.l.b16 %v2864
        %v2869 = vpack.c.b16 %v2868, %v2867
        %v2871 = vsel %vm337, %v2869, 0
        %2873 = vmatprep.subr.bf16.mxu0 0
        %2874 = vmatpush1.bf16.msra.mxu0 %v2471
        %2875 = vmatprep.subr.bf16.mxu0 0
        %2876 = vmatpush1.bf16.msra.mxu0 0
        %2877 = vmatprep.subr.bf16.mxu0 0
        %2878 = vmatpush1.bf16.msra.mxu0 0
        %2879 = vmatprep.subr.bf16.mxu0 0
        %2880 = vmatpush1.bf16.msra.mxu0 0
        %2881 = vmatprep.subr.bf16.mxu0 0
        %2882 = vmatpush1.bf16.msra.mxu0 0
        %2883 = vmatprep.subr.bf16.mxu0 0
        %2884 = vmatpush1.bf16.msra.mxu0 0
        %2885 = vmatprep.subr.bf16.mxu0 0
        %2886 = vmatpush1.bf16.msra.mxu0 0
        %2887 = vmatprep.subr.bf16.mxu0 0
        %2888 = vmatpush1.bf16.msra.mxu0 0
        %2889 = vmatprep.subr.bf16.mxu0 0
        %2890 = vmatpush1.bf16.msra.mxu0 0
        %2891 = vmatprep.subr.bf16.mxu0 0
        %2892 = vmatpush1.bf16.msra.mxu0 0
        %2893 = vmatprep.subr.bf16.mxu0 0
        %2894 = vmatpush1.bf16.msra.mxu0 0
        %2895 = vmatprep.subr.bf16.mxu0 0
        %2896 = vmatpush1.bf16.msra.mxu0 0
        %2897 = vmatprep.subr.bf16.mxu0 0
        %2898 = vmatpush1.bf16.msra.mxu0 0
        %2899 = vmatprep.subr.bf16.mxu0 0
        %2900 = vmatpush1.bf16.msra.mxu0 0
        %2901 = vmatprep.subr.bf16.mxu0 0
        %2902 = vmatpush1.bf16.msra.mxu0 0
        %2903 = vmatprep.subr.bf16.mxu0 0
        %2904 = vmatpush1.bf16.msra.mxu0 0
        %2905 = vmatprep.mubr.bf16.mxu0 0
        %2906 = vmatmul.mubr.bf16.gmra.mrb[0].mxu0 %v2871
        %v2907 = vpop.f32.mrb[0].mxu0
        %v2908 = vadd.f32 0.0, %v2907
        %v2909 = vpop.f32.mrb[0].mxu0
        %v2910 = vpop.f32.mrb[0].mxu0
        %v2911 = vadd.f32 0.0, %v2910
        %v2912 = vpop.f32.mrb[0].mxu0
        %2913 = vdwg.mxu0
        %v2914 = vadd.f32 %v2861, %v2908
        %v2915 = vadd.f32 %v2862, %v2911
        %v2916 = vld [vmem:[%s616] sm:$0xf]
        %v2917 = vld [vmem:[%s616 + $0x4] sm:$0xf]
        %v2920 = vunpack.c.l.b16 %v2916
        %v2921 = vunpack.c.l.b16 %v2917
        %v2922 = vpack.c.b16 %v2921, %v2920
        %v2924 = vsel %vm337, %v2922, 0
        %2926 = vmatprep.subr.bf16.mxu0 0
        %2927 = vmatpush1.bf16.msra.mxu0 %v2529
        %2928 = vmatprep.subr.bf16.mxu0 0
        %2929 = vmatpush1.bf16.msra.mxu0 0
        %2930 = vmatprep.subr.bf16.mxu0 0
        %2931 = vmatpush1.bf16.msra.mxu0 0
        %2932 = vmatprep.subr.bf16.mxu0 0
        %2933 = vmatpush1.bf16.msra.mxu0 0
        %2934 = vmatprep.subr.bf16.mxu0 0
        %2935 = vmatpush1.bf16.msra.mxu0 0
        %2936 = vmatprep.subr.bf16.mxu0 0
        %2937 = vmatpush1.bf16.msra.mxu0 0
        %2938 = vmatprep.subr.bf16.mxu0 0
        %2939 = vmatpush1.bf16.msra.mxu0 0
        %2940 = vmatprep.subr.bf16.mxu0 0
        %2941 = vmatpush1.bf16.msra.mxu0 0
        %2942 = vmatprep.subr.bf16.mxu0 0
        %2943 = vmatpush1.bf16.msra.mxu0 0
        %2944 = vmatprep.subr.bf16.mxu0 0
        %2945 = vmatpush1.bf16.msra.mxu0 0
        %2946 = vmatprep.subr.bf16.mxu0 0
        %2947 = vmatpush1.bf16.msra.mxu0 0
        %2948 = vmatprep.subr.bf16.mxu0 0
        %2949 = vmatpush1.bf16.msra.mxu0 0
        %2950 = vmatprep.subr.bf16.mxu0 0
        %2951 = vmatpush1.bf16.msra.mxu0 0
        %2952 = vmatprep.subr.bf16.mxu0 0
        %2953 = vmatpush1.bf16.msra.mxu0 0
        %2954 = vmatprep.subr.bf16.mxu0 0
        %2955 = vmatpush1.bf16.msra.mxu0 0
        %2956 = vmatprep.subr.bf16.mxu0 0
        %2957 = vmatpush1.bf16.msra.mxu0 0
        %2958 = vmatprep.mubr.bf16.mxu0 0
        %2959 = vmatmul.mubr.bf16.gmra.mrb[0].mxu0 %v2924
        %v2960 = vpop.f32.mrb[0].mxu0
        %v2961 = vadd.f32 0.0, %v2960
        %v2962 = vpop.f32.mrb[0].mxu0
        %v2963 = vpop.f32.mrb[0].mxu0
        %v2964 = vadd.f32 0.0, %v2963
        %v2965 = vpop.f32.mrb[0].mxu0
        %2966 = vdwg.mxu0
        %v2967 = vadd.f32 %v2914, %v2961
        %v2968 = vadd.f32 %v2915, %v2964
        %v2969 = vld [vmem:[%s675] sm:$0xf]
        %v2970 = vld [vmem:[%s675 + $0x4] sm:$0xf]
        %v2973 = vunpack.c.l.b16 %v2969
        %v2974 = vunpack.c.l.b16 %v2970
        %v2975 = vpack.c.b16 %v2974, %v2973
        %v2977 = vsel %vm337, %v2975, 0
        %v2980 = vsel %vm341, %v307, 0
        %2982 = vmatprep.subr.bf16.mxu0 0
        %2983 = vmatpush1.bf16.msra.mxu0 %v2980
        %2984 = vmatprep.subr.bf16.mxu0 0
        %2985 = vmatpush1.bf16.msra.mxu0 0
        %2986 = vmatprep.subr.bf16.mxu0 0
        %2987 = vmatpush1.bf16.msra.mxu0 0
        %2988 = vmatprep.subr.bf16.mxu0 0
        %2989 = vmatpush1.bf16.msra.mxu0 0
        %2990 = vmatprep.subr.bf16.mxu0 0
        %2991 = vmatpush1.bf16.msra.mxu0 0
        %2992 = vmatprep.subr.bf16.mxu0 0
        %2993 = vmatpush1.bf16.msra.mxu0 0
        %2994 = vmatprep.subr.bf16.mxu0 0
        %2995 = vmatpush1.bf16.msra.mxu0 0
        %2996 = vmatprep.subr.bf16.mxu0 0
        %2997 = vmatpush1.bf16.msra.mxu0 0
        %2998 = vmatprep.subr.bf16.mxu0 0
        %2999 = vmatpush1.bf16.msra.mxu0 0
        %3000 = vmatprep.subr.bf16.mxu0 0
        %3001 = vmatpush1.bf16.msra.mxu0 0
        %3002 = vmatprep.subr.bf16.mxu0 0
        %3003 = vmatpush1.bf16.msra.mxu0 0
        %3004 = vmatprep.subr.bf16.mxu0 0
        %3005 = vmatpush1.bf16.msra.mxu0 0
        %3006 = vmatprep.subr.bf16.mxu0 0
        %3007 = vmatpush1.bf16.msra.mxu0 0
        %3008 = vmatprep.subr.bf16.mxu0 0
        %3009 = vmatpush1.bf16.msra.mxu0 0
        %3010 = vmatprep.subr.bf16.mxu0 0
        %3011 = vmatpush1.bf16.msra.mxu0 0
        %3012 = vmatprep.subr.bf16.mxu0 0
        %3013 = vmatpush1.bf16.msra.mxu0 0
        %3014 = vmatprep.mubr.bf16.mxu0 0
        %3015 = vmatmul.mubr.bf16.gmra.mrb[0].mxu0 %v2977
        %v3016 = vpop.f32.mrb[0].mxu0
        %v3017 = vadd.f32 0.0, %v3016
        %v3018 = vpop.f32.mrb[0].mxu0
        %v3019 = vpop.f32.mrb[0].mxu0
        %v3020 = vadd.f32 0.0, %v3019
        %v3021 = vpop.f32.mrb[0].mxu0
        %3022 = vdwg.mxu0
        %v3023 = vadd.f32 %v2967, %v3017
        %v3024 = vadd.f32 %v2968, %v3020
        %v3025 = vld [vmem:[%s732] sm:$0xf]
        %v3026 = vld [vmem:[%s732 + $0x4] sm:$0xf]
        %v3029 = vunpack.c.l.b16 %v3025
        %v3030 = vunpack.c.l.b16 %v3026
        %v3031 = vpack.c.b16 %v3030, %v3029
        %v3033 = vunpack.c.l.b16 %v307
        %v3034 = vpack.c.b16 %v3033, %v3033
        %3035 = vrot.lane.b32.xlu0 %v3034, 127
        %v3036 = vpop.permute.xlu0 %3035
        %v3038 = vsel %vm337, %v3031, 0
        %v3041 = vsel %vm341, %v3036, 0
        %3043 = vmatprep.subr.bf16.mxu0 0
        %3044 = vmatpush1.bf16.msra.mxu0 %v3041
        %3045 = vmatprep.subr.bf16.mxu0 0
        %3046 = vmatpush1.bf16.msra.mxu0 0
        %3047 = vmatprep.subr.bf16.mxu0 0
        %3048 = vmatpush1.bf16.msra.mxu0 0
        %3049 = vmatprep.subr.bf16.mxu0 0
        %3050 = vmatpush1.bf16.msra.mxu0 0
        %3051 = vmatprep.subr.bf16.mxu0 0
        %3052 = vmatpush1.bf16.msra.mxu0 0
        %3053 = vmatprep.subr.bf16.mxu0 0
        %3054 = vmatpush1.bf16.msra.mxu0 0
        %3055 = vmatprep.subr.bf16.mxu0 0
        %3056 = vmatpush1.bf16.msra.mxu0 0
        %3057 = vmatprep.subr.bf16.mxu0 0
        %3058 = vmatpush1.bf16.msra.mxu0 0
        %3059 = vmatprep.subr.bf16.mxu0 0
        %3060 = vmatpush1.bf16.msra.mxu0 0
        %3061 = vmatprep.subr.bf16.mxu0 0
        %3062 = vmatpush1.bf16.msra.mxu0 0
        %3063 = vmatprep.subr.bf16.mxu0 0
        %3064 = vmatpush1.bf16.msra.mxu0 0
        %3065 = vmatprep.subr.bf16.mxu0 0
        %3066 = vmatpush1.bf16.msra.mxu0 0
        %3067 = vmatprep.subr.bf16.mxu0 0
        %3068 = vmatpush1.bf16.msra.mxu0 0
        %3069 = vmatprep.subr.bf16.mxu0 0
        %3070 = vmatpush1.bf16.msra.mxu0 0
        %3071 = vmatprep.subr.bf16.mxu0 0
        %3072 = vmatpush1.bf16.msra.mxu0 0
        %3073 = vmatprep.subr.bf16.mxu0 0
        %3074 = vmatpush1.bf16.msra.mxu0 0
        %3075 = vmatprep.mubr.bf16.mxu0 0
        %3076 = vmatmul.mubr.bf16.gmra.mrb[0].mxu0 %v3038
        %v3077 = vpop.f32.mrb[0].mxu0
        %v3078 = vadd.f32 0.0, %v3077
        %v3079 = vpop.f32.mrb[0].mxu0
        %v3080 = vpop.f32.mrb[0].mxu0
        %v3081 = vadd.f32 0.0, %v3080
        %v3082 = vpop.f32.mrb[0].mxu0
        %3083 = vdwg.mxu0
        %v3084 = vadd.f32 %v3023, %v3078
        %v3085 = vadd.f32 %v3024, %v3081
        %v3086 = vld [vmem:[%s794] sm:$0xf]
        %v3087 = vld [vmem:[%s794 + $0x4] sm:$0xf]
        %v3090 = vunpack.c.l.b16 %v3086
        %v3091 = vunpack.c.l.b16 %v3087
        %v3092 = vpack.c.b16 %v3091, %v3090
        %3093 = vrot.lane.b32.xlu0 %v3034, 126
        %v3094 = vpop.permute.xlu0 %3093
        %v3096 = vsel %vm337, %v3092, 0
        %v3099 = vsel %vm341, %v3094, 0
        %3101 = vmatprep.subr.bf16.mxu0 0
        %3102 = vmatpush1.bf16.msra.mxu0 %v3099
        %3103 = vmatprep.subr.bf16.mxu0 0
        %3104 = vmatpush1.bf16.msra.mxu0 0
        %3105 = vmatprep.subr.bf16.mxu0 0
        %3106 = vmatpush1.bf16.msra.mxu0 0
        %3107 = vmatprep.subr.bf16.mxu0 0
        %3108 = vmatpush1.bf16.msra.mxu0 0
        %3109 = vmatprep.subr.bf16.mxu0 0
        %3110 = vmatpush1.bf16.msra.mxu0 0
        %3111 = vmatprep.subr.bf16.mxu0 0
        %3112 = vmatpush1.bf16.msra.mxu0 0
        %3113 = vmatprep.subr.bf16.mxu0 0
        %3114 = vmatpush1.bf16.msra.mxu0 0
        %3115 = vmatprep.subr.bf16.mxu0 0
        %3116 = vmatpush1.bf16.msra.mxu0 0
        %3117 = vmatprep.subr.bf16.mxu0 0
        %3118 = vmatpush1.bf16.msra.mxu0 0
        %3119 = vmatprep.subr.bf16.mxu0 0
        %3120 = vmatpush1.bf16.msra.mxu0 0
        %3121 = vmatprep.subr.bf16.mxu0 0
        %3122 = vmatpush1.bf16.msra.mxu0 0
        %3123 = vmatprep.subr.bf16.mxu0 0
        %3124 = vmatpush1.bf16.msra.mxu0 0
        %3125 = vmatprep.subr.bf16.mxu0 0
        %3126 = vmatpush1.bf16.msra.mxu0 0
        %3127 = vmatprep.subr.bf16.mxu0 0
        %3128 = vmatpush1.bf16.msra.mxu0 0
        %3129 = vmatprep.subr.bf16.mxu0 0
        %3130 = vmatpush1.bf16.msra.mxu0 0
        %3131 = vmatprep.subr.bf16.mxu0 0
        %3132 = vmatpush1.bf16.msra.mxu0 0
        %3133 = vmatprep.mubr.bf16.mxu0 0
        %3134 = vmatmul.mubr.bf16.gmra.mrb[0].mxu0 %v3096
        %v3135 = vpop.f32.mrb[0].mxu0
        %v3136 = vadd.f32 0.0, %v3135
        %v3137 = vpop.f32.mrb[0].mxu0
        %v3138 = vpop.f32.mrb[0].mxu0
        %v3139 = vadd.f32 0.0, %v3138
        %v3140 = vpop.f32.mrb[0].mxu0
        %3141 = vdwg.mxu0
        %v3142 = vadd.f32 %v3084, %v3136
        %v3143 = vadd.f32 %v3085, %v3139
        %v3144 = vadd.f32 %v3142, %v856
        %v3145 = vadd.f32 %v3143, %v861
        %vm3146 = vcmp.gt.f32.partialorder %v3144, 0.0
        %v3147 = vmul.f32 %v3144, 0.2
        %v3148 = vsel %vm3146, %v3144, %v3147
        %v3149 = vxor.u32 %v3145, 2147483648
        %v3150 = vmul.f32 %v3149, 1.442695
        %v3151 = vpow.pop %v3150
        %v3152 = vadd.f32 %v3151, 1.0
        %v3153 = vrcp.pop %v3152
        %v3154 = vmul.f32 1.0, %v3153
        %v3155 = vmul.f32 %v3148, %v3154
        %v3157 = vcombine.high %v3155, %v3155
        %v3159 = vunpack.c.l.s4 1966171168
        %v3160 = vunpack.c.0.s8 %v3159
        %v3161 = vlaneseq
        %v3162 = vshrl.u32 %v3161, 7
        %v3163 = vsub.s32 %v3160, %v3162
        %v3164 = vrot.slane %v3155, %v3163
        %v3166 = vunpack.c.l.s4 1966171168
        %v3167 = vunpack.c.0.s8 %v3166
        %v3168 = vlaneseq
        %v3169 = vshrl.u32 %v3168, 7
        %v3170 = vsub.s32 %v3167, %v3169
        %v3171 = vrot.slane %v3157, %v3170
        %v3172 = vcombine.high %v3164, %v3164
        %v3173 = vcombine.high %v3171, %v3171
        %v3175 = vunpack.c.l.s4 1966171168
        %v3176 = vunpack.c.0.s8 %v3175
        %v3177 = vlaneseq
        %v3178 = vshrl.u32 %v3177, 7
        %v3179 = vsub.s32 %v3176, %v3178
        %v3180 = vrot.slane %v3164, %v3179
        %v3182 = vunpack.c.l.s4 1966171168
        %v3183 = vunpack.c.0.s8 %v3182
        %v3184 = vlaneseq
        %v3185 = vshrl.u32 %v3184, 7
        %v3186 = vsub.s32 %v3183, %v3185
        %v3187 = vrot.slane %v3171, %v3186
        %v3189 = vunpack.c.l.s4 1966171168
        %v3190 = vunpack.c.0.s8 %v3189
        %v3191 = vlaneseq
        %v3192 = vshrl.u32 %v3191, 7
        %v3193 = vsub.s32 %v3190, %v3192
        %v3194 = vrot.slane %v3172, %v3193
        %v3196 = vunpack.c.l.s4 1966171168
        %v3197 = vunpack.c.0.s8 %v3196
        %v3198 = vlaneseq
        %v3199 = vshrl.u32 %v3198, 7
        %v3200 = vsub.s32 %v3197, %v3199
        %v3201 = vrot.slane %v3173, %v3200
        %v3202 = vcombine.high %v3180, %v3180
        %v3203 = vcombine.high %v3187, %v3187
        %v3204 = vcombine.high %v3194, %v3194
        %v3205 = vcombine.high %v3201, %v3201
        %3214 = vst.msk [vmem:[%s264 + $0x4] sm:$0x1] %vm933, %v3180
        %3215 = vst.msk [vmem:[%s264 + $0xc] sm:$0x1] %vm933, %v3194
        %3216 = vst.msk [vmem:[%s264 + $0x14] sm:$0x1] %vm933, %v3202
        %3217 = vst.msk [vmem:[%s264 + $0x1c] sm:$0x1] %vm933, %v3204
        %3218 = vst.msk [vmem:[%s264 + $0x24] sm:$0x1] %vm933, %v3187
        %3219 = vst.msk [vmem:[%s264 + $0x2c] sm:$0x1] %vm933, %v3201
        %3220 = vst.msk [vmem:[%s264 + $0x34] sm:$0x1] %vm933, %v3203
        %3221 = vst.msk [vmem:[%s264 + $0x3c] sm:$0x1] %vm933, %v3205
        %v3222 = vadd.f32 %v2652, %v3155
        %v3223 = vmul.f32 %v3155, %v3155
        %v3224 = vadd.f32 %v2654, %v3223
        %v3225 = vld [vmem:[%s1] sm:$0xf]
        %v3226 = vld [vmem:[%s1 + $0x4] sm:$0xf]
        %v3227 = vld [vmem:[%s324] sm:$0xf]
        %v3228 = vld [vmem:[%s324 + $0x4] sm:$0xf]
        %v3231 = vunpack.c.l.b16 %v3227
        %v3232 = vunpack.c.l.b16 %v3228
        %v3233 = vpack.c.b16 %v3232, %v3231
        %v3235 = vsel %vm337, %v3233, 0
        %3237 = vmatprep.subr.bf16.mxu0 0
        %3238 = vmatpush1.bf16.msra.mxu0 %v2471
        %3239 = vmatprep.subr.bf16.mxu0 0
        %3240 = vmatpush1.bf16.msra.mxu0 0
        %3241 = vmatprep.subr.bf16.mxu0 0
        %3242 = vmatpush1.bf16.msra.mxu0 0
        %3243 = vmatprep.subr.bf16.mxu0 0
        %3244 = vmatpush1.bf16.msra.mxu0 0
        %3245 = vmatprep.subr.bf16.mxu0 0
        %3246 = vmatpush1.bf16.msra.mxu0 0
        %3247 = vmatprep.subr.bf16.mxu0 0
        %3248 = vmatpush1.bf16.msra.mxu0 0
        %3249 = vmatprep.subr.bf16.mxu0 0
        %3250 = vmatpush1.bf16.msra.mxu0 0
        %3251 = vmatprep.subr.bf16.mxu0 0
        %3252 = vmatpush1.bf16.msra.mxu0 0
        %3253 = vmatprep.subr.bf16.mxu0 0
        %3254 = vmatpush1.bf16.msra.mxu0 0
        %3255 = vmatprep.subr.bf16.mxu0 0
        %3256 = vmatpush1.bf16.msra.mxu0 0
        %3257 = vmatprep.subr.bf16.mxu0 0
        %3258 = vmatpush1.bf16.msra.mxu0 0
        %3259 = vmatprep.subr.bf16.mxu0 0
        %3260 = vmatpush1.bf16.msra.mxu0 0
        %3261 = vmatprep.subr.bf16.mxu0 0
        %3262 = vmatpush1.bf16.msra.mxu0 0
        %3263 = vmatprep.subr.bf16.mxu0 0
        %3264 = vmatpush1.bf16.msra.mxu0 0
        %3265 = vmatprep.subr.bf16.mxu0 0
        %3266 = vmatpush1.bf16.msra.mxu0 0
        %3267 = vmatprep.subr.bf16.mxu0 0
        %3268 = vmatpush1.bf16.msra.mxu0 0
        %3269 = vmatprep.mubr.bf16.mxu0 0
        %3270 = vmatmul.mubr.bf16.gmra.mrb[0].mxu0 %v3235
        %v3271 = vpop.f32.mrb[0].mxu0
        %v3272 = vadd.f32 0.0, %v3271
        %v3273 = vpop.f32.mrb[0].mxu0
        %v3274 = vpop.f32.mrb[0].mxu0
        %v3275 = vadd.f32 0.0, %v3274
        %v3276 = vpop.f32.mrb[0].mxu0
        %3277 = vdwg.mxu0
        %v3280 = vunpack.c.l.b16 %v3225
        %v3281 = vunpack.c.l.b16 %v3226
        %v3282 = vpack.c.b16 %v3281, %v3280
        %v3284 = vsel %vm337, %v3282, 0
        %3286 = vmatprep.subr.bf16.mxu0 0
        %3287 = vmatpush1.bf16.msra.mxu0 %v2410
        %3288 = vmatprep.subr.bf16.mxu0 0
        %3289 = vmatpush1.bf16.msra.mxu0 0
        %3290 = vmatprep.subr.bf16.mxu0 0
        %3291 = vmatpush1.bf16.msra.mxu0 0
        %3292 = vmatprep.subr.bf16.mxu0 0
        %3293 = vmatpush1.bf16.msra.mxu0 0
        %3294 = vmatprep.subr.bf16.mxu0 0
        %3295 = vmatpush1.bf16.msra.mxu0 0
        %3296 = vmatprep.subr.bf16.mxu0 0
        %3297 = vmatpush1.bf16.msra.mxu0 0
        %3298 = vmatprep.subr.bf16.mxu0 0
        %3299 = vmatpush1.bf16.msra.mxu0 0
        %3300 = vmatprep.subr.bf16.mxu0 0
        %3301 = vmatpush1.bf16.msra.mxu0 0
        %3302 = vmatprep.subr.bf16.mxu0 0
        %3303 = vmatpush1.bf16.msra.mxu0 0
        %3304 = vmatprep.subr.bf16.mxu0 0
        %3305 = vmatpush1.bf16.msra.mxu0 0
        %3306 = vmatprep.subr.bf16.mxu0 0
        %3307 = vmatpush1.bf16.msra.mxu0 0
        %3308 = vmatprep.subr.bf16.mxu0 0
        %3309 = vmatpush1.bf16.msra.mxu0 0
        %3310 = vmatprep.subr.bf16.mxu0 0
        %3311 = vmatpush1.bf16.msra.mxu0 0
        %3312 = vmatprep.subr.bf16.mxu0 0
        %3313 = vmatpush1.bf16.msra.mxu0 0
        %3314 = vmatprep.subr.bf16.mxu0 0
        %3315 = vmatpush1.bf16.msra.mxu0 0
        %3316 = vmatprep.subr.bf16.mxu0 0
        %3317 = vmatpush1.bf16.msra.mxu0 0
        %3318 = vmatprep.mubr.bf16.mxu0 0
        %3319 = vmatmul.mubr.bf16.gmra.mrb[0].mxu0 %v3284
        %v3320 = vpop.f32.mrb[0].mxu0
        %v3321 = vadd.f32 %v3272, %v3320
        %v3322 = vpop.f32.mrb[0].mxu0
        %v3323 = vpop.f32.mrb[0].mxu0
        %v3324 = vadd.f32 %v3275, %v3323
        %v3325 = vpop.f32.mrb[0].mxu0
        %3326 = vdwg.mxu0
        %v3327 = vld [vmem:[%s438] sm:$0xf]
        %v3328 = vld [vmem:[%s438 + $0x4] sm:$0xf]
        %v3331 = vunpack.c.l.b16 %v3327
        %v3332 = vunpack.c.l.b16 %v3328
        %v3333 = vpack.c.b16 %v3332, %v3331
        %v3335 = vsel %vm337, %v3333, 0
        %3337 = vmatprep.subr.bf16.mxu0 0
        %3338 = vmatpush1.bf16.msra.mxu0 %v2529
        %3339 = vmatprep.subr.bf16.mxu0 0
        %3340 = vmatpush1.bf16.msra.mxu0 0
        %3341 = vmatprep.subr.bf16.mxu0 0
        %3342 = vmatpush1.bf16.msra.mxu0 0
        %3343 = vmatprep.subr.bf16.mxu0 0
        %3344 = vmatpush1.bf16.msra.mxu0 0
        %3345 = vmatprep.subr.bf16.mxu0 0
        %3346 = vmatpush1.bf16.msra.mxu0 0
        %3347 = vmatprep.subr.bf16.mxu0 0
        %3348 = vmatpush1.bf16.msra.mxu0 0
        %3349 = vmatprep.subr.bf16.mxu0 0
        %3350 = vmatpush1.bf16.msra.mxu0 0
        %3351 = vmatprep.subr.bf16.mxu0 0
        %3352 = vmatpush1.bf16.msra.mxu0 0
        %3353 = vmatprep.subr.bf16.mxu0 0
        %3354 = vmatpush1.bf16.msra.mxu0 0
        %3355 = vmatprep.subr.bf16.mxu0 0
        %3356 = vmatpush1.bf16.msra.mxu0 0
        %3357 = vmatprep.subr.bf16.mxu0 0
        %3358 = vmatpush1.bf16.msra.mxu0 0
        %3359 = vmatprep.subr.bf16.mxu0 0
        %3360 = vmatpush1.bf16.msra.mxu0 0
        %3361 = vmatprep.subr.bf16.mxu0 0
        %3362 = vmatpush1.bf16.msra.mxu0 0
        %3363 = vmatprep.subr.bf16.mxu0 0
        %3364 = vmatpush1.bf16.msra.mxu0 0
        %3365 = vmatprep.subr.bf16.mxu0 0
        %3366 = vmatpush1.bf16.msra.mxu0 0
        %3367 = vmatprep.subr.bf16.mxu0 0
        %3368 = vmatpush1.bf16.msra.mxu0 0
        %3369 = vmatprep.mubr.bf16.mxu0 0
        %3370 = vmatmul.mubr.bf16.gmra.mrb[0].mxu0 %v3335
        %v3371 = vpop.f32.mrb[0].mxu0
        %v3372 = vadd.f32 0.0, %v3371
        %v3373 = vpop.f32.mrb[0].mxu0
        %v3374 = vpop.f32.mrb[0].mxu0
        %v3375 = vadd.f32 0.0, %v3374
        %v3376 = vpop.f32.mrb[0].mxu0
        %3377 = vdwg.mxu0
        %v3378 = vadd.f32 %v3321, %v3372
        %v3379 = vadd.f32 %v3324, %v3375
        %v3380 = vld [vmem:[%s497] sm:$0xf]
        %v3381 = vld [vmem:[%s497 + $0x4] sm:$0xf]
        %v3384 = vunpack.c.l.b16 %v3380
        %v3385 = vunpack.c.l.b16 %v3381
        %v3386 = vpack.c.b16 %v3385, %v3384
        %v3388 = vsel %vm337, %v3386, 0
        %3390 = vmatprep.subr.bf16.mxu0 0
        %3391 = vmatpush1.bf16.msra.mxu0 %v2980
        %3392 = vmatprep.subr.bf16.mxu0 0
        %3393 = vmatpush1.bf16.msra.mxu0 0
        %3394 = vmatprep.subr.bf16.mxu0 0
        %3395 = vmatpush1.bf16.msra.mxu0 0
        %3396 = vmatprep.subr.bf16.mxu0 0
        %3397 = vmatpush1.bf16.msra.mxu0 0
        %3398 = vmatprep.subr.bf16.mxu0 0
        %3399 = vmatpush1.bf16.msra.mxu0 0
        %3400 = vmatprep.subr.bf16.mxu0 0
        %3401 = vmatpush1.bf16.msra.mxu0 0
        %3402 = vmatprep.subr.bf16.mxu0 0
        %3403 = vmatpush1.bf16.msra.mxu0 0
        %3404 = vmatprep.subr.bf16.mxu0 0
        %3405 = vmatpush1.bf16.msra.mxu0 0
        %3406 = vmatprep.subr.bf16.mxu0 0
        %3407 = vmatpush1.bf16.msra.mxu0 0
        %3408 = vmatprep.subr.bf16.mxu0 0
        %3409 = vmatpush1.bf16.msra.mxu0 0
        %3410 = vmatprep.subr.bf16.mxu0 0
        %3411 = vmatpush1.bf16.msra.mxu0 0
        %3412 = vmatprep.subr.bf16.mxu0 0
        %3413 = vmatpush1.bf16.msra.mxu0 0
        %3414 = vmatprep.subr.bf16.mxu0 0
        %3415 = vmatpush1.bf16.msra.mxu0 0
        %3416 = vmatprep.subr.bf16.mxu0 0
        %3417 = vmatpush1.bf16.msra.mxu0 0
        %3418 = vmatprep.subr.bf16.mxu0 0
        %3419 = vmatpush1.bf16.msra.mxu0 0
        %3420 = vmatprep.subr.bf16.mxu0 0
        %3421 = vmatpush1.bf16.msra.mxu0 0
        %3422 = vmatprep.mubr.bf16.mxu0 0
        %3423 = vmatmul.mubr.bf16.gmra.mrb[0].mxu0 %v3388
        %v3424 = vpop.f32.mrb[0].mxu0
        %v3425 = vadd.f32 0.0, %v3424
        %v3426 = vpop.f32.mrb[0].mxu0
        %v3427 = vpop.f32.mrb[0].mxu0
        %v3428 = vadd.f32 0.0, %v3427
        %v3429 = vpop.f32.mrb[0].mxu0
        %3430 = vdwg.mxu0
        %v3431 = vadd.f32 %v3378, %v3425
        %v3432 = vadd.f32 %v3379, %v3428
        %v3433 = vld [vmem:[%s554] sm:$0xf]
        %v3434 = vld [vmem:[%s554 + $0x4] sm:$0xf]
        %v3437 = vunpack.c.l.b16 %v3433
        %v3438 = vunpack.c.l.b16 %v3434
        %v3439 = vpack.c.b16 %v3438, %v3437
        %v3441 = vsel %vm337, %v3439, 0
        %3443 = vmatprep.subr.bf16.mxu0 0
        %3444 = vmatpush1.bf16.msra.mxu0 %v3041
        %3445 = vmatprep.subr.bf16.mxu0 0
        %3446 = vmatpush1.bf16.msra.mxu0 0
        %3447 = vmatprep.subr.bf16.mxu0 0
        %3448 = vmatpush1.bf16.msra.mxu0 0
        %3449 = vmatprep.subr.bf16.mxu0 0
        %3450 = vmatpush1.bf16.msra.mxu0 0
        %3451 = vmatprep.subr.bf16.mxu0 0
        %3452 = vmatpush1.bf16.msra.mxu0 0
        %3453 = vmatprep.subr.bf16.mxu0 0
        %3454 = vmatpush1.bf16.msra.mxu0 0
        %3455 = vmatprep.subr.bf16.mxu0 0
        %3456 = vmatpush1.bf16.msra.mxu0 0
        %3457 = vmatprep.subr.bf16.mxu0 0
        %3458 = vmatpush1.bf16.msra.mxu0 0
        %3459 = vmatprep.subr.bf16.mxu0 0
        %3460 = vmatpush1.bf16.msra.mxu0 0
        %3461 = vmatprep.subr.bf16.mxu0 0
        %3462 = vmatpush1.bf16.msra.mxu0 0
        %3463 = vmatprep.subr.bf16.mxu0 0
        %3464 = vmatpush1.bf16.msra.mxu0 0
        %3465 = vmatprep.subr.bf16.mxu0 0
        %3466 = vmatpush1.bf16.msra.mxu0 0
        %3467 = vmatprep.subr.bf16.mxu0 0
        %3468 = vmatpush1.bf16.msra.mxu0 0
        %3469 = vmatprep.subr.bf16.mxu0 0
        %3470 = vmatpush1.bf16.msra.mxu0 0
        %3471 = vmatprep.subr.bf16.mxu0 0
        %3472 = vmatpush1.bf16.msra.mxu0 0
        %3473 = vmatprep.subr.bf16.mxu0 0
        %3474 = vmatpush1.bf16.msra.mxu0 0
        %3475 = vmatprep.mubr.bf16.mxu0 0
        %3476 = vmatmul.mubr.bf16.gmra.mrb[0].mxu0 %v3441
        %v3477 = vpop.f32.mrb[0].mxu0
        %v3478 = vadd.f32 0.0, %v3477
        %v3479 = vpop.f32.mrb[0].mxu0
        %v3480 = vpop.f32.mrb[0].mxu0
        %v3481 = vadd.f32 0.0, %v3480
        %v3482 = vpop.f32.mrb[0].mxu0
        %3483 = vdwg.mxu0
        %v3484 = vadd.f32 %v3431, %v3478
        %v3485 = vadd.f32 %v3432, %v3481
        %v3486 = vld [vmem:[%s616] sm:$0xf]
        %v3487 = vld [vmem:[%s616 + $0x4] sm:$0xf]
        %v3490 = vunpack.c.l.b16 %v3486
        %v3491 = vunpack.c.l.b16 %v3487
        %v3492 = vpack.c.b16 %v3491, %v3490
        %v3494 = vsel %vm337, %v3492, 0
        %3496 = vmatprep.subr.bf16.mxu0 0
        %3497 = vmatpush1.bf16.msra.mxu0 %v3099
        %3498 = vmatprep.subr.bf16.mxu0 0
        %3499 = vmatpush1.bf16.msra.mxu0 0
        %3500 = vmatprep.subr.bf16.mxu0 0
        %3501 = vmatpush1.bf16.msra.mxu0 0
        %3502 = vmatprep.subr.bf16.mxu0 0
        %3503 = vmatpush1.bf16.msra.mxu0 0
        %3504 = vmatprep.subr.bf16.mxu0 0
        %3505 = vmatpush1.bf16.msra.mxu0 0
        %3506 = vmatprep.subr.bf16.mxu0 0
        %3507 = vmatpush1.bf16.msra.mxu0 0
        %3508 = vmatprep.subr.bf16.mxu0 0
        %3509 = vmatpush1.bf16.msra.mxu0 0
        %3510 = vmatprep.subr.bf16.mxu0 0
        %3511 = vmatpush1.bf16.msra.mxu0 0
        %3512 = vmatprep.subr.bf16.mxu0 0
        %3513 = vmatpush1.bf16.msra.mxu0 0
        %3514 = vmatprep.subr.bf16.mxu0 0
        %3515 = vmatpush1.bf16.msra.mxu0 0
        %3516 = vmatprep.subr.bf16.mxu0 0
        %3517 = vmatpush1.bf16.msra.mxu0 0
        %3518 = vmatprep.subr.bf16.mxu0 0
        %3519 = vmatpush1.bf16.msra.mxu0 0
        %3520 = vmatprep.subr.bf16.mxu0 0
        %3521 = vmatpush1.bf16.msra.mxu0 0
        %3522 = vmatprep.subr.bf16.mxu0 0
        %3523 = vmatpush1.bf16.msra.mxu0 0
        %3524 = vmatprep.subr.bf16.mxu0 0
        %3525 = vmatpush1.bf16.msra.mxu0 0
        %3526 = vmatprep.subr.bf16.mxu0 0
        %3527 = vmatpush1.bf16.msra.mxu0 0
        %3528 = vmatprep.mubr.bf16.mxu0 0
        %3529 = vmatmul.mubr.bf16.gmra.mrb[0].mxu0 %v3494
        %v3530 = vpop.f32.mrb[0].mxu0
        %v3531 = vadd.f32 0.0, %v3530
        %v3532 = vpop.f32.mrb[0].mxu0
        %v3533 = vpop.f32.mrb[0].mxu0
        %v3534 = vadd.f32 0.0, %v3533
        %v3535 = vpop.f32.mrb[0].mxu0
        %3536 = vdwg.mxu0
        %v3537 = vadd.f32 %v3484, %v3531
        %v3538 = vadd.f32 %v3485, %v3534
        %v3539 = vld [vmem:[%s675] sm:$0xf]
        %v3540 = vld [vmem:[%s675 + $0x4] sm:$0xf]
        %v3543 = vunpack.c.l.b16 %v3539
        %v3544 = vunpack.c.l.b16 %v3540
        %v3545 = vpack.c.b16 %v3544, %v3543
        %v3547 = vsel %vm337, %v3545, 0
        %v3550 = vsel %vm341, %v311, 0
        %3552 = vmatprep.subr.bf16.mxu0 0
        %3553 = vmatpush1.bf16.msra.mxu0 %v3550
        %3554 = vmatprep.subr.bf16.mxu0 0
        %3555 = vmatpush1.bf16.msra.mxu0 0
        %3556 = vmatprep.subr.bf16.mxu0 0
        %3557 = vmatpush1.bf16.msra.mxu0 0
        %3558 = vmatprep.subr.bf16.mxu0 0
        %3559 = vmatpush1.bf16.msra.mxu0 0
        %3560 = vmatprep.subr.bf16.mxu0 0
        %3561 = vmatpush1.bf16.msra.mxu0 0
        %3562 = vmatprep.subr.bf16.mxu0 0
        %3563 = vmatpush1.bf16.msra.mxu0 0
        %3564 = vmatprep.subr.bf16.mxu0 0
        %3565 = vmatpush1.bf16.msra.mxu0 0
        %3566 = vmatprep.subr.bf16.mxu0 0
        %3567 = vmatpush1.bf16.msra.mxu0 0
        %3568 = vmatprep.subr.bf16.mxu0 0
        %3569 = vmatpush1.bf16.msra.mxu0 0
        %3570 = vmatprep.subr.bf16.mxu0 0
        %3571 = vmatpush1.bf16.msra.mxu0 0
        %3572 = vmatprep.subr.bf16.mxu0 0
        %3573 = vmatpush1.bf16.msra.mxu0 0
        %3574 = vmatprep.subr.bf16.mxu0 0
        %3575 = vmatpush1.bf16.msra.mxu0 0
        %3576 = vmatprep.subr.bf16.mxu0 0
        %3577 = vmatpush1.bf16.msra.mxu0 0
        %3578 = vmatprep.subr.bf16.mxu0 0
        %3579 = vmatpush1.bf16.msra.mxu0 0
        %3580 = vmatprep.subr.bf16.mxu0 0
        %3581 = vmatpush1.bf16.msra.mxu0 0
        %3582 = vmatprep.subr.bf16.mxu0 0
        %3583 = vmatpush1.bf16.msra.mxu0 0
        %3584 = vmatprep.mubr.bf16.mxu0 0
        %3585 = vmatmul.mubr.bf16.gmra.mrb[0].mxu0 %v3547
        %v3586 = vpop.f32.mrb[0].mxu0
        %v3587 = vadd.f32 0.0, %v3586
        %v3588 = vpop.f32.mrb[0].mxu0
        %v3589 = vpop.f32.mrb[0].mxu0
        %v3590 = vadd.f32 0.0, %v3589
        %v3591 = vpop.f32.mrb[0].mxu0
        %3592 = vdwg.mxu0
        %v3593 = vadd.f32 %v3537, %v3587
        %v3594 = vadd.f32 %v3538, %v3590
        %v3595 = vld [vmem:[%s732] sm:$0xf]
        %v3596 = vld [vmem:[%s732 + $0x4] sm:$0xf]
        %v3599 = vunpack.c.l.b16 %v3595
        %v3600 = vunpack.c.l.b16 %v3596
        %v3601 = vpack.c.b16 %v3600, %v3599
        %v3603 = vunpack.c.l.b16 %v311
        %v3604 = vpack.c.b16 %v3603, %v3603
        %3605 = vrot.lane.b32.xlu0 %v3604, 127
        %v3606 = vpop.permute.xlu0 %3605
        %v3608 = vsel %vm337, %v3601, 0
        %v3611 = vsel %vm341, %v3606, 0
        %3613 = vmatprep.subr.bf16.mxu0 0
        %3614 = vmatpush1.bf16.msra.mxu0 %v3611
        %3615 = vmatprep.subr.bf16.mxu0 0
        %3616 = vmatpush1.bf16.msra.mxu0 0
        %3617 = vmatprep.subr.bf16.mxu0 0
        %3618 = vmatpush1.bf16.msra.mxu0 0
        %3619 = vmatprep.subr.bf16.mxu0 0
        %3620 = vmatpush1.bf16.msra.mxu0 0
        %3621 = vmatprep.subr.bf16.mxu0 0
        %3622 = vmatpush1.bf16.msra.mxu0 0
        %3623 = vmatprep.subr.bf16.mxu0 0
        %3624 = vmatpush1.bf16.msra.mxu0 0
        %3625 = vmatprep.subr.bf16.mxu0 0
        %3626 = vmatpush1.bf16.msra.mxu0 0
        %3627 = vmatprep.subr.bf16.mxu0 0
        %3628 = vmatpush1.bf16.msra.mxu0 0
        %3629 = vmatprep.subr.bf16.mxu0 0
        %3630 = vmatpush1.bf16.msra.mxu0 0
        %3631 = vmatprep.subr.bf16.mxu0 0
        %3632 = vmatpush1.bf16.msra.mxu0 0
        %3633 = vmatprep.subr.bf16.mxu0 0
        %3634 = vmatpush1.bf16.msra.mxu0 0
        %3635 = vmatprep.subr.bf16.mxu0 0
        %3636 = vmatpush1.bf16.msra.mxu0 0
        %3637 = vmatprep.subr.bf16.mxu0 0
        %3638 = vmatpush1.bf16.msra.mxu0 0
        %3639 = vmatprep.subr.bf16.mxu0 0
        %3640 = vmatpush1.bf16.msra.mxu0 0
        %3641 = vmatprep.subr.bf16.mxu0 0
        %3642 = vmatpush1.bf16.msra.mxu0 0
        %3643 = vmatprep.subr.bf16.mxu0 0
        %3644 = vmatpush1.bf16.msra.mxu0 0
        %3645 = vmatprep.mubr.bf16.mxu0 0
        %3646 = vmatmul.mubr.bf16.gmra.mrb[0].mxu0 %v3608
        %v3647 = vpop.f32.mrb[0].mxu0
        %v3648 = vadd.f32 0.0, %v3647
        %v3649 = vpop.f32.mrb[0].mxu0
        %v3650 = vpop.f32.mrb[0].mxu0
        %v3651 = vadd.f32 0.0, %v3650
        %v3652 = vpop.f32.mrb[0].mxu0
        %3653 = vdwg.mxu0
        %v3654 = vadd.f32 %v3593, %v3648
        %v3655 = vadd.f32 %v3594, %v3651
        %v3656 = vld [vmem:[%s794] sm:$0xf]
        %v3657 = vld [vmem:[%s794 + $0x4] sm:$0xf]
        %v3660 = vunpack.c.l.b16 %v3656
        %v3661 = vunpack.c.l.b16 %v3657
        %v3662 = vpack.c.b16 %v3661, %v3660
        %3663 = vrot.lane.b32.xlu0 %v3604, 126
        %v3664 = vpop.permute.xlu0 %3663
        %v3666 = vsel %vm337, %v3662, 0
        %v3669 = vsel %vm341, %v3664, 0
        %3671 = vmatprep.subr.bf16.mxu0 0
        %3672 = vmatpush1.bf16.msra.mxu0 %v3669
        %3673 = vmatprep.subr.bf16.mxu0 0
        %3674 = vmatpush1.bf16.msra.mxu0 0
        %3675 = vmatprep.subr.bf16.mxu0 0
        %3676 = vmatpush1.bf16.msra.mxu0 0
        %3677 = vmatprep.subr.bf16.mxu0 0
        %3678 = vmatpush1.bf16.msra.mxu0 0
        %3679 = vmatprep.subr.bf16.mxu0 0
        %3680 = vmatpush1.bf16.msra.mxu0 0
        %3681 = vmatprep.subr.bf16.mxu0 0
        %3682 = vmatpush1.bf16.msra.mxu0 0
        %3683 = vmatprep.subr.bf16.mxu0 0
        %3684 = vmatpush1.bf16.msra.mxu0 0
        %3685 = vmatprep.subr.bf16.mxu0 0
        %3686 = vmatpush1.bf16.msra.mxu0 0
        %3687 = vmatprep.subr.bf16.mxu0 0
        %3688 = vmatpush1.bf16.msra.mxu0 0
        %3689 = vmatprep.subr.bf16.mxu0 0
        %3690 = vmatpush1.bf16.msra.mxu0 0
        %3691 = vmatprep.subr.bf16.mxu0 0
        %3692 = vmatpush1.bf16.msra.mxu0 0
        %3693 = vmatprep.subr.bf16.mxu0 0
        %3694 = vmatpush1.bf16.msra.mxu0 0
        %3695 = vmatprep.subr.bf16.mxu0 0
        %3696 = vmatpush1.bf16.msra.mxu0 0
        %3697 = vmatprep.subr.bf16.mxu0 0
        %3698 = vmatpush1.bf16.msra.mxu0 0
        %3699 = vmatprep.subr.bf16.mxu0 0
        %3700 = vmatpush1.bf16.msra.mxu0 0
        %3701 = vmatprep.subr.bf16.mxu0 0
        %3702 = vmatpush1.bf16.msra.mxu0 0
        %3703 = vmatprep.mubr.bf16.mxu0 0
        %3704 = vmatmul.mubr.bf16.gmra.mrb[0].mxu0 %v3666
        %v3705 = vpop.f32.mrb[0].mxu0
        %v3706 = vadd.f32 0.0, %v3705
        %v3707 = vpop.f32.mrb[0].mxu0
        %v3708 = vpop.f32.mrb[0].mxu0
        %v3709 = vadd.f32 0.0, %v3708
        %v3710 = vpop.f32.mrb[0].mxu0
        %3711 = vdwg.mxu0
        %v3712 = vadd.f32 %v3654, %v3706
        %v3713 = vadd.f32 %v3655, %v3709
        %v3714 = vadd.f32 %v3712, %v856
        %v3715 = vadd.f32 %v3713, %v861
        %vm3716 = vcmp.gt.f32.partialorder %v3714, 0.0
        %v3717 = vmul.f32 %v3714, 0.2
        %v3718 = vsel %vm3716, %v3714, %v3717
        %v3719 = vxor.u32 %v3715, 2147483648
        %v3720 = vmul.f32 %v3719, 1.442695
        %v3721 = vpow.pop %v3720
        %v3722 = vadd.f32 %v3721, 1.0
        %v3723 = vrcp.pop %v3722
        %v3724 = vmul.f32 1.0, %v3723
        %v3725 = vmul.f32 %v3718, %v3724
        %v3727 = vcombine.high %v3725, %v3725
        %v3729 = vunpack.c.l.s4 1966171168
        %v3730 = vunpack.c.0.s8 %v3729
        %v3731 = vlaneseq
        %v3732 = vshrl.u32 %v3731, 7
        %v3733 = vsub.s32 %v3730, %v3732
        %v3734 = vrot.slane %v3725, %v3733
        %v3736 = vunpack.c.l.s4 1966171168
        %v3737 = vunpack.c.0.s8 %v3736
        %v3738 = vlaneseq
        %v3739 = vshrl.u32 %v3738, 7
        %v3740 = vsub.s32 %v3737, %v3739
        %v3741 = vrot.slane %v3727, %v3740
        %v3742 = vcombine.high %v3734, %v3734
        %v3743 = vcombine.high %v3741, %v3741
        %v3745 = vunpack.c.l.s4 1966171168
        %v3746 = vunpack.c.0.s8 %v3745
        %v3747 = vlaneseq
        %v3748 = vshrl.u32 %v3747, 7
        %v3749 = vsub.s32 %v3746, %v3748
        %v3750 = vrot.slane %v3734, %v3749
        %v3752 = vunpack.c.l.s4 1966171168
        %v3753 = vunpack.c.0.s8 %v3752
        %v3754 = vlaneseq
        %v3755 = vshrl.u32 %v3754, 7
        %v3756 = vsub.s32 %v3753, %v3755
        %v3757 = vrot.slane %v3741, %v3756
        %v3759 = vunpack.c.l.s4 1966171168
        %v3760 = vunpack.c.0.s8 %v3759
        %v3761 = vlaneseq
        %v3762 = vshrl.u32 %v3761, 7
        %v3763 = vsub.s32 %v3760, %v3762
        %v3764 = vrot.slane %v3742, %v3763
        %v3766 = vunpack.c.l.s4 1966171168
        %v3767 = vunpack.c.0.s8 %v3766
        %v3768 = vlaneseq
        %v3769 = vshrl.u32 %v3768, 7
        %v3770 = vsub.s32 %v3767, %v3769
        %v3771 = vrot.slane %v3743, %v3770
        %v3772 = vcombine.high %v3750, %v3750
        %v3773 = vcombine.high %v3757, %v3757
        %v3774 = vcombine.high %v3764, %v3764
        %v3775 = vcombine.high %v3771, %v3771
        %3784 = vst.msk [vmem:[%s264 + $0x5] sm:$0x1] %vm933, %v3750
        %3785 = vst.msk [vmem:[%s264 + $0xd] sm:$0x1] %vm933, %v3764
        %3786 = vst.msk [vmem:[%s264 + $0x15] sm:$0x1] %vm933, %v3772
        %3787 = vst.msk [vmem:[%s264 + $0x1d] sm:$0x1] %vm933, %v3774
        %3788 = vst.msk [vmem:[%s264 + $0x25] sm:$0x1] %vm933, %v3757
        %3789 = vst.msk [vmem:[%s264 + $0x2d] sm:$0x1] %vm933, %v3771
        %3790 = vst.msk [vmem:[%s264 + $0x35] sm:$0x1] %vm933, %v3773
        %3791 = vst.msk [vmem:[%s264 + $0x3d] sm:$0x1] %vm933, %v3775
        %v3792 = vadd.f32 %v3222, %v3725
        %v3793 = vmul.f32 %v3725, %v3725
        %v3794 = vadd.f32 %v3224, %v3793
        %v3795 = vld [vmem:[%s1] sm:$0xf]
        %v3796 = vld [vmem:[%s1 + $0x4] sm:$0xf]
        %v3797 = vld [vmem:[%s324] sm:$0xf]
        %v3798 = vld [vmem:[%s324 + $0x4] sm:$0xf]
        %v3801 = vunpack.c.l.b16 %v3797
        %v3802 = vunpack.c.l.b16 %v3798
        %v3803 = vpack.c.b16 %v3802, %v3801
        %v3805 = vsel %vm337, %v3803, 0
        %3807 = vmatprep.subr.bf16.mxu0 0
        %3808 = vmatpush1.bf16.msra.mxu0 %v3041
        %3809 = vmatprep.subr.bf16.mxu0 0
        %3810 = vmatpush1.bf16.msra.mxu0 0
        %3811 = vmatprep.subr.bf16.mxu0 0
        %3812 = vmatpush1.bf16.msra.mxu0 0
        %3813 = vmatprep.subr.bf16.mxu0 0
        %3814 = vmatpush1.bf16.msra.mxu0 0
        %3815 = vmatprep.subr.bf16.mxu0 0
        %3816 = vmatpush1.bf16.msra.mxu0 0
        %3817 = vmatprep.subr.bf16.mxu0 0
        %3818 = vmatpush1.bf16.msra.mxu0 0
        %3819 = vmatprep.subr.bf16.mxu0 0
        %3820 = vmatpush1.bf16.msra.mxu0 0
        %3821 = vmatprep.subr.bf16.mxu0 0
        %3822 = vmatpush1.bf16.msra.mxu0 0
        %3823 = vmatprep.subr.bf16.mxu0 0
        %3824 = vmatpush1.bf16.msra.mxu0 0
        %3825 = vmatprep.subr.bf16.mxu0 0
        %3826 = vmatpush1.bf16.msra.mxu0 0
        %3827 = vmatprep.subr.bf16.mxu0 0
        %3828 = vmatpush1.bf16.msra.mxu0 0
        %3829 = vmatprep.subr.bf16.mxu0 0
        %3830 = vmatpush1.bf16.msra.mxu0 0
        %3831 = vmatprep.subr.bf16.mxu0 0
        %3832 = vmatpush1.bf16.msra.mxu0 0
        %3833 = vmatprep.subr.bf16.mxu0 0
        %3834 = vmatpush1.bf16.msra.mxu0 0
        %3835 = vmatprep.subr.bf16.mxu0 0
        %3836 = vmatpush1.bf16.msra.mxu0 0
        %3837 = vmatprep.subr.bf16.mxu0 0
        %3838 = vmatpush1.bf16.msra.mxu0 0
        %3839 = vmatprep.mubr.bf16.mxu0 0
        %3840 = vmatmul.mubr.bf16.gmra.mrb[0].mxu0 %v3805
        %v3841 = vpop.f32.mrb[0].mxu0
        %v3842 = vadd.f32 0.0, %v3841
        %v3843 = vpop.f32.mrb[0].mxu0
        %v3844 = vpop.f32.mrb[0].mxu0
        %v3845 = vadd.f32 0.0, %v3844
        %v3846 = vpop.f32.mrb[0].mxu0
        %3847 = vdwg.mxu0
        %v3850 = vunpack.c.l.b16 %v3795
        %v3851 = vunpack.c.l.b16 %v3796
        %v3852 = vpack.c.b16 %v3851, %v3850
        %v3854 = vsel %vm337, %v3852, 0
        %3856 = vmatprep.subr.bf16.mxu0 0
        %3857 = vmatpush1.bf16.msra.mxu0 %v2980
        %3858 = vmatprep.subr.bf16.mxu0 0
        %3859 = vmatpush1.bf16.msra.mxu0 0
        %3860 = vmatprep.subr.bf16.mxu0 0
        %3861 = vmatpush1.bf16.msra.mxu0 0
        %3862 = vmatprep.subr.bf16.mxu0 0
        %3863 = vmatpush1.bf16.msra.mxu0 0
        %3864 = vmatprep.subr.bf16.mxu0 0
        %3865 = vmatpush1.bf16.msra.mxu0 0
        %3866 = vmatprep.subr.bf16.mxu0 0
        %3867 = vmatpush1.bf16.msra.mxu0 0
        %3868 = vmatprep.subr.bf16.mxu0 0
        %3869 = vmatpush1.bf16.msra.mxu0 0
        %3870 = vmatprep.subr.bf16.mxu0 0
        %3871 = vmatpush1.bf16.msra.mxu0 0
        %3872 = vmatprep.subr.bf16.mxu0 0
        %3873 = vmatpush1.bf16.msra.mxu0 0
        %3874 = vmatprep.subr.bf16.mxu0 0
        %3875 = vmatpush1.bf16.msra.mxu0 0
        %3876 = vmatprep.subr.bf16.mxu0 0
        %3877 = vmatpush1.bf16.msra.mxu0 0
        %3878 = vmatprep.subr.bf16.mxu0 0
        %3879 = vmatpush1.bf16.msra.mxu0 0
        %3880 = vmatprep.subr.bf16.mxu0 0
        %3881 = vmatpush1.bf16.msra.mxu0 0
        %3882 = vmatprep.subr.bf16.mxu0 0
        %3883 = vmatpush1.bf16.msra.mxu0 0
        %3884 = vmatprep.subr.bf16.mxu0 0
        %3885 = vmatpush1.bf16.msra.mxu0 0
        %3886 = vmatprep.subr.bf16.mxu0 0
        %3887 = vmatpush1.bf16.msra.mxu0 0
        %3888 = vmatprep.mubr.bf16.mxu0 0
        %3889 = vmatmul.mubr.bf16.gmra.mrb[0].mxu0 %v3854
        %v3890 = vpop.f32.mrb[0].mxu0
        %v3891 = vadd.f32 %v3842, %v3890
        %v3892 = vpop.f32.mrb[0].mxu0
        %v3893 = vpop.f32.mrb[0].mxu0
        %v3894 = vadd.f32 %v3845, %v3893
        %v3895 = vpop.f32.mrb[0].mxu0
        %3896 = vdwg.mxu0
        %v3897 = vld [vmem:[%s438] sm:$0xf]
        %v3898 = vld [vmem:[%s438 + $0x4] sm:$0xf]
        %v3901 = vunpack.c.l.b16 %v3897
        %v3902 = vunpack.c.l.b16 %v3898
        %v3903 = vpack.c.b16 %v3902, %v3901
        %v3905 = vsel %vm337, %v3903, 0
        %3907 = vmatprep.subr.bf16.mxu0 0
        %3908 = vmatpush1.bf16.msra.mxu0 %v3099
        %3909 = vmatprep.subr.bf16.mxu0 0
        %3910 = vmatpush1.bf16.msra.mxu0 0
        %3911 = vmatprep.subr.bf16.mxu0 0
        %3912 = vmatpush1.bf16.msra.mxu0 0
        %3913 = vmatprep.subr.bf16.mxu0 0
        %3914 = vmatpush1.bf16.msra.mxu0 0
        %3915 = vmatprep.subr.bf16.mxu0 0
        %3916 = vmatpush1.bf16.msra.mxu0 0
        %3917 = vmatprep.subr.bf16.mxu0 0
        %3918 = vmatpush1.bf16.msra.mxu0 0
        %3919 = vmatprep.subr.bf16.mxu0 0
        %3920 = vmatpush1.bf16.msra.mxu0 0
        %3921 = vmatprep.subr.bf16.mxu0 0
        %3922 = vmatpush1.bf16.msra.mxu0 0
        %3923 = vmatprep.subr.bf16.mxu0 0
        %3924 = vmatpush1.bf16.msra.mxu0 0
        %3925 = vmatprep.subr.bf16.mxu0 0
        %3926 = vmatpush1.bf16.msra.mxu0 0
        %3927 = vmatprep.subr.bf16.mxu0 0
        %3928 = vmatpush1.bf16.msra.mxu0 0
        %3929 = vmatprep.subr.bf16.mxu0 0
        %3930 = vmatpush1.bf16.msra.mxu0 0
        %3931 = vmatprep.subr.bf16.mxu0 0
        %3932 = vmatpush1.bf16.msra.mxu0 0
        %3933 = vmatprep.subr.bf16.mxu0 0
        %3934 = vmatpush1.bf16.msra.mxu0 0
        %3935 = vmatprep.subr.bf16.mxu0 0
        %3936 = vmatpush1.bf16.msra.mxu0 0
        %3937 = vmatprep.subr.bf16.mxu0 0
        %3938 = vmatpush1.bf16.msra.mxu0 0
        %3939 = vmatprep.mubr.bf16.mxu0 0
        %3940 = vmatmul.mubr.bf16.gmra.mrb[0].mxu0 %v3905
        %v3941 = vpop.f32.mrb[0].mxu0
        %v3942 = vadd.f32 0.0, %v3941
        %v3943 = vpop.f32.mrb[0].mxu0
        %v3944 = vpop.f32.mrb[0].mxu0
        %v3945 = vadd.f32 0.0, %v3944
        %v3946 = vpop.f32.mrb[0].mxu0
        %3947 = vdwg.mxu0
        %v3948 = vadd.f32 %v3891, %v3942
        %v3949 = vadd.f32 %v3894, %v3945
        %v3950 = vld [vmem:[%s497] sm:$0xf]
        %v3951 = vld [vmem:[%s497 + $0x4] sm:$0xf]
        %v3954 = vunpack.c.l.b16 %v3950
        %v3955 = vunpack.c.l.b16 %v3951
        %v3956 = vpack.c.b16 %v3955, %v3954
        %v3958 = vsel %vm337, %v3956, 0
        %3960 = vmatprep.subr.bf16.mxu0 0
        %3961 = vmatpush1.bf16.msra.mxu0 %v3550
        %3962 = vmatprep.subr.bf16.mxu0 0
        %3963 = vmatpush1.bf16.msra.mxu0 0
        %3964 = vmatprep.subr.bf16.mxu0 0
        %3965 = vmatpush1.bf16.msra.mxu0 0
        %3966 = vmatprep.subr.bf16.mxu0 0
        %3967 = vmatpush1.bf16.msra.mxu0 0
        %3968 = vmatprep.subr.bf16.mxu0 0
        %3969 = vmatpush1.bf16.msra.mxu0 0
        %3970 = vmatprep.subr.bf16.mxu0 0
        %3971 = vmatpush1.bf16.msra.mxu0 0
        %3972 = vmatprep.subr.bf16.mxu0 0
        %3973 = vmatpush1.bf16.msra.mxu0 0
        %3974 = vmatprep.subr.bf16.mxu0 0
        %3975 = vmatpush1.bf16.msra.mxu0 0
        %3976 = vmatprep.subr.bf16.mxu0 0
        %3977 = vmatpush1.bf16.msra.mxu0 0
        %3978 = vmatprep.subr.bf16.mxu0 0
        %3979 = vmatpush1.bf16.msra.mxu0 0
        %3980 = vmatprep.subr.bf16.mxu0 0
        %3981 = vmatpush1.bf16.msra.mxu0 0
        %3982 = vmatprep.subr.bf16.mxu0 0
        %3983 = vmatpush1.bf16.msra.mxu0 0
        %3984 = vmatprep.subr.bf16.mxu0 0
        %3985 = vmatpush1.bf16.msra.mxu0 0
        %3986 = vmatprep.subr.bf16.mxu0 0
        %3987 = vmatpush1.bf16.msra.mxu0 0
        %3988 = vmatprep.subr.bf16.mxu0 0
        %3989 = vmatpush1.bf16.msra.mxu0 0
        %3990 = vmatprep.subr.bf16.mxu0 0
        %3991 = vmatpush1.bf16.msra.mxu0 0
        %3992 = vmatprep.mubr.bf16.mxu0 0
        %3993 = vmatmul.mubr.bf16.gmra.mrb[0].mxu0 %v3958
        %v3994 = vpop.f32.mrb[0].mxu0
        %v3995 = vadd.f32 0.0, %v3994
        %v3996 = vpop.f32.mrb[0].mxu0
        %v3997 = vpop.f32.mrb[0].mxu0
        %v3998 = vadd.f32 0.0, %v3997
        %v3999 = vpop.f32.mrb[0].mxu0
        %4000 = vdwg.mxu0
        %v4001 = vadd.f32 %v3948, %v3995
        %v4002 = vadd.f32 %v3949, %v3998
        %v4003 = vld [vmem:[%s554] sm:$0xf]
        %v4004 = vld [vmem:[%s554 + $0x4] sm:$0xf]
        %v4007 = vunpack.c.l.b16 %v4003
        %v4008 = vunpack.c.l.b16 %v4004
        %v4009 = vpack.c.b16 %v4008, %v4007
        %v4011 = vsel %vm337, %v4009, 0
        %4013 = vmatprep.subr.bf16.mxu0 0
        %4014 = vmatpush1.bf16.msra.mxu0 %v3611
        %4015 = vmatprep.subr.bf16.mxu0 0
        %4016 = vmatpush1.bf16.msra.mxu0 0
        %4017 = vmatprep.subr.bf16.mxu0 0
        %4018 = vmatpush1.bf16.msra.mxu0 0
        %4019 = vmatprep.subr.bf16.mxu0 0
        %4020 = vmatpush1.bf16.msra.mxu0 0
        %4021 = vmatprep.subr.bf16.mxu0 0
        %4022 = vmatpush1.bf16.msra.mxu0 0
        %4023 = vmatprep.subr.bf16.mxu0 0
        %4024 = vmatpush1.bf16.msra.mxu0 0
        %4025 = vmatprep.subr.bf16.mxu0 0
        %4026 = vmatpush1.bf16.msra.mxu0 0
        %4027 = vmatprep.subr.bf16.mxu0 0
        %4028 = vmatpush1.bf16.msra.mxu0 0
        %4029 = vmatprep.subr.bf16.mxu0 0
        %4030 = vmatpush1.bf16.msra.mxu0 0
        %4031 = vmatprep.subr.bf16.mxu0 0
        %4032 = vmatpush1.bf16.msra.mxu0 0
        %4033 = vmatprep.subr.bf16.mxu0 0
        %4034 = vmatpush1.bf16.msra.mxu0 0
        %4035 = vmatprep.subr.bf16.mxu0 0
        %4036 = vmatpush1.bf16.msra.mxu0 0
        %4037 = vmatprep.subr.bf16.mxu0 0
        %4038 = vmatpush1.bf16.msra.mxu0 0
        %4039 = vmatprep.subr.bf16.mxu0 0
        %4040 = vmatpush1.bf16.msra.mxu0 0
        %4041 = vmatprep.subr.bf16.mxu0 0
        %4042 = vmatpush1.bf16.msra.mxu0 0
        %4043 = vmatprep.subr.bf16.mxu0 0
        %4044 = vmatpush1.bf16.msra.mxu0 0
        %4045 = vmatprep.mubr.bf16.mxu0 0
        %4046 = vmatmul.mubr.bf16.gmra.mrb[0].mxu0 %v4011
        %v4047 = vpop.f32.mrb[0].mxu0
        %v4048 = vadd.f32 0.0, %v4047
        %v4049 = vpop.f32.mrb[0].mxu0
        %v4050 = vpop.f32.mrb[0].mxu0
        %v4051 = vadd.f32 0.0, %v4050
        %v4052 = vpop.f32.mrb[0].mxu0
        %4053 = vdwg.mxu0
        %v4054 = vadd.f32 %v4001, %v4048
        %v4055 = vadd.f32 %v4002, %v4051
        %v4056 = vld [vmem:[%s616] sm:$0xf]
        %v4057 = vld [vmem:[%s616 + $0x4] sm:$0xf]
        %v4060 = vunpack.c.l.b16 %v4056
        %v4061 = vunpack.c.l.b16 %v4057
        %v4062 = vpack.c.b16 %v4061, %v4060
        %v4064 = vsel %vm337, %v4062, 0
        %4066 = vmatprep.subr.bf16.mxu0 0
        %4067 = vmatpush1.bf16.msra.mxu0 %v3669
        %4068 = vmatprep.subr.bf16.mxu0 0
        %4069 = vmatpush1.bf16.msra.mxu0 0
        %4070 = vmatprep.subr.bf16.mxu0 0
        %4071 = vmatpush1.bf16.msra.mxu0 0
        %4072 = vmatprep.subr.bf16.mxu0 0
        %4073 = vmatpush1.bf16.msra.mxu0 0
        %4074 = vmatprep.subr.bf16.mxu0 0
        %4075 = vmatpush1.bf16.msra.mxu0 0
        %4076 = vmatprep.subr.bf16.mxu0 0
        %4077 = vmatpush1.bf16.msra.mxu0 0
        %4078 = vmatprep.subr.bf16.mxu0 0
        %4079 = vmatpush1.bf16.msra.mxu0 0
        %4080 = vmatprep.subr.bf16.mxu0 0
        %4081 = vmatpush1.bf16.msra.mxu0 0
        %4082 = vmatprep.subr.bf16.mxu0 0
        %4083 = vmatpush1.bf16.msra.mxu0 0
        %4084 = vmatprep.subr.bf16.mxu0 0
        %4085 = vmatpush1.bf16.msra.mxu0 0
        %4086 = vmatprep.subr.bf16.mxu0 0
        %4087 = vmatpush1.bf16.msra.mxu0 0
        %4088 = vmatprep.subr.bf16.mxu0 0
        %4089 = vmatpush1.bf16.msra.mxu0 0
        %4090 = vmatprep.subr.bf16.mxu0 0
        %4091 = vmatpush1.bf16.msra.mxu0 0
        %4092 = vmatprep.subr.bf16.mxu0 0
        %4093 = vmatpush1.bf16.msra.mxu0 0
        %4094 = vmatprep.subr.bf16.mxu0 0
        %4095 = vmatpush1.bf16.msra.mxu0 0
        %4096 = vmatprep.subr.bf16.mxu0 0
        %4097 = vmatpush1.bf16.msra.mxu0 0
        %4098 = vmatprep.mubr.bf16.mxu0 0
        %4099 = vmatmul.mubr.bf16.gmra.mrb[0].mxu0 %v4064
        %v4100 = vpop.f32.mrb[0].mxu0
        %v4101 = vadd.f32 0.0, %v4100
        %v4102 = vpop.f32.mrb[0].mxu0
        %v4103 = vpop.f32.mrb[0].mxu0
        %v4104 = vadd.f32 0.0, %v4103
        %v4105 = vpop.f32.mrb[0].mxu0
        %4106 = vdwg.mxu0
        %v4107 = vadd.f32 %v4054, %v4101
        %v4108 = vadd.f32 %v4055, %v4104
        %v4109 = vld [vmem:[%s675] sm:$0xf]
        %v4110 = vld [vmem:[%s675 + $0x4] sm:$0xf]
        %v4113 = vunpack.c.l.b16 %v4109
        %v4114 = vunpack.c.l.b16 %v4110
        %v4115 = vpack.c.b16 %v4114, %v4113
        %v4117 = vsel %vm337, %v4115, 0
        %v4120 = vsel %vm341, %v315, 0
        %4122 = vmatprep.subr.bf16.mxu0 0
        %4123 = vmatpush1.bf16.msra.mxu0 %v4120
        %4124 = vmatprep.subr.bf16.mxu0 0
        %4125 = vmatpush1.bf16.msra.mxu0 0
        %4126 = vmatprep.subr.bf16.mxu0 0
        %4127 = vmatpush1.bf16.msra.mxu0 0
        %4128 = vmatprep.subr.bf16.mxu0 0
        %4129 = vmatpush1.bf16.msra.mxu0 0
        %4130 = vmatprep.subr.bf16.mxu0 0
        %4131 = vmatpush1.bf16.msra.mxu0 0
        %4132 = vmatprep.subr.bf16.mxu0 0
        %4133 = vmatpush1.bf16.msra.mxu0 0
        %4134 = vmatprep.subr.bf16.mxu0 0
        %4135 = vmatpush1.bf16.msra.mxu0 0
        %4136 = vmatprep.subr.bf16.mxu0 0
        %4137 = vmatpush1.bf16.msra.mxu0 0
        %4138 = vmatprep.subr.bf16.mxu0 0
        %4139 = vmatpush1.bf16.msra.mxu0 0
        %4140 = vmatprep.subr.bf16.mxu0 0
        %4141 = vmatpush1.bf16.msra.mxu0 0
        %4142 = vmatprep.subr.bf16.mxu0 0
        %4143 = vmatpush1.bf16.msra.mxu0 0
        %4144 = vmatprep.subr.bf16.mxu0 0
        %4145 = vmatpush1.bf16.msra.mxu0 0
        %4146 = vmatprep.subr.bf16.mxu0 0
        %4147 = vmatpush1.bf16.msra.mxu0 0
        %4148 = vmatprep.subr.bf16.mxu0 0
        %4149 = vmatpush1.bf16.msra.mxu0 0
        %4150 = vmatprep.subr.bf16.mxu0 0
        %4151 = vmatpush1.bf16.msra.mxu0 0
        %4152 = vmatprep.subr.bf16.mxu0 0
        %4153 = vmatpush1.bf16.msra.mxu0 0
        %4154 = vmatprep.mubr.bf16.mxu0 0
        %4155 = vmatmul.mubr.bf16.gmra.mrb[0].mxu0 %v4117
        %v4156 = vpop.f32.mrb[0].mxu0
        %v4157 = vadd.f32 0.0, %v4156
        %v4158 = vpop.f32.mrb[0].mxu0
        %v4159 = vpop.f32.mrb[0].mxu0
        %v4160 = vadd.f32 0.0, %v4159
        %v4161 = vpop.f32.mrb[0].mxu0
        %4162 = vdwg.mxu0
        %v4163 = vadd.f32 %v4107, %v4157
        %v4164 = vadd.f32 %v4108, %v4160
        %v4165 = vld [vmem:[%s732] sm:$0xf]
        %v4166 = vld [vmem:[%s732 + $0x4] sm:$0xf]
        %v4169 = vunpack.c.l.b16 %v4165
        %v4170 = vunpack.c.l.b16 %v4166
        %v4171 = vpack.c.b16 %v4170, %v4169
        %v4173 = vunpack.c.l.b16 %v315
        %v4174 = vpack.c.b16 %v4173, %v4173
        %4175 = vrot.lane.b32.xlu0 %v4174, 127
        %v4176 = vpop.permute.xlu0 %4175
        %v4178 = vsel %vm337, %v4171, 0
        %v4181 = vsel %vm341, %v4176, 0
        %4183 = vmatprep.subr.bf16.mxu0 0
        %4184 = vmatpush1.bf16.msra.mxu0 %v4181
        %4185 = vmatprep.subr.bf16.mxu0 0
        %4186 = vmatpush1.bf16.msra.mxu0 0
        %4187 = vmatprep.subr.bf16.mxu0 0
        %4188 = vmatpush1.bf16.msra.mxu0 0
        %4189 = vmatprep.subr.bf16.mxu0 0
        %4190 = vmatpush1.bf16.msra.mxu0 0
        %4191 = vmatprep.subr.bf16.mxu0 0
        %4192 = vmatpush1.bf16.msra.mxu0 0
        %4193 = vmatprep.subr.bf16.mxu0 0
        %4194 = vmatpush1.bf16.msra.mxu0 0
        %4195 = vmatprep.subr.bf16.mxu0 0
        %4196 = vmatpush1.bf16.msra.mxu0 0
        %4197 = vmatprep.subr.bf16.mxu0 0
        %4198 = vmatpush1.bf16.msra.mxu0 0
        %4199 = vmatprep.subr.bf16.mxu0 0
        %4200 = vmatpush1.bf16.msra.mxu0 0
        %4201 = vmatprep.subr.bf16.mxu0 0
        %4202 = vmatpush1.bf16.msra.mxu0 0
        %4203 = vmatprep.subr.bf16.mxu0 0
        %4204 = vmatpush1.bf16.msra.mxu0 0
        %4205 = vmatprep.subr.bf16.mxu0 0
        %4206 = vmatpush1.bf16.msra.mxu0 0
        %4207 = vmatprep.subr.bf16.mxu0 0
        %4208 = vmatpush1.bf16.msra.mxu0 0
        %4209 = vmatprep.subr.bf16.mxu0 0
        %4210 = vmatpush1.bf16.msra.mxu0 0
        %4211 = vmatprep.subr.bf16.mxu0 0
        %4212 = vmatpush1.bf16.msra.mxu0 0
        %4213 = vmatprep.subr.bf16.mxu0 0
        %4214 = vmatpush1.bf16.msra.mxu0 0
        %4215 = vmatprep.mubr.bf16.mxu0 0
        %4216 = vmatmul.mubr.bf16.gmra.mrb[0].mxu0 %v4178
        %v4217 = vpop.f32.mrb[0].mxu0
        %v4218 = vadd.f32 0.0, %v4217
        %v4219 = vpop.f32.mrb[0].mxu0
        %v4220 = vpop.f32.mrb[0].mxu0
        %v4221 = vadd.f32 0.0, %v4220
        %v4222 = vpop.f32.mrb[0].mxu0
        %4223 = vdwg.mxu0
        %v4224 = vadd.f32 %v4163, %v4218
        %v4225 = vadd.f32 %v4164, %v4221
        %v4226 = vld [vmem:[%s794] sm:$0xf]
        %v4227 = vld [vmem:[%s794 + $0x4] sm:$0xf]
        %v4230 = vunpack.c.l.b16 %v4226
        %v4231 = vunpack.c.l.b16 %v4227
        %v4232 = vpack.c.b16 %v4231, %v4230
        %4233 = vrot.lane.b32.xlu0 %v4174, 126
        %v4234 = vpop.permute.xlu0 %4233
        %v4236 = vsel %vm337, %v4232, 0
        %v4239 = vsel %vm341, %v4234, 0
        %4241 = vmatprep.subr.bf16.mxu0 0
        %4242 = vmatpush1.bf16.msra.mxu0 %v4239
        %4243 = vmatprep.subr.bf16.mxu0 0
        %4244 = vmatpush1.bf16.msra.mxu0 0
        %4245 = vmatprep.subr.bf16.mxu0 0
        %4246 = vmatpush1.bf16.msra.mxu0 0
        %4247 = vmatprep.subr.bf16.mxu0 0
        %4248 = vmatpush1.bf16.msra.mxu0 0
        %4249 = vmatprep.subr.bf16.mxu0 0
        %4250 = vmatpush1.bf16.msra.mxu0 0
        %4251 = vmatprep.subr.bf16.mxu0 0
        %4252 = vmatpush1.bf16.msra.mxu0 0
        %4253 = vmatprep.subr.bf16.mxu0 0
        %4254 = vmatpush1.bf16.msra.mxu0 0
        %4255 = vmatprep.subr.bf16.mxu0 0
        %4256 = vmatpush1.bf16.msra.mxu0 0
        %4257 = vmatprep.subr.bf16.mxu0 0
        %4258 = vmatpush1.bf16.msra.mxu0 0
        %4259 = vmatprep.subr.bf16.mxu0 0
        %4260 = vmatpush1.bf16.msra.mxu0 0
        %4261 = vmatprep.subr.bf16.mxu0 0
        %4262 = vmatpush1.bf16.msra.mxu0 0
        %4263 = vmatprep.subr.bf16.mxu0 0
        %4264 = vmatpush1.bf16.msra.mxu0 0
        %4265 = vmatprep.subr.bf16.mxu0 0
        %4266 = vmatpush1.bf16.msra.mxu0 0
        %4267 = vmatprep.subr.bf16.mxu0 0
        %4268 = vmatpush1.bf16.msra.mxu0 0
        %4269 = vmatprep.subr.bf16.mxu0 0
        %4270 = vmatpush1.bf16.msra.mxu0 0
        %4271 = vmatprep.subr.bf16.mxu0 0
        %4272 = vmatpush1.bf16.msra.mxu0 0
        %4273 = vmatprep.mubr.bf16.mxu0 0
        %4274 = vmatmul.mubr.bf16.gmra.mrb[0].mxu0 %v4236
        %v4275 = vpop.f32.mrb[0].mxu0
        %v4276 = vadd.f32 0.0, %v4275
        %v4277 = vpop.f32.mrb[0].mxu0
        %v4278 = vpop.f32.mrb[0].mxu0
        %v4279 = vadd.f32 0.0, %v4278
        %v4280 = vpop.f32.mrb[0].mxu0
        %4281 = vdwg.mxu0
        %v4282 = vadd.f32 %v4224, %v4276
        %v4283 = vadd.f32 %v4225, %v4279
        %v4284 = vadd.f32 %v4282, %v856
        %v4285 = vadd.f32 %v4283, %v861
        %vm4286 = vcmp.gt.f32.partialorder %v4284, 0.0
        %v4287 = vmul.f32 %v4284, 0.2
        %v4288 = vsel %vm4286, %v4284, %v4287
        %v4289 = vxor.u32 %v4285, 2147483648
        %v4290 = vmul.f32 %v4289, 1.442695
        %v4291 = vpow.pop %v4290
        %v4292 = vadd.f32 %v4291, 1.0
        %v4293 = vrcp.pop %v4292
        %v4294 = vmul.f32 1.0, %v4293
        %v4295 = vmul.f32 %v4288, %v4294
        %v4297 = vcombine.high %v4295, %v4295
        %v4299 = vunpack.c.l.s4 1966171168
        %v4300 = vunpack.c.0.s8 %v4299
        %v4301 = vlaneseq
        %v4302 = vshrl.u32 %v4301, 7
        %v4303 = vsub.s32 %v4300, %v4302
        %v4304 = vrot.slane %v4295, %v4303
        %v4306 = vunpack.c.l.s4 1966171168
        %v4307 = vunpack.c.0.s8 %v4306
        %v4308 = vlaneseq
        %v4309 = vshrl.u32 %v4308, 7
        %v4310 = vsub.s32 %v4307, %v4309
        %v4311 = vrot.slane %v4297, %v4310
        %v4312 = vcombine.high %v4304, %v4304
        %v4313 = vcombine.high %v4311, %v4311
        %v4315 = vunpack.c.l.s4 1966171168
        %v4316 = vunpack.c.0.s8 %v4315
        %v4317 = vlaneseq
        %v4318 = vshrl.u32 %v4317, 7
        %v4319 = vsub.s32 %v4316, %v4318
        %v4320 = vrot.slane %v4304, %v4319
        %v4322 = vunpack.c.l.s4 1966171168
        %v4323 = vunpack.c.0.s8 %v4322
        %v4324 = vlaneseq
        %v4325 = vshrl.u32 %v4324, 7
        %v4326 = vsub.s32 %v4323, %v4325
        %v4327 = vrot.slane %v4311, %v4326
        %v4329 = vunpack.c.l.s4 1966171168
        %v4330 = vunpack.c.0.s8 %v4329
        %v4331 = vlaneseq
        %v4332 = vshrl.u32 %v4331, 7
        %v4333 = vsub.s32 %v4330, %v4332
        %v4334 = vrot.slane %v4312, %v4333
        %v4336 = vunpack.c.l.s4 1966171168
        %v4337 = vunpack.c.0.s8 %v4336
        %v4338 = vlaneseq
        %v4339 = vshrl.u32 %v4338, 7
        %v4340 = vsub.s32 %v4337, %v4339
        %v4341 = vrot.slane %v4313, %v4340
        %v4342 = vcombine.high %v4320, %v4320
        %v4343 = vcombine.high %v4327, %v4327
        %v4344 = vcombine.high %v4334, %v4334
        %v4345 = vcombine.high %v4341, %v4341
        %4354 = vst.msk [vmem:[%s264 + $0x6] sm:$0x1] %vm933, %v4320
        %4355 = vst.msk [vmem:[%s264 + $0xe] sm:$0x1] %vm933, %v4334
        %4356 = vst.msk [vmem:[%s264 + $0x16] sm:$0x1] %vm933, %v4342
        %4357 = vst.msk [vmem:[%s264 + $0x1e] sm:$0x1] %vm933, %v4344
        %4358 = vst.msk [vmem:[%s264 + $0x26] sm:$0x1] %vm933, %v4327
        %4359 = vst.msk [vmem:[%s264 + $0x2e] sm:$0x1] %vm933, %v4341
        %4360 = vst.msk [vmem:[%s264 + $0x36] sm:$0x1] %vm933, %v4343
        %4361 = vst.msk [vmem:[%s264 + $0x3e] sm:$0x1] %vm933, %v4345
        %v4362 = vadd.f32 %v3792, %v4295
        %v4363 = vmul.f32 %v4295, %v4295
        %v4364 = vadd.f32 %v3794, %v4363
        %v4365 = vld [vmem:[%s1] sm:$0xf]
        %v4366 = vld [vmem:[%s1 + $0x4] sm:$0xf]
        %v4367 = vld [vmem:[%s324] sm:$0xf]
        %v4368 = vld [vmem:[%s324 + $0x4] sm:$0xf]
        %v4371 = vunpack.c.l.b16 %v4367
        %v4372 = vunpack.c.l.b16 %v4368
        %v4373 = vpack.c.b16 %v4372, %v4371
        %v4375 = vsel %vm337, %v4373, 0
        %4377 = vmatprep.subr.bf16.mxu0 0
        %4378 = vmatpush1.bf16.msra.mxu0 %v3611
        %4379 = vmatprep.subr.bf16.mxu0 0
        %4380 = vmatpush1.bf16.msra.mxu0 0
        %4381 = vmatprep.subr.bf16.mxu0 0
        %4382 = vmatpush1.bf16.msra.mxu0 0
        %4383 = vmatprep.subr.bf16.mxu0 0
        %4384 = vmatpush1.bf16.msra.mxu0 0
        %4385 = vmatprep.subr.bf16.mxu0 0
        %4386 = vmatpush1.bf16.msra.mxu0 0
        %4387 = vmatprep.subr.bf16.mxu0 0
        %4388 = vmatpush1.bf16.msra.mxu0 0
        %4389 = vmatprep.subr.bf16.mxu0 0
        %4390 = vmatpush1.bf16.msra.mxu0 0
        %4391 = vmatprep.subr.bf16.mxu0 0
        %4392 = vmatpush1.bf16.msra.mxu0 0
        %4393 = vmatprep.subr.bf16.mxu0 0
        %4394 = vmatpush1.bf16.msra.mxu0 0
        %4395 = vmatprep.subr.bf16.mxu0 0
        %4396 = vmatpush1.bf16.msra.mxu0 0
        %4397 = vmatprep.subr.bf16.mxu0 0
        %4398 = vmatpush1.bf16.msra.mxu0 0
        %4399 = vmatprep.subr.bf16.mxu0 0
        %4400 = vmatpush1.bf16.msra.mxu0 0
        %4401 = vmatprep.subr.bf16.mxu0 0
        %4402 = vmatpush1.bf16.msra.mxu0 0
        %4403 = vmatprep.subr.bf16.mxu0 0
        %4404 = vmatpush1.bf16.msra.mxu0 0
        %4405 = vmatprep.subr.bf16.mxu0 0
        %4406 = vmatpush1.bf16.msra.mxu0 0
        %4407 = vmatprep.subr.bf16.mxu0 0
        %4408 = vmatpush1.bf16.msra.mxu0 0
        %4409 = vmatprep.mubr.bf16.mxu0 0
        %4410 = vmatmul.mubr.bf16.gmra.mrb[0].mxu0 %v4375
        %v4411 = vpop.f32.mrb[0].mxu0
        %v4412 = vadd.f32 0.0, %v4411
        %v4413 = vpop.f32.mrb[0].mxu0
        %v4414 = vpop.f32.mrb[0].mxu0
        %v4415 = vadd.f32 0.0, %v4414
        %v4416 = vpop.f32.mrb[0].mxu0
        %4417 = vdwg.mxu0
        %v4420 = vunpack.c.l.b16 %v4365
        %v4421 = vunpack.c.l.b16 %v4366
        %v4422 = vpack.c.b16 %v4421, %v4420
        %v4424 = vsel %vm337, %v4422, 0
        %4426 = vmatprep.subr.bf16.mxu0 0
        %4427 = vmatpush1.bf16.msra.mxu0 %v3550
        %4428 = vmatprep.subr.bf16.mxu0 0
        %4429 = vmatpush1.bf16.msra.mxu0 0
        %4430 = vmatprep.subr.bf16.mxu0 0
        %4431 = vmatpush1.bf16.msra.mxu0 0
        %4432 = vmatprep.subr.bf16.mxu0 0
        %4433 = vmatpush1.bf16.msra.mxu0 0
        %4434 = vmatprep.subr.bf16.mxu0 0
        %4435 = vmatpush1.bf16.msra.mxu0 0
        %4436 = vmatprep.subr.bf16.mxu0 0
        %4437 = vmatpush1.bf16.msra.mxu0 0
        %4438 = vmatprep.subr.bf16.mxu0 0
        %4439 = vmatpush1.bf16.msra.mxu0 0
        %4440 = vmatprep.subr.bf16.mxu0 0
        %4441 = vmatpush1.bf16.msra.mxu0 0
        %4442 = vmatprep.subr.bf16.mxu0 0
        %4443 = vmatpush1.bf16.msra.mxu0 0
        %4444 = vmatprep.subr.bf16.mxu0 0
        %4445 = vmatpush1.bf16.msra.mxu0 0
        %4446 = vmatprep.subr.bf16.mxu0 0
        %4447 = vmatpush1.bf16.msra.mxu0 0
        %4448 = vmatprep.subr.bf16.mxu0 0
        %4449 = vmatpush1.bf16.msra.mxu0 0
        %4450 = vmatprep.subr.bf16.mxu0 0
        %4451 = vmatpush1.bf16.msra.mxu0 0
        %4452 = vmatprep.subr.bf16.mxu0 0
        %4453 = vmatpush1.bf16.msra.mxu0 0
        %4454 = vmatprep.subr.bf16.mxu0 0
        %4455 = vmatpush1.bf16.msra.mxu0 0
        %4456 = vmatprep.subr.bf16.mxu0 0
        %4457 = vmatpush1.bf16.msra.mxu0 0
        %4458 = vmatprep.mubr.bf16.mxu0 0
        %4459 = vmatmul.mubr.bf16.gmra.mrb[0].mxu0 %v4424
        %v4460 = vpop.f32.mrb[0].mxu0
        %v4461 = vadd.f32 %v4412, %v4460
        %v4462 = vpop.f32.mrb[0].mxu0
        %v4463 = vpop.f32.mrb[0].mxu0
        %v4464 = vadd.f32 %v4415, %v4463
        %v4465 = vpop.f32.mrb[0].mxu0
        %4466 = vdwg.mxu0
        %v4467 = vld [vmem:[%s438] sm:$0xf]
        %v4468 = vld [vmem:[%s438 + $0x4] sm:$0xf]
        %v4471 = vunpack.c.l.b16 %v4467
        %v4472 = vunpack.c.l.b16 %v4468
        %v4473 = vpack.c.b16 %v4472, %v4471
        %v4475 = vsel %vm337, %v4473, 0
        %4477 = vmatprep.subr.bf16.mxu0 0
        %4478 = vmatpush1.bf16.msra.mxu0 %v3669
        %4479 = vmatprep.subr.bf16.mxu0 0
        %4480 = vmatpush1.bf16.msra.mxu0 0
        %4481 = vmatprep.subr.bf16.mxu0 0
        %4482 = vmatpush1.bf16.msra.mxu0 0
        %4483 = vmatprep.subr.bf16.mxu0 0
        %4484 = vmatpush1.bf16.msra.mxu0 0
        %4485 = vmatprep.subr.bf16.mxu0 0
        %4486 = vmatpush1.bf16.msra.mxu0 0
        %4487 = vmatprep.subr.bf16.mxu0 0
        %4488 = vmatpush1.bf16.msra.mxu0 0
        %4489 = vmatprep.subr.bf16.mxu0 0
        %4490 = vmatpush1.bf16.msra.mxu0 0
        %4491 = vmatprep.subr.bf16.mxu0 0
        %4492 = vmatpush1.bf16.msra.mxu0 0
        %4493 = vmatprep.subr.bf16.mxu0 0
        %4494 = vmatpush1.bf16.msra.mxu0 0
        %4495 = vmatprep.subr.bf16.mxu0 0
        %4496 = vmatpush1.bf16.msra.mxu0 0
        %4497 = vmatprep.subr.bf16.mxu0 0
        %4498 = vmatpush1.bf16.msra.mxu0 0
        %4499 = vmatprep.subr.bf16.mxu0 0
        %4500 = vmatpush1.bf16.msra.mxu0 0
        %4501 = vmatprep.subr.bf16.mxu0 0
        %4502 = vmatpush1.bf16.msra.mxu0 0
        %4503 = vmatprep.subr.bf16.mxu0 0
        %4504 = vmatpush1.bf16.msra.mxu0 0
        %4505 = vmatprep.subr.bf16.mxu0 0
        %4506 = vmatpush1.bf16.msra.mxu0 0
        %4507 = vmatprep.subr.bf16.mxu0 0
        %4508 = vmatpush1.bf16.msra.mxu0 0
        %4509 = vmatprep.mubr.bf16.mxu0 0
        %4510 = vmatmul.mubr.bf16.gmra.mrb[0].mxu0 %v4475
        %v4511 = vpop.f32.mrb[0].mxu0
        %v4512 = vadd.f32 0.0, %v4511
        %v4513 = vpop.f32.mrb[0].mxu0
        %v4514 = vpop.f32.mrb[0].mxu0
        %v4515 = vadd.f32 0.0, %v4514
        %v4516 = vpop.f32.mrb[0].mxu0
        %4517 = vdwg.mxu0
        %v4518 = vadd.f32 %v4461, %v4512
        %v4519 = vadd.f32 %v4464, %v4515
        %v4520 = vld [vmem:[%s497] sm:$0xf]
        %v4521 = vld [vmem:[%s497 + $0x4] sm:$0xf]
        %v4524 = vunpack.c.l.b16 %v4520
        %v4525 = vunpack.c.l.b16 %v4521
        %v4526 = vpack.c.b16 %v4525, %v4524
        %v4528 = vsel %vm337, %v4526, 0
        %4530 = vmatprep.subr.bf16.mxu0 0
        %4531 = vmatpush1.bf16.msra.mxu0 %v4120
        %4532 = vmatprep.subr.bf16.mxu0 0
        %4533 = vmatpush1.bf16.msra.mxu0 0
        %4534 = vmatprep.subr.bf16.mxu0 0
        %4535 = vmatpush1.bf16.msra.mxu0 0
        %4536 = vmatprep.subr.bf16.mxu0 0
        %4537 = vmatpush1.bf16.msra.mxu0 0
        %4538 = vmatprep.subr.bf16.mxu0 0
        %4539 = vmatpush1.bf16.msra.mxu0 0
        %4540 = vmatprep.subr.bf16.mxu0 0
        %4541 = vmatpush1.bf16.msra.mxu0 0
        %4542 = vmatprep.subr.bf16.mxu0 0
        %4543 = vmatpush1.bf16.msra.mxu0 0
        %4544 = vmatprep.subr.bf16.mxu0 0
        %4545 = vmatpush1.bf16.msra.mxu0 0
        %4546 = vmatprep.subr.bf16.mxu0 0
        %4547 = vmatpush1.bf16.msra.mxu0 0
        %4548 = vmatprep.subr.bf16.mxu0 0
        %4549 = vmatpush1.bf16.msra.mxu0 0
        %4550 = vmatprep.subr.bf16.mxu0 0
        %4551 = vmatpush1.bf16.msra.mxu0 0
        %4552 = vmatprep.subr.bf16.mxu0 0
        %4553 = vmatpush1.bf16.msra.mxu0 0
        %4554 = vmatprep.subr.bf16.mxu0 0
        %4555 = vmatpush1.bf16.msra.mxu0 0
        %4556 = vmatprep.subr.bf16.mxu0 0
        %4557 = vmatpush1.bf16.msra.mxu0 0
        %4558 = vmatprep.subr.bf16.mxu0 0
        %4559 = vmatpush1.bf16.msra.mxu0 0
        %4560 = vmatprep.subr.bf16.mxu0 0
        %4561 = vmatpush1.bf16.msra.mxu0 0
        %4562 = vmatprep.mubr.bf16.mxu0 0
        %4563 = vmatmul.mubr.bf16.gmra.mrb[0].mxu0 %v4528
        %v4564 = vpop.f32.mrb[0].mxu0
        %v4565 = vadd.f32 0.0, %v4564
        %v4566 = vpop.f32.mrb[0].mxu0
        %v4567 = vpop.f32.mrb[0].mxu0
        %v4568 = vadd.f32 0.0, %v4567
        %v4569 = vpop.f32.mrb[0].mxu0
        %4570 = vdwg.mxu0
        %v4571 = vadd.f32 %v4518, %v4565
        %v4572 = vadd.f32 %v4519, %v4568
        %v4573 = vld [vmem:[%s554] sm:$0xf]
        %v4574 = vld [vmem:[%s554 + $0x4] sm:$0xf]
        %v4577 = vunpack.c.l.b16 %v4573
        %v4578 = vunpack.c.l.b16 %v4574
        %v4579 = vpack.c.b16 %v4578, %v4577
        %v4581 = vsel %vm337, %v4579, 0
        %4583 = vmatprep.subr.bf16.mxu0 0
        %4584 = vmatpush1.bf16.msra.mxu0 %v4181
        %4585 = vmatprep.subr.bf16.mxu0 0
        %4586 = vmatpush1.bf16.msra.mxu0 0
        %4587 = vmatprep.subr.bf16.mxu0 0
        %4588 = vmatpush1.bf16.msra.mxu0 0
        %4589 = vmatprep.subr.bf16.mxu0 0
        %4590 = vmatpush1.bf16.msra.mxu0 0
        %4591 = vmatprep.subr.bf16.mxu0 0
        %4592 = vmatpush1.bf16.msra.mxu0 0
        %4593 = vmatprep.subr.bf16.mxu0 0
        %4594 = vmatpush1.bf16.msra.mxu0 0
        %4595 = vmatprep.subr.bf16.mxu0 0
        %4596 = vmatpush1.bf16.msra.mxu0 0
        %4597 = vmatprep.subr.bf16.mxu0 0
        %4598 = vmatpush1.bf16.msra.mxu0 0
        %4599 = vmatprep.subr.bf16.mxu0 0
        %4600 = vmatpush1.bf16.msra.mxu0 0
        %4601 = vmatprep.subr.bf16.mxu0 0
        %4602 = vmatpush1.bf16.msra.mxu0 0
        %4603 = vmatprep.subr.bf16.mxu0 0
        %4604 = vmatpush1.bf16.msra.mxu0 0
        %4605 = vmatprep.subr.bf16.mxu0 0
        %4606 = vmatpush1.bf16.msra.mxu0 0
        %4607 = vmatprep.subr.bf16.mxu0 0
        %4608 = vmatpush1.bf16.msra.mxu0 0
        %4609 = vmatprep.subr.bf16.mxu0 0
        %4610 = vmatpush1.bf16.msra.mxu0 0
        %4611 = vmatprep.subr.bf16.mxu0 0
        %4612 = vmatpush1.bf16.msra.mxu0 0
        %4613 = vmatprep.subr.bf16.mxu0 0
        %4614 = vmatpush1.bf16.msra.mxu0 0
        %4615 = vmatprep.mubr.bf16.mxu0 0
        %4616 = vmatmul.mubr.bf16.gmra.mrb[0].mxu0 %v4581
        %v4617 = vpop.f32.mrb[0].mxu0
        %v4618 = vadd.f32 0.0, %v4617
        %v4619 = vpop.f32.mrb[0].mxu0
        %v4620 = vpop.f32.mrb[0].mxu0
        %v4621 = vadd.f32 0.0, %v4620
        %v4622 = vpop.f32.mrb[0].mxu0
        %4623 = vdwg.mxu0
        %v4624 = vadd.f32 %v4571, %v4618
        %v4625 = vadd.f32 %v4572, %v4621
        %v4626 = vld [vmem:[%s616] sm:$0xf]
        %v4627 = vld [vmem:[%s616 + $0x4] sm:$0xf]
        %v4630 = vunpack.c.l.b16 %v4626
        %v4631 = vunpack.c.l.b16 %v4627
        %v4632 = vpack.c.b16 %v4631, %v4630
        %v4634 = vsel %vm337, %v4632, 0
        %4636 = vmatprep.subr.bf16.mxu0 0
        %4637 = vmatpush1.bf16.msra.mxu0 %v4239
        %4638 = vmatprep.subr.bf16.mxu0 0
        %4639 = vmatpush1.bf16.msra.mxu0 0
        %4640 = vmatprep.subr.bf16.mxu0 0
        %4641 = vmatpush1.bf16.msra.mxu0 0
        %4642 = vmatprep.subr.bf16.mxu0 0
        %4643 = vmatpush1.bf16.msra.mxu0 0
        %4644 = vmatprep.subr.bf16.mxu0 0
        %4645 = vmatpush1.bf16.msra.mxu0 0
        %4646 = vmatprep.subr.bf16.mxu0 0
        %4647 = vmatpush1.bf16.msra.mxu0 0
        %4648 = vmatprep.subr.bf16.mxu0 0
        %4649 = vmatpush1.bf16.msra.mxu0 0
        %4650 = vmatprep.subr.bf16.mxu0 0
        %4651 = vmatpush1.bf16.msra.mxu0 0
        %4652 = vmatprep.subr.bf16.mxu0 0
        %4653 = vmatpush1.bf16.msra.mxu0 0
        %4654 = vmatprep.subr.bf16.mxu0 0
        %4655 = vmatpush1.bf16.msra.mxu0 0
        %4656 = vmatprep.subr.bf16.mxu0 0
        %4657 = vmatpush1.bf16.msra.mxu0 0
        %4658 = vmatprep.subr.bf16.mxu0 0
        %4659 = vmatpush1.bf16.msra.mxu0 0
        %4660 = vmatprep.subr.bf16.mxu0 0
        %4661 = vmatpush1.bf16.msra.mxu0 0
        %4662 = vmatprep.subr.bf16.mxu0 0
        %4663 = vmatpush1.bf16.msra.mxu0 0
        %4664 = vmatprep.subr.bf16.mxu0 0
        %4665 = vmatpush1.bf16.msra.mxu0 0
        %4666 = vmatprep.subr.bf16.mxu0 0
        %4667 = vmatpush1.bf16.msra.mxu0 0
        %4668 = vmatprep.mubr.bf16.mxu0 0
        %4669 = vmatmul.mubr.bf16.gmra.mrb[0].mxu0 %v4634
        %v4670 = vpop.f32.mrb[0].mxu0
        %v4671 = vadd.f32 0.0, %v4670
        %v4672 = vpop.f32.mrb[0].mxu0
        %v4673 = vpop.f32.mrb[0].mxu0
        %v4674 = vadd.f32 0.0, %v4673
        %v4675 = vpop.f32.mrb[0].mxu0
        %4676 = vdwg.mxu0
        %v4677 = vadd.f32 %v4624, %v4671
        %v4678 = vadd.f32 %v4625, %v4674
        %v4679 = vld [vmem:[%s675] sm:$0xf]
        %v4680 = vld [vmem:[%s675 + $0x4] sm:$0xf]
        %v4683 = vunpack.c.l.b16 %v4679
        %v4684 = vunpack.c.l.b16 %v4680
        %v4685 = vpack.c.b16 %v4684, %v4683
        %v4687 = vsel %vm337, %v4685, 0
        %v4690 = vsel %vm341, %v319, 0
        %4692 = vmatprep.subr.bf16.mxu0 0
        %4693 = vmatpush1.bf16.msra.mxu0 %v4690
        %4694 = vmatprep.subr.bf16.mxu0 0
        %4695 = vmatpush1.bf16.msra.mxu0 0
        %4696 = vmatprep.subr.bf16.mxu0 0
        %4697 = vmatpush1.bf16.msra.mxu0 0
        %4698 = vmatprep.subr.bf16.mxu0 0
        %4699 = vmatpush1.bf16.msra.mxu0 0
        %4700 = vmatprep.subr.bf16.mxu0 0
        %4701 = vmatpush1.bf16.msra.mxu0 0
        %4702 = vmatprep.subr.bf16.mxu0 0
        %4703 = vmatpush1.bf16.msra.mxu0 0
        %4704 = vmatprep.subr.bf16.mxu0 0
        %4705 = vmatpush1.bf16.msra.mxu0 0
        %4706 = vmatprep.subr.bf16.mxu0 0
        %4707 = vmatpush1.bf16.msra.mxu0 0
        %4708 = vmatprep.subr.bf16.mxu0 0
        %4709 = vmatpush1.bf16.msra.mxu0 0
        %4710 = vmatprep.subr.bf16.mxu0 0
        %4711 = vmatpush1.bf16.msra.mxu0 0
        %4712 = vmatprep.subr.bf16.mxu0 0
        %4713 = vmatpush1.bf16.msra.mxu0 0
        %4714 = vmatprep.subr.bf16.mxu0 0
        %4715 = vmatpush1.bf16.msra.mxu0 0
        %4716 = vmatprep.subr.bf16.mxu0 0
        %4717 = vmatpush1.bf16.msra.mxu0 0
        %4718 = vmatprep.subr.bf16.mxu0 0
        %4719 = vmatpush1.bf16.msra.mxu0 0
        %4720 = vmatprep.subr.bf16.mxu0 0
        %4721 = vmatpush1.bf16.msra.mxu0 0
        %4722 = vmatprep.subr.bf16.mxu0 0
        %4723 = vmatpush1.bf16.msra.mxu0 0
        %4724 = vmatprep.mubr.bf16.mxu0 0
        %4725 = vmatmul.mubr.bf16.gmra.mrb[0].mxu0 %v4687
        %v4726 = vpop.f32.mrb[0].mxu0
        %v4727 = vadd.f32 0.0, %v4726
        %v4728 = vpop.f32.mrb[0].mxu0
        %v4729 = vpop.f32.mrb[0].mxu0
        %v4730 = vadd.f32 0.0, %v4729
        %v4731 = vpop.f32.mrb[0].mxu0
        %4732 = vdwg.mxu0
        %v4733 = vadd.f32 %v4677, %v4727
        %v4734 = vadd.f32 %v4678, %v4730
        %v4735 = vld [vmem:[%s732] sm:$0xf]
        %v4736 = vld [vmem:[%s732 + $0x4] sm:$0xf]
        %v4739 = vunpack.c.l.b16 %v4735
        %v4740 = vunpack.c.l.b16 %v4736
        %v4741 = vpack.c.b16 %v4740, %v4739
        %v4743 = vunpack.c.l.b16 %v319
        %v4744 = vpack.c.b16 %v4743, %v4743
        %4745 = vrot.lane.b32.xlu0 %v4744, 127
        %v4746 = vpop.permute.xlu0 %4745
        %v4748 = vsel %vm337, %v4741, 0
        %v4751 = vsel %vm341, %v4746, 0
        %4753 = vmatprep.subr.bf16.mxu0 0
        %4754 = vmatpush1.bf16.msra.mxu0 %v4751
        %4755 = vmatprep.subr.bf16.mxu0 0
        %4756 = vmatpush1.bf16.msra.mxu0 0
        %4757 = vmatprep.subr.bf16.mxu0 0
        %4758 = vmatpush1.bf16.msra.mxu0 0
        %4759 = vmatprep.subr.bf16.mxu0 0
        %4760 = vmatpush1.bf16.msra.mxu0 0
        %4761 = vmatprep.subr.bf16.mxu0 0
        %4762 = vmatpush1.bf16.msra.mxu0 0
        %4763 = vmatprep.subr.bf16.mxu0 0
        %4764 = vmatpush1.bf16.msra.mxu0 0
        %4765 = vmatprep.subr.bf16.mxu0 0
        %4766 = vmatpush1.bf16.msra.mxu0 0
        %4767 = vmatprep.subr.bf16.mxu0 0
        %4768 = vmatpush1.bf16.msra.mxu0 0
        %4769 = vmatprep.subr.bf16.mxu0 0
        %4770 = vmatpush1.bf16.msra.mxu0 0
        %4771 = vmatprep.subr.bf16.mxu0 0
        %4772 = vmatpush1.bf16.msra.mxu0 0
        %4773 = vmatprep.subr.bf16.mxu0 0
        %4774 = vmatpush1.bf16.msra.mxu0 0
        %4775 = vmatprep.subr.bf16.mxu0 0
        %4776 = vmatpush1.bf16.msra.mxu0 0
        %4777 = vmatprep.subr.bf16.mxu0 0
        %4778 = vmatpush1.bf16.msra.mxu0 0
        %4779 = vmatprep.subr.bf16.mxu0 0
        %4780 = vmatpush1.bf16.msra.mxu0 0
        %4781 = vmatprep.subr.bf16.mxu0 0
        %4782 = vmatpush1.bf16.msra.mxu0 0
        %4783 = vmatprep.subr.bf16.mxu0 0
        %4784 = vmatpush1.bf16.msra.mxu0 0
        %4785 = vmatprep.mubr.bf16.mxu0 0
        %4786 = vmatmul.mubr.bf16.gmra.mrb[0].mxu0 %v4748
        %v4787 = vpop.f32.mrb[0].mxu0
        %v4788 = vadd.f32 0.0, %v4787
        %v4789 = vpop.f32.mrb[0].mxu0
        %v4790 = vpop.f32.mrb[0].mxu0
        %v4791 = vadd.f32 0.0, %v4790
        %v4792 = vpop.f32.mrb[0].mxu0
        %4793 = vdwg.mxu0
        %v4794 = vadd.f32 %v4733, %v4788
        %v4795 = vadd.f32 %v4734, %v4791
        %v4796 = vld [vmem:[%s794] sm:$0xf]
        %v4797 = vld [vmem:[%s794 + $0x4] sm:$0xf]
        %v4800 = vunpack.c.l.b16 %v4796
        %v4801 = vunpack.c.l.b16 %v4797
        %v4802 = vpack.c.b16 %v4801, %v4800
        %4803 = vrot.lane.b32.xlu0 %v4744, 126
        %v4804 = vpop.permute.xlu0 %4803
        %v4806 = vsel %vm337, %v4802, 0
        %v4809 = vsel %vm341, %v4804, 0
        %4811 = vmatprep.subr.bf16.mxu0 0
        %4812 = vmatpush1.bf16.msra.mxu0 %v4809
        %4813 = vmatprep.subr.bf16.mxu0 0
        %4814 = vmatpush1.bf16.msra.mxu0 0
        %4815 = vmatprep.subr.bf16.mxu0 0
        %4816 = vmatpush1.bf16.msra.mxu0 0
        %4817 = vmatprep.subr.bf16.mxu0 0
        %4818 = vmatpush1.bf16.msra.mxu0 0
        %4819 = vmatprep.subr.bf16.mxu0 0
        %4820 = vmatpush1.bf16.msra.mxu0 0
        %4821 = vmatprep.subr.bf16.mxu0 0
        %4822 = vmatpush1.bf16.msra.mxu0 0
        %4823 = vmatprep.subr.bf16.mxu0 0
        %4824 = vmatpush1.bf16.msra.mxu0 0
        %4825 = vmatprep.subr.bf16.mxu0 0
        %4826 = vmatpush1.bf16.msra.mxu0 0
        %4827 = vmatprep.subr.bf16.mxu0 0
        %4828 = vmatpush1.bf16.msra.mxu0 0
        %4829 = vmatprep.subr.bf16.mxu0 0
        %4830 = vmatpush1.bf16.msra.mxu0 0
        %4831 = vmatprep.subr.bf16.mxu0 0
        %4832 = vmatpush1.bf16.msra.mxu0 0
        %4833 = vmatprep.subr.bf16.mxu0 0
        %4834 = vmatpush1.bf16.msra.mxu0 0
        %4835 = vmatprep.subr.bf16.mxu0 0
        %4836 = vmatpush1.bf16.msra.mxu0 0
        %4837 = vmatprep.subr.bf16.mxu0 0
        %4838 = vmatpush1.bf16.msra.mxu0 0
        %4839 = vmatprep.subr.bf16.mxu0 0
        %4840 = vmatpush1.bf16.msra.mxu0 0
        %4841 = vmatprep.subr.bf16.mxu0 0
        %4842 = vmatpush1.bf16.msra.mxu0 0
        %4843 = vmatprep.mubr.bf16.mxu0 0
        %4844 = vmatmul.mubr.bf16.gmra.mrb[0].mxu0 %v4806
        %v4845 = vpop.f32.mrb[0].mxu0
        %v4846 = vadd.f32 0.0, %v4845
        %v4847 = vpop.f32.mrb[0].mxu0
        %v4848 = vpop.f32.mrb[0].mxu0
        %v4849 = vadd.f32 0.0, %v4848
        %v4850 = vpop.f32.mrb[0].mxu0
        %4851 = vdwg.mxu0
        %v4852 = vadd.f32 %v4794, %v4846
        %v4853 = vadd.f32 %v4795, %v4849
        %v4854 = vadd.f32 %v4852, %v856
        %v4855 = vadd.f32 %v4853, %v861
        %vm4856 = vcmp.gt.f32.partialorder %v4854, 0.0
        %v4857 = vmul.f32 %v4854, 0.2
        %v4858 = vsel %vm4856, %v4854, %v4857
        %v4859 = vxor.u32 %v4855, 2147483648
        %v4860 = vmul.f32 %v4859, 1.442695
        %v4861 = vpow.pop %v4860
        %v4862 = vadd.f32 %v4861, 1.0
        %v4863 = vrcp.pop %v4862
        %v4864 = vmul.f32 1.0, %v4863
        %v4865 = vmul.f32 %v4858, %v4864
        %v4867 = vcombine.high %v4865, %v4865
        %v4869 = vunpack.c.l.s4 1966171168
        %v4870 = vunpack.c.0.s8 %v4869
        %v4871 = vlaneseq
        %v4872 = vshrl.u32 %v4871, 7
        %v4873 = vsub.s32 %v4870, %v4872
        %v4874 = vrot.slane %v4865, %v4873
        %v4876 = vunpack.c.l.s4 1966171168
        %v4877 = vunpack.c.0.s8 %v4876
        %v4878 = vlaneseq
        %v4879 = vshrl.u32 %v4878, 7
        %v4880 = vsub.s32 %v4877, %v4879
        %v4881 = vrot.slane %v4867, %v4880
        %v4882 = vcombine.high %v4874, %v4874
        %v4883 = vcombine.high %v4881, %v4881
        %v4885 = vunpack.c.l.s4 1966171168
        %v4886 = vunpack.c.0.s8 %v4885
        %v4887 = vlaneseq
        %v4888 = vshrl.u32 %v4887, 7
        %v4889 = vsub.s32 %v4886, %v4888
        %v4890 = vrot.slane %v4874, %v4889
        %v4892 = vunpack.c.l.s4 1966171168
        %v4893 = vunpack.c.0.s8 %v4892
        %v4894 = vlaneseq
        %v4895 = vshrl.u32 %v4894, 7
        %v4896 = vsub.s32 %v4893, %v4895
        %v4897 = vrot.slane %v4881, %v4896
        %v4899 = vunpack.c.l.s4 1966171168
        %v4900 = vunpack.c.0.s8 %v4899
        %v4901 = vlaneseq
        %v4902 = vshrl.u32 %v4901, 7
        %v4903 = vsub.s32 %v4900, %v4902
        %v4904 = vrot.slane %v4882, %v4903
        %v4906 = vunpack.c.l.s4 1966171168
        %v4907 = vunpack.c.0.s8 %v4906
        %v4908 = vlaneseq
        %v4909 = vshrl.u32 %v4908, 7
        %v4910 = vsub.s32 %v4907, %v4909
        %v4911 = vrot.slane %v4883, %v4910
        %v4912 = vcombine.high %v4890, %v4890
        %v4913 = vcombine.high %v4897, %v4897
        %v4914 = vcombine.high %v4904, %v4904
        %v4915 = vcombine.high %v4911, %v4911
        %4924 = vst.msk [vmem:[%s264 + $0x7] sm:$0x1] %vm933, %v4890
        %4925 = vst.msk [vmem:[%s264 + $0xf] sm:$0x1] %vm933, %v4904
        %4926 = vst.msk [vmem:[%s264 + $0x17] sm:$0x1] %vm933, %v4912
        %4927 = vst.msk [vmem:[%s264 + $0x1f] sm:$0x1] %vm933, %v4914
        %4928 = vst.msk [vmem:[%s264 + $0x27] sm:$0x1] %vm933, %v4897
        %4929 = vst.msk [vmem:[%s264 + $0x2f] sm:$0x1] %vm933, %v4911
        %4930 = vst.msk [vmem:[%s264 + $0x37] sm:$0x1] %vm933, %v4913
        %4931 = vst.msk [vmem:[%s264 + $0x3f] sm:$0x1] %vm933, %v4915
        %v4932 = vadd.f32 %v4362, %v4865
        %v4933 = vmul.f32 %v4865, %v4865
        %v4934 = vadd.f32 %v4364, %v4933
        %vm4935 = vcmask 130048
        %4936 = vst.msk [vmem:[%s271] sm:$0xff] %vm4935, %v4932
        %4937 = vst.msk [vmem:[%s278] sm:$0xff] %vm4935, %v4934
        %s4938 = sand.u32 %s116, 1
        %s4939 = scalar_lea.sflag [#allocation4], %s4938
        %s4940 = sand.u32 %s116, 1
        %s4941 = smul.addr %s4940, 64
        %s4942 = scalar_lea.vmem [#allocation5], %s4941
        %s4943 = sand.u32 %s26, 1
        %s4944 = scalar_lea.sflag [#allocation7], %s4943
        %s4945 = sand.u32 %s144, 1
        %s4946 = smul.addr %s4945, 8
        %s4947 = scalar_lea.vmem [#allocation6], %s4946
        %s4948 = sand.u32 %s26, 1
        %s4949 = scalar_lea.sflag [#allocation7], %s4948
        %s4950 = sand.u32 %s172, 1
        %s4951 = smul.addr %s4950, 8
        %s4952 = scalar_lea.vmem [#allocation8], %s4951
        // Predicated region
        $region37: #{tpu_custom_call.1} parent=31 // pred_check
          %p4953 = pneg %p126
        $region38: #{tpu_custom_call.1} parent=31 // pred_check_branch
          %4955 = sbr.rel (%p4953) target = $region40
        $region39: #{tpu_custom_call.1} parent=31 // pred_region
          %s4957 = ssub.s32 1024, 1024
          %4958 = vsyncadd %s4939, %s4957
          %s4959 = smul.addr %s30, 16
          %s4960 = sadd.s32 %s31, %s4959
          %s4961 = smul.addr %s4960, 128
          %s4962 = scalar_lea.hbm %s3, %s4961
          %s4963 = sshll.u32 %s4942, 4
          %s4964 = int_to_ptr.vmem [resolvable:$true] %s4963
          %4969 = dma.vmem_to_hbm [thread:$0]  %s4964, 1024, %s4962, %s4939, 128, 256, 8
        $region40: #{tpu_custom_call.1} parent=31 // pred_fallthru
          _
        // Predicated region
        $region41: #{tpu_custom_call.1} parent=31 // pred_check
          %p4970 = pneg %p154
        $region42: #{tpu_custom_call.1} parent=31 // pred_check_branch
          %4972 = sbr.rel (%p4970) target = $region44
        $region43: #{tpu_custom_call.1} parent=31 // pred_region
          %s4974 = ssub.s32 128, 128
          %4975 = vsyncadd %s4944, %s4974
          %s4976 = smul.addr %s30, 2
          %s4977 = sadd.s32 %s31, %s4976
          %s4978 = smul.addr %s4977, 128
          %s4979 = scalar_lea.hbm %s4, %s4978
          %s4981 = sshll.u32 %s4947, 4
          %s4982 = int_to_ptr.vmem [resolvable:$true] %s4981
          %4984 = dma.vmem_to_hbm [thread:$0]  %s4982, 128, %s4979, %s4944
        $region44: #{tpu_custom_call.1} parent=31 // pred_fallthru
          _
        // Predicated region
        $region45: #{tpu_custom_call.1} parent=31 // pred_check
          %p4985 = pneg %p182
        $region46: #{tpu_custom_call.1} parent=31 // pred_check_branch
          %4987 = sbr.rel (%p4985) target = $region48
        $region47: #{tpu_custom_call.1} parent=31 // pred_region
          %s4989 = ssub.s32 128, 128
          %4990 = vsyncadd %s4949, %s4989
          %s4991 = smul.addr %s30, 2
          %s4992 = sadd.s32 %s31, %s4991
          %s4993 = smul.addr %s4992, 128
          %s4994 = scalar_lea.hbm %s5, %s4993
          %s4996 = sshll.u32 %s4952, 4
          %s4997 = int_to_ptr.vmem [resolvable:$true] %s4996
          %4999 = dma.vmem_to_hbm [thread:$0]  %s4997, 128, %s4994, %s4949
        $region48: #{tpu_custom_call.1} parent=31 // pred_fallthru
          _
      $region32: #{tpu_custom_call.1} parent=5 // pred_fallthru
        _
      %p5000 = scmp.le.s32.totalorder 2, %s21
      // Predicated region
      $region49: #{tpu_custom_call.1} parent=5 // pred_check
        %p5001 = pneg %p5000
      $region50: #{tpu_custom_call.1} parent=5 // pred_check_branch
        %5003 = sbr.rel (%p5001) target = $region52
      $region51: #{tpu_custom_call.1} parent=5 // pred_region
        %s5004 = ssub.s32 %s21, 2
        // Predicated region
        $region53: #{tpu_custom_call.1} parent=51 // pred_check
          %p5005 = pneg %p132
        $region54: #{tpu_custom_call.1} parent=51 // pred_check_branch
          %5007 = sbr.rel (%p5005) target = $region56
        $region55: #{tpu_custom_call.1} parent=51 // pred_region
          %s5008 = sand.u32 %s117, 1
          %s5009 = scalar_lea.sflag [#allocation4], %s5008
          %s5010 = sand.u32 %s117, 1
          %s5011 = smul.addr %s5010, 64
          %s5012 = scalar_lea.vmem [#allocation5], %s5011
          %5013 = dma.done %s5009, 1024
        $region56: #{tpu_custom_call.1} parent=51 // pred_fallthru
          _
        // Predicated region
        $region57: #{tpu_custom_call.1} parent=51 // pred_check
          %p5014 = pneg %p160
        $region58: #{tpu_custom_call.1} parent=51 // pred_check_branch
          %5016 = sbr.rel (%p5014) target = $region60
        $region59: #{tpu_custom_call.1} parent=51 // pred_region
          %s5017 = sand.u32 %s27, 1
          %s5018 = scalar_lea.sflag [#allocation7], %s5017
          %s5019 = sand.u32 %s145, 1
          %s5020 = smul.addr %s5019, 8
          %s5021 = scalar_lea.vmem [#allocation6], %s5020
          %5022 = dma.done %s5018, 128
        $region60: #{tpu_custom_call.1} parent=51 // pred_fallthru
          _
        // Predicated region
        $region61: #{tpu_custom_call.1} parent=51 // pred_check
          %p5023 = pneg %p188
        $region62: #{tpu_custom_call.1} parent=51 // pred_check_branch
          %5025 = sbr.rel (%p5023) target = $region64
        $region63: #{tpu_custom_call.1} parent=51 // pred_region
          %s5026 = sand.u32 %s27, 1
          %s5027 = scalar_lea.sflag [#allocation7], %s5026
          %s5028 = sand.u32 %s173, 1
          %s5029 = smul.addr %s5028, 8
          %s5030 = scalar_lea.vmem [#allocation8], %s5029
          %5031 = dma.done %s5027, 128
        $region64: #{tpu_custom_call.1} parent=51 // pred_fallthru
          _
      $region52: #{tpu_custom_call.1} parent=5 // pred_fallthru
        _
    $region6: #{tpu_custom_call.1} parent=1 // loop_footer
      %s25 = sadd.s32 1, %s21
    $region7: #{tpu_custom_call.1} parent=1 // loop_footer_branch
      %20 = sbr.rel target = $region3
    $region8: #{tpu_custom_call.1} parent=1 // loop_exit
      _
    %5032 = vsyncpa [#allocation3], 1
    %s5033 = scalar_lea.sflag [#allocation3], 1
    %5034 = vsyncpa %s5033, 1
    %5035 = vsyncpa [#allocation4], 1
    %s5036 = scalar_lea.sflag [#allocation4], 1
    %5037 = vsyncpa %s5036, 1
    %5038 = vsyncpa [#allocation7], 1
    %s5039 = scalar_lea.sflag [#allocation7], 1
    %5040 = vsyncpa %s5039, 1

</llo_original>
